<compile_context>
chip_gen: v7x
topology: tpu7x:2x2x1
jax: 0.10.0
libtpu: 0.0.40
codegen_flags: <defaults>
</compile_context>

<pallas_src>
import math
from functools import lru_cache, partial

import jax
import jax.numpy as jnp
from jax import lax
from jax.experimental import pallas as pl
from jax.experimental.pallas import tpu as pltpu


def _round_up(x, m):
    return ((x + m - 1) // m) * m


@lru_cache(maxsize=None)
def _vmem_limit_bytes():
    # Per-generation VMEM budget: ~75% of physical capacity, capped at 100 MiB
    # (v5e/v6e: 128 MiB -> 96 MiB; v7x: 64 MiB -> 48 MiB of headroomed scratch).
    try:
        cap = int(pltpu.get_tpu_info().vmem_capacity_bytes)
        return min(cap * 3 // 4, 100 * 1024 * 1024)
    except Exception:
        return 48 * 1024 * 1024


# ----------------------------------------------------------------------------
# Kernel 1: fused pointwise (1x1) conv
#   y = act((gate * x) @ W * bn_scale + bn_bias) [+ residual]
# Single K step (K = Cin always fits VMEM for MBConv shapes), so there is no
# accumulator scratch and no reduction grid axis.
# ----------------------------------------------------------------------------
def _make_pw_kernel(act, has_gate, has_res):
    def kernel(*refs):
        it = iter(refs)
        x_ref = next(it)
        w_ref = next(it)
        s_ref = next(it)
        b_ref = next(it)
        g_ref = next(it) if has_gate else None
        r_ref = next(it) if has_res else None
        o_ref = next(it)

        a = x_ref[0]                              # (tm, K) bf16
        if has_gate:
            a = a * g_ref[0]                      # per-(batch, channel) SE gate
        y = jnp.dot(a, w_ref[...], preferred_element_type=jnp.float32)
        y = y * s_ref[...] + b_ref[...]           # folded BN (f32)
        if act == "swish":
            y = y * jax.nn.sigmoid(y)
        if has_res:
            y = y + r_ref[0]                      # identity skip (f32)
        o_ref[0] = y.astype(o_ref.dtype)

    return kernel


@lru_cache(maxsize=None)
def _pw_call(NB, HWp, K, Cout, tm, act, has_gate, has_res, out_dtype):
    in_specs = [
        pl.BlockSpec((1, tm, K), lambda b, i: (b, i, 0)),
        pl.BlockSpec((K, Cout), lambda b, i: (0, 0)),
        pl.BlockSpec((1, Cout), lambda b, i: (0, 0)),
        pl.BlockSpec((1, Cout), lambda b, i: (0, 0)),
    ]
    if has_gate:
        in_specs.append(pl.BlockSpec((1, 1, K), lambda b, i: (b, 0, 0)))
    if has_res:
        in_specs.append(pl.BlockSpec((1, tm, Cout), lambda b, i: (b, i, 0)))
    return pl.pallas_call(
        _make_pw_kernel(act, has_gate, has_res),
        out_shape=jax.ShapeDtypeStruct((NB, HWp, Cout), out_dtype),
        grid=(NB, HWp // tm),
        in_specs=in_specs,
        out_specs=pl.BlockSpec((1, tm, Cout), lambda b, i: (b, i, 0)),
        compiler_params=pltpu.CompilerParams(
            dimension_semantics=("parallel", "parallel"),
            vmem_limit_bytes=_vmem_limit_bytes()),
    )


def conv1x1_bn_act(x, w, scale, bias, *, act="none", gate=None, residual=None,
                   out_dtype=jnp.bfloat16):
    """x: (N, HW, Cin) -> (N, HW, Cout).  bf16 MXU operands, f32 epilogue."""
    N, HW, K = x.shape
    Cout = w.shape[1]
    out_bytes = jnp.dtype(out_dtype).itemsize
    # ~4 MiB per double-buffered operand set -> large M tiles.
    per_row = 2 * (K * 2) + 2 * (Cout * out_bytes)
    if residual is not None:
        per_row += 2 * Cout * 4
    tm = max(8, min(1024, (4 * 1024 * 1024) // max(per_row, 1) // 8 * 8))
    tm = min(tm, _round_up(HW, 8))
    HWp = _round_up(HW, tm)

    xb = x.astype(jnp.bfloat16)
    if HWp != HW:
        xb = jnp.pad(xb, ((0, 0), (0, HWp - HW), (0, 0)))
    args = [xb,
            w.astype(jnp.bfloat16),
            scale.reshape(1, Cout).astype(jnp.float32),
            bias.reshape(1, Cout).astype(jnp.float32)]
    if gate is not None:
        args.append(gate.reshape(N, 1, K).astype(jnp.bfloat16))
    if residual is not None:
        r = residual.astype(jnp.float32)
        if HWp != HW:
            r = jnp.pad(r, ((0, 0), (0, HWp - HW), (0, 0)))
        args.append(r)
    out = _pw_call(N, HWp, K, Cout, tm, act, gate is not None,
                   residual is not None, jnp.dtype(out_dtype))(*args)
    return out[:, :HW]


# ----------------------------------------------------------------------------
# Kernel 2: depthwise k x k conv (TF dynamic SAME, stride s) + folded BN +
# swish + fused global average pool (for the SE branch).
# The whole (phase-decomposed) spatial plane of one batch element sits in VMEM;
# the k*k taps are static contiguous slices of that block (no tap copies in
# HBM and no strided in-kernel loads).  The per-batch channel mean is emitted
# as a second output so the SE pooling never re-reads the activation from HBM.
# ----------------------------------------------------------------------------
def _make_dw_kernel(kh, kw, stride, OH, OW, Hq):
    inv_hw = 1.0 / float(OH * OW)

    def kernel(x_ref, w_ref, s_ref, b_ref, o_ref, p_ref):
        acc = None
        for di in range(kh):
            pr, ro = di % stride, di // stride
            for dj in range(kw):
                pc, co = dj % stride, dj // stride
                base = (pr * stride + pc) * Hq + ro
                tap = x_ref[0, base:base + OH, co:co + OW, :].astype(jnp.float32)
                term = tap * w_ref[di * kw + dj, :]
                acc = term if acc is None else acc + term
        y = acc * s_ref[...] + b_ref[...]
        y = y * jax.nn.sigmoid(y)                 # swish (f32)
        o_ref[0] = y.astype(o_ref.dtype)
        # Fused SE global-average-pool over the spatial plane (f32).
        p_ref[...] = (jnp.sum(y, axis=(0, 1)) * inv_hw).reshape(1, 1, -1)

    return kernel


@lru_cache(maxsize=None)
def _dw_call(NB, PHHq, Wq, C, OH, OW, kh, kw, stride, Hq):
    return pl.pallas_call(
        _make_dw_kernel(kh, kw, stride, OH, OW, Hq),
        out_shape=(jax.ShapeDtypeStruct((NB, OH, OW, C), jnp.bfloat16),
                   jax.ShapeDtypeStruct((NB, 1, C), jnp.float32)),
        grid=(NB,),
        in_specs=[
            pl.BlockSpec((1, PHHq, Wq, C), lambda b: (b, 0, 0, 0)),
            pl.BlockSpec((kh * kw, C), lambda b: (0, 0)),
            pl.BlockSpec((1, C), lambda b: (0, 0)),
            pl.BlockSpec((1, C), lambda b: (0, 0)),
        ],
        out_specs=[pl.BlockSpec((1, OH, OW, C), lambda b: (b, 0, 0, 0)),
                   pl.BlockSpec((1, 1, C), lambda b: (b, 0, 0))],
        compiler_params=pltpu.CompilerParams(
            dimension_semantics=("parallel",),
            vmem_limit_bytes=_vmem_limit_bytes()),
    )


def depthwise_conv_bn_swish(x, w, stride, scale, bias):
    """x: (N, H, W, C); w: (k, k, C).
    Returns ((N, OH, OW, C) bf16, (N, C) f32 global-average-pooled)."""
    N, H, W, C = x.shape
    kh, kw = w.shape[0], w.shape[1]
    s = stride
    OH, OW = -(-H // s), -(-W // s)
    ph = max((OH - 1) * s + kh - H, 0)
    pw = max((OW - 1) * s + kw - W, 0)
    E = (kh - 1) // s + 1                   # per-phase tap extent (kh == kw)
    Hq, Wq = OH + E - 1, OW + E - 1
    pad_t, pad_l = ph // 2, pw // 2
    xpad = jnp.pad(x.astype(jnp.bfloat16),
                   ((0, 0), (pad_t, s * Hq - H - pad_t),
                    (pad_l, s * Wq - W - pad_l), (0, 0)))
    if s == 1:
        xph = xpad.reshape(N, Hq, Wq, C)                      # 1 phase
        nph = 1
    else:
        # Phase decomposition: tap (di, dj) becomes a unit-stride read of
        # phase (di % s, dj % s) at offset (di // s, dj // s).
        xph = (xpad.reshape(N, Hq, s, Wq, s, C)
               .transpose(0, 2, 4, 1, 3, 5)
               .reshape(N, s * s * Hq, Wq, C))
        nph = s * s
    # TODO(synk): add a lane (channel) tiling path for very large H*W*C planes;
    # every MBConv depthwise plane in this block family fits VMEM comfortably.
    out, pooled = _dw_call(N, nph * Hq, Wq, C, OH, OW, kh, kw, s, Hq)(
        xph,
        w.reshape(kh * kw, C).astype(jnp.float32),
        scale.reshape(1, C).astype(jnp.float32),
        bias.reshape(1, C).astype(jnp.float32))
    return out, pooled.reshape(N, C)


# ----------------------------------------------------------------------------
# Kernel 3: fused Squeeze-and-Excitation gate
#   gate = sigmoid(swish(pooled @ W1 + b1) @ W2 + b2)
# ----------------------------------------------------------------------------
def _se_kernel(p_ref, w1_ref, b1_ref, w2_ref, b2_ref, o_ref):
    h = jnp.dot(p_ref[...], w1_ref[...],
                preferred_element_type=jnp.float32) + b1_ref[...]
    h = h * jax.nn.sigmoid(h)
    g = jnp.dot(h.astype(w2_ref.dtype), w2_ref[...],
                preferred_element_type=jnp.float32) + b2_ref[...]
    o_ref[...] = jax.nn.sigmoid(g).astype(o_ref.dtype)


@lru_cache(maxsize=None)
def _se_call(NB, C, Sq):
    return pl.pallas_call(
        _se_kernel,
        out_shape=jax.ShapeDtypeStruct((NB, C), jnp.bfloat16),
        grid=(1,),
        in_specs=[pl.BlockSpec((NB, C), lambda i: (0, 0)),
                  pl.BlockSpec((C, Sq), lambda i: (0, 0)),
                  pl.BlockSpec((1, Sq), lambda i: (0, 0)),
                  pl.BlockSpec((Sq, C), lambda i: (0, 0)),
                  pl.BlockSpec((1, C), lambda i: (0, 0))],
        out_specs=pl.BlockSpec((NB, C), lambda i: (0, 0)),
        compiler_params=pltpu.CompilerParams(
            dimension_semantics=("arbitrary",),
            vmem_limit_bytes=_vmem_limit_bytes()),
    )


def se_gate(pooled, w1, b1, w2, b2):
    N, C = pooled.shape
    Sq = w1.shape[1]
    Sqp = _round_up(Sq, 128)      # MXU-friendly lane width; zero padding is inert
    NB = _round_up(N, 8)
    p = jnp.pad(pooled.astype(jnp.bfloat16), ((0, NB - N), (0, 0)))
    w1p = jnp.pad(w1.astype(jnp.bfloat16), ((0, 0), (0, Sqp - Sq)))
    b1p = jnp.pad(b1.astype(jnp.float32), ((0, Sqp - Sq),)).reshape(1, Sqp)
    w2p = jnp.pad(w2.astype(jnp.bfloat16), ((0, Sqp - Sq), (0, 0)))
    b2p = b2.astype(jnp.float32).reshape(1, C)
    return _se_call(NB, C, Sqp)(p, w1p, b1p, w2p, b2p)[:N]


# ----------------------------------------------------------------------------
# MBConvBlock forward (inference)
# ----------------------------------------------------------------------------
def mbconv_forward(x_nchw, P, args):
    """args = (input_filters, output_filters, kernel, stride, expand_ratio,
    se_ratio, id_skip).  x: (N, Cin, H, W) f32 -> (N, Cout, OH, OW) f32."""
    inp, outp, k, s, e, se_ratio, id_skip = args
    oup = inp * e
    x = jnp.transpose(x_nchw, (0, 2, 3, 1)).astype(jnp.float32)   # NHWC
    N, H, W, _ = x.shape

    h = x.astype(jnp.bfloat16)
    if e != 1:
        h = conv1x1_bn_act(h.reshape(N, H * W, inp), P["expand_w"],
                           P["bn0"][0], P["bn0"][1], act="swish",
                           out_dtype=jnp.bfloat16).reshape(N, H, W, oup)

    # Depthwise conv + BN + swish, with the SE global-average-pool fused in.
    h, pooled = depthwise_conv_bn_swish(h, P["dw_w"], s,
                                        P["bn1"][0], P["bn1"][1])
    OH, OW = h.shape[1], h.shape[2]

    # Squeeze & Excitation gate (fused reduce/swish/expand/sigmoid kernel).
    gate = se_gate(pooled, P["se_r"][0], P["se_r"][1],
                   P["se_e"][0], P["se_e"][1])                     # (N, oup)

    res = None
    if id_skip and s == 1 and inp == outp:
        res = x.reshape(N, H * W, inp)                             # f32 skip
    y = conv1x1_bn_act(h.reshape(N, OH * OW, oup), P["proj_w"],
                       P["bn2"][0], P["bn2"][1], act="none",
                       gate=gate, residual=res,
                       out_dtype=jnp.float32).reshape(N, OH, OW, outp)
    return jnp.transpose(y, (0, 3, 1, 2))


# ----------------------------------------------------------------------------
# Deterministic synthetic parameters + pure-JAX f32 reference
# ----------------------------------------------------------------------------
def init_block_params(args, seed=0):
    inp, outp, k, s, e, se_ratio, id_skip = args
    oup = inp * e
    keys = iter(jax.random.split(jax.random.PRNGKey(seed), 64))
    nk = lambda: next(keys)

    def bn_fold(c, eps=1e-3):
        gamma = 1.0 + 0.05 * jax.random.normal(nk(), (c,), jnp.float32)
        beta = 0.02 * jax.random.normal(nk(), (c,), jnp.float32)
        mean = 0.1 * jax.random.normal(nk(), (c,), jnp.float32)
        var = 1.0 + 0.1 * jax.random.uniform(nk(), (c,), jnp.float32)
        scale = gamma / jnp.sqrt(var + eps)
        return scale, beta - mean * scale

    P = {}
    if e != 1:
        P["expand_w"] = (jax.random.normal(nk(), (inp, oup), jnp.float32)
                         / math.sqrt(inp))
        P["bn0"] = bn_fold(oup)
    P["dw_w"] = jax.random.normal(nk(), (k, k, oup), jnp.float32) / float(k)
    P["bn1"] = bn_fold(oup)
    nsq = max(1, int(inp * se_ratio))
    P["se_r"] = (jax.random.normal(nk(), (oup, nsq), jnp.float32) / math.sqrt(oup),
                 0.02 * jax.random.normal(nk(), (nsq,), jnp.float32))
    P["se_e"] = (jax.random.normal(nk(), (nsq, oup), jnp.float32) / math.sqrt(nsq),
                 0.02 * jax.random.normal(nk(), (oup,), jnp.float32))
    P["proj_w"] = (jax.random.normal(nk(), (oup, outp), jnp.float32)
                   / math.sqrt(oup))
    P["bn2"] = bn_fold(outp)
    return P


def mbconv_reference(x_nchw, P, args):
    inp, outp, k, s, e, se_ratio, id_skip = args
    x = jnp.transpose(x_nchw, (0, 2, 3, 1)).astype(jnp.float32)
    N, H, W, _ = x.shape
    h = x
    if e != 1:
        h = jnp.einsum("nhwc,cd->nhwd", h, P["expand_w"])
        h = h * P["bn0"][0] + P["bn0"][1]
        h = h * jax.nn.sigmoid(h)
    OH, OW = -(-H // s), -(-W // s)
    ph = max((OH - 1) * s + k - H, 0)
    pw = max((OW - 1) * s + k - W, 0)
    hp = jnp.pad(h, ((0, 0), (ph // 2, ph - ph // 2),
                     (pw // 2, pw - pw // 2), (0, 0)))
    oup = h.shape[-1]
    h = lax.conv_general_dilated(
        hp, P["dw_w"].reshape(k, k, 1, oup),
        window_strides=(s, s), padding="VALID",
        dimension_numbers=("NHWC", "HWIO", "NHWC"),
        feature_group_count=oup)
    h = h * P["bn1"][0] + P["bn1"][1]
    h = h * jax.nn.sigmoid(h)
    se = jnp.mean(h, axis=(1, 2))
    se = se @ P["se_r"][0] + P["se_r"][1]
    se = se * jax.nn.sigmoid(se)
    se = se @ P["se_e"][0] + P["se_e"][1]
    h = h * jax.nn.sigmoid(se)[:, None, None, :]
    y = jnp.einsum("nhwc,cd->nhwd", h, P["proj_w"])
    y = y * P["bn2"][0] + P["bn2"][1]
    if id_skip and s == 1 and inp == outp:
        y = y + x
    return jnp.transpose(y, (0, 3, 1, 2))


if __name__ == "__main__":
    # (input_filters, output_filters, kernel, stride, expand_ratio, se_ratio, id_skip)
    test_blocks = [
        (32, 32, 3, 1, 6, 0.25, True),    # expand, k3/s1, SE, identity skip
        (16, 24, 5, 2, 6, 0.25, True),    # expand, k5/s2 (phase path), no skip
        (32, 16, 3, 1, 1, 0.25, True),    # expand_ratio == 1 (no expand conv)
    ]
    base_key = jax.random.PRNGKey(0)
    for idx, args in enumerate(test_blocks):
        inp = args[0]
        x = jax.random.normal(jax.random.fold_in(base_key, idx),
                              (2, inp, 16, 16), jnp.float32)
        P = init_block_params(args, seed=idx)
        out = jax.block_until_ready(
            jax.jit(partial(mbconv_forward, args=args))(x, P))
        ref = jax.block_until_ready(
            jax.jit(partial(mbconv_reference, args=args))(x, P))
        assert out.shape == ref.shape, (out.shape, ref.shape)
        assert bool(jnp.all(jnp.isfinite(out)))
        err = float(jnp.max(jnp.abs(out - ref)) /
                    (jnp.max(jnp.abs(ref)) + 1e-6))
        assert err < 0.1, f"block {idx}: relative error {err}"
    print("KERNEL_OK")
</pallas_src>

<mosaic_0001>
module attributes {stable_mosaic.version = 11 : i64} {
  func.func @kernel(%arg0: i32, %arg1: i32, %arg2: memref<1x256x32xbf16, #tpu.memory_space<vmem>>, %arg3: memref<32x192xbf16, #tpu.memory_space<vmem>>, %arg4: memref<1x192xf32, #tpu.memory_space<vmem>>, %arg5: memref<1x192xf32, #tpu.memory_space<vmem>>, %arg6: memref<1x256x192xbf16, #tpu.memory_space<vmem>>) attributes {dimension_semantics = [#tpu.dimension_semantics<parallel>, #tpu.dimension_semantics<parallel>], iteration_bounds = array<i64: 2, 1>, scalar_prefetch = 0 : i64, scratch_operands = 0 : i64, tpu.core_type = #tpu.core_type<tc>, window_params = [{transform_indices = @transform_0, window_bounds = array<i64: 1, 256, 32>}, {pipeline_mode = #tpu.pipeline_mode<synchronous>, transform_indices = @transform_1, window_bounds = array<i64: 32, 192>}, {pipeline_mode = #tpu.pipeline_mode<synchronous>, transform_indices = @transform_2, window_bounds = array<i64: 1, 192>}, {pipeline_mode = #tpu.pipeline_mode<synchronous>, transform_indices = @transform_3, window_bounds = array<i64: 1, 192>}, {transform_indices = @transform_4, window_bounds = array<i64: 1, 256, 192>}]} {
    %c0 = arith.constant 0 : index
    %c0_0 = arith.constant 0 : index
    %c0_1 = arith.constant 0 : index
    %0 = vector.load %arg2[%c0, %c0_0, %c0_1] : memref<1x256x32xbf16, #tpu.memory_space<vmem>>, vector<1x256x32xbf16>
    %1 = vector.shape_cast %0 : vector<1x256x32xbf16> to vector<256x32xbf16>
    %c0_2 = arith.constant 0 : index
    %c0_3 = arith.constant 0 : index
    %2 = vector.load %arg3[%c0_2, %c0_3] : memref<32x192xbf16, #tpu.memory_space<vmem>>, vector<32x192xbf16>
    %cst = arith.constant dense<0.000000e+00> : vector<256x192xf32>
    %3 = tpu.matmul %1, %2, %cst {dimension_numbers = #tpu.dot_dimension_numbers<[1], [0], [0], [1], [0, 0, 1, 1], [], []>} : vector<256x32xbf16>, vector<32x192xbf16>, vector<256x192xf32> -> vector<256x192xf32>
    %c0_4 = arith.constant 0 : index
    %c0_5 = arith.constant 0 : index
    %4 = vector.load %arg4[%c0_4, %c0_5] : memref<1x192xf32, #tpu.memory_space<vmem>>, vector<1x192xf32>
    %5 = vector.broadcast %4 : vector<1x192xf32> to vector<256x192xf32>
    %6 = arith.mulf %3, %5 : vector<256x192xf32>
    %c0_6 = arith.constant 0 : index
    %c0_7 = arith.constant 0 : index
    %7 = vector.load %arg5[%c0_6, %c0_7] : memref<1x192xf32, #tpu.memory_space<vmem>>, vector<1x192xf32>
    %8 = vector.broadcast %7 : vector<1x192xf32> to vector<256x192xf32>
    %9 = arith.addf %6, %8 : vector<256x192xf32>
    %10 = arith.negf %9 : vector<256x192xf32>
    %11 = math.exp %10 : vector<256x192xf32>
    %cst_8 = arith.constant 1.000000e+00 : f32
    %12 = vector.broadcast %cst_8 : f32 to vector<256x192xf32>
    %13 = arith.addf %12, %11 : vector<256x192xf32>
    %14 = arith.divf %12, %13 : vector<256x192xf32>
    %15 = arith.mulf %9, %14 : vector<256x192xf32>
    %16 = arith.truncf %15 : vector<256x192xf32> to vector<256x192xbf16>
    %c0_9 = arith.constant 0 : index
    %c0_10 = arith.constant 0 : index
    %c0_11 = arith.constant 0 : index
    %17 = vector.load %arg6[%c0_9, %c0_10, %c0_11] : memref<1x256x192xbf16, #tpu.memory_space<vmem>>, vector<1x256x192xbf16>
    %18 = vector.shape_cast %17 : vector<1x256x192xbf16> to vector<256x192xbf16>
    %19 = vector.shape_cast %16 : vector<256x192xbf16> to vector<1x256x192xbf16>
    tpu.vector_store %arg6[%c0_9, %c0_10, %c0_11], %19 {strides = array<i32>} : memref<1x256x192xbf16, #tpu.memory_space<vmem>>, vector<1x256x192xbf16>,
    return
  }
  func.func @transform_0(%arg0: i32, %arg1: i32) -> (i32, i32, i32) {
    %c0_i32 = arith.constant 0 : i32
    %c0_i32_0 = arith.constant 0 : i32
    return %arg0, %arg1, %c0_i32 : i32, i32, i32
  }
  func.func @transform_1(%arg0: i32, %arg1: i32) -> (i32, i32) {
    %c0_i32 = arith.constant 0 : i32
    %c0_i32_0 = arith.constant 0 : i32
    %c0_i32_1 = arith.constant 0 : i32
    return %c0_i32, %c0_i32_0 : i32, i32
  }
  func.func @transform_2(%arg0: i32, %arg1: i32) -> (i32, i32) {
    %c0_i32 = arith.constant 0 : i32
    %c0_i32_0 = arith.constant 0 : i32
    %c0_i32_1 = arith.constant 0 : i32
    return %c0_i32, %c0_i32_0 : i32, i32
  }
  func.func @transform_3(%arg0: i32, %arg1: i32) -> (i32, i32) {
    %c0_i32 = arith.constant 0 : i32
    %c0_i32_0 = arith.constant 0 : i32
    %c0_i32_1 = arith.constant 0 : i32
    return %c0_i32, %c0_i32_0 : i32, i32
  }
  func.func @transform_4(%arg0: i32, %arg1: i32) -> (i32, i32, i32) {
    %c0_i32 = arith.constant 0 : i32
    %c0_i32_0 = arith.constant 0 : i32
    return %arg0, %arg1, %c0_i32 : i32, i32, i32
  }
}

module attributes {stable_mosaic.version = 11 : i64} {
  func.func @kernel(%arg0: i32, %arg1: memref<1x18x18x192xbf16, #tpu.memory_space<vmem>>, %arg2: memref<9x192xf32, #tpu.memory_space<vmem>>, %arg3: memref<1x192xf32, #tpu.memory_space<vmem>>, %arg4: memref<1x192xf32, #tpu.memory_space<vmem>>, %arg5: memref<1x16x16x192xbf16, #tpu.memory_space<vmem>>, %arg6: memref<1x1x192xf32, #tpu.memory_space<vmem>>) attributes {dimension_semantics = [#tpu.dimension_semantics<parallel>], iteration_bounds = array<i64: 2>, scalar_prefetch = 0 : i64, scratch_operands = 0 : i64, tpu.core_type = #tpu.core_type<tc>, window_params = [{transform_indices = @transform_0, window_bounds = array<i64: 1, 18, 18, 192>}, {pipeline_mode = #tpu.pipeline_mode<synchronous>, transform_indices = @transform_1, window_bounds = array<i64: 9, 192>}, {pipeline_mode = #tpu.pipeline_mode<synchronous>, transform_indices = @transform_2, window_bounds = array<i64: 1, 192>}, {pipeline_mode = #tpu.pipeline_mode<synchronous>, transform_indices = @transform_3, window_bounds = array<i64: 1, 192>}, {transform_indices = @transform_4, window_bounds = array<i64: 1, 16, 16, 192>}, {transform_indices = @transform_5, window_bounds = array<i64: 1, 1, 192>}]} {
    %c0 = arith.constant 0 : index
    %c0_0 = arith.constant 0 : index
    %c0_1 = arith.constant 0 : index
    %c0_2 = arith.constant 0 : index
    %0 = vector.load %arg1[%c0, %c0_0, %c0_1, %c0_2] : memref<1x18x18x192xbf16, #tpu.memory_space<vmem>>, vector<1x16x16x192xbf16>
    %1 = vector.shape_cast %0 : vector<1x16x16x192xbf16> to vector<16x16x192xbf16>
    %2 = arith.extf %1 : vector<16x16x192xbf16> to vector<16x16x192xf32>
    %c0_3 = arith.constant 0 : index
    %c0_4 = arith.constant 0 : index
    %3 = vector.load %arg2[%c0_3, %c0_4] : memref<9x192xf32, #tpu.memory_space<vmem>>, vector<1x192xf32>
    %4 = vector.shape_cast %3 : vector<1x192xf32> to vector<192xf32>
    %5 = vector.shape_cast %4 : vector<192xf32> to vector<1x1x192xf32>
    %6 = vector.broadcast %5 : vector<1x1x192xf32> to vector<16x16x192xf32>
    %7 = arith.mulf %2, %6 : vector<16x16x192xf32>
    %c0_5 = arith.constant 0 : index
    %c0_6 = arith.constant 0 : index
    %c1 = arith.constant 1 : index
    %c0_7 = arith.constant 0 : index
    %8 = vector.load %arg1[%c0_5, %c0_6, %c1, %c0_7] : memref<1x18x18x192xbf16, #tpu.memory_space<vmem>>, vector<1x16x16x192xbf16>
    %9 = vector.shape_cast %8 : vector<1x16x16x192xbf16> to vector<16x16x192xbf16>
    %10 = arith.extf %9 : vector<16x16x192xbf16> to vector<16x16x192xf32>
    %c1_8 = arith.constant 1 : index
    %c0_9 = arith.constant 0 : index
    %11 = vector.load %arg2[%c1_8, %c0_9] : memref<9x192xf32, #tpu.memory_space<vmem>>, vector<1x192xf32>
    %12 = vector.shape_cast %11 : vector<1x192xf32> to vector<192xf32>
    %13 = vector.shape_cast %12 : vector<192xf32> to vector<1x1x192xf32>
    %14 = vector.broadcast %13 : vector<1x1x192xf32> to vector<16x16x192xf32>
    %15 = arith.mulf %10, %14 : vector<16x16x192xf32>
    %16 = arith.addf %7, %15 : vector<16x16x192xf32>
    %c0_10 = arith.constant 0 : index
    %c0_11 = arith.constant 0 : index
    %c2 = arith.constant 2 : index
    %c0_12 = arith.constant 0 : index
    %17 = vector.load %arg1[%c0_10, %c0_11, %c2, %c0_12] : memref<1x18x18x192xbf16, #tpu.memory_space<vmem>>, vector<1x16x16x192xbf16>
    %18 = vector.shape_cast %17 : vector<1x16x16x192xbf16> to vector<16x16x192xbf16>
    %19 = arith.extf %18 : vector<16x16x192xbf16> to vector<16x16x192xf32>
    %c2_13 = arith.constant 2 : index
    %c0_14 = arith.constant 0 : index
    %20 = vector.load %arg2[%c2_13, %c0_14] : memref<9x192xf32, #tpu.memory_space<vmem>>, vector<1x192xf32>
    %21 = vector.shape_cast %20 : vector<1x192xf32> to vector<192xf32>
    %22 = vector.shape_cast %21 : vector<192xf32> to vector<1x1x192xf32>
    %23 = vector.broadcast %22 : vector<1x1x192xf32> to vector<16x16x192xf32>
    %24 = arith.mulf %19, %23 : vector<16x16x192xf32>
    %25 = arith.addf %16, %24 : vector<16x16x192xf32>
    %c0_15 = arith.constant 0 : index
    %c1_16 = arith.constant 1 : index
    %c0_17 = arith.constant 0 : index
    %c0_18 = arith.constant 0 : index
    %26 = vector.load %arg1[%c0_15, %c1_16, %c0_17, %c0_18] : memref<1x18x18x192xbf16, #tpu.memory_space<vmem>>, vector<1x16x16x192xbf16>
    %27 = vector.shape_cast %26 : vector<1x16x16x192xbf16> to vector<16x16x192xbf16>
    %28 = arith.extf %27 : vector<16x16x192xbf16> to vector<16x16x192xf32>
    %c3 = arith.constant 3 : index
    %c0_19 = arith.constant 0 : index
    %29 = vector.load %arg2[%c3, %c0_19] : memref<9x192xf32, #tpu.memory_space<vmem>>, vector<1x192xf32>
    %30 = vector.shape_cast %29 : vector<1x192xf32> to vector<192xf32>
    %31 = vector.shape_cast %30 : vector<192xf32> to vector<1x1x192xf32>
    %32 = vector.broadcast %31 : vector<1x1x192xf32> to vector<16x16x192xf32>
    %33 = arith.mulf %28, %32 : vector<16x16x192xf32>
    %34 = arith.addf %25, %33 : vector<16x16x192xf32>
    %c0_20 = arith.constant 0 : index
    %c1_21 = arith.constant 1 : index
    %c1_22 = arith.constant 1 : index
    %c0_23 = arith.constant 0 : index
    %35 = vector.load %arg1[%c0_20, %c1_21, %c1_22, %c0_23] : memref<1x18x18x192xbf16, #tpu.memory_space<vmem>>, vector<1x16x16x192xbf16>
    %36 = vector.shape_cast %35 : vector<1x16x16x192xbf16> to vector<16x16x192xbf16>
    %37 = arith.extf %36 : vector<16x16x192xbf16> to vector<16x16x192xf32>
    %c4 = arith.constant 4 : index
    %c0_24 = arith.constant 0 : index
    %38 = vector.load %arg2[%c4, %c0_24] : memref<9x192xf32, #tpu.memory_space<vmem>>, vector<1x192xf32>
    %39 = vector.shape_cast %38 : vector<1x192xf32> to vector<192xf32>
    %40 = vector.shape_cast %39 : vector<192xf32> to vector<1x1x192xf32>
    %41 = vector.broadcast %40 : vector<1x1x192xf32> to vector<16x16x192xf32>
    %42 = arith.mulf %37, %41 : vector<16x16x192xf32>
    %43 = arith.addf %34, %42 : vector<16x16x192xf32>
    %c0_25 = arith.constant 0 : index
    %c1_26 = arith.constant 1 : index
    %c2_27 = arith.constant 2 : index
    %c0_28 = arith.constant 0 : index
    %44 = vector.load %arg1[%c0_25, %c1_26, %c2_27, %c0_28] : memref<1x18x18x192xbf16, #tpu.memory_space<vmem>>, vector<1x16x16x192xbf16>
    %45 = vector.shape_cast %44 : vector<1x16x16x192xbf16> to vector<16x16x192xbf16>
    %46 = arith.extf %45 : vector<16x16x192xbf16> to vector<16x16x192xf32>
    %c5 = arith.constant 5 : index
    %c0_29 = arith.constant 0 : index
    %47 = vector.load %arg2[%c5, %c0_29] : memref<9x192xf32, #tpu.memory_space<vmem>>, vector<1x192xf32>
    %48 = vector.shape_cast %47 : vector<1x192xf32> to vector<192xf32>
    %49 = vector.shape_cast %48 : vector<192xf32> to vector<1x1x192xf32>
    %50 = vector.broadcast %49 : vector<1x1x192xf32> to vector<16x16x192xf32>
    %51 = arith.mulf %46, %50 : vector<16x16x192xf32>
    %52 = arith.addf %43, %51 : vector<16x16x192xf32>
    %c0_30 = arith.constant 0 : index
    %c2_31 = arith.constant 2 : index
    %c0_32 = arith.constant 0 : index
    %c0_33 = arith.constant 0 : index
    %53 = vector.load %arg1[%c0_30, %c2_31, %c0_32, %c0_33] : memref<1x18x18x192xbf16, #tpu.memory_space<vmem>>, vector<1x16x16x192xbf16>
    %54 = vector.shape_cast %53 : vector<1x16x16x192xbf16> to vector<16x16x192xbf16>
    %55 = arith.extf %54 : vector<16x16x192xbf16> to vector<16x16x192xf32>
    %c6 = arith.constant 6 : index
    %c0_34 = arith.constant 0 : index
    %56 = vector.load %arg2[%c6, %c0_34] : memref<9x192xf32, #tpu.memory_space<vmem>>, vector<1x192xf32>
    %57 = vector.shape_cast %56 : vector<1x192xf32> to vector<192xf32>
    %58 = vector.shape_cast %57 : vector<192xf32> to vector<1x1x192xf32>
    %59 = vector.broadcast %58 : vector<1x1x192xf32> to vector<16x16x192xf32>
    %60 = arith.mulf %55, %59 : vector<16x16x192xf32>
    %61 = arith.addf %52, %60 : vector<16x16x192xf32>
    %c0_35 = arith.constant 0 : index
    %c2_36 = arith.constant 2 : index
    %c1_37 = arith.constant 1 : index
    %c0_38 = arith.constant 0 : index
    %62 = vector.load %arg1[%c0_35, %c2_36, %c1_37, %c0_38] : memref<1x18x18x192xbf16, #tpu.memory_space<vmem>>, vector<1x16x16x192xbf16>
    %63 = vector.shape_cast %62 : vector<1x16x16x192xbf16> to vector<16x16x192xbf16>
    %64 = arith.extf %63 : vector<16x16x192xbf16> to vector<16x16x192xf32>
    %c7 = arith.constant 7 : index
    %c0_39 = arith.constant 0 : index
    %65 = vector.load %arg2[%c7, %c0_39] : memref<9x192xf32, #tpu.memory_space<vmem>>, vector<1x192xf32>
    %66 = vector.shape_cast %65 : vector<1x192xf32> to vector<192xf32>
    %67 = vector.shape_cast %66 : vector<192xf32> to vector<1x1x192xf32>
    %68 = vector.broadcast %67 : vector<1x1x192xf32> to vector<16x16x192xf32>
    %69 = arith.mulf %64, %68 : vector<16x16x192xf32>
    %70 = arith.addf %61, %69 : vector<16x16x192xf32>
    %c0_40 = arith.constant 0 : index
    %c2_41 = arith.constant 2 : index
    %c2_42 = arith.constant 2 : index
    %c0_43 = arith.constant 0 : index
    %71 = vector.load %arg1[%c0_40, %c2_41, %c2_42, %c0_43] : memref<1x18x18x192xbf16, #tpu.memory_space<vmem>>, vector<1x16x16x192xbf16>
    %72 = vector.shape_cast %71 : vector<1x16x16x192xbf16> to vector<16x16x192xbf16>
    %73 = arith.extf %72 : vector<16x16x192xbf16> to vector<16x16x192xf32>
    %c8 = arith.constant 8 : index
    %c0_44 = arith.constant 0 : index
    %74 = vector.load %arg2[%c8, %c0_44] : memref<9x192xf32, #tpu.memory_space<vmem>>, vector<1x192xf32>
    %75 = vector.shape_cast %74 : vector<1x192xf32> to vector<192xf32>
    %76 = vector.shape_cast %75 : vector<192xf32> to vector<1x1x192xf32>
    %77 = vector.broadcast %76 : vector<1x1x192xf32> to vector<16x16x192xf32>
    %78 = arith.mulf %73, %77 : vector<16x16x192xf32>
    %79 = arith.addf %70, %78 : vector<16x16x192xf32>
    %c0_45 = arith.constant 0 : index
    %c0_46 = arith.constant 0 : index
    %80 = vector.load %arg3[%c0_45, %c0_46] : memref<1x192xf32, #tpu.memory_space<vmem>>, vector<1x192xf32>
    %81 = vector.shape_cast %80 : vector<1x192xf32> to vector<1x1x192xf32>
    %82 = vector.broadcast %81 : vector<1x1x192xf32> to vector<16x16x192xf32>
    %83 = arith.mulf %79, %82 : vector<16x16x192xf32>
    %c0_47 = arith.constant 0 : index
    %c0_48 = arith.constant 0 : index
    %84 = vector.load %arg4[%c0_47, %c0_48] : memref<1x192xf32, #tpu.memory_space<vmem>>, vector<1x192xf32>
    %85 = vector.shape_cast %84 : vector<1x192xf32> to vector<1x1x192xf32>
    %86 = vector.broadcast %85 : vector<1x1x192xf32> to vector<16x16x192xf32>
    %87 = arith.addf %83, %86 : vector<16x16x192xf32>
    %88 = arith.negf %87 : vector<16x16x192xf32>
    %89 = math.exp %88 : vector<16x16x192xf32>
    %cst = arith.constant 1.000000e+00 : f32
    %90 = vector.broadcast %cst : f32 to vector<16x16x192xf32>
    %91 = arith.addf %90, %89 : vector<16x16x192xf32>
    %92 = arith.divf %90, %91 : vector<16x16x192xf32>
    %93 = arith.mulf %87, %92 : vector<16x16x192xf32>
    %94 = arith.truncf %93 : vector<16x16x192xf32> to vector<16x16x192xbf16>
    %c0_49 = arith.constant 0 : index
    %c0_50 = arith.constant 0 : index
    %c0_51 = arith.constant 0 : index
    %c0_52 = arith.constant 0 : index
    %95 = vector.load %arg5[%c0_49, %c0_50, %c0_51, %c0_52] : memref<1x16x16x192xbf16, #tpu.memory_space<vmem>>, vector<1x16x16x192xbf16>
    %96 = vector.shape_cast %95 : vector<1x16x16x192xbf16> to vector<16x16x192xbf16>
    %97 = vector.shape_cast %94 : vector<16x16x192xbf16> to vector<1x16x16x192xbf16>
    tpu.vector_store %arg5[%c0_49, %c0_50, %c0_51, %c0_52], %97 {strides = array<i32>} : memref<1x16x16x192xbf16, #tpu.memory_space<vmem>>, vector<1x16x16x192xbf16>,
    %cst_53 = arith.constant dense<0.000000e+00> : vector<192xf32>
    %98 = vector.multi_reduction <add>, %93, %cst_53 [0, 1] : vector<16x16x192xf32> to vector<192xf32>
    %cst_54 = arith.constant 3.906250e-03 : f32
    %99 = vector.broadcast %cst_54 : f32 to vector<192xf32>
    %100 = arith.mulf %98, %99 : vector<192xf32>
    %101 = vector.shape_cast %100 : vector<192xf32> to vector<1x1x192xf32>
    %c0_55 = arith.constant 0 : index
    %c0_56 = arith.constant 0 : index
    %c0_57 = arith.constant 0 : index
    %102 = vector.load %arg6[%c0_55, %c0_56, %c0_57] : memref<1x1x192xf32, #tpu.memory_space<vmem>>, vector<1x1x192xf32>
    tpu.vector_store %arg6[%c0_55, %c0_56, %c0_57], %101 {strides = array<i32>} : memref<1x1x192xf32, #tpu.memory_space<vmem>>, vector<1x1x192xf32>,
    return
  }
  func.func @transform_0(%arg0: i32) -> (i32, i32, i32, i32) {
    %c0_i32 = arith.constant 0 : i32
    %c0_i32_0 = arith.constant 0 : i32
    %c0_i32_1 = arith.constant 0 : i32
    %c0_i32_2 = arith.constant 0 : i32
    return %arg0, %c0_i32, %c0_i32_0, %c0_i32_1 : i32, i32, i32, i32
  }
  func.func @transform_1(%arg0: i32) -> (i32, i32) {
    %c0_i32 = arith.constant 0 : i32
    %c0_i32_0 = arith.constant 0 : i32
    %c0_i32_1 = arith.constant 0 : i32
    return %c0_i32, %c0_i32_0 : i32, i32
  }
  func.func @transform_2(%arg0: i32) -> (i32, i32) {
    %c0_i32 = arith.constant 0 : i32
    %c0_i32_0 = arith.constant 0 : i32
    %c0_i32_1 = arith.constant 0 : i32
    return %c0_i32, %c0_i32_0 : i32, i32
  }
  func.func @transform_3(%arg0: i32) -> (i32, i32) {
    %c0_i32 = arith.constant 0 : i32
    %c0_i32_0 = arith.constant 0 : i32
    %c0_i32_1 = arith.constant 0 : i32
    return %c0_i32, %c0_i32_0 : i32, i32
  }
  func.func @transform_4(%arg0: i32) -> (i32, i32, i32, i32) {
    %c0_i32 = arith.constant 0 : i32
    %c0_i32_0 = arith.constant 0 : i32
    %c0_i32_1 = arith.constant 0 : i32
    %c0_i32_2 = arith.constant 0 : i32
    return %arg0, %c0_i32, %c0_i32_0, %c0_i32_1 : i32, i32, i32, i32
  }
  func.func @transform_5(%arg0: i32) -> (i32, i32, i32) {
    %c0_i32 = arith.constant 0 : i32
    %c0_i32_0 = arith.constant 0 : i32
    %c0_i32_1 = arith.constant 0 : i32
    return %arg0, %c0_i32, %c0_i32_0 : i32, i32, i32
  }
}

module attributes {stable_mosaic.version = 11 : i64} {
  func.func @_se_kernel(%arg0: i32, %arg1: memref<8x192xbf16, #tpu.memory_space<vmem>>, %arg2: memref<192x128xbf16, #tpu.memory_space<vmem>>, %arg3: memref<1x128xf32, #tpu.memory_space<vmem>>, %arg4: memref<128x192xbf16, #tpu.memory_space<vmem>>, %arg5: memref<1x192xf32, #tpu.memory_space<vmem>>, %arg6: memref<8x192xbf16, #tpu.memory_space<vmem>>) attributes {dimension_semantics = [#tpu.dimension_semantics<arbitrary>], iteration_bounds = array<i64: 1>, scalar_prefetch = 0 : i64, scratch_operands = 0 : i64, tpu.core_type = #tpu.core_type<tc>, window_params = [{pipeline_mode = #tpu.pipeline_mode<synchronous>, transform_indices = @transform_0, window_bounds = array<i64: 8, 192>}, {pipeline_mode = #tpu.pipeline_mode<synchronous>, transform_indices = @transform_1, window_bounds = array<i64: 192, 128>}, {pipeline_mode = #tpu.pipeline_mode<synchronous>, transform_indices = @transform_2, window_bounds = array<i64: 1, 128>}, {pipeline_mode = #tpu.pipeline_mode<synchronous>, transform_indices = @transform_3, window_bounds = array<i64: 128, 192>}, {pipeline_mode = #tpu.pipeline_mode<synchronous>, transform_indices = @transform_4, window_bounds = array<i64: 1, 192>}, {pipeline_mode = #tpu.pipeline_mode<synchronous>, transform_indices = @transform_5, window_bounds = array<i64: 8, 192>}]} {
    %c0 = arith.constant 0 : index
    %c0_0 = arith.constant 0 : index
    %0 = vector.load %arg1[%c0, %c0_0] : memref<8x192xbf16, #tpu.memory_space<vmem>>, vector<8x192xbf16>
    %c0_1 = arith.constant 0 : index
    %c0_2 = arith.constant 0 : index
    %1 = vector.load %arg2[%c0_1, %c0_2] : memref<192x128xbf16, #tpu.memory_space<vmem>>, vector<192x128xbf16>
    %cst = arith.constant dense<0.000000e+00> : vector<8x128xf32>
    %2 = tpu.matmul %0, %1, %cst {dimension_numbers = #tpu.dot_dimension_numbers<[1], [0], [0], [1], [0, 0, 1, 1], [], []>} : vector<8x192xbf16>, vector<192x128xbf16>, vector<8x128xf32> -> vector<8x128xf32>
    %c0_3 = arith.constant 0 : index
    %c0_4 = arith.constant 0 : index
    %3 = vector.load %arg3[%c0_3, %c0_4] : memref<1x128xf32, #tpu.memory_space<vmem>>, vector<1x128xf32>
    %4 = vector.broadcast %3 : vector<1x128xf32> to vector<8x128xf32>
    %5 = arith.addf %2, %4 : vector<8x128xf32>
    %6 = arith.negf %5 : vector<8x128xf32>
    %7 = math.exp %6 : vector<8x128xf32>
    %cst_5 = arith.constant 1.000000e+00 : f32
    %8 = vector.broadcast %cst_5 : f32 to vector<8x128xf32>
    %9 = arith.addf %8, %7 : vector<8x128xf32>
    %10 = arith.divf %8, %9 : vector<8x128xf32>
    %11 = arith.mulf %5, %10 : vector<8x128xf32>
    %12 = arith.truncf %11 : vector<8x128xf32> to vector<8x128xbf16>
    %c0_6 = arith.constant 0 : index
    %c0_7 = arith.constant 0 : index
    %13 = vector.load %arg4[%c0_6, %c0_7] : memref<128x192xbf16, #tpu.memory_space<vmem>>, vector<128x192xbf16>
    %cst_8 = arith.constant dense<0.000000e+00> : vector<8x192xf32>
    %14 = tpu.matmul %12, %13, %cst_8 {dimension_numbers = #tpu.dot_dimension_numbers<[1], [0], [0], [1], [0, 0, 1, 1], [], []>} : vector<8x128xbf16>, vector<128x192xbf16>, vector<8x192xf32> -> vector<8x192xf32>
    %c0_9 = arith.constant 0 : index
    %c0_10 = arith.constant 0 : index
    %15 = vector.load %arg5[%c0_9, %c0_10] : memref<1x192xf32, #tpu.memory_space<vmem>>, vector<1x192xf32>
    %16 = vector.broadcast %15 : vector<1x192xf32> to vector<8x192xf32>
    %17 = arith.addf %14, %16 : vector<8x192xf32>
    %18 = arith.negf %17 : vector<8x192xf32>
    %19 = math.exp %18 : vector<8x192xf32>
    %cst_11 = arith.constant 1.000000e+00 : f32
    %20 = vector.broadcast %cst_11 : f32 to vector<8x192xf32>
    %21 = arith.addf %20, %19 : vector<8x192xf32>
    %22 = arith.divf %20, %21 : vector<8x192xf32>
    %23 = arith.truncf %22 : vector<8x192xf32> to vector<8x192xbf16>
    %c0_12 = arith.constant 0 : index
    %c0_13 = arith.constant 0 : index
    %24 = vector.load %arg6[%c0_12, %c0_13] : memref<8x192xbf16, #tpu.memory_space<vmem>>, vector<8x192xbf16>
    tpu.vector_store %arg6[%c0_12, %c0_13], %23 {strides = array<i32>} : memref<8x192xbf16, #tpu.memory_space<vmem>>, vector<8x192xbf16>,
    return
  }
  func.func @transform_0(%arg0: i32) -> (i32, i32) {
    %c0_i32 = arith.constant 0 : i32
    %c0_i32_0 = arith.constant 0 : i32
    %c0_i32_1 = arith.constant 0 : i32
    return %c0_i32, %c0_i32_0 : i32, i32
  }
  func.func @transform_1(%arg0: i32) -> (i32, i32) {
    %c0_i32 = arith.constant 0 : i32
    %c0_i32_0 = arith.constant 0 : i32
    %c0_i32_1 = arith.constant 0 : i32
    return %c0_i32, %c0_i32_0 : i32, i32
  }
  func.func @transform_2(%arg0: i32) -> (i32, i32) {
    %c0_i32 = arith.constant 0 : i32
    %c0_i32_0 = arith.constant 0 : i32
    %c0_i32_1 = arith.constant 0 : i32
    return %c0_i32, %c0_i32_0 : i32, i32
  }
  func.func @transform_3(%arg0: i32) -> (i32, i32) {
    %c0_i32 = arith.constant 0 : i32
    %c0_i32_0 = arith.constant 0 : i32
    %c0_i32_1 = arith.constant 0 : i32
    return %c0_i32, %c0_i32_0 : i32, i32
  }
  func.func @transform_4(%arg0: i32) -> (i32, i32) {
    %c0_i32 = arith.constant 0 : i32
    %c0_i32_0 = arith.constant 0 : i32
    %c0_i32_1 = arith.constant 0 : i32
    return %c0_i32, %c0_i32_0 : i32, i32
  }
  func.func @transform_5(%arg0: i32) -> (i32, i32) {
    %c0_i32 = arith.constant 0 : i32
    %c0_i32_0 = arith.constant 0 : i32
    %c0_i32_1 = arith.constant 0 : i32
    return %c0_i32, %c0_i32_0 : i32, i32
  }
}

module attributes {stable_mosaic.version = 11 : i64} {
  func.func @kernel(%arg0: i32, %arg1: i32, %arg2: memref<1x256x192xbf16, #tpu.memory_space<vmem>>, %arg3: memref<192x32xbf16, #tpu.memory_space<vmem>>, %arg4: memref<1x32xf32, #tpu.memory_space<vmem>>, %arg5: memref<1x32xf32, #tpu.memory_space<vmem>>, %arg6: memref<1x1x192xbf16, #tpu.memory_space<vmem>>, %arg7: memref<1x256x32xf32, #tpu.memory_space<vmem>>, %arg8: memref<1x256x32xf32, #tpu.memory_space<vmem>>) attributes {dimension_semantics = [#tpu.dimension_semantics<parallel>, #tpu.dimension_semantics<parallel>], iteration_bounds = array<i64: 2, 1>, scalar_prefetch = 0 : i64, scratch_operands = 0 : i64, tpu.core_type = #tpu.core_type<tc>, window_params = [{transform_indices = @transform_0, window_bounds = array<i64: 1, 256, 192>}, {pipeline_mode = #tpu.pipeline_mode<synchronous>, transform_indices = @transform_1, window_bounds = array<i64: 192, 32>}, {pipeline_mode = #tpu.pipeline_mode<synchronous>, transform_indices = @transform_2, window_bounds = array<i64: 1, 32>}, {pipeline_mode = #tpu.pipeline_mode<synchronous>, transform_indices = @transform_3, window_bounds = array<i64: 1, 32>}, {transform_indices = @transform_4, window_bounds = array<i64: 1, 1, 192>}, {transform_indices = @transform_5, window_bounds = array<i64: 1, 256, 32>}, {transform_indices = @transform_6, window_bounds = array<i64: 1, 256, 32>}]} {
    %c0 = arith.constant 0 : index
    %c0_0 = arith.constant 0 : index
    %c0_1 = arith.constant 0 : index
    %0 = vector.load %arg2[%c0, %c0_0, %c0_1] : memref<1x256x192xbf16, #tpu.memory_space<vmem>>, vector<1x256x192xbf16>
    %1 = vector.shape_cast %0 : vector<1x256x192xbf16> to vector<256x192xbf16>
    %c0_2 = arith.constant 0 : index
    %c0_3 = arith.constant 0 : index
    %c0_4 = arith.constant 0 : index
    %2 = vector.load %arg6[%c0_2, %c0_3, %c0_4] : memref<1x1x192xbf16, #tpu.memory_space<vmem>>, vector<1x1x192xbf16>
    %3 = vector.shape_cast %2 : vector<1x1x192xbf16> to vector<1x192xbf16>
    %4 = vector.broadcast %3 : vector<1x192xbf16> to vector<256x192xbf16>
    %5 = arith.mulf %1, %4 : vector<256x192xbf16>
    %c0_5 = arith.constant 0 : index
    %c0_6 = arith.constant 0 : index
    %6 = vector.load %arg3[%c0_5, %c0_6] : memref<192x32xbf16, #tpu.memory_space<vmem>>, vector<192x32xbf16>
    %cst = arith.constant dense<0.000000e+00> : vector<256x32xf32>
    %7 = tpu.matmul %5, %6, %cst {dimension_numbers = #tpu.dot_dimension_numbers<[1], [0], [0], [1], [0, 0, 1, 1], [], []>} : vector<256x192xbf16>, vector<192x32xbf16>, vector<256x32xf32> -> vector<256x32xf32>
    %c0_7 = arith.constant 0 : index
    %c0_8 = arith.constant 0 : index
    %8 = vector.load %arg4[%c0_7, %c0_8] : memref<1x32xf32, #tpu.memory_space<vmem>>, vector<1x32xf32>
    %9 = vector.broadcast %8 : vector<1x32xf32> to vector<256x32xf32>
    %10 = arith.mulf %7, %9 : vector<256x32xf32>
    %c0_9 = arith.constant 0 : index
    %c0_10 = arith.constant 0 : index
    %11 = vector.load %arg5[%c0_9, %c0_10] : memref<1x32xf32, #tpu.memory_space<vmem>>, vector<1x32xf32>
    %12 = vector.broadcast %11 : vector<1x32xf32> to vector<256x32xf32>
    %13 = arith.addf %10, %12 : vector<256x32xf32>
    %c0_11 = arith.constant 0 : index
    %c0_12 = arith.constant 0 : index
    %c0_13 = arith.constant 0 : index
    %14 = vector.load %arg7[%c0_11, %c0_12, %c0_13] : memref<1x256x32xf32, #tpu.memory_space<vmem>>, vector<1x256x32xf32>
    %15 = vector.shape_cast %14 : vector<1x256x32xf32> to vector<256x32xf32>
    %16 = arith.addf %13, %15 : vector<256x32xf32>
    %c0_14 = arith.constant 0 : index
    %c0_15 = arith.constant 0 : index
    %c0_16 = arith.constant 0 : index
    %17 = vector.load %arg8[%c0_14, %c0_15, %c0_16] : memref<1x256x32xf32, #tpu.memory_space<vmem>>, vector<1x256x32xf32>
    %18 = vector.shape_cast %17 : vector<1x256x32xf32> to vector<256x32xf32>
    %19 = vector.shape_cast %16 : vector<256x32xf32> to vector<1x256x32xf32>
    tpu.vector_store %arg8[%c0_14, %c0_15, %c0_16], %19 {strides = array<i32>} : memref<1x256x32xf32, #tpu.memory_space<vmem>>, vector<1x256x32xf32>,
    return
  }
  func.func @transform_0(%arg0: i32, %arg1: i32) -> (i32, i32, i32) {
    %c0_i32 = arith.constant 0 : i32
    %c0_i32_0 = arith.constant 0 : i32
    return %arg0, %arg1, %c0_i32 : i32, i32, i32
  }
  func.func @transform_1(%arg0: i32, %arg1: i32) -> (i32, i32) {
    %c0_i32 = arith.constant 0 : i32
    %c0_i32_0 = arith.constant 0 : i32
    %c0_i32_1 = arith.constant 0 : i32
    return %c0_i32, %c0_i32_0 : i32, i32
  }
  func.func @transform_2(%arg0: i32, %arg1: i32) -> (i32, i32) {
    %c0_i32 = arith.constant 0 : i32
    %c0_i32_0 = arith.constant 0 : i32
    %c0_i32_1 = arith.constant 0 : i32
    return %c0_i32, %c0_i32_0 : i32, i32
  }
  func.func @transform_3(%arg0: i32, %arg1: i32) -> (i32, i32) {
    %c0_i32 = arith.constant 0 : i32
    %c0_i32_0 = arith.constant 0 : i32
    %c0_i32_1 = arith.constant 0 : i32
    return %c0_i32, %c0_i32_0 : i32, i32
  }
  func.func @transform_4(%arg0: i32, %arg1: i32) -> (i32, i32, i32) {
    %c0_i32 = arith.constant 0 : i32
    %c0_i32_0 = arith.constant 0 : i32
    %c0_i32_1 = arith.constant 0 : i32
    return %arg0, %c0_i32, %c0_i32_0 : i32, i32, i32
  }
  func.func @transform_5(%arg0: i32, %arg1: i32) -> (i32, i32, i32) {
    %c0_i32 = arith.constant 0 : i32
    %c0_i32_0 = arith.constant 0 : i32
    return %arg0, %arg1, %c0_i32 : i32, i32, i32
  }
  func.func @transform_6(%arg0: i32, %arg1: i32) -> (i32, i32, i32) {
    %c0_i32 = arith.constant 0 : i32
    %c0_i32_0 = arith.constant 0 : i32
    return %arg0, %arg1, %c0_i32 : i32, i32, i32
  }
}

</mosaic_0001>

<llo_original>
// kernel: mbconv_forward.6
$region0: #{mbconv_forward.6}
  #allocation0 [shape = 'u32[]', space=smem, size = 0x4, offset = 0x4, fixed_abs, tag = 'smem constant byte address 0x4 - core index']
  #allocation1 [shape = 'u32[144,128]{1,0:T(1,128)}', space=vmem, size = 0x12000, scoped, tag = 'internal scratch']
  %s0 = inlined_call_operand.vmem [shape: bf16[8,192], index: 0, kind: input, shape index: {}]
  %s1 = inlined_call_operand.vmem [shape: bf16[192,128], index: 1, kind: input, shape index: {}]
  %s2 = inlined_call_operand.vmem [shape: f32[1,128], index: 2, kind: input, shape index: {}]
  %s3 = inlined_call_operand.vmem [shape: bf16[128,192], index: 3, kind: input, shape index: {}]
  %s4 = inlined_call_operand.vmem [shape: f32[1,192], index: 4, kind: input, shape index: {}]
  %s5 = inlined_call_operand.vmem [shape: bf16[8,192], index: 5, kind: output, shape index: {}]
  %s6 = sld [smem:[#allocation0]]
  $region30: #{mbconv_forward.6} parent=0
    _
  %s8 = ssub.s32 1, %s6
  %s9 = scalar_select 0, %s8, %s6
  // Predicated region
  $region2: #{mbconv_forward.6} parent=0 // pred_check
    _
  $region3: #{mbconv_forward.6} parent=0 // pred_check_branch
    %11 = sbr.rel (0) target = $region5
  $region4: #{mbconv_forward.6} parent=0 // pred_region
    _
  $region5: #{mbconv_forward.6} parent=0 // pred_fallthru
    _
  // Predicated region
  $region6: #{mbconv_forward.6} parent=0 // pred_check
    _
  $region7: #{mbconv_forward.6} parent=0 // pred_check_branch
    %13 = sbr.rel (0) target = $region9
  $region8: #{mbconv_forward.6} parent=0 // pred_region
    _
  $region9: #{mbconv_forward.6} parent=0 // pred_fallthru
    _
  // Predicated region
  $region10: #{mbconv_forward.6} parent=0 // pred_check
    _
  $region11: #{mbconv_forward.6} parent=0 // pred_check_branch
    %15 = sbr.rel (0) target = $region13
  $region12: #{mbconv_forward.6} parent=0 // pred_region
    _
  $region13: #{mbconv_forward.6} parent=0 // pred_fallthru
    _
  // Predicated region
  $region14: #{mbconv_forward.6} parent=0 // pred_check
    _
  $region15: #{mbconv_forward.6} parent=0 // pred_check_branch
    %17 = sbr.rel (0) target = $region17
  $region16: #{mbconv_forward.6} parent=0 // pred_region
    _
  $region17: #{mbconv_forward.6} parent=0 // pred_fallthru
    _
  // Predicated region
  $region18: #{mbconv_forward.6} parent=0 // pred_check
    _
  $region19: #{mbconv_forward.6} parent=0 // pred_check_branch
    %19 = sbr.rel (0) target = $region21
  $region20: #{mbconv_forward.6} parent=0 // pred_region
    _
  $region21: #{mbconv_forward.6} parent=0 // pred_fallthru
    _
  %v21 = vld [vmem:[%s0] sm:$0xff]
  %v22 = vld [vmem:[%s1] sm:$0xf]
  %v23 = vld [vmem:[%s1 + $0x4] sm:$0xf]
  %v24 = vld [vmem:[%s1 + $0x8] sm:$0xf]
  %v25 = vld [vmem:[%s1 + $0xc] sm:$0xf]
  %v26 = vld [vmem:[%s1 + $0x10] sm:$0xf]
  %v27 = vld [vmem:[%s1 + $0x14] sm:$0xf]
  %v28 = vld [vmem:[%s1 + $0x18] sm:$0xf]
  %v29 = vld [vmem:[%s1 + $0x1c] sm:$0xf]
  %v30 = vld [vmem:[%s1 + $0x20] sm:$0xf]
  %v31 = vld [vmem:[%s1 + $0x24] sm:$0xf]
  %v32 = vld [vmem:[%s1 + $0x28] sm:$0xf]
  %v33 = vld [vmem:[%s1 + $0x2c] sm:$0xf]
  %v34 = vld [vmem:[%s1 + $0x30] sm:$0xf]
  %v35 = vld [vmem:[%s1 + $0x34] sm:$0xf]
  %v36 = vld [vmem:[%s1 + $0x38] sm:$0xf]
  %v37 = vld [vmem:[%s1 + $0x3c] sm:$0xf]
  %v38 = vld [vmem:[%s1 + $0x40] sm:$0xf]
  %v39 = vld [vmem:[%s1 + $0x44] sm:$0xf]
  %v40 = vld [vmem:[%s1 + $0x48] sm:$0xf]
  %v41 = vld [vmem:[%s1 + $0x4c] sm:$0xf]
  %v42 = vld [vmem:[%s1 + $0x50] sm:$0xf]
  %v43 = vld [vmem:[%s1 + $0x54] sm:$0xf]
  %v44 = vld [vmem:[%s1 + $0x58] sm:$0xf]
  %v45 = vld [vmem:[%s1 + $0x5c] sm:$0xf]
  %v46 = vld [vmem:[%s2] sm:$0x1]
  %v48 = vlaneseq
  %v49 = vshrl.u32 %v48, 7
  %v50 = vsub.s32 0, %v49
  %v51 = vrot.slane %v46, %v50
  %v54 = vunpack.c.l.b16 %v21
  %v55 = vunpack.c.h.b16 %v21
  %v56 = vpack.c.b16 %v54, %v54
  %v57 = vpack.c.b16 %v55, %v55
  %v83 = vunpack.c.l.b16 %v22
  %v84 = vunpack.c.l.b16 %v23
  %v85 = vunpack.c.l.b16 %v24
  %v86 = vunpack.c.l.b16 %v25
  %v87 = vunpack.c.l.b16 %v26
  %v88 = vunpack.c.l.b16 %v27
  %v89 = vunpack.c.l.b16 %v28
  %v90 = vunpack.c.l.b16 %v29
  %v91 = vunpack.c.l.b16 %v30
  %v92 = vunpack.c.l.b16 %v31
  %v93 = vunpack.c.l.b16 %v32
  %v94 = vunpack.c.l.b16 %v33
  %v95 = vunpack.c.l.b16 %v34
  %v96 = vunpack.c.l.b16 %v35
  %v97 = vunpack.c.l.b16 %v36
  %v98 = vunpack.c.l.b16 %v37
  %v99 = vunpack.c.l.b16 %v38
  %v100 = vunpack.c.l.b16 %v39
  %v101 = vunpack.c.l.b16 %v40
  %v102 = vunpack.c.l.b16 %v41
  %v103 = vunpack.c.l.b16 %v42
  %v104 = vunpack.c.l.b16 %v43
  %v105 = vunpack.c.l.b16 %v44
  %v106 = vunpack.c.l.b16 %v45
  %v107 = vpack.c.b16 %v84, %v83
  %v108 = vpack.c.b16 %v86, %v85
  %v109 = vpack.c.b16 %v88, %v87
  %v110 = vpack.c.b16 %v90, %v89
  %v111 = vpack.c.b16 %v92, %v91
  %v112 = vpack.c.b16 %v94, %v93
  %v113 = vpack.c.b16 %v96, %v95
  %v114 = vpack.c.b16 %v98, %v97
  %v115 = vpack.c.b16 %v100, %v99
  %v116 = vpack.c.b16 %v102, %v101
  %v117 = vpack.c.b16 %v104, %v103
  %v118 = vpack.c.b16 %v106, %v105
  %vm131 = vcmask 523264
  %v133 = vsel %vm131, %v57, 0
  %135 = vmatprep.subr.bf16.mxu0 0
  %136 = vmatpush1.bf16.msra.mxu0 %v107
  %137 = vmatprep.subr.bf16.mxu0 0
  %138 = vmatpush1.bf16.msra.mxu0 %v108
  %139 = vmatprep.subr.bf16.mxu0 0
  %140 = vmatpush1.bf16.msra.mxu0 %v109
  %141 = vmatprep.subr.bf16.mxu0 0
  %142 = vmatpush1.bf16.msra.mxu0 %v110
  %143 = vmatprep.subr.bf16.mxu0 0
  %144 = vmatpush1.bf16.msra.mxu0 %v111
  %145 = vmatprep.subr.bf16.mxu0 0
  %146 = vmatpush1.bf16.msra.mxu0 %v112
  %147 = vmatprep.subr.bf16.mxu0 0
  %148 = vmatpush1.bf16.msra.mxu0 %v113
  %149 = vmatprep.subr.bf16.mxu0 0
  %150 = vmatpush1.bf16.msra.mxu0 %v114
  %151 = vmatprep.subr.bf16.mxu0 0
  %152 = vmatpush1.bf16.msra.mxu0 %v115
  %153 = vmatprep.subr.bf16.mxu0 0
  %154 = vmatpush1.bf16.msra.mxu0 %v116
  %155 = vmatprep.subr.bf16.mxu0 0
  %156 = vmatpush1.bf16.msra.mxu0 %v117
  %157 = vmatprep.subr.bf16.mxu0 0
  %158 = vmatpush1.bf16.msra.mxu0 %v118
  %159 = vmatprep.subr.bf16.mxu0 0
  %160 = vmatpush1.bf16.msra.mxu0 0
  %161 = vmatprep.subr.bf16.mxu0 0
  %162 = vmatpush1.bf16.msra.mxu0 0
  %163 = vmatprep.subr.bf16.mxu0 0
  %164 = vmatpush1.bf16.msra.mxu0 0
  %165 = vmatprep.subr.bf16.mxu0 0
  %166 = vmatpush1.bf16.msra.mxu0 0
  %167 = vmatprep.mubr.bf16.mxu0 %v133
  %168 = vmatmul.mubr.bf16.gmra.mrb[0].mxu0 %v56
  %v169 = vpop.f32.mrb[0].mxu0
  %v170 = vadd.f32 %v51, %v169
  %v171 = vpop.f32.mrb[0].mxu0
  %v172 = vpop.f32.mrb[0].mxu0
  %v173 = vpop.f32.mrb[0].mxu0
  %174 = vdwg.mxu0
  %v175 = vxor.u32 %v170, 2147483648
  %v176 = vmul.f32 %v175, 1.442695
  %v177 = vpow.pop %v176
  %v178 = vadd.f32 %v177, 1.0
  %v179 = vrcp.pop %v178
  %v180 = vmul.f32 1.0, %v179
  %v181 = vmul.f32 %v170, %v180
  %v182 = vpack.c.bf16 %v181, %v181
  %v183 = vld [vmem:[%s3] sm:$0xff]
  %v184 = vld [vmem:[%s3 + $0x8] sm:$0xff]
  %v185 = vld [vmem:[%s3 + $0x10] sm:$0xff]
  %v186 = vld [vmem:[%s3 + $0x18] sm:$0xff]
  %v187 = vld [vmem:[%s3 + $0x20] sm:$0xff]
  %v188 = vld [vmem:[%s3 + $0x28] sm:$0xff]
  %v189 = vld [vmem:[%s3 + $0x30] sm:$0xff]
  %v190 = vld [vmem:[%s3 + $0x38] sm:$0xff]
  %v191 = vld [vmem:[%s3 + $0x40] sm:$0xff]
  %v192 = vld [vmem:[%s3 + $0x48] sm:$0xff]
  %v193 = vld [vmem:[%s3 + $0x50] sm:$0xff]
  %v194 = vld [vmem:[%s3 + $0x58] sm:$0xff]
  %v195 = vld [vmem:[%s3 + $0x60] sm:$0xff]
  %v196 = vld [vmem:[%s3 + $0x68] sm:$0xff]
  %v197 = vld [vmem:[%s3 + $0x70] sm:$0xff]
  %v198 = vld [vmem:[%s3 + $0x78] sm:$0xff]
  %v199 = vld [vmem:[%s4] sm:$0x3]
  %v201 = vlaneseq
  %v202 = vshrl.u32 %v201, 7
  %v203 = vsub.s32 0, %v202
  %v204 = vrot.slane %v199, %v203
  %v205 = vlaneseq
  %v206 = vshrl.u32 %v205, 7
  %v207 = vsub.s32 1, %v206
  %v208 = vrot.slane %v199, %v207
  %v227 = vunpack.c.l.b16 %v183
  %v228 = vunpack.c.h.b16 %v183
  %v229 = vunpack.c.l.b16 %v184
  %v230 = vunpack.c.h.b16 %v184
  %v231 = vunpack.c.l.b16 %v185
  %v232 = vunpack.c.h.b16 %v185
  %v233 = vunpack.c.l.b16 %v186
  %v234 = vunpack.c.h.b16 %v186
  %v235 = vunpack.c.l.b16 %v187
  %v236 = vunpack.c.h.b16 %v187
  %v237 = vunpack.c.l.b16 %v188
  %v238 = vunpack.c.h.b16 %v188
  %v239 = vunpack.c.l.b16 %v189
  %v240 = vunpack.c.h.b16 %v189
  %v241 = vunpack.c.l.b16 %v190
  %v242 = vunpack.c.h.b16 %v190
  %v243 = vunpack.c.l.b16 %v191
  %v244 = vunpack.c.h.b16 %v191
  %v245 = vunpack.c.l.b16 %v192
  %v246 = vunpack.c.h.b16 %v192
  %v247 = vunpack.c.l.b16 %v193
  %v248 = vunpack.c.h.b16 %v193
  %v249 = vunpack.c.l.b16 %v194
  %v250 = vunpack.c.h.b16 %v194
  %v251 = vunpack.c.l.b16 %v195
  %v252 = vunpack.c.h.b16 %v195
  %v253 = vunpack.c.l.b16 %v196
  %v254 = vunpack.c.h.b16 %v196
  %v255 = vunpack.c.l.b16 %v197
  %v256 = vunpack.c.h.b16 %v197
  %v257 = vunpack.c.l.b16 %v198
  %v258 = vunpack.c.h.b16 %v198
  %v259 = vpack.c.b16 %v229, %v227
  %v260 = vpack.c.b16 %v230, %v228
  %v261 = vpack.c.b16 %v233, %v231
  %v262 = vpack.c.b16 %v234, %v232
  %v263 = vpack.c.b16 %v237, %v235
  %v264 = vpack.c.b16 %v238, %v236
  %v265 = vpack.c.b16 %v241, %v239
  %v266 = vpack.c.b16 %v242, %v240
  %v267 = vpack.c.b16 %v245, %v243
  %v268 = vpack.c.b16 %v246, %v244
  %v269 = vpack.c.b16 %v249, %v247
  %v270 = vpack.c.b16 %v250, %v248
  %v271 = vpack.c.b16 %v253, %v251
  %v272 = vpack.c.b16 %v254, %v252
  %v273 = vpack.c.b16 %v257, %v255
  %v274 = vpack.c.b16 %v258, %v256
  %291 = vmatprep.subr.bf16.mxu0 %v260
  %292 = vmatpush1.bf16.msra.mxu0 %v259
  %293 = vmatprep.subr.bf16.mxu0 %v262
  %294 = vmatpush1.bf16.msra.mxu0 %v261
  %295 = vmatprep.subr.bf16.mxu0 %v264
  %296 = vmatpush1.bf16.msra.mxu0 %v263
  %297 = vmatprep.subr.bf16.mxu0 %v266
  %298 = vmatpush1.bf16.msra.mxu0 %v265
  %299 = vmatprep.subr.bf16.mxu0 %v268
  %300 = vmatpush1.bf16.msra.mxu0 %v267
  %301 = vmatprep.subr.bf16.mxu0 %v270
  %302 = vmatpush1.bf16.msra.mxu0 %v269
  %303 = vmatprep.subr.bf16.mxu0 %v272
  %304 = vmatpush1.bf16.msra.mxu0 %v271
  %305 = vmatprep.subr.bf16.mxu0 %v274
  %306 = vmatpush1.bf16.msra.mxu0 %v273
  %307 = vmatprep.subr.bf16.mxu0 0
  %308 = vmatpush1.bf16.msra.mxu0 0
  %309 = vmatprep.subr.bf16.mxu0 0
  %310 = vmatpush1.bf16.msra.mxu0 0
  %311 = vmatprep.subr.bf16.mxu0 0
  %312 = vmatpush1.bf16.msra.mxu0 0
  %313 = vmatprep.subr.bf16.mxu0 0
  %314 = vmatpush1.bf16.msra.mxu0 0
  %315 = vmatprep.subr.bf16.mxu0 0
  %316 = vmatpush1.bf16.msra.mxu0 0
  %317 = vmatprep.subr.bf16.mxu0 0
  %318 = vmatpush1.bf16.msra.mxu0 0
  %319 = vmatprep.subr.bf16.mxu0 0
  %320 = vmatpush1.bf16.msra.mxu0 0
  %321 = vmatprep.subr.bf16.mxu0 0
  %322 = vmatpush1.bf16.msra.mxu0 0
  %323 = vmatprep.mubr.bf16.mxu0 0
  %324 = vmatmul.mubr.bf16.gmra.mrb[0].mxu0 %v182
  %v325 = vpop.f32.mrb[0].mxu0
  %v326 = vadd.f32 %v204, %v325
  %v327 = vpop.f32.mrb[0].mxu0
  %v328 = vadd.f32 %v208, %v327
  %v329 = vpop.f32.mrb[0].mxu0
  %v330 = vpop.f32.mrb[0].mxu0
  %331 = vdwg.mxu0
  %v332 = vxor.u32 %v326, 2147483648
  %v333 = vxor.u32 %v328, 2147483648
  %v334 = vmul.f32 %v332, 1.442695
  %v335 = vpow.pop %v334
  %v336 = vmul.f32 %v333, 1.442695
  %v337 = vpow.pop %v336
  %v338 = vadd.f32 %v335, 1.0
  %v339 = vadd.f32 %v337, 1.0
  %v340 = vrcp.pop %v338
  %v341 = vmul.f32 1.0, %v340
  %v342 = vrcp.pop %v339
  %v343 = vmul.f32 1.0, %v342
  %v344 = vpack.c.bf16 %v341, %v341
  %v345 = vpack.c.bf16 %v343, %v343
  %v348 = vunpack.c.l.b16 %v344
  %v349 = vunpack.c.l.b16 %v345
  %v350 = vpack.c.b16 %v349, %v348
  %vm352 = vcmask 1043456
  %vm353 = vcmask 523268
  %vm354 = vmor %vm353, %vm352
  %355 = vst.msk [vmem:[%s5] sm:$0xff] %vm354, %v350
  // Predicated region
  $region22: #{mbconv_forward.6} parent=0 // pred_check
    _
  $region23: #{mbconv_forward.6} parent=0 // pred_check_branch
    %357 = sbr.rel (0) target = $region25
  $region24: #{mbconv_forward.6} parent=0 // pred_region
    _
  $region25: #{mbconv_forward.6} parent=0 // pred_fallthru
    _
  // Predicated region
  $region26: #{mbconv_forward.6} parent=0 // pred_check
    _
  $region27: #{mbconv_forward.6} parent=0 // pred_check_branch
    %359 = sbr.rel (0) target = $region29
  $region28: #{mbconv_forward.6} parent=0 // pred_region
    _
  $region29: #{mbconv_forward.6} parent=0 // pred_fallthru
    _

// kernel: mbconv_forward.4
$region0: #{mbconv_forward.4}
  #allocation0 [shape = 'u32[]', space=smem, size = 0x4, offset = 0x4, fixed_abs, tag = 'smem constant byte address 0x4 - core index']
  #allocation1 [shape = 'u32[144,128]{1,0:T(1,128)}', space=vmem, size = 0x12000, scoped, tag = 'internal scratch']
  %s0 = inlined_call_operand.vmem [shape: bf16[2,256,32], index: 0, kind: input, shape index: {}]
  %s1 = inlined_call_operand.vmem [shape: bf16[32,192], index: 1, kind: input, shape index: {}]
  %s2 = inlined_call_operand.vmem [shape: f32[1,192], index: 2, kind: input, shape index: {}]
  %s3 = inlined_call_operand.vmem [shape: f32[1,192], index: 3, kind: input, shape index: {}]
  %s4 = inlined_call_operand.vmem [shape: bf16[2,256,192], index: 4, kind: output, shape index: {}]
  %s5 = sld [smem:[#allocation0]]
  $region49: #{mbconv_forward.4} parent=0
    _
  %s7 = ssub.s32 1, %s5
  %s8 = scalar_select 0, %s7, %s5
  loop: start=0, step=1, limit=4
  $region2: #{mbconv_forward.4} parent=0 // loop_pre_header
    _
  $region3: #{mbconv_forward.4} parent=0 // loop_header
    %s10 = sphi 0, %s14
    %p11 = scmp.ge.s32.totalorder %s10, 4
    %s17 = sphi 0, %s29
    %s18 = sphi 0, %s25
    %s19 = sphi 0, %s17
    %s20 = sphi 0, %s18
    %s21 = sphi 0, %s19
    %s22 = sphi 0, %s20
    %s34 = sphi 0, %s36
    %s37 = sphi 0, %s34
    %s38 = sphi 0, %s37
    %s54 = sphi 0, %s38
    %s58 = sphi 0, %s58
    %s60 = sphi 0, %s58
    %s61 = sphi 0, %s60
    %s75 = sphi 0, %s61
    %s79 = sphi 0, %s79
    %s81 = sphi 0, %s79
    %s82 = sphi 0, %s81
    %s96 = sphi 0, %s82
    %s100 = sphi 0, %s100
    %s102 = sphi 0, %s100
    %s103 = sphi 0, %s102
    %s117 = sphi 0, %s103
    %s125 = sphi 0, %s127
    %s128 = sphi 0, %s125
    %s129 = sphi 0, %s128
    %s145 = sphi 0, %s129
  $region4: #{mbconv_forward.4} parent=0 // loop_header_branch
    %13 = sbr.rel (%p11) target = $region8
  $region5: #{mbconv_forward.4} parent=0 // loop_body
    %s15 = ssub.s32 %s10, 1
    %s16 = ssub.s32 %s10, 2
    %s23 = sadd.s32 1, %s18
    %p24 = scmp.ge.s32.totalorder %s23, 1
    %s25 = scalar_select %p24, 0, %s23
    %s26 = sadd.s32 1, %s17
    %s27 = scalar_select %p24, %s26, %s17
    %p28 = scmp.ge.s32.totalorder %s27, 2
    %s29 = scalar_select %p28, 0, %s27
    %s30 = ssub.s32 %s17, %s29
    %s31 = ssub.s32 %s18, %s25
    %s32 = sor.u32 %s30, %s31
    %p33 = scmp.eq.s32.totalorder %s32, 0
    %s35 = sadd.s32 %s34, 1
    %s36 = scalar_select %p33, %s34, %s35
    %p39 = pneg %p33
    %p40 = scmp.eq.s32.totalorder %s10, 1
    %p41 = por %p39, %p40
    %p42 = scmp.ne.s32.totalorder %s34, %s37
    %p43 = scmp.eq.s32.totalorder %s10, 0
    %p44 = por %p42, %p43
    %p45 = scmp.ne.s32.totalorder %s34, %s37
    %p46 = scmp.eq.s32.totalorder %s15, 1
    %p47 = por %p45, %p46
    %p48 = scmp.ne.s32.totalorder %s37, %s38
    %p49 = scmp.eq.s32.totalorder %s15, 0
    %p50 = por %p48, %p49
    %p51 = scmp.ne.s32.totalorder %s37, %s38
    %p52 = scmp.eq.s32.totalorder %s16, 1
    %p53 = por %p51, %p52
    %p55 = scmp.ne.s32.totalorder %s38, %s54
    %p56 = scmp.eq.s32.totalorder %s16, 0
    %p57 = por %p55, %p56
    %s59 = sadd.s32 %s58, 1
    %p62 = scmp.eq.s32.totalorder %s10, 1
    %p63 = scmp.ne.s32.totalorder %s58, %s60
    %p64 = scmp.eq.s32.totalorder %s10, 0
    %p65 = por %p63, %p64
    %p66 = scmp.ne.s32.totalorder %s58, %s60
    %p67 = scmp.eq.s32.totalorder %s15, 1
    %p68 = por %p66, %p67
    %p69 = scmp.ne.s32.totalorder %s60, %s61
    %p70 = scmp.eq.s32.totalorder %s15, 0
    %p71 = por %p69, %p70
    %p72 = scmp.ne.s32.totalorder %s60, %s61
    %p73 = scmp.eq.s32.totalorder %s16, 1
    %p74 = por %p72, %p73
    %p76 = scmp.ne.s32.totalorder %s61, %s75
    %p77 = scmp.eq.s32.totalorder %s16, 0
    %p78 = por %p76, %p77
    %s80 = sadd.s32 %s79, 1
    %p83 = scmp.eq.s32.totalorder %s10, 1
    %p84 = scmp.ne.s32.totalorder %s79, %s81
    %p85 = scmp.eq.s32.totalorder %s10, 0
    %p86 = por %p84, %p85
    %p87 = scmp.ne.s32.totalorder %s79, %s81
    %p88 = scmp.eq.s32.totalorder %s15, 1
    %p89 = por %p87, %p88
    %p90 = scmp.ne.s32.totalorder %s81, %s82
    %p91 = scmp.eq.s32.totalorder %s15, 0
    %p92 = por %p90, %p91
    %p93 = scmp.ne.s32.totalorder %s81, %s82
    %p94 = scmp.eq.s32.totalorder %s16, 1
    %p95 = por %p93, %p94
    %p97 = scmp.ne.s32.totalorder %s82, %s96
    %p98 = scmp.eq.s32.totalorder %s16, 0
    %p99 = por %p97, %p98
    %s101 = sadd.s32 %s100, 1
    %p104 = scmp.eq.s32.totalorder %s10, 1
    %p105 = scmp.ne.s32.totalorder %s100, %s102
    %p106 = scmp.eq.s32.totalorder %s10, 0
    %p107 = por %p105, %p106
    %p108 = scmp.ne.s32.totalorder %s100, %s102
    %p109 = scmp.eq.s32.totalorder %s15, 1
    %p110 = por %p108, %p109
    %p111 = scmp.ne.s32.totalorder %s102, %s103
    %p112 = scmp.eq.s32.totalorder %s15, 0
    %p113 = por %p111, %p112
    %p114 = scmp.ne.s32.totalorder %s102, %s103
    %p115 = scmp.eq.s32.totalorder %s16, 1
    %p116 = por %p114, %p115
    %p118 = scmp.ne.s32.totalorder %s103, %s117
    %p119 = scmp.eq.s32.totalorder %s16, 0
    %p120 = por %p118, %p119
    %s121 = ssub.s32 %s17, %s29
    %s122 = ssub.s32 %s18, %s25
    %s123 = sor.u32 %s121, %s122
    %p124 = scmp.eq.s32.totalorder %s123, 0
    %s126 = sadd.s32 %s125, 1
    %s127 = scalar_select %p124, %s125, %s126
    %p130 = pneg %p124
    %p131 = scmp.eq.s32.totalorder %s10, 1
    %p132 = por %p130, %p131
    %p133 = scmp.ne.s32.totalorder %s125, %s128
    %p134 = scmp.eq.s32.totalorder %s10, 0
    %p135 = por %p133, %p134
    %p136 = scmp.ne.s32.totalorder %s125, %s128
    %p137 = scmp.eq.s32.totalorder %s15, 1
    %p138 = por %p136, %p137
    %p139 = scmp.ne.s32.totalorder %s128, %s129
    %p140 = scmp.eq.s32.totalorder %s15, 0
    %p141 = por %p139, %p140
    %p142 = scmp.ne.s32.totalorder %s128, %s129
    %p143 = scmp.eq.s32.totalorder %s16, 1
    %p144 = por %p142, %p143
    %p146 = scmp.ne.s32.totalorder %s129, %s145
    %p147 = scmp.eq.s32.totalorder %s16, 0
    %p148 = por %p146, %p147
    %p149 = scmp.le.s32.totalorder 1, %s10
    %p150 = scmp.lt.s32.totalorder %s10, 3
    %p151 = pnand %p149, %p150
    %p152 = pneg %p151
    // Predicated region
    $region9: #{mbconv_forward.4} parent=5 // pred_check
      _
    $region10: #{mbconv_forward.4} parent=5 // pred_check_branch
      %154 = sbr.rel (%p151) target = $region12
    $region11: #{mbconv_forward.4} parent=5 // pred_region
      %s155 = ssub.s32 %s10, 1
      // Predicated region
      $region13: #{mbconv_forward.4} parent=11 // pred_check
        %p156 = pneg %p71
      $region14: #{mbconv_forward.4} parent=11 // pred_check_branch
        %158 = sbr.rel (%p156) target = $region16
      $region15: #{mbconv_forward.4} parent=11 // pred_region
        _
      $region16: #{mbconv_forward.4} parent=11 // pred_fallthru
        _
      // Predicated region
      $region17: #{mbconv_forward.4} parent=11 // pred_check
        %p159 = pneg %p92
      $region18: #{mbconv_forward.4} parent=11 // pred_check_branch
        %161 = sbr.rel (%p159) target = $region20
      $region19: #{mbconv_forward.4} parent=11 // pred_region
        _
      $region20: #{mbconv_forward.4} parent=11 // pred_fallthru
        _
      // Predicated region
      $region21: #{mbconv_forward.4} parent=11 // pred_check
        %p162 = pneg %p113
      $region22: #{mbconv_forward.4} parent=11 // pred_check_branch
        %164 = sbr.rel (%p162) target = $region24
      $region23: #{mbconv_forward.4} parent=11 // pred_region
        _
      $region24: #{mbconv_forward.4} parent=11 // pred_fallthru
        _
    $region12: #{mbconv_forward.4} parent=5 // pred_fallthru
      _
    %p165 = scmp.lt.s32.totalorder %s10, 2
    // Predicated region
    $region25: #{mbconv_forward.4} parent=5 // pred_check
      %p166 = pneg %p165
    $region26: #{mbconv_forward.4} parent=5 // pred_check_branch
      %168 = sbr.rel (%p166) target = $region28
    $region27: #{mbconv_forward.4} parent=5 // pred_region
      // Predicated region
      $region29: #{mbconv_forward.4} parent=27 // pred_check
        %p169 = pneg %p44
      $region30: #{mbconv_forward.4} parent=27 // pred_check_branch
        %171 = sbr.rel (%p169) target = $region32
      $region31: #{mbconv_forward.4} parent=27 // pred_region
        %s172 = smul.u32 32, %s18
        %p173 = scmp.lt.s32.totalorder %s17, 1
        %s174 = scalar_select %p173, %s17, 1
        %p175 = scmp.lt.s32.totalorder %s172, 31
        %s176 = scalar_select %p175, %s172, 31
        %s177 = smul.addr %s174, 32
        %s178 = sadd.s32 %s176, %s177
        %s179 = smul.addr %s178, 4
        %s180 = scalar_lea.vmem %s0, %s179
        %s181 = smul.u32 32, %s18
      $region32: #{mbconv_forward.4} parent=27 // pred_fallthru
        _
    $region28: #{mbconv_forward.4} parent=5 // pred_fallthru
      _
    %p182 = scmp.le.s32.totalorder 1, %s10
    %p183 = scmp.lt.s32.totalorder %s10, 3
    %p184 = pnand %p182, %p183
    %p185 = pneg %p184
    // Predicated region
    $region33: #{mbconv_forward.4} parent=5 // pred_check
      _
    $region34: #{mbconv_forward.4} parent=5 // pred_check_branch
      %187 = sbr.rel (%p184) target = $region36
    $region35: #{mbconv_forward.4} parent=5 // pred_region
      %s188 = ssub.s32 %s10, 1
      %s189 = smul.u32 32, %s20
      %p190 = scmp.lt.s32.totalorder %s19, 1
      %s191 = scalar_select %p190, %s19, 1
      %p192 = scmp.lt.s32.totalorder %s189, 31
      %s193 = scalar_select %p192, %s189, 31
      %s194 = smul.addr %s191, 32
      %s195 = sadd.s32 %s193, %s194
      %s196 = smul.addr %s195, 4
      %s197 = scalar_lea.vmem %s0, %s196
      %p198 = pneg %p50
      %p199 = pneg %p47
      %p200 = pneg %p71
      %p201 = pneg %p68
      %p202 = pneg %p92
      %p203 = pneg %p89
      %p204 = pneg %p113
      %p205 = pneg %p110
      %p206 = pneg %p141
      %p207 = pneg %p138
      %s208 = smul.u32 32, %s20
      %p209 = scmp.lt.s32.totalorder %s19, 1
      %s210 = scalar_select %p209, %s19, 1
      %p211 = scmp.lt.s32.totalorder %s208, 31
      %s212 = scalar_select %p211, %s208, 31
      %s213 = smul.addr %s212, 2
      %s214 = smul.addr %s210, 64
      %s215 = sadd.s32 %s213, %s214
      %s216 = smul.addr %s215, 4
      %s217 = scalar_lea.vmem %s4, %s216
      %s218 = smul.u32 32, %s20
      %p219 = scmp.lt.s32.totalorder %s19, 1
      %s220 = scalar_select %p219, %s19, 1
      %p221 = scmp.lt.s32.totalorder %s218, 31
      %s222 = scalar_select %p221, %s218, 31
      %s223 = smul.addr %s220, 32
      %s224 = sadd.s32 %s222, %s223
      %s225 = smul.addr %s224, 4
      %s226 = scalar_lea.vmem %s0, %s225
      %s227 = smul.u32 32, %s20
      %s228 = smul.u32 32, %s20
      %p229 = scmp.lt.s32.totalorder %s19, 1
      %s230 = scalar_select %p229, %s19, 1
      %p231 = scmp.lt.s32.totalorder %s228, 31
      %s232 = scalar_select %p231, %s228, 31
      %s233 = smul.addr %s232, 2
      %s234 = smul.addr %s230, 64
      %s235 = sadd.s32 %s233, %s234
      %s236 = smul.addr %s235, 4
      %s237 = scalar_lea.vmem %s4, %s236
      %s238 = smul.u32 32, %s20
      %v240 = vld [vmem:[%s226] sm:$0xf]
      %v241 = vld [vmem:[%s226 + $0x4] sm:$0xf]
      %v242 = vld [vmem:[%s226 + $0x8] sm:$0xf]
      %v243 = vld [vmem:[%s226 + $0xc] sm:$0xf]
      %v244 = vld [vmem:[%s226 + $0x10] sm:$0xf]
      %v245 = vld [vmem:[%s226 + $0x14] sm:$0xf]
      %v246 = vld [vmem:[%s226 + $0x18] sm:$0xf]
      %v247 = vld [vmem:[%s226 + $0x1c] sm:$0xf]
      %v248 = vld [vmem:[%s226 + $0x20] sm:$0xf]
      %v249 = vld [vmem:[%s226 + $0x24] sm:$0xf]
      %v250 = vld [vmem:[%s226 + $0x28] sm:$0xf]
      %v251 = vld [vmem:[%s226 + $0x2c] sm:$0xf]
      %v252 = vld [vmem:[%s226 + $0x30] sm:$0xf]
      %v253 = vld [vmem:[%s226 + $0x34] sm:$0xf]
      %v254 = vld [vmem:[%s226 + $0x38] sm:$0xf]
      %v255 = vld [vmem:[%s226 + $0x3c] sm:$0xf]
      %v256 = vld [vmem:[%s226 + $0x40] sm:$0xf]
      %v257 = vld [vmem:[%s226 + $0x44] sm:$0xf]
      %v258 = vld [vmem:[%s226 + $0x48] sm:$0xf]
      %v259 = vld [vmem:[%s226 + $0x4c] sm:$0xf]
      %v260 = vld [vmem:[%s226 + $0x50] sm:$0xf]
      %v261 = vld [vmem:[%s226 + $0x54] sm:$0xf]
      %v262 = vld [vmem:[%s226 + $0x58] sm:$0xf]
      %v263 = vld [vmem:[%s226 + $0x5c] sm:$0xf]
      %v264 = vld [vmem:[%s226 + $0x60] sm:$0xf]
      %v265 = vld [vmem:[%s226 + $0x64] sm:$0xf]
      %v266 = vld [vmem:[%s226 + $0x68] sm:$0xf]
      %v267 = vld [vmem:[%s226 + $0x6c] sm:$0xf]
      %v268 = vld [vmem:[%s226 + $0x70] sm:$0xf]
      %v269 = vld [vmem:[%s226 + $0x74] sm:$0xf]
      %v270 = vld [vmem:[%s226 + $0x78] sm:$0xf]
      %v271 = vld [vmem:[%s226 + $0x7c] sm:$0xf]
      %v272 = vld [vmem:[%s1] sm:$0xff]
      %v273 = vld [vmem:[%s1 + $0x8] sm:$0xff]
      %v274 = vld [vmem:[%s1 + $0x10] sm:$0xff]
      %v275 = vld [vmem:[%s1 + $0x18] sm:$0xff]
      %v308 = vunpack.c.l.b16 %v240
      %v309 = vunpack.c.l.b16 %v241
      %v310 = vunpack.c.l.b16 %v242
      %v311 = vunpack.c.l.b16 %v243
      %v312 = vunpack.c.l.b16 %v244
      %v313 = vunpack.c.l.b16 %v245
      %v314 = vunpack.c.l.b16 %v246
      %v315 = vunpack.c.l.b16 %v247
      %v316 = vunpack.c.l.b16 %v248
      %v317 = vunpack.c.l.b16 %v249
      %v318 = vunpack.c.l.b16 %v250
      %v319 = vunpack.c.l.b16 %v251
      %v320 = vunpack.c.l.b16 %v252
      %v321 = vunpack.c.l.b16 %v253
      %v322 = vunpack.c.l.b16 %v254
      %v323 = vunpack.c.l.b16 %v255
      %v324 = vunpack.c.l.b16 %v256
      %v325 = vunpack.c.l.b16 %v257
      %v326 = vunpack.c.l.b16 %v258
      %v327 = vunpack.c.l.b16 %v259
      %v328 = vunpack.c.l.b16 %v260
      %v329 = vunpack.c.l.b16 %v261
      %v330 = vunpack.c.l.b16 %v262
      %v331 = vunpack.c.l.b16 %v263
      %v332 = vunpack.c.l.b16 %v264
      %v333 = vunpack.c.l.b16 %v265
      %v334 = vunpack.c.l.b16 %v266
      %v335 = vunpack.c.l.b16 %v267
      %v336 = vunpack.c.l.b16 %v268
      %v337 = vunpack.c.l.b16 %v269
      %v338 = vunpack.c.l.b16 %v270
      %v339 = vunpack.c.l.b16 %v271
      %v340 = vpack.c.b16 %v309, %v308
      %v341 = vpack.c.b16 %v311, %v310
      %v342 = vpack.c.b16 %v313, %v312
      %v343 = vpack.c.b16 %v315, %v314
      %v344 = vpack.c.b16 %v317, %v316
      %v345 = vpack.c.b16 %v319, %v318
      %v346 = vpack.c.b16 %v321, %v320
      %v347 = vpack.c.b16 %v323, %v322
      %v348 = vpack.c.b16 %v325, %v324
      %v349 = vpack.c.b16 %v327, %v326
      %v350 = vpack.c.b16 %v329, %v328
      %v351 = vpack.c.b16 %v331, %v330
      %v352 = vpack.c.b16 %v333, %v332
      %v353 = vpack.c.b16 %v335, %v334
      %v354 = vpack.c.b16 %v337, %v336
      %v355 = vpack.c.b16 %v339, %v338
      %v360 = vunpack.c.l.b16 %v272
      %v361 = vunpack.c.h.b16 %v272
      %v362 = vunpack.c.l.b16 %v273
      %v363 = vunpack.c.h.b16 %v273
      %v364 = vunpack.c.l.b16 %v274
      %v365 = vunpack.c.h.b16 %v274
      %v366 = vunpack.c.l.b16 %v275
      %v367 = vunpack.c.h.b16 %v275
      %v368 = vpack.c.b16 %v362, %v360
      %v369 = vpack.c.b16 %v363, %v361
      %v370 = vpack.c.b16 %v366, %v364
      %v371 = vpack.c.b16 %v367, %v365
      %vm376 = vcmask 261120
      %v378 = vsel %vm376, %v340, 0
      %v381 = vsel %vm376, %v341, 0
      %v384 = vsel %vm376, %v342, 0
      %v387 = vsel %vm376, %v343, 0
      %v390 = vsel %vm376, %v344, 0
      %v393 = vsel %vm376, %v345, 0
      %v396 = vsel %vm376, %v346, 0
      %v399 = vsel %vm376, %v347, 0
      %v402 = vsel %vm376, %v348, 0
      %v405 = vsel %vm376, %v349, 0
      %v408 = vsel %vm376, %v350, 0
      %v411 = vsel %vm376, %v351, 0
      %v414 = vsel %vm376, %v352, 0
      %v417 = vsel %vm376, %v353, 0
      %v420 = vsel %vm376, %v354, 0
      %v423 = vsel %vm376, %v355, 0
      %425 = vmatprep.subr.bf16.mxu0 %v369
      %426 = vmatpush1.bf16.msra.mxu0 %v368
      %427 = vmatprep.subr.bf16.mxu0 %v371
      %428 = vmatpush1.bf16.msra.mxu0 %v370
      %429 = vmatprep.subr.bf16.mxu0 0
      %430 = vmatpush1.bf16.msra.mxu0 0
      %431 = vmatprep.subr.bf16.mxu0 0
      %432 = vmatpush1.bf16.msra.mxu0 0
      %433 = vmatprep.subr.bf16.mxu0 0
      %434 = vmatpush1.bf16.msra.mxu0 0
      %435 = vmatprep.subr.bf16.mxu0 0
      %436 = vmatpush1.bf16.msra.mxu0 0
      %437 = vmatprep.subr.bf16.mxu0 0
      %438 = vmatpush1.bf16.msra.mxu0 0
      %439 = vmatprep.subr.bf16.mxu0 0
      %440 = vmatpush1.bf16.msra.mxu0 0
      %441 = vmatprep.subr.bf16.mxu0 0
      %442 = vmatpush1.bf16.msra.mxu0 0
      %443 = vmatprep.subr.bf16.mxu0 0
      %444 = vmatpush1.bf16.msra.mxu0 0
      %445 = vmatprep.subr.bf16.mxu0 0
      %446 = vmatpush1.bf16.msra.mxu0 0
      %447 = vmatprep.subr.bf16.mxu0 0
      %448 = vmatpush1.bf16.msra.mxu0 0
      %449 = vmatprep.subr.bf16.mxu0 0
      %450 = vmatpush1.bf16.msra.mxu0 0
      %451 = vmatprep.subr.bf16.mxu0 0
      %452 = vmatpush1.bf16.msra.mxu0 0
      %453 = vmatprep.subr.bf16.mxu0 0
      %454 = vmatpush1.bf16.msra.mxu0 0
      %455 = vmatprep.subr.bf16.mxu0 0
      %456 = vmatpush1.bf16.msra.mxu0 0
      %457 = vmatprep.mubr.bf16.mxu0 0
      %458 = vmatmul.mubr.bf16.gmra.mrb[0].mxu0 %v378
      %v459 = vpop.f32.mrb[0].mxu0
      %v460 = vadd.f32 0.0, %v459
      %v461 = vpop.f32.mrb[0].mxu0
      %v462 = vadd.f32 0.0, %v461
      %v463 = vpop.f32.mrb[0].mxu0
      %v464 = vadd.f32 0.0, %v463
      %v465 = vpop.f32.mrb[0].mxu0
      %v466 = vadd.f32 0.0, %v465
      %467 = vmatprep.mubr.bf16.mxu0 0
      %468 = vmatmul.mubr.bf16.gmra.mrb[0].mxu0 %v381
      %v469 = vpop.f32.mrb[0].mxu0
      %v470 = vadd.f32 0.0, %v469
      %v471 = vpop.f32.mrb[0].mxu0
      %v472 = vadd.f32 0.0, %v471
      %v473 = vpop.f32.mrb[0].mxu0
      %v474 = vadd.f32 0.0, %v473
      %v475 = vpop.f32.mrb[0].mxu0
      %v476 = vadd.f32 0.0, %v475
      %477 = vmatprep.mubr.bf16.mxu0 0
      %478 = vmatmul.mubr.bf16.gmra.mrb[0].mxu0 %v384
      %v479 = vpop.f32.mrb[0].mxu0
      %v480 = vadd.f32 0.0, %v479
      %v481 = vpop.f32.mrb[0].mxu0
      %v482 = vadd.f32 0.0, %v481
      %v483 = vpop.f32.mrb[0].mxu0
      %v484 = vadd.f32 0.0, %v483
      %v485 = vpop.f32.mrb[0].mxu0
      %v486 = vadd.f32 0.0, %v485
      %487 = vmatprep.mubr.bf16.mxu0 0
      %488 = vmatmul.mubr.bf16.gmra.mrb[0].mxu0 %v387
      %v489 = vpop.f32.mrb[0].mxu0
      %v490 = vadd.f32 0.0, %v489
      %v491 = vpop.f32.mrb[0].mxu0
      %v492 = vadd.f32 0.0, %v491
      %v493 = vpop.f32.mrb[0].mxu0
      %v494 = vadd.f32 0.0, %v493
      %v495 = vpop.f32.mrb[0].mxu0
      %v496 = vadd.f32 0.0, %v495
      %497 = vmatprep.mubr.bf16.mxu0 0
      %498 = vmatmul.mubr.bf16.gmra.mrb[0].mxu0 %v390
      %v499 = vpop.f32.mrb[0].mxu0
      %v500 = vadd.f32 0.0, %v499
      %v501 = vpop.f32.mrb[0].mxu0
      %v502 = vadd.f32 0.0, %v501
      %v503 = vpop.f32.mrb[0].mxu0
      %v504 = vadd.f32 0.0, %v503
      %v505 = vpop.f32.mrb[0].mxu0
      %v506 = vadd.f32 0.0, %v505
      %507 = vmatprep.mubr.bf16.mxu0 0
      %508 = vmatmul.mubr.bf16.gmra.mrb[0].mxu0 %v393
      %v509 = vpop.f32.mrb[0].mxu0
      %v510 = vadd.f32 0.0, %v509
      %v511 = vpop.f32.mrb[0].mxu0
      %v512 = vadd.f32 0.0, %v511
      %v513 = vpop.f32.mrb[0].mxu0
      %v514 = vadd.f32 0.0, %v513
      %v515 = vpop.f32.mrb[0].mxu0
      %v516 = vadd.f32 0.0, %v515
      %517 = vmatprep.mubr.bf16.mxu0 0
      %518 = vmatmul.mubr.bf16.gmra.mrb[0].mxu0 %v396
      %v519 = vpop.f32.mrb[0].mxu0
      %v520 = vadd.f32 0.0, %v519
      %v521 = vpop.f32.mrb[0].mxu0
      %v522 = vadd.f32 0.0, %v521
      %v523 = vpop.f32.mrb[0].mxu0
      %v524 = vadd.f32 0.0, %v523
      %v525 = vpop.f32.mrb[0].mxu0
      %v526 = vadd.f32 0.0, %v525
      %527 = vmatprep.mubr.bf16.mxu0 0
      %528 = vmatmul.mubr.bf16.gmra.mrb[0].mxu0 %v399
      %v529 = vpop.f32.mrb[0].mxu0
      %v530 = vadd.f32 0.0, %v529
      %v531 = vpop.f32.mrb[0].mxu0
      %v532 = vadd.f32 0.0, %v531
      %v533 = vpop.f32.mrb[0].mxu0
      %v534 = vadd.f32 0.0, %v533
      %v535 = vpop.f32.mrb[0].mxu0
      %v536 = vadd.f32 0.0, %v535
      %537 = vmatprep.mubr.bf16.mxu0 0
      %538 = vmatmul.mubr.bf16.gmra.mrb[0].mxu0 %v402
      %v539 = vpop.f32.mrb[0].mxu0
      %v540 = vadd.f32 0.0, %v539
      %v541 = vpop.f32.mrb[0].mxu0
      %v542 = vadd.f32 0.0, %v541
      %v543 = vpop.f32.mrb[0].mxu0
      %v544 = vadd.f32 0.0, %v543
      %v545 = vpop.f32.mrb[0].mxu0
      %v546 = vadd.f32 0.0, %v545
      %547 = vmatprep.mubr.bf16.mxu0 0
      %548 = vmatmul.mubr.bf16.gmra.mrb[0].mxu0 %v405
      %v549 = vpop.f32.mrb[0].mxu0
      %v550 = vadd.f32 0.0, %v549
      %v551 = vpop.f32.mrb[0].mxu0
      %v552 = vadd.f32 0.0, %v551
      %v553 = vpop.f32.mrb[0].mxu0
      %v554 = vadd.f32 0.0, %v553
      %v555 = vpop.f32.mrb[0].mxu0
      %v556 = vadd.f32 0.0, %v555
      %557 = vmatprep.mubr.bf16.mxu0 0
      %558 = vmatmul.mubr.bf16.gmra.mrb[0].mxu0 %v408
      %v559 = vpop.f32.mrb[0].mxu0
      %v560 = vadd.f32 0.0, %v559
      %v561 = vpop.f32.mrb[0].mxu0
      %v562 = vadd.f32 0.0, %v561
      %v563 = vpop.f32.mrb[0].mxu0
      %v564 = vadd.f32 0.0, %v563
      %v565 = vpop.f32.mrb[0].mxu0
      %v566 = vadd.f32 0.0, %v565
      %567 = vmatprep.mubr.bf16.mxu0 0
      %568 = vmatmul.mubr.bf16.gmra.mrb[0].mxu0 %v411
      %v569 = vpop.f32.mrb[0].mxu0
      %v570 = vadd.f32 0.0, %v569
      %v571 = vpop.f32.mrb[0].mxu0
      %v572 = vadd.f32 0.0, %v571
      %v573 = vpop.f32.mrb[0].mxu0
      %v574 = vadd.f32 0.0, %v573
      %v575 = vpop.f32.mrb[0].mxu0
      %v576 = vadd.f32 0.0, %v575
      %577 = vmatprep.mubr.bf16.mxu0 0
      %578 = vmatmul.mubr.bf16.gmra.mrb[0].mxu0 %v414
      %v579 = vpop.f32.mrb[0].mxu0
      %v580 = vadd.f32 0.0, %v579
      %v581 = vpop.f32.mrb[0].mxu0
      %v582 = vadd.f32 0.0, %v581
      %v583 = vpop.f32.mrb[0].mxu0
      %v584 = vadd.f32 0.0, %v583
      %v585 = vpop.f32.mrb[0].mxu0
      %v586 = vadd.f32 0.0, %v585
      %587 = vmatprep.mubr.bf16.mxu0 0
      %588 = vmatmul.mubr.bf16.gmra.mrb[0].mxu0 %v417
      %v589 = vpop.f32.mrb[0].mxu0
      %v590 = vadd.f32 0.0, %v589
      %v591 = vpop.f32.mrb[0].mxu0
      %v592 = vadd.f32 0.0, %v591
      %v593 = vpop.f32.mrb[0].mxu0
      %v594 = vadd.f32 0.0, %v593
      %v595 = vpop.f32.mrb[0].mxu0
      %v596 = vadd.f32 0.0, %v595
      %597 = vmatprep.mubr.bf16.mxu0 0
      %598 = vmatmul.mubr.bf16.gmra.mrb[0].mxu0 %v420
      %v599 = vpop.f32.mrb[0].mxu0
      %v600 = vadd.f32 0.0, %v599
      %v601 = vpop.f32.mrb[0].mxu0
      %v602 = vadd.f32 0.0, %v601
      %v603 = vpop.f32.mrb[0].mxu0
      %v604 = vadd.f32 0.0, %v603
      %v605 = vpop.f32.mrb[0].mxu0
      %v606 = vadd.f32 0.0, %v605
      %607 = vmatprep.mubr.bf16.mxu0 0
      %608 = vmatmul.mubr.bf16.gmra.mrb[0].mxu0 %v423
      %v609 = vpop.f32.mrb[0].mxu0
      %v610 = vadd.f32 0.0, %v609
      %v611 = vpop.f32.mrb[0].mxu0
      %v612 = vadd.f32 0.0, %v611
      %v613 = vpop.f32.mrb[0].mxu0
      %v614 = vadd.f32 0.0, %v613
      %v615 = vpop.f32.mrb[0].mxu0
      %v616 = vadd.f32 0.0, %v615
      %617 = vdwg.mxu0
      %v618 = vld [vmem:[%s2] sm:$0x3]
      %v620 = vlaneseq
      %v621 = vshrl.u32 %v620, 7
      %v622 = vsub.s32 0, %v621
      %v623 = vrot.slane %v618, %v622
      %v624 = vlaneseq
      %v625 = vshrl.u32 %v624, 7
      %v626 = vsub.s32 1, %v625
      %v627 = vrot.slane %v618, %v626
      %v630 = vmul.f32 %v460, %v623
      %v631 = vmul.f32 %v462, %v627
      %v632 = vmul.f32 %v464, %v623
      %v633 = vmul.f32 %v466, %v627
      %v634 = vmul.f32 %v470, %v623
      %v635 = vmul.f32 %v472, %v627
      %v636 = vmul.f32 %v474, %v623
      %v637 = vmul.f32 %v476, %v627
      %v638 = vmul.f32 %v480, %v623
      %v639 = vmul.f32 %v482, %v627
      %v640 = vmul.f32 %v484, %v623
      %v641 = vmul.f32 %v486, %v627
      %v642 = vmul.f32 %v490, %v623
      %v643 = vmul.f32 %v492, %v627
      %v644 = vmul.f32 %v494, %v623
      %v645 = vmul.f32 %v496, %v627
      %v646 = vmul.f32 %v500, %v623
      %v647 = vmul.f32 %v502, %v627
      %v648 = vmul.f32 %v504, %v623
      %v649 = vmul.f32 %v506, %v627
      %v650 = vmul.f32 %v510, %v623
      %v651 = vmul.f32 %v512, %v627
      %v652 = vmul.f32 %v514, %v623
      %v653 = vmul.f32 %v516, %v627
      %v654 = vmul.f32 %v520, %v623
      %v655 = vmul.f32 %v522, %v627
      %v656 = vmul.f32 %v524, %v623
      %v657 = vmul.f32 %v526, %v627
      %v658 = vmul.f32 %v530, %v623
      %v659 = vmul.f32 %v532, %v627
      %v660 = vmul.f32 %v534, %v623
      %v661 = vmul.f32 %v536, %v627
      %v662 = vmul.f32 %v540, %v623
      %v663 = vmul.f32 %v542, %v627
      %v664 = vmul.f32 %v544, %v623
      %v665 = vmul.f32 %v546, %v627
      %v666 = vmul.f32 %v550, %v623
      %v667 = vmul.f32 %v552, %v627
      %v668 = vmul.f32 %v554, %v623
      %v669 = vmul.f32 %v556, %v627
      %v670 = vmul.f32 %v560, %v623
      %v671 = vmul.f32 %v562, %v627
      %v672 = vmul.f32 %v564, %v623
      %v673 = vmul.f32 %v566, %v627
      %v674 = vmul.f32 %v570, %v623
      %v675 = vmul.f32 %v572, %v627
      %v676 = vmul.f32 %v574, %v623
      %v677 = vmul.f32 %v576, %v627
      %v678 = vmul.f32 %v580, %v623
      %v679 = vmul.f32 %v582, %v627
      %v680 = vmul.f32 %v584, %v623
      %v681 = vmul.f32 %v586, %v627
      %v682 = vmul.f32 %v590, %v623
      %v683 = vmul.f32 %v592, %v627
      %v684 = vmul.f32 %v594, %v623
      %v685 = vmul.f32 %v596, %v627
      %v686 = vmul.f32 %v600, %v623
      %v687 = vmul.f32 %v602, %v627
      %v688 = vmul.f32 %v604, %v623
      %v689 = vmul.f32 %v606, %v627
      %v690 = vmul.f32 %v610, %v623
      %v691 = vmul.f32 %v612, %v627
      %v692 = vmul.f32 %v614, %v623
      %v693 = vmul.f32 %v616, %v627
      %v694 = vld [vmem:[%s3] sm:$0x3]
      %v696 = vlaneseq
      %v697 = vshrl.u32 %v696, 7
      %v698 = vsub.s32 0, %v697
      %v699 = vrot.slane %v694, %v698
      %v700 = vlaneseq
      %v701 = vshrl.u32 %v700, 7
      %v702 = vsub.s32 1, %v701
      %v703 = vrot.slane %v694, %v702
      %v706 = vadd.f32 %v630, %v699
      %v707 = vadd.f32 %v631, %v703
      %v708 = vadd.f32 %v632, %v699
      %v709 = vadd.f32 %v633, %v703
      %v710 = vadd.f32 %v634, %v699
      %v711 = vadd.f32 %v635, %v703
      %v712 = vadd.f32 %v636, %v699
      %v713 = vadd.f32 %v637, %v703
      %v714 = vadd.f32 %v638, %v699
      %v715 = vadd.f32 %v639, %v703
      %v716 = vadd.f32 %v640, %v699
      %v717 = vadd.f32 %v641, %v703
      %v718 = vadd.f32 %v642, %v699
      %v719 = vadd.f32 %v643, %v703
      %v720 = vadd.f32 %v644, %v699
      %v721 = vadd.f32 %v645, %v703
      %v722 = vadd.f32 %v646, %v699
      %v723 = vadd.f32 %v647, %v703
      %v724 = vadd.f32 %v648, %v699
      %v725 = vadd.f32 %v649, %v703
      %v726 = vadd.f32 %v650, %v699
      %v727 = vadd.f32 %v651, %v703
      %v728 = vadd.f32 %v652, %v699
      %v729 = vadd.f32 %v653, %v703
      %v730 = vadd.f32 %v654, %v699
      %v731 = vadd.f32 %v655, %v703
      %v732 = vadd.f32 %v656, %v699
      %v733 = vadd.f32 %v657, %v703
      %v734 = vadd.f32 %v658, %v699
      %v735 = vadd.f32 %v659, %v703
      %v736 = vadd.f32 %v660, %v699
      %v737 = vadd.f32 %v661, %v703
      %v738 = vadd.f32 %v662, %v699
      %v739 = vadd.f32 %v663, %v703
      %v740 = vadd.f32 %v664, %v699
      %v741 = vadd.f32 %v665, %v703
      %v742 = vadd.f32 %v666, %v699
      %v743 = vadd.f32 %v667, %v703
      %v744 = vadd.f32 %v668, %v699
      %v745 = vadd.f32 %v669, %v703
      %v746 = vadd.f32 %v670, %v699
      %v747 = vadd.f32 %v671, %v703
      %v748 = vadd.f32 %v672, %v699
      %v749 = vadd.f32 %v673, %v703
      %v750 = vadd.f32 %v674, %v699
      %v751 = vadd.f32 %v675, %v703
      %v752 = vadd.f32 %v676, %v699
      %v753 = vadd.f32 %v677, %v703
      %v754 = vadd.f32 %v678, %v699
      %v755 = vadd.f32 %v679, %v703
      %v756 = vadd.f32 %v680, %v699
      %v757 = vadd.f32 %v681, %v703
      %v758 = vadd.f32 %v682, %v699
      %v759 = vadd.f32 %v683, %v703
      %v760 = vadd.f32 %v684, %v699
      %v761 = vadd.f32 %v685, %v703
      %v762 = vadd.f32 %v686, %v699
      %v763 = vadd.f32 %v687, %v703
      %v764 = vadd.f32 %v688, %v699
      %v765 = vadd.f32 %v689, %v703
      %v766 = vadd.f32 %v690, %v699
      %v767 = vadd.f32 %v691, %v703
      %v768 = vadd.f32 %v692, %v699
      %v769 = vadd.f32 %v693, %v703
      %v770 = vxor.u32 %v706, 2147483648
      %v771 = vxor.u32 %v707, 2147483648
      %v772 = vxor.u32 %v708, 2147483648
      %v773 = vxor.u32 %v709, 2147483648
      %v774 = vxor.u32 %v710, 2147483648
      %v775 = vxor.u32 %v711, 2147483648
      %v776 = vxor.u32 %v712, 2147483648
      %v777 = vxor.u32 %v713, 2147483648
      %v778 = vxor.u32 %v714, 2147483648
      %v779 = vxor.u32 %v715, 2147483648
      %v780 = vxor.u32 %v716, 2147483648
      %v781 = vxor.u32 %v717, 2147483648
      %v782 = vxor.u32 %v718, 2147483648
      %v783 = vxor.u32 %v719, 2147483648
      %v784 = vxor.u32 %v720, 2147483648
      %v785 = vxor.u32 %v721, 2147483648
      %v786 = vxor.u32 %v722, 2147483648
      %v787 = vxor.u32 %v723, 2147483648
      %v788 = vxor.u32 %v724, 2147483648
      %v789 = vxor.u32 %v725, 2147483648
      %v790 = vxor.u32 %v726, 2147483648
      %v791 = vxor.u32 %v727, 2147483648
      %v792 = vxor.u32 %v728, 2147483648
      %v793 = vxor.u32 %v729, 2147483648
      %v794 = vxor.u32 %v730, 2147483648
      %v795 = vxor.u32 %v731, 2147483648
      %v796 = vxor.u32 %v732, 2147483648
      %v797 = vxor.u32 %v733, 2147483648
      %v798 = vxor.u32 %v734, 2147483648
      %v799 = vxor.u32 %v735, 2147483648
      %v800 = vxor.u32 %v736, 2147483648
      %v801 = vxor.u32 %v737, 2147483648
      %v802 = vxor.u32 %v738, 2147483648
      %v803 = vxor.u32 %v739, 2147483648
      %v804 = vxor.u32 %v740, 2147483648
      %v805 = vxor.u32 %v741, 2147483648
      %v806 = vxor.u32 %v742, 2147483648
      %v807 = vxor.u32 %v743, 2147483648
      %v808 = vxor.u32 %v744, 2147483648
      %v809 = vxor.u32 %v745, 2147483648
      %v810 = vxor.u32 %v746, 2147483648
      %v811 = vxor.u32 %v747, 2147483648
      %v812 = vxor.u32 %v748, 2147483648
      %v813 = vxor.u32 %v749, 2147483648
      %v814 = vxor.u32 %v750, 2147483648
      %v815 = vxor.u32 %v751, 2147483648
      %v816 = vxor.u32 %v752, 2147483648
      %v817 = vxor.u32 %v753, 2147483648
      %v818 = vxor.u32 %v754, 2147483648
      %v819 = vxor.u32 %v755, 2147483648
      %v820 = vxor.u32 %v756, 2147483648
      %v821 = vxor.u32 %v757, 2147483648
      %v822 = vxor.u32 %v758, 2147483648
      %v823 = vxor.u32 %v759, 2147483648
      %v824 = vxor.u32 %v760, 2147483648
      %v825 = vxor.u32 %v761, 2147483648
      %v826 = vxor.u32 %v762, 2147483648
      %v827 = vxor.u32 %v763, 2147483648
      %v828 = vxor.u32 %v764, 2147483648
      %v829 = vxor.u32 %v765, 2147483648
      %v830 = vxor.u32 %v766, 2147483648
      %v831 = vxor.u32 %v767, 2147483648
      %v832 = vxor.u32 %v768, 2147483648
      %v833 = vxor.u32 %v769, 2147483648
      %v834 = vmul.f32 %v770, 1.442695
      %v835 = vpow.pop %v834
      %v836 = vmul.f32 %v771, 1.442695
      %v837 = vpow.pop %v836
      %v838 = vmul.f32 %v772, 1.442695
      %v839 = vpow.pop %v838
      %v840 = vmul.f32 %v773, 1.442695
      %v841 = vpow.pop %v840
      %v842 = vmul.f32 %v774, 1.442695
      %v843 = vpow.pop %v842
      %v844 = vmul.f32 %v775, 1.442695
      %v845 = vpow.pop %v844
      %v846 = vmul.f32 %v776, 1.442695
      %v847 = vpow.pop %v846
      %v848 = vmul.f32 %v777, 1.442695
      %v849 = vpow.pop %v848
      %v850 = vmul.f32 %v778, 1.442695
      %v851 = vpow.pop %v850
      %v852 = vmul.f32 %v779, 1.442695
      %v853 = vpow.pop %v852
      %v854 = vmul.f32 %v780, 1.442695
      %v855 = vpow.pop %v854
      %v856 = vmul.f32 %v781, 1.442695
      %v857 = vpow.pop %v856
      %v858 = vmul.f32 %v782, 1.442695
      %v859 = vpow.pop %v858
      %v860 = vmul.f32 %v783, 1.442695
      %v861 = vpow.pop %v860
      %v862 = vmul.f32 %v784, 1.442695
      %v863 = vpow.pop %v862
      %v864 = vmul.f32 %v785, 1.442695
      %v865 = vpow.pop %v864
      %v866 = vmul.f32 %v786, 1.442695
      %v867 = vpow.pop %v866
      %v868 = vmul.f32 %v787, 1.442695
      %v869 = vpow.pop %v868
      %v870 = vmul.f32 %v788, 1.442695
      %v871 = vpow.pop %v870
      %v872 = vmul.f32 %v789, 1.442695
      %v873 = vpow.pop %v872
      %v874 = vmul.f32 %v790, 1.442695
      %v875 = vpow.pop %v874
      %v876 = vmul.f32 %v791, 1.442695
      %v877 = vpow.pop %v876
      %v878 = vmul.f32 %v792, 1.442695
      %v879 = vpow.pop %v878
      %v880 = vmul.f32 %v793, 1.442695
      %v881 = vpow.pop %v880
      %v882 = vmul.f32 %v794, 1.442695
      %v883 = vpow.pop %v882
      %v884 = vmul.f32 %v795, 1.442695
      %v885 = vpow.pop %v884
      %v886 = vmul.f32 %v796, 1.442695
      %v887 = vpow.pop %v886
      %v888 = vmul.f32 %v797, 1.442695
      %v889 = vpow.pop %v888
      %v890 = vmul.f32 %v798, 1.442695
      %v891 = vpow.pop %v890
      %v892 = vmul.f32 %v799, 1.442695
      %v893 = vpow.pop %v892
      %v894 = vmul.f32 %v800, 1.442695
      %v895 = vpow.pop %v894
      %v896 = vmul.f32 %v801, 1.442695
      %v897 = vpow.pop %v896
      %v898 = vmul.f32 %v802, 1.442695
      %v899 = vpow.pop %v898
      %v900 = vmul.f32 %v803, 1.442695
      %v901 = vpow.pop %v900
      %v902 = vmul.f32 %v804, 1.442695
      %v903 = vpow.pop %v902
      %v904 = vmul.f32 %v805, 1.442695
      %v905 = vpow.pop %v904
      %v906 = vmul.f32 %v806, 1.442695
      %v907 = vpow.pop %v906
      %v908 = vmul.f32 %v807, 1.442695
      %v909 = vpow.pop %v908
      %v910 = vmul.f32 %v808, 1.442695
      %v911 = vpow.pop %v910
      %v912 = vmul.f32 %v809, 1.442695
      %v913 = vpow.pop %v912
      %v914 = vmul.f32 %v810, 1.442695
      %v915 = vpow.pop %v914
      %v916 = vmul.f32 %v811, 1.442695
      %v917 = vpow.pop %v916
      %v918 = vmul.f32 %v812, 1.442695
      %v919 = vpow.pop %v918
      %v920 = vmul.f32 %v813, 1.442695
      %v921 = vpow.pop %v920
      %v922 = vmul.f32 %v814, 1.442695
      %v923 = vpow.pop %v922
      %v924 = vmul.f32 %v815, 1.442695
      %v925 = vpow.pop %v924
      %v926 = vmul.f32 %v816, 1.442695
      %v927 = vpow.pop %v926
      %v928 = vmul.f32 %v817, 1.442695
      %v929 = vpow.pop %v928
      %v930 = vmul.f32 %v818, 1.442695
      %v931 = vpow.pop %v930
      %v932 = vmul.f32 %v819, 1.442695
      %v933 = vpow.pop %v932
      %v934 = vmul.f32 %v820, 1.442695
      %v935 = vpow.pop %v934
      %v936 = vmul.f32 %v821, 1.442695
      %v937 = vpow.pop %v936
      %v938 = vmul.f32 %v822, 1.442695
      %v939 = vpow.pop %v938
      %v940 = vmul.f32 %v823, 1.442695
      %v941 = vpow.pop %v940
      %v942 = vmul.f32 %v824, 1.442695
      %v943 = vpow.pop %v942
      %v944 = vmul.f32 %v825, 1.442695
      %v945 = vpow.pop %v944
      %v946 = vmul.f32 %v826, 1.442695
      %v947 = vpow.pop %v946
      %v948 = vmul.f32 %v827, 1.442695
      %v949 = vpow.pop %v948
      %v950 = vmul.f32 %v828, 1.442695
      %v951 = vpow.pop %v950
      %v952 = vmul.f32 %v829, 1.442695
      %v953 = vpow.pop %v952
      %v954 = vmul.f32 %v830, 1.442695
      %v955 = vpow.pop %v954
      %v956 = vmul.f32 %v831, 1.442695
      %v957 = vpow.pop %v956
      %v958 = vmul.f32 %v832, 1.442695
      %v959 = vpow.pop %v958
      %v960 = vmul.f32 %v833, 1.442695
      %v961 = vpow.pop %v960
      %v962 = vadd.f32 %v835, 1.0
      %v963 = vadd.f32 %v837, 1.0
      %v964 = vadd.f32 %v839, 1.0
      %v965 = vadd.f32 %v841, 1.0
      %v966 = vadd.f32 %v843, 1.0
      %v967 = vadd.f32 %v845, 1.0
      %v968 = vadd.f32 %v847, 1.0
      %v969 = vadd.f32 %v849, 1.0
      %v970 = vadd.f32 %v851, 1.0
      %v971 = vadd.f32 %v853, 1.0
      %v972 = vadd.f32 %v855, 1.0
      %v973 = vadd.f32 %v857, 1.0
      %v974 = vadd.f32 %v859, 1.0
      %v975 = vadd.f32 %v861, 1.0
      %v976 = vadd.f32 %v863, 1.0
      %v977 = vadd.f32 %v865, 1.0
      %v978 = vadd.f32 %v867, 1.0
      %v979 = vadd.f32 %v869, 1.0
      %v980 = vadd.f32 %v871, 1.0
      %v981 = vadd.f32 %v873, 1.0
      %v982 = vadd.f32 %v875, 1.0
      %v983 = vadd.f32 %v877, 1.0
      %v984 = vadd.f32 %v879, 1.0
      %v985 = vadd.f32 %v881, 1.0
      %v986 = vadd.f32 %v883, 1.0
      %v987 = vadd.f32 %v885, 1.0
      %v988 = vadd.f32 %v887, 1.0
      %v989 = vadd.f32 %v889, 1.0
      %v990 = vadd.f32 %v891, 1.0
      %v991 = vadd.f32 %v893, 1.0
      %v992 = vadd.f32 %v895, 1.0
      %v993 = vadd.f32 %v897, 1.0
      %v994 = vadd.f32 %v899, 1.0
      %v995 = vadd.f32 %v901, 1.0
      %v996 = vadd.f32 %v903, 1.0
      %v997 = vadd.f32 %v905, 1.0
      %v998 = vadd.f32 %v907, 1.0
      %v999 = vadd.f32 %v909, 1.0
      %v1000 = vadd.f32 %v911, 1.0
      %v1001 = vadd.f32 %v913, 1.0
      %v1002 = vadd.f32 %v915, 1.0
      %v1003 = vadd.f32 %v917, 1.0
      %v1004 = vadd.f32 %v919, 1.0
      %v1005 = vadd.f32 %v921, 1.0
      %v1006 = vadd.f32 %v923, 1.0
      %v1007 = vadd.f32 %v925, 1.0
      %v1008 = vadd.f32 %v927, 1.0
      %v1009 = vadd.f32 %v929, 1.0
      %v1010 = vadd.f32 %v931, 1.0
      %v1011 = vadd.f32 %v933, 1.0
      %v1012 = vadd.f32 %v935, 1.0
      %v1013 = vadd.f32 %v937, 1.0
      %v1014 = vadd.f32 %v939, 1.0
      %v1015 = vadd.f32 %v941, 1.0
      %v1016 = vadd.f32 %v943, 1.0
      %v1017 = vadd.f32 %v945, 1.0
      %v1018 = vadd.f32 %v947, 1.0
      %v1019 = vadd.f32 %v949, 1.0
      %v1020 = vadd.f32 %v951, 1.0
      %v1021 = vadd.f32 %v953, 1.0
      %v1022 = vadd.f32 %v955, 1.0
      %v1023 = vadd.f32 %v957, 1.0
      %v1024 = vadd.f32 %v959, 1.0
      %v1025 = vadd.f32 %v961, 1.0
      %v1026 = vrcp.pop %v962
      %v1027 = vmul.f32 1.0, %v1026
      %v1028 = vrcp.pop %v963
      %v1029 = vmul.f32 1.0, %v1028
      %v1030 = vrcp.pop %v964
      %v1031 = vmul.f32 1.0, %v1030
      %v1032 = vrcp.pop %v965
      %v1033 = vmul.f32 1.0, %v1032
      %v1034 = vrcp.pop %v966
      %v1035 = vmul.f32 1.0, %v1034
      %v1036 = vrcp.pop %v967
      %v1037 = vmul.f32 1.0, %v1036
      %v1038 = vrcp.pop %v968
      %v1039 = vmul.f32 1.0, %v1038
      %v1040 = vrcp.pop %v969
      %v1041 = vmul.f32 1.0, %v1040
      %v1042 = vrcp.pop %v970
      %v1043 = vmul.f32 1.0, %v1042
      %v1044 = vrcp.pop %v971
      %v1045 = vmul.f32 1.0, %v1044
      %v1046 = vrcp.pop %v972
      %v1047 = vmul.f32 1.0, %v1046
      %v1048 = vrcp.pop %v973
      %v1049 = vmul.f32 1.0, %v1048
      %v1050 = vrcp.pop %v974
      %v1051 = vmul.f32 1.0, %v1050
      %v1052 = vrcp.pop %v975
      %v1053 = vmul.f32 1.0, %v1052
      %v1054 = vrcp.pop %v976
      %v1055 = vmul.f32 1.0, %v1054
      %v1056 = vrcp.pop %v977
      %v1057 = vmul.f32 1.0, %v1056
      %v1058 = vrcp.pop %v978
      %v1059 = vmul.f32 1.0, %v1058
      %v1060 = vrcp.pop %v979
      %v1061 = vmul.f32 1.0, %v1060
      %v1062 = vrcp.pop %v980
      %v1063 = vmul.f32 1.0, %v1062
      %v1064 = vrcp.pop %v981
      %v1065 = vmul.f32 1.0, %v1064
      %v1066 = vrcp.pop %v982
      %v1067 = vmul.f32 1.0, %v1066
      %v1068 = vrcp.pop %v983
      %v1069 = vmul.f32 1.0, %v1068
      %v1070 = vrcp.pop %v984
      %v1071 = vmul.f32 1.0, %v1070
      %v1072 = vrcp.pop %v985
      %v1073 = vmul.f32 1.0, %v1072
      %v1074 = vrcp.pop %v986
      %v1075 = vmul.f32 1.0, %v1074
      %v1076 = vrcp.pop %v987
      %v1077 = vmul.f32 1.0, %v1076
      %v1078 = vrcp.pop %v988
      %v1079 = vmul.f32 1.0, %v1078
      %v1080 = vrcp.pop %v989
      %v1081 = vmul.f32 1.0, %v1080
      %v1082 = vrcp.pop %v990
      %v1083 = vmul.f32 1.0, %v1082
      %v1084 = vrcp.pop %v991
      %v1085 = vmul.f32 1.0, %v1084
      %v1086 = vrcp.pop %v992
      %v1087 = vmul.f32 1.0, %v1086
      %v1088 = vrcp.pop %v993
      %v1089 = vmul.f32 1.0, %v1088
      %v1090 = vrcp.pop %v994
      %v1091 = vmul.f32 1.0, %v1090
      %v1092 = vrcp.pop %v995
      %v1093 = vmul.f32 1.0, %v1092
      %v1094 = vrcp.pop %v996
      %v1095 = vmul.f32 1.0, %v1094
      %v1096 = vrcp.pop %v997
      %v1097 = vmul.f32 1.0, %v1096
      %v1098 = vrcp.pop %v998
      %v1099 = vmul.f32 1.0, %v1098
      %v1100 = vrcp.pop %v999
      %v1101 = vmul.f32 1.0, %v1100
      %v1102 = vrcp.pop %v1000
      %v1103 = vmul.f32 1.0, %v1102
      %v1104 = vrcp.pop %v1001
      %v1105 = vmul.f32 1.0, %v1104
      %v1106 = vrcp.pop %v1002
      %v1107 = vmul.f32 1.0, %v1106
      %v1108 = vrcp.pop %v1003
      %v1109 = vmul.f32 1.0, %v1108
      %v1110 = vrcp.pop %v1004
      %v1111 = vmul.f32 1.0, %v1110
      %v1112 = vrcp.pop %v1005
      %v1113 = vmul.f32 1.0, %v1112
      %v1114 = vrcp.pop %v1006
      %v1115 = vmul.f32 1.0, %v1114
      %v1116 = vrcp.pop %v1007
      %v1117 = vmul.f32 1.0, %v1116
      %v1118 = vrcp.pop %v1008
      %v1119 = vmul.f32 1.0, %v1118
      %v1120 = vrcp.pop %v1009
      %v1121 = vmul.f32 1.0, %v1120
      %v1122 = vrcp.pop %v1010
      %v1123 = vmul.f32 1.0, %v1122
      %v1124 = vrcp.pop %v1011
      %v1125 = vmul.f32 1.0, %v1124
      %v1126 = vrcp.pop %v1012
      %v1127 = vmul.f32 1.0, %v1126
      %v1128 = vrcp.pop %v1013
      %v1129 = vmul.f32 1.0, %v1128
      %v1130 = vrcp.pop %v1014
      %v1131 = vmul.f32 1.0, %v1130
      %v1132 = vrcp.pop %v1015
      %v1133 = vmul.f32 1.0, %v1132
      %v1134 = vrcp.pop %v1016
      %v1135 = vmul.f32 1.0, %v1134
      %v1136 = vrcp.pop %v1017
      %v1137 = vmul.f32 1.0, %v1136
      %v1138 = vrcp.pop %v1018
      %v1139 = vmul.f32 1.0, %v1138
      %v1140 = vrcp.pop %v1019
      %v1141 = vmul.f32 1.0, %v1140
      %v1142 = vrcp.pop %v1020
      %v1143 = vmul.f32 1.0, %v1142
      %v1144 = vrcp.pop %v1021
      %v1145 = vmul.f32 1.0, %v1144
      %v1146 = vrcp.pop %v1022
      %v1147 = vmul.f32 1.0, %v1146
      %v1148 = vrcp.pop %v1023
      %v1149 = vmul.f32 1.0, %v1148
      %v1150 = vrcp.pop %v1024
      %v1151 = vmul.f32 1.0, %v1150
      %v1152 = vrcp.pop %v1025
      %v1153 = vmul.f32 1.0, %v1152
      %v1154 = vmul.f32 %v706, %v1027
      %v1155 = vmul.f32 %v707, %v1029
      %v1156 = vmul.f32 %v708, %v1031
      %v1157 = vmul.f32 %v709, %v1033
      %v1158 = vmul.f32 %v710, %v1035
      %v1159 = vmul.f32 %v711, %v1037
      %v1160 = vmul.f32 %v712, %v1039
      %v1161 = vmul.f32 %v713, %v1041
      %v1162 = vmul.f32 %v714, %v1043
      %v1163 = vmul.f32 %v715, %v1045
      %v1164 = vmul.f32 %v716, %v1047
      %v1165 = vmul.f32 %v717, %v1049
      %v1166 = vmul.f32 %v718, %v1051
      %v1167 = vmul.f32 %v719, %v1053
      %v1168 = vmul.f32 %v720, %v1055
      %v1169 = vmul.f32 %v721, %v1057
      %v1170 = vmul.f32 %v722, %v1059
      %v1171 = vmul.f32 %v723, %v1061
      %v1172 = vmul.f32 %v724, %v1063
      %v1173 = vmul.f32 %v725, %v1065
      %v1174 = vmul.f32 %v726, %v1067
      %v1175 = vmul.f32 %v727, %v1069
      %v1176 = vmul.f32 %v728, %v1071
      %v1177 = vmul.f32 %v729, %v1073
      %v1178 = vmul.f32 %v730, %v1075
      %v1179 = vmul.f32 %v731, %v1077
      %v1180 = vmul.f32 %v732, %v1079
      %v1181 = vmul.f32 %v733, %v1081
      %v1182 = vmul.f32 %v734, %v1083
      %v1183 = vmul.f32 %v735, %v1085
      %v1184 = vmul.f32 %v736, %v1087
      %v1185 = vmul.f32 %v737, %v1089
      %v1186 = vmul.f32 %v738, %v1091
      %v1187 = vmul.f32 %v739, %v1093
      %v1188 = vmul.f32 %v740, %v1095
      %v1189 = vmul.f32 %v741, %v1097
      %v1190 = vmul.f32 %v742, %v1099
      %v1191 = vmul.f32 %v743, %v1101
      %v1192 = vmul.f32 %v744, %v1103
      %v1193 = vmul.f32 %v745, %v1105
      %v1194 = vmul.f32 %v746, %v1107
      %v1195 = vmul.f32 %v747, %v1109
      %v1196 = vmul.f32 %v748, %v1111
      %v1197 = vmul.f32 %v749, %v1113
      %v1198 = vmul.f32 %v750, %v1115
      %v1199 = vmul.f32 %v751, %v1117
      %v1200 = vmul.f32 %v752, %v1119
      %v1201 = vmul.f32 %v753, %v1121
      %v1202 = vmul.f32 %v754, %v1123
      %v1203 = vmul.f32 %v755, %v1125
      %v1204 = vmul.f32 %v756, %v1127
      %v1205 = vmul.f32 %v757, %v1129
      %v1206 = vmul.f32 %v758, %v1131
      %v1207 = vmul.f32 %v759, %v1133
      %v1208 = vmul.f32 %v760, %v1135
      %v1209 = vmul.f32 %v761, %v1137
      %v1210 = vmul.f32 %v762, %v1139
      %v1211 = vmul.f32 %v763, %v1141
      %v1212 = vmul.f32 %v764, %v1143
      %v1213 = vmul.f32 %v765, %v1145
      %v1214 = vmul.f32 %v766, %v1147
      %v1215 = vmul.f32 %v767, %v1149
      %v1216 = vmul.f32 %v768, %v1151
      %v1217 = vmul.f32 %v769, %v1153
      %v1218 = vpack.c.bf16 %v1156, %v1154
      %v1219 = vpack.c.bf16 %v1157, %v1155
      %v1220 = vpack.c.bf16 %v1160, %v1158
      %v1221 = vpack.c.bf16 %v1161, %v1159
      %v1222 = vpack.c.bf16 %v1164, %v1162
      %v1223 = vpack.c.bf16 %v1165, %v1163
      %v1224 = vpack.c.bf16 %v1168, %v1166
      %v1225 = vpack.c.bf16 %v1169, %v1167
      %v1226 = vpack.c.bf16 %v1172, %v1170
      %v1227 = vpack.c.bf16 %v1173, %v1171
      %v1228 = vpack.c.bf16 %v1176, %v1174
      %v1229 = vpack.c.bf16 %v1177, %v1175
      %v1230 = vpack.c.bf16 %v1180, %v1178
      %v1231 = vpack.c.bf16 %v1181, %v1179
      %v1232 = vpack.c.bf16 %v1184, %v1182
      %v1233 = vpack.c.bf16 %v1185, %v1183
      %v1234 = vpack.c.bf16 %v1188, %v1186
      %v1235 = vpack.c.bf16 %v1189, %v1187
      %v1236 = vpack.c.bf16 %v1192, %v1190
      %v1237 = vpack.c.bf16 %v1193, %v1191
      %v1238 = vpack.c.bf16 %v1196, %v1194
      %v1239 = vpack.c.bf16 %v1197, %v1195
      %v1240 = vpack.c.bf16 %v1200, %v1198
      %v1241 = vpack.c.bf16 %v1201, %v1199
      %v1242 = vpack.c.bf16 %v1204, %v1202
      %v1243 = vpack.c.bf16 %v1205, %v1203
      %v1244 = vpack.c.bf16 %v1208, %v1206
      %v1245 = vpack.c.bf16 %v1209, %v1207
      %v1246 = vpack.c.bf16 %v1212, %v1210
      %v1247 = vpack.c.bf16 %v1213, %v1211
      %v1248 = vpack.c.bf16 %v1216, %v1214
      %v1249 = vpack.c.bf16 %v1217, %v1215
      %v1282 = vunpack.c.l.b16 %v1218
      %v1283 = vunpack.c.l.b16 %v1219
      %v1284 = vunpack.c.h.b16 %v1218
      %v1285 = vunpack.c.h.b16 %v1219
      %v1286 = vunpack.c.l.b16 %v1220
      %v1287 = vunpack.c.l.b16 %v1221
      %v1288 = vunpack.c.h.b16 %v1220
      %v1289 = vunpack.c.h.b16 %v1221
      %v1290 = vunpack.c.l.b16 %v1222
      %v1291 = vunpack.c.l.b16 %v1223
      %v1292 = vunpack.c.h.b16 %v1222
      %v1293 = vunpack.c.h.b16 %v1223
      %v1294 = vunpack.c.l.b16 %v1224
      %v1295 = vunpack.c.l.b16 %v1225
      %v1296 = vunpack.c.h.b16 %v1224
      %v1297 = vunpack.c.h.b16 %v1225
      %v1298 = vunpack.c.l.b16 %v1226
      %v1299 = vunpack.c.l.b16 %v1227
      %v1300 = vunpack.c.h.b16 %v1226
      %v1301 = vunpack.c.h.b16 %v1227
      %v1302 = vunpack.c.l.b16 %v1228
      %v1303 = vunpack.c.l.b16 %v1229
      %v1304 = vunpack.c.h.b16 %v1228
      %v1305 = vunpack.c.h.b16 %v1229
      %v1306 = vunpack.c.l.b16 %v1230
      %v1307 = vunpack.c.l.b16 %v1231
      %v1308 = vunpack.c.h.b16 %v1230
      %v1309 = vunpack.c.h.b16 %v1231
      %v1310 = vunpack.c.l.b16 %v1232
      %v1311 = vunpack.c.l.b16 %v1233
      %v1312 = vunpack.c.h.b16 %v1232
      %v1313 = vunpack.c.h.b16 %v1233
      %v1314 = vunpack.c.l.b16 %v1234
      %v1315 = vunpack.c.l.b16 %v1235
      %v1316 = vunpack.c.h.b16 %v1234
      %v1317 = vunpack.c.h.b16 %v1235
      %v1318 = vunpack.c.l.b16 %v1236
      %v1319 = vunpack.c.l.b16 %v1237
      %v1320 = vunpack.c.h.b16 %v1236
      %v1321 = vunpack.c.h.b16 %v1237
      %v1322 = vunpack.c.l.b16 %v1238
      %v1323 = vunpack.c.l.b16 %v1239
      %v1324 = vunpack.c.h.b16 %v1238
      %v1325 = vunpack.c.h.b16 %v1239
      %v1326 = vunpack.c.l.b16 %v1240
      %v1327 = vunpack.c.l.b16 %v1241
      %v1328 = vunpack.c.h.b16 %v1240
      %v1329 = vunpack.c.h.b16 %v1241
      %v1330 = vunpack.c.l.b16 %v1242
      %v1331 = vunpack.c.l.b16 %v1243
      %v1332 = vunpack.c.h.b16 %v1242
      %v1333 = vunpack.c.h.b16 %v1243
      %v1334 = vunpack.c.l.b16 %v1244
      %v1335 = vunpack.c.l.b16 %v1245
      %v1336 = vunpack.c.h.b16 %v1244
      %v1337 = vunpack.c.h.b16 %v1245
      %v1338 = vunpack.c.l.b16 %v1246
      %v1339 = vunpack.c.l.b16 %v1247
      %v1340 = vunpack.c.h.b16 %v1246
      %v1341 = vunpack.c.h.b16 %v1247
      %v1342 = vunpack.c.l.b16 %v1248
      %v1343 = vunpack.c.l.b16 %v1249
      %v1344 = vunpack.c.h.b16 %v1248
      %v1345 = vunpack.c.h.b16 %v1249
      %v1346 = vpack.c.b16 %v1283, %v1282
      %v1347 = vpack.c.b16 %v1285, %v1284
      %v1348 = vpack.c.b16 %v1287, %v1286
      %v1349 = vpack.c.b16 %v1289, %v1288
      %v1350 = vpack.c.b16 %v1291, %v1290
      %v1351 = vpack.c.b16 %v1293, %v1292
      %v1352 = vpack.c.b16 %v1295, %v1294
      %v1353 = vpack.c.b16 %v1297, %v1296
      %v1354 = vpack.c.b16 %v1299, %v1298
      %v1355 = vpack.c.b16 %v1301, %v1300
      %v1356 = vpack.c.b16 %v1303, %v1302
      %v1357 = vpack.c.b16 %v1305, %v1304
      %v1358 = vpack.c.b16 %v1307, %v1306
      %v1359 = vpack.c.b16 %v1309, %v1308
      %v1360 = vpack.c.b16 %v1311, %v1310
      %v1361 = vpack.c.b16 %v1313, %v1312
      %v1362 = vpack.c.b16 %v1315, %v1314
      %v1363 = vpack.c.b16 %v1317, %v1316
      %v1364 = vpack.c.b16 %v1319, %v1318
      %v1365 = vpack.c.b16 %v1321, %v1320
      %v1366 = vpack.c.b16 %v1323, %v1322
      %v1367 = vpack.c.b16 %v1325, %v1324
      %v1368 = vpack.c.b16 %v1327, %v1326
      %v1369 = vpack.c.b16 %v1329, %v1328
      %v1370 = vpack.c.b16 %v1331, %v1330
      %v1371 = vpack.c.b16 %v1333, %v1332
      %v1372 = vpack.c.b16 %v1335, %v1334
      %v1373 = vpack.c.b16 %v1337, %v1336
      %v1374 = vpack.c.b16 %v1339, %v1338
      %v1375 = vpack.c.b16 %v1341, %v1340
      %v1376 = vpack.c.b16 %v1343, %v1342
      %v1377 = vpack.c.b16 %v1345, %v1344
      %vm1410 = vcmask 1043456
      %vm1411 = vcmask 523268
      %vm1412 = vmor %vm1411, %vm1410
      %1413 = vst.msk [vmem:[%s237] sm:$0xff] %vm1412, %v1346
      %1414 = vst.msk [vmem:[%s237 + $0x8] sm:$0xff] %vm1412, %v1347
      %1415 = vst.msk [vmem:[%s237 + $0x10] sm:$0xff] %vm1412, %v1348
      %1416 = vst.msk [vmem:[%s237 + $0x18] sm:$0xff] %vm1412, %v1349
      %1417 = vst.msk [vmem:[%s237 + $0x20] sm:$0xff] %vm1412, %v1350
      %1418 = vst.msk [vmem:[%s237 + $0x28] sm:$0xff] %vm1412, %v1351
      %1419 = vst.msk [vmem:[%s237 + $0x30] sm:$0xff] %vm1412, %v1352
      %1420 = vst.msk [vmem:[%s237 + $0x38] sm:$0xff] %vm1412, %v1353
      %1421 = vst.msk [vmem:[%s237 + $0x40] sm:$0xff] %vm1412, %v1354
      %1422 = vst.msk [vmem:[%s237 + $0x48] sm:$0xff] %vm1412, %v1355
      %1423 = vst.msk [vmem:[%s237 + $0x50] sm:$0xff] %vm1412, %v1356
      %1424 = vst.msk [vmem:[%s237 + $0x58] sm:$0xff] %vm1412, %v1357
      %1425 = vst.msk [vmem:[%s237 + $0x60] sm:$0xff] %vm1412, %v1358
      %1426 = vst.msk [vmem:[%s237 + $0x68] sm:$0xff] %vm1412, %v1359
      %1427 = vst.msk [vmem:[%s237 + $0x70] sm:$0xff] %vm1412, %v1360
      %1428 = vst.msk [vmem:[%s237 + $0x78] sm:$0xff] %vm1412, %v1361
      %1429 = vst.msk [vmem:[%s237 + $0x80] sm:$0xff] %vm1412, %v1362
      %1430 = vst.msk [vmem:[%s237 + $0x88] sm:$0xff] %vm1412, %v1363
      %1431 = vst.msk [vmem:[%s237 + $0x90] sm:$0xff] %vm1412, %v1364
      %1432 = vst.msk [vmem:[%s237 + $0x98] sm:$0xff] %vm1412, %v1365
      %1433 = vst.msk [vmem:[%s237 + $0xa0] sm:$0xff] %vm1412, %v1366
      %1434 = vst.msk [vmem:[%s237 + $0xa8] sm:$0xff] %vm1412, %v1367
      %1435 = vst.msk [vmem:[%s237 + $0xb0] sm:$0xff] %vm1412, %v1368
      %1436 = vst.msk [vmem:[%s237 + $0xb8] sm:$0xff] %vm1412, %v1369
      %1437 = vst.msk [vmem:[%s237 + $0xc0] sm:$0xff] %vm1412, %v1370
      %1438 = vst.msk [vmem:[%s237 + $0xc8] sm:$0xff] %vm1412, %v1371
      %1439 = vst.msk [vmem:[%s237 + $0xd0] sm:$0xff] %vm1412, %v1372
      %1440 = vst.msk [vmem:[%s237 + $0xd8] sm:$0xff] %vm1412, %v1373
      %1441 = vst.msk [vmem:[%s237 + $0xe0] sm:$0xff] %vm1412, %v1374
      %1442 = vst.msk [vmem:[%s237 + $0xe8] sm:$0xff] %vm1412, %v1375
      %1443 = vst.msk [vmem:[%s237 + $0xf0] sm:$0xff] %vm1412, %v1376
      %1444 = vst.msk [vmem:[%s237 + $0xf8] sm:$0xff] %vm1412, %v1377
      %s1445 = smul.u32 32, %s20
      %p1446 = scmp.lt.s32.totalorder %s19, 1
      %s1447 = scalar_select %p1446, %s19, 1
      %p1448 = scmp.lt.s32.totalorder %s1445, 31
      %s1449 = scalar_select %p1448, %s1445, 31
      %s1450 = smul.addr %s1449, 2
      %s1451 = smul.addr %s1447, 64
      %s1452 = sadd.s32 %s1450, %s1451
      %s1453 = smul.addr %s1452, 4
      %s1454 = scalar_lea.vmem %s4, %s1453
      // Predicated region
      $region37: #{mbconv_forward.4} parent=35 // pred_check
        %p1455 = pneg %p138
      $region38: #{mbconv_forward.4} parent=35 // pred_check_branch
        %1457 = sbr.rel (%p1455) target = $region40
      $region39: #{mbconv_forward.4} parent=35 // pred_region
        %s1458 = smul.u32 32, %s20
      $region40: #{mbconv_forward.4} parent=35 // pred_fallthru
        _
    $region36: #{mbconv_forward.4} parent=5 // pred_fallthru
      _
    %p1459 = scmp.le.s32.totalorder 2, %s10
    // Predicated region
    $region41: #{mbconv_forward.4} parent=5 // pred_check
      %p1460 = pneg %p1459
    $region42: #{mbconv_forward.4} parent=5 // pred_check_branch
      %1462 = sbr.rel (%p1460) target = $region44
    $region43: #{mbconv_forward.4} parent=5 // pred_region
      %s1463 = ssub.s32 %s10, 2
      // Predicated region
      $region45: #{mbconv_forward.4} parent=43 // pred_check
        %p1464 = pneg %p144
      $region46: #{mbconv_forward.4} parent=43 // pred_check_branch
        %1466 = sbr.rel (%p1464) target = $region48
      $region47: #{mbconv_forward.4} parent=43 // pred_region
        %s1467 = smul.u32 32, %s22
        %p1468 = scmp.lt.s32.totalorder %s21, 1
        %s1469 = scalar_select %p1468, %s21, 1
        %p1470 = scmp.lt.s32.totalorder %s1467, 31
        %s1471 = scalar_select %p1470, %s1467, 31
        %s1472 = smul.addr %s1471, 2
        %s1473 = smul.addr %s1469, 64
        %s1474 = sadd.s32 %s1472, %s1473
        %s1475 = smul.addr %s1474, 4
        %s1476 = scalar_lea.vmem %s4, %s1475
      $region48: #{mbconv_forward.4} parent=43 // pred_fallthru
        _
    $region44: #{mbconv_forward.4} parent=5 // pred_fallthru
      _
  $region6: #{mbconv_forward.4} parent=0 // loop_footer
    %s14 = sadd.s32 1, %s10
  $region7: #{mbconv_forward.4} parent=0 // loop_footer_branch
    %9 = sbr.rel target = $region3
  $region8: #{mbconv_forward.4} parent=0 // loop_exit
    _

// kernel: mbconv_forward.7
$region0: #{mbconv_forward.7}
  #allocation0 [shape = 'u32[]', space=smem, size = 0x4, offset = 0x4, fixed_abs, tag = 'smem constant byte address 0x4 - core index']
  #allocation1 [shape = 'u32[144,128]{1,0:T(1,128)}', space=vmem, size = 0x12000, scoped, tag = 'internal scratch']
  %s0 = inlined_call_operand.vmem [shape: bf16[2,256,192], index: 0, kind: input, shape index: {}]
  %s1 = inlined_call_operand.vmem [shape: bf16[192,32], index: 1, kind: input, shape index: {}]
  %s2 = inlined_call_operand.vmem [shape: f32[1,32], index: 2, kind: input, shape index: {}]
  %s3 = inlined_call_operand.vmem [shape: f32[1,32], index: 3, kind: input, shape index: {}]
  %s4 = inlined_call_operand.vmem [shape: bf16[2,1,192], index: 4, kind: input, shape index: {}]
  %s5 = inlined_call_operand.vmem [shape: f32[2,256,32], index: 5, kind: input, shape index: {}]
  %s6 = inlined_call_operand.hbm [shape: f32[2,256,32], index: 6, kind: output, shape index: {}]
  %s7 = sld [smem:[#allocation0]]
  $region57: #{mbconv_forward.7} parent=0
    _
  %s9 = ssub.s32 1, %s7
  %s10 = scalar_select 0, %s9, %s7
  $region1: #{mbconv_forward.7} parent=0
    #allocation2 [shape = 'u8[262144]{0}', space=vmem, size = 0x40000, scoped, tag = 'output window, operand 0']
    #allocation3 [shape = 's32[2]{0}', space=sflag, size = 0x8, scoped, tag = 'scoped memory for mbconv_forward.7']
    %11 = vsyncpa [#allocation3], 0
    %s12 = scalar_lea.sflag [#allocation3], 1
    %13 = vsyncpa %s12, 0
    loop: start=0, step=1, limit=4
    $region2: #{mbconv_forward.7} parent=1 // loop_pre_header
      _
    $region3: #{mbconv_forward.7} parent=1 // loop_header
      %s15 = sphi 0, %s19
      %p16 = scmp.ge.s32.totalorder %s15, 4
      %s22 = sphi 0, %s34
      %s23 = sphi 0, %s30
      %s24 = sphi 0, %s22
      %s25 = sphi 0, %s23
      %s26 = sphi 0, %s24
      %s27 = sphi 0, %s25
      %s39 = sphi 0, %s41
      %s42 = sphi 0, %s39
      %s43 = sphi 0, %s42
      %s59 = sphi 0, %s43
      %s63 = sphi 0, %s63
      %s65 = sphi 0, %s63
      %s66 = sphi 0, %s65
      %s80 = sphi 0, %s66
      %s84 = sphi 0, %s84
      %s86 = sphi 0, %s84
      %s87 = sphi 0, %s86
      %s101 = sphi 0, %s87
      %s105 = sphi 0, %s105
      %s107 = sphi 0, %s105
      %s108 = sphi 0, %s107
      %s122 = sphi 0, %s108
      %s128 = sphi 0, %s130
      %s131 = sphi 0, %s128
      %s132 = sphi 0, %s131
      %s148 = sphi 0, %s132
      %s156 = sphi 0, %s158
      %s159 = sphi 0, %s156
      %s160 = sphi 0, %s159
      %s176 = sphi 0, %s160
      %s184 = sphi 0, %s186
      %s187 = sphi 0, %s184
      %s188 = sphi 0, %s187
      %s204 = sphi 0, %s188
    $region4: #{mbconv_forward.7} parent=1 // loop_header_branch
      %18 = sbr.rel (%p16) target = $region8
    $region5: #{mbconv_forward.7} parent=1 // loop_body
      %s20 = ssub.s32 %s15, 1
      %s21 = ssub.s32 %s15, 2
      %s28 = sadd.s32 1, %s23
      %p29 = scmp.ge.s32.totalorder %s28, 1
      %s30 = scalar_select %p29, 0, %s28
      %s31 = sadd.s32 1, %s22
      %s32 = scalar_select %p29, %s31, %s22
      %p33 = scmp.ge.s32.totalorder %s32, 2
      %s34 = scalar_select %p33, 0, %s32
      %s35 = ssub.s32 %s22, %s34
      %s36 = ssub.s32 %s23, %s30
      %s37 = sor.u32 %s35, %s36
      %p38 = scmp.eq.s32.totalorder %s37, 0
      %s40 = sadd.s32 %s39, 1
      %s41 = scalar_select %p38, %s39, %s40
      %p44 = pneg %p38
      %p45 = scmp.eq.s32.totalorder %s15, 1
      %p46 = por %p44, %p45
      %p47 = scmp.ne.s32.totalorder %s39, %s42
      %p48 = scmp.eq.s32.totalorder %s15, 0
      %p49 = por %p47, %p48
      %p50 = scmp.ne.s32.totalorder %s39, %s42
      %p51 = scmp.eq.s32.totalorder %s20, 1
      %p52 = por %p50, %p51
      %p53 = scmp.ne.s32.totalorder %s42, %s43
      %p54 = scmp.eq.s32.totalorder %s20, 0
      %p55 = por %p53, %p54
      %p56 = scmp.ne.s32.totalorder %s42, %s43
      %p57 = scmp.eq.s32.totalorder %s21, 1
      %p58 = por %p56, %p57
      %p60 = scmp.ne.s32.totalorder %s43, %s59
      %p61 = scmp.eq.s32.totalorder %s21, 0
      %p62 = por %p60, %p61
      %s64 = sadd.s32 %s63, 1
      %p67 = scmp.eq.s32.totalorder %s15, 1
      %p68 = scmp.ne.s32.totalorder %s63, %s65
      %p69 = scmp.eq.s32.totalorder %s15, 0
      %p70 = por %p68, %p69
      %p71 = scmp.ne.s32.totalorder %s63, %s65
      %p72 = scmp.eq.s32.totalorder %s20, 1
      %p73 = por %p71, %p72
      %p74 = scmp.ne.s32.totalorder %s65, %s66
      %p75 = scmp.eq.s32.totalorder %s20, 0
      %p76 = por %p74, %p75
      %p77 = scmp.ne.s32.totalorder %s65, %s66
      %p78 = scmp.eq.s32.totalorder %s21, 1
      %p79 = por %p77, %p78
      %p81 = scmp.ne.s32.totalorder %s66, %s80
      %p82 = scmp.eq.s32.totalorder %s21, 0
      %p83 = por %p81, %p82
      %s85 = sadd.s32 %s84, 1
      %p88 = scmp.eq.s32.totalorder %s15, 1
      %p89 = scmp.ne.s32.totalorder %s84, %s86
      %p90 = scmp.eq.s32.totalorder %s15, 0
      %p91 = por %p89, %p90
      %p92 = scmp.ne.s32.totalorder %s84, %s86
      %p93 = scmp.eq.s32.totalorder %s20, 1
      %p94 = por %p92, %p93
      %p95 = scmp.ne.s32.totalorder %s86, %s87
      %p96 = scmp.eq.s32.totalorder %s20, 0
      %p97 = por %p95, %p96
      %p98 = scmp.ne.s32.totalorder %s86, %s87
      %p99 = scmp.eq.s32.totalorder %s21, 1
      %p100 = por %p98, %p99
      %p102 = scmp.ne.s32.totalorder %s87, %s101
      %p103 = scmp.eq.s32.totalorder %s21, 0
      %p104 = por %p102, %p103
      %s106 = sadd.s32 %s105, 1
      %p109 = scmp.eq.s32.totalorder %s15, 1
      %p110 = scmp.ne.s32.totalorder %s105, %s107
      %p111 = scmp.eq.s32.totalorder %s15, 0
      %p112 = por %p110, %p111
      %p113 = scmp.ne.s32.totalorder %s105, %s107
      %p114 = scmp.eq.s32.totalorder %s20, 1
      %p115 = por %p113, %p114
      %p116 = scmp.ne.s32.totalorder %s107, %s108
      %p117 = scmp.eq.s32.totalorder %s20, 0
      %p118 = por %p116, %p117
      %p119 = scmp.ne.s32.totalorder %s107, %s108
      %p120 = scmp.eq.s32.totalorder %s21, 1
      %p121 = por %p119, %p120
      %p123 = scmp.ne.s32.totalorder %s108, %s122
      %p124 = scmp.eq.s32.totalorder %s21, 0
      %p125 = por %p123, %p124
      %s126 = ssub.s32 %s22, %s34
      %p127 = scmp.eq.s32.totalorder %s126, 0
      %s129 = sadd.s32 %s128, 1
      %s130 = scalar_select %p127, %s128, %s129
      %p133 = pneg %p127
      %p134 = scmp.eq.s32.totalorder %s15, 1
      %p135 = por %p133, %p134
      %p136 = scmp.ne.s32.totalorder %s128, %s131
      %p137 = scmp.eq.s32.totalorder %s15, 0
      %p138 = por %p136, %p137
      %p139 = scmp.ne.s32.totalorder %s128, %s131
      %p140 = scmp.eq.s32.totalorder %s20, 1
      %p141 = por %p139, %p140
      %p142 = scmp.ne.s32.totalorder %s131, %s132
      %p143 = scmp.eq.s32.totalorder %s20, 0
      %p144 = por %p142, %p143
      %p145 = scmp.ne.s32.totalorder %s131, %s132
      %p146 = scmp.eq.s32.totalorder %s21, 1
      %p147 = por %p145, %p146
      %p149 = scmp.ne.s32.totalorder %s132, %s148
      %p150 = scmp.eq.s32.totalorder %s21, 0
      %p151 = por %p149, %p150
      %s152 = ssub.s32 %s22, %s34
      %s153 = ssub.s32 %s23, %s30
      %s154 = sor.u32 %s152, %s153
      %p155 = scmp.eq.s32.totalorder %s154, 0
      %s157 = sadd.s32 %s156, 1
      %s158 = scalar_select %p155, %s156, %s157
      %p161 = pneg %p155
      %p162 = scmp.eq.s32.totalorder %s15, 1
      %p163 = por %p161, %p162
      %p164 = scmp.ne.s32.totalorder %s156, %s159
      %p165 = scmp.eq.s32.totalorder %s15, 0
      %p166 = por %p164, %p165
      %p167 = scmp.ne.s32.totalorder %s156, %s159
      %p168 = scmp.eq.s32.totalorder %s20, 1
      %p169 = por %p167, %p168
      %p170 = scmp.ne.s32.totalorder %s159, %s160
      %p171 = scmp.eq.s32.totalorder %s20, 0
      %p172 = por %p170, %p171
      %p173 = scmp.ne.s32.totalorder %s159, %s160
      %p174 = scmp.eq.s32.totalorder %s21, 1
      %p175 = por %p173, %p174
      %p177 = scmp.ne.s32.totalorder %s160, %s176
      %p178 = scmp.eq.s32.totalorder %s21, 0
      %p179 = por %p177, %p178
      %s180 = ssub.s32 %s22, %s34
      %s181 = ssub.s32 %s23, %s30
      %s182 = sor.u32 %s180, %s181
      %p183 = scmp.eq.s32.totalorder %s182, 0
      %s185 = sadd.s32 %s184, 1
      %s186 = scalar_select %p183, %s184, %s185
      %p189 = pneg %p183
      %p190 = scmp.eq.s32.totalorder %s15, 1
      %p191 = por %p189, %p190
      %p192 = scmp.ne.s32.totalorder %s184, %s187
      %p193 = scmp.eq.s32.totalorder %s15, 0
      %p194 = por %p192, %p193
      %p195 = scmp.ne.s32.totalorder %s184, %s187
      %p196 = scmp.eq.s32.totalorder %s20, 1
      %p197 = por %p195, %p196
      %p198 = scmp.ne.s32.totalorder %s187, %s188
      %p199 = scmp.eq.s32.totalorder %s20, 0
      %p200 = por %p198, %p199
      %p201 = scmp.ne.s32.totalorder %s187, %s188
      %p202 = scmp.eq.s32.totalorder %s21, 1
      %p203 = por %p201, %p202
      %p205 = scmp.ne.s32.totalorder %s188, %s204
      %p206 = scmp.eq.s32.totalorder %s21, 0
      %p207 = por %p205, %p206
      %p208 = scmp.le.s32.totalorder 1, %s15
      %p209 = scmp.lt.s32.totalorder %s15, 3
      %p210 = pnand %p208, %p209
      %p211 = pneg %p210
      // Predicated region
      $region9: #{mbconv_forward.7} parent=5 // pred_check
        _
      $region10: #{mbconv_forward.7} parent=5 // pred_check_branch
        %213 = sbr.rel (%p210) target = $region12
      $region11: #{mbconv_forward.7} parent=5 // pred_region
        %s214 = ssub.s32 %s15, 1
        // Predicated region
        $region13: #{mbconv_forward.7} parent=11 // pred_check
          %p215 = pneg %p76
        $region14: #{mbconv_forward.7} parent=11 // pred_check_branch
          %217 = sbr.rel (%p215) target = $region16
        $region15: #{mbconv_forward.7} parent=11 // pred_region
          _
        $region16: #{mbconv_forward.7} parent=11 // pred_fallthru
          _
        // Predicated region
        $region17: #{mbconv_forward.7} parent=11 // pred_check
          %p218 = pneg %p97
        $region18: #{mbconv_forward.7} parent=11 // pred_check_branch
          %220 = sbr.rel (%p218) target = $region20
        $region19: #{mbconv_forward.7} parent=11 // pred_region
          _
        $region20: #{mbconv_forward.7} parent=11 // pred_fallthru
          _
        // Predicated region
        $region21: #{mbconv_forward.7} parent=11 // pred_check
          %p221 = pneg %p118
        $region22: #{mbconv_forward.7} parent=11 // pred_check_branch
          %223 = sbr.rel (%p221) target = $region24
        $region23: #{mbconv_forward.7} parent=11 // pred_region
          _
        $region24: #{mbconv_forward.7} parent=11 // pred_fallthru
          _
      $region12: #{mbconv_forward.7} parent=5 // pred_fallthru
        _
      %p224 = scmp.lt.s32.totalorder %s15, 2
      // Predicated region
      $region25: #{mbconv_forward.7} parent=5 // pred_check
        %p225 = pneg %p224
      $region26: #{mbconv_forward.7} parent=5 // pred_check_branch
        %227 = sbr.rel (%p225) target = $region28
      $region27: #{mbconv_forward.7} parent=5 // pred_region
        // Predicated region
        $region29: #{mbconv_forward.7} parent=27 // pred_check
          %p228 = pneg %p49
        $region30: #{mbconv_forward.7} parent=27 // pred_check_branch
          %230 = sbr.rel (%p228) target = $region32
        $region31: #{mbconv_forward.7} parent=27 // pred_region
          %s231 = smul.u32 32, %s23
          %p232 = scmp.lt.s32.totalorder %s22, 1
          %s233 = scalar_select %p232, %s22, 1
          %p234 = scmp.lt.s32.totalorder %s231, 31
          %s235 = scalar_select %p234, %s231, 31
          %s236 = smul.addr %s235, 2
          %s237 = smul.addr %s233, 64
          %s238 = sadd.s32 %s236, %s237
          %s239 = smul.addr %s238, 4
          %s240 = scalar_lea.vmem %s0, %s239
          %s241 = smul.u32 32, %s23
        $region32: #{mbconv_forward.7} parent=27 // pred_fallthru
          _
        // Predicated region
        $region33: #{mbconv_forward.7} parent=27 // pred_check
          %p242 = pneg %p138
        $region34: #{mbconv_forward.7} parent=27 // pred_check_branch
          %244 = sbr.rel (%p242) target = $region36
        $region35: #{mbconv_forward.7} parent=27 // pred_region
          %p245 = scmp.lt.s32.totalorder %s22, 1
          %s246 = scalar_select %p245, %s22, 1
          %s247 = smul.addr %s246, 2
          %s248 = scalar_lea.vmem %s4, %s247
        $region36: #{mbconv_forward.7} parent=27 // pred_fallthru
          _
        // Predicated region
        $region37: #{mbconv_forward.7} parent=27 // pred_check
          %p249 = pneg %p166
        $region38: #{mbconv_forward.7} parent=27 // pred_check_branch
          %251 = sbr.rel (%p249) target = $region40
        $region39: #{mbconv_forward.7} parent=27 // pred_region
          %s252 = smul.u32 32, %s23
          %p253 = scmp.lt.s32.totalorder %s22, 1
          %s254 = scalar_select %p253, %s22, 1
          %p255 = scmp.lt.s32.totalorder %s252, 31
          %s256 = scalar_select %p255, %s252, 31
          %s257 = smul.addr %s254, 32
          %s258 = sadd.s32 %s256, %s257
          %s259 = smul.addr %s258, 8
          %s260 = scalar_lea.vmem %s5, %s259
          %s261 = smul.u32 32, %s23
        $region40: #{mbconv_forward.7} parent=27 // pred_fallthru
          _
      $region28: #{mbconv_forward.7} parent=5 // pred_fallthru
        _
      %p262 = scmp.le.s32.totalorder 1, %s15
      %p263 = scmp.lt.s32.totalorder %s15, 3
      %p264 = pnand %p262, %p263
      %p265 = pneg %p264
      // Predicated region
      $region41: #{mbconv_forward.7} parent=5 // pred_check
        _
      $region42: #{mbconv_forward.7} parent=5 // pred_check_branch
        %267 = sbr.rel (%p264) target = $region44
      $region43: #{mbconv_forward.7} parent=5 // pred_region
        %s268 = ssub.s32 %s15, 1
        %s269 = smul.u32 32, %s25
        %p270 = scmp.lt.s32.totalorder %s24, 1
        %s271 = scalar_select %p270, %s24, 1
        %p272 = scmp.lt.s32.totalorder %s269, 31
        %s273 = scalar_select %p272, %s269, 31
        %s274 = smul.addr %s273, 2
        %s275 = smul.addr %s271, 64
        %s276 = sadd.s32 %s274, %s275
        %s277 = smul.addr %s276, 4
        %s278 = scalar_lea.vmem %s0, %s277
        %p279 = pneg %p55
        %p280 = pneg %p52
        %p281 = pneg %p76
        %p282 = pneg %p73
        %p283 = pneg %p97
        %p284 = pneg %p94
        %p285 = pneg %p118
        %p286 = pneg %p115
        %p287 = scmp.lt.s32.totalorder %s24, 1
        %s288 = scalar_select %p287, %s24, 1
        %s289 = smul.addr %s288, 2
        %s290 = scalar_lea.vmem %s4, %s289
        %p291 = pneg %p144
        %p292 = pneg %p141
        %s293 = smul.u32 32, %s25
        %p294 = scmp.lt.s32.totalorder %s24, 1
        %s295 = scalar_select %p294, %s24, 1
        %p296 = scmp.lt.s32.totalorder %s293, 31
        %s297 = scalar_select %p296, %s293, 31
        %s298 = smul.addr %s295, 32
        %s299 = sadd.s32 %s297, %s298
        %s300 = smul.addr %s299, 8
        %s301 = scalar_lea.vmem %s5, %s300
        %p302 = pneg %p172
        %p303 = pneg %p169
        %p304 = pneg %p200
        %p305 = pneg %p197
        %s306 = sand.u32 %s187, 1
        %s307 = scalar_lea.sflag [#allocation3], %s306
        %s308 = sand.u32 %s187, 1
        %s309 = smul.addr %s308, 256
        %s310 = scalar_lea.vmem [#allocation2], %s309
        %s311 = smul.u32 32, %s25
        %p312 = scmp.lt.s32.totalorder %s24, 1
        %s313 = scalar_select %p312, %s24, 1
        %p314 = scmp.lt.s32.totalorder %s311, 31
        %s315 = scalar_select %p314, %s311, 31
        %s316 = smul.addr %s315, 2
        %s317 = smul.addr %s313, 64
        %s318 = sadd.s32 %s316, %s317
        %s319 = smul.addr %s318, 4
        %s320 = scalar_lea.vmem %s0, %s319
        %s321 = smul.u32 32, %s25
        %p322 = scmp.lt.s32.totalorder %s24, 1
        %s323 = scalar_select %p322, %s24, 1
        %s324 = smul.addr %s323, 2
        %s325 = scalar_lea.vmem %s4, %s324
        %s326 = smul.u32 32, %s25
        %p327 = scmp.lt.s32.totalorder %s24, 1
        %s328 = scalar_select %p327, %s24, 1
        %p329 = scmp.lt.s32.totalorder %s326, 31
        %s330 = scalar_select %p329, %s326, 31
        %s331 = smul.addr %s328, 32
        %s332 = sadd.s32 %s330, %s331
        %s333 = smul.addr %s332, 8
        %s334 = scalar_lea.vmem %s5, %s333
        %s335 = smul.u32 32, %s25
        %s336 = smul.u32 32, %s25
        %v338 = vld [vmem:[%s320] sm:$0xff]
        %v339 = vld [vmem:[%s320 + $0x8] sm:$0xff]
        %v340 = vld [vmem:[%s320 + $0x10] sm:$0xff]
        %v341 = vld [vmem:[%s320 + $0x18] sm:$0xff]
        %v342 = vld [vmem:[%s320 + $0x20] sm:$0xff]
        %v343 = vld [vmem:[%s320 + $0x28] sm:$0xff]
        %v344 = vld [vmem:[%s320 + $0x30] sm:$0xff]
        %v345 = vld [vmem:[%s320 + $0x38] sm:$0xff]
        %v346 = vld [vmem:[%s320 + $0x40] sm:$0xff]
        %v347 = vld [vmem:[%s320 + $0x48] sm:$0xff]
        %v348 = vld [vmem:[%s320 + $0x50] sm:$0xff]
        %v349 = vld [vmem:[%s320 + $0x58] sm:$0xff]
        %v350 = vld [vmem:[%s320 + $0x60] sm:$0xff]
        %v351 = vld [vmem:[%s320 + $0x68] sm:$0xff]
        %v352 = vld [vmem:[%s320 + $0x70] sm:$0xff]
        %v353 = vld [vmem:[%s320 + $0x78] sm:$0xff]
        %v354 = vld [vmem:[%s320 + $0x80] sm:$0xff]
        %v355 = vld [vmem:[%s320 + $0x88] sm:$0xff]
        %v356 = vld [vmem:[%s320 + $0x90] sm:$0xff]
        %v357 = vld [vmem:[%s320 + $0x98] sm:$0xff]
        %v358 = vld [vmem:[%s320 + $0xa0] sm:$0xff]
        %v359 = vld [vmem:[%s320 + $0xa8] sm:$0xff]
        %v360 = vld [vmem:[%s320 + $0xb0] sm:$0xff]
        %v361 = vld [vmem:[%s320 + $0xb8] sm:$0xff]
        %v362 = vld [vmem:[%s320 + $0xc0] sm:$0xff]
        %v363 = vld [vmem:[%s320 + $0xc8] sm:$0xff]
        %v364 = vld [vmem:[%s320 + $0xd0] sm:$0xff]
        %v365 = vld [vmem:[%s320 + $0xd8] sm:$0xff]
        %v366 = vld [vmem:[%s320 + $0xe0] sm:$0xff]
        %v367 = vld [vmem:[%s320 + $0xe8] sm:$0xff]
        %v368 = vld [vmem:[%s320 + $0xf0] sm:$0xff]
        %v369 = vld [vmem:[%s320 + $0xf8] sm:$0xff]
        %v370 = vld [vmem:[%s325] sm:$0x3]
        %v373 = vunpack.c.l.s4 1966171168
        %v374 = vunpack.c.0.s8 %v373
        %v375 = vlaneseq
        %v376 = vshrl.u32 %v375, 7
        %v377 = vsub.s32 %v374, %v376
        %v378 = vrot.slane %v370, %v377
        %v379 = vcombine.high %v378, %v378
        %v381 = vunpack.c.l.s4 1966171168
        %v382 = vunpack.c.0.s8 %v381
        %v383 = vlaneseq
        %v384 = vshrl.u32 %v383, 7
        %v385 = vsub.s32 %v382, %v384
        %v386 = vrot.slane %v378, %v385
        %v388 = vunpack.c.l.s4 1966171168
        %v389 = vunpack.c.0.s8 %v388
        %v390 = vlaneseq
        %v391 = vshrl.u32 %v390, 7
        %v392 = vsub.s32 %v389, %v391
        %v393 = vrot.slane %v379, %v392
        %v395 = vpack.i.b16 %v386, %v386
        %v397 = vlaneseq
        %v398 = vshrl.u32 %v397, 7
        %v399 = vsub.s32 0, %v398
        %v400 = vrot.slane %v395, %v399
        %v402 = vpack.i.b16 %v393, %v393
        %v404 = vlaneseq
        %v405 = vshrl.u32 %v404, 7
        %v406 = vsub.s32 0, %v405
        %v407 = vrot.slane %v402, %v406
        %v410 = vunpack.c.l.b16 %v400
        %v411 = vunpack.c.l.b16 %v407
        %v412 = vpack.c.b16 %v411, %v410
        %v414 = vmul.bf16 %v338, %v412
        %v415 = vmul.bf16 %v339, %v412
        %v416 = vmul.bf16 %v340, %v412
        %v417 = vmul.bf16 %v341, %v412
        %v418 = vmul.bf16 %v342, %v412
        %v419 = vmul.bf16 %v343, %v412
        %v420 = vmul.bf16 %v344, %v412
        %v421 = vmul.bf16 %v345, %v412
        %v422 = vmul.bf16 %v346, %v412
        %v423 = vmul.bf16 %v347, %v412
        %v424 = vmul.bf16 %v348, %v412
        %v425 = vmul.bf16 %v349, %v412
        %v426 = vmul.bf16 %v350, %v412
        %v427 = vmul.bf16 %v351, %v412
        %v428 = vmul.bf16 %v352, %v412
        %v429 = vmul.bf16 %v353, %v412
        %v430 = vmul.bf16 %v354, %v412
        %v431 = vmul.bf16 %v355, %v412
        %v432 = vmul.bf16 %v356, %v412
        %v433 = vmul.bf16 %v357, %v412
        %v434 = vmul.bf16 %v358, %v412
        %v435 = vmul.bf16 %v359, %v412
        %v436 = vmul.bf16 %v360, %v412
        %v437 = vmul.bf16 %v361, %v412
        %v438 = vmul.bf16 %v362, %v412
        %v439 = vmul.bf16 %v363, %v412
        %v440 = vmul.bf16 %v364, %v412
        %v441 = vmul.bf16 %v365, %v412
        %v442 = vmul.bf16 %v366, %v412
        %v443 = vmul.bf16 %v367, %v412
        %v444 = vmul.bf16 %v368, %v412
        %v445 = vmul.bf16 %v369, %v412
        %v446 = vld [vmem:[%s1] sm:$0xf]
        %v447 = vld [vmem:[%s1 + $0x4] sm:$0xf]
        %v448 = vld [vmem:[%s1 + $0x8] sm:$0xf]
        %v449 = vld [vmem:[%s1 + $0xc] sm:$0xf]
        %v450 = vld [vmem:[%s1 + $0x10] sm:$0xf]
        %v451 = vld [vmem:[%s1 + $0x14] sm:$0xf]
        %v452 = vld [vmem:[%s1 + $0x18] sm:$0xf]
        %v453 = vld [vmem:[%s1 + $0x1c] sm:$0xf]
        %v454 = vld [vmem:[%s1 + $0x20] sm:$0xf]
        %v455 = vld [vmem:[%s1 + $0x24] sm:$0xf]
        %v456 = vld [vmem:[%s1 + $0x28] sm:$0xf]
        %v457 = vld [vmem:[%s1 + $0x2c] sm:$0xf]
        %v458 = vld [vmem:[%s1 + $0x30] sm:$0xf]
        %v459 = vld [vmem:[%s1 + $0x34] sm:$0xf]
        %v460 = vld [vmem:[%s1 + $0x38] sm:$0xf]
        %v461 = vld [vmem:[%s1 + $0x3c] sm:$0xf]
        %v462 = vld [vmem:[%s1 + $0x40] sm:$0xf]
        %v463 = vld [vmem:[%s1 + $0x44] sm:$0xf]
        %v464 = vld [vmem:[%s1 + $0x48] sm:$0xf]
        %v465 = vld [vmem:[%s1 + $0x4c] sm:$0xf]
        %v466 = vld [vmem:[%s1 + $0x50] sm:$0xf]
        %v467 = vld [vmem:[%s1 + $0x54] sm:$0xf]
        %v468 = vld [vmem:[%s1 + $0x58] sm:$0xf]
        %v469 = vld [vmem:[%s1 + $0x5c] sm:$0xf]
        %v502 = vunpack.c.l.b16 %v414
        %v503 = vunpack.c.h.b16 %v414
        %v504 = vunpack.c.l.b16 %v415
        %v505 = vunpack.c.h.b16 %v415
        %v506 = vunpack.c.l.b16 %v416
        %v507 = vunpack.c.h.b16 %v416
        %v508 = vunpack.c.l.b16 %v417
        %v509 = vunpack.c.h.b16 %v417
        %v510 = vunpack.c.l.b16 %v418
        %v511 = vunpack.c.h.b16 %v418
        %v512 = vunpack.c.l.b16 %v419
        %v513 = vunpack.c.h.b16 %v419
        %v514 = vunpack.c.l.b16 %v420
        %v515 = vunpack.c.h.b16 %v420
        %v516 = vunpack.c.l.b16 %v421
        %v517 = vunpack.c.h.b16 %v421
        %v518 = vunpack.c.l.b16 %v422
        %v519 = vunpack.c.h.b16 %v422
        %v520 = vunpack.c.l.b16 %v423
        %v521 = vunpack.c.h.b16 %v423
        %v522 = vunpack.c.l.b16 %v424
        %v523 = vunpack.c.h.b16 %v424
        %v524 = vunpack.c.l.b16 %v425
        %v525 = vunpack.c.h.b16 %v425
        %v526 = vunpack.c.l.b16 %v426
        %v527 = vunpack.c.h.b16 %v426
        %v528 = vunpack.c.l.b16 %v427
        %v529 = vunpack.c.h.b16 %v427
        %v530 = vunpack.c.l.b16 %v428
        %v531 = vunpack.c.h.b16 %v428
        %v532 = vunpack.c.l.b16 %v429
        %v533 = vunpack.c.h.b16 %v429
        %v534 = vunpack.c.l.b16 %v430
        %v535 = vunpack.c.h.b16 %v430
        %v536 = vunpack.c.l.b16 %v431
        %v537 = vunpack.c.h.b16 %v431
        %v538 = vunpack.c.l.b16 %v432
        %v539 = vunpack.c.h.b16 %v432
        %v540 = vunpack.c.l.b16 %v433
        %v541 = vunpack.c.h.b16 %v433
        %v542 = vunpack.c.l.b16 %v434
        %v543 = vunpack.c.h.b16 %v434
        %v544 = vunpack.c.l.b16 %v435
        %v545 = vunpack.c.h.b16 %v435
        %v546 = vunpack.c.l.b16 %v436
        %v547 = vunpack.c.h.b16 %v436
        %v548 = vunpack.c.l.b16 %v437
        %v549 = vunpack.c.h.b16 %v437
        %v550 = vunpack.c.l.b16 %v438
        %v551 = vunpack.c.h.b16 %v438
        %v552 = vunpack.c.l.b16 %v439
        %v553 = vunpack.c.h.b16 %v439
        %v554 = vunpack.c.l.b16 %v440
        %v555 = vunpack.c.h.b16 %v440
        %v556 = vunpack.c.l.b16 %v441
        %v557 = vunpack.c.h.b16 %v441
        %v558 = vunpack.c.l.b16 %v442
        %v559 = vunpack.c.h.b16 %v442
        %v560 = vunpack.c.l.b16 %v443
        %v561 = vunpack.c.h.b16 %v443
        %v562 = vunpack.c.l.b16 %v444
        %v563 = vunpack.c.h.b16 %v444
        %v564 = vunpack.c.l.b16 %v445
        %v565 = vunpack.c.h.b16 %v445
        %v566 = vpack.c.b16 %v504, %v502
        %v567 = vpack.c.b16 %v505, %v503
        %v568 = vpack.c.b16 %v508, %v506
        %v569 = vpack.c.b16 %v509, %v507
        %v570 = vpack.c.b16 %v512, %v510
        %v571 = vpack.c.b16 %v513, %v511
        %v572 = vpack.c.b16 %v516, %v514
        %v573 = vpack.c.b16 %v517, %v515
        %v574 = vpack.c.b16 %v520, %v518
        %v575 = vpack.c.b16 %v521, %v519
        %v576 = vpack.c.b16 %v524, %v522
        %v577 = vpack.c.b16 %v525, %v523
        %v578 = vpack.c.b16 %v528, %v526
        %v579 = vpack.c.b16 %v529, %v527
        %v580 = vpack.c.b16 %v532, %v530
        %v581 = vpack.c.b16 %v533, %v531
        %v582 = vpack.c.b16 %v536, %v534
        %v583 = vpack.c.b16 %v537, %v535
        %v584 = vpack.c.b16 %v540, %v538
        %v585 = vpack.c.b16 %v541, %v539
        %v586 = vpack.c.b16 %v544, %v542
        %v587 = vpack.c.b16 %v545, %v543
        %v588 = vpack.c.b16 %v548, %v546
        %v589 = vpack.c.b16 %v549, %v547
        %v590 = vpack.c.b16 %v552, %v550
        %v591 = vpack.c.b16 %v553, %v551
        %v592 = vpack.c.b16 %v556, %v554
        %v593 = vpack.c.b16 %v557, %v555
        %v594 = vpack.c.b16 %v560, %v558
        %v595 = vpack.c.b16 %v561, %v559
        %v596 = vpack.c.b16 %v564, %v562
        %v597 = vpack.c.b16 %v565, %v563
        %v638 = vunpack.c.l.b16 %v446
        %v639 = vunpack.c.l.b16 %v447
        %v640 = vunpack.c.l.b16 %v448
        %v641 = vunpack.c.l.b16 %v449
        %v642 = vunpack.c.l.b16 %v450
        %v643 = vunpack.c.l.b16 %v451
        %v644 = vunpack.c.l.b16 %v452
        %v645 = vunpack.c.l.b16 %v453
        %v646 = vunpack.c.l.b16 %v454
        %v647 = vunpack.c.l.b16 %v455
        %v648 = vunpack.c.l.b16 %v456
        %v649 = vunpack.c.l.b16 %v457
        %v650 = vunpack.c.l.b16 %v458
        %v651 = vunpack.c.l.b16 %v459
        %v652 = vunpack.c.l.b16 %v460
        %v653 = vunpack.c.l.b16 %v461
        %v654 = vunpack.c.l.b16 %v462
        %v655 = vunpack.c.l.b16 %v463
        %v656 = vunpack.c.l.b16 %v464
        %v657 = vunpack.c.l.b16 %v465
        %v658 = vunpack.c.l.b16 %v466
        %v659 = vunpack.c.l.b16 %v467
        %v660 = vunpack.c.l.b16 %v468
        %v661 = vunpack.c.l.b16 %v469
        %v662 = vpack.c.b16 %v639, %v638
        %v663 = vpack.c.b16 %v641, %v640
        %v664 = vpack.c.b16 %v643, %v642
        %v665 = vpack.c.b16 %v645, %v644
        %v666 = vpack.c.b16 %v647, %v646
        %v667 = vpack.c.b16 %v649, %v648
        %v668 = vpack.c.b16 %v651, %v650
        %v669 = vpack.c.b16 %v653, %v652
        %v670 = vpack.c.b16 %v655, %v654
        %v671 = vpack.c.b16 %v657, %v656
        %v672 = vpack.c.b16 %v659, %v658
        %v673 = vpack.c.b16 %v661, %v660
        %vm686 = vcmask 523264
        %v688 = vsel %vm686, %v567, 0
        %v691 = vsel %vm686, %v569, 0
        %v694 = vsel %vm686, %v571, 0
        %v697 = vsel %vm686, %v573, 0
        %v700 = vsel %vm686, %v575, 0
        %v703 = vsel %vm686, %v577, 0
        %v706 = vsel %vm686, %v579, 0
        %v709 = vsel %vm686, %v581, 0
        %v712 = vsel %vm686, %v583, 0
        %v715 = vsel %vm686, %v585, 0
        %v718 = vsel %vm686, %v587, 0
        %v721 = vsel %vm686, %v589, 0
        %v724 = vsel %vm686, %v591, 0
        %v727 = vsel %vm686, %v593, 0
        %v730 = vsel %vm686, %v595, 0
        %v733 = vsel %vm686, %v597, 0
        %735 = vmatprep.subr.bf16.mxu0 0
        %736 = vmatpush1.bf16.msra.mxu0 %v662
        %737 = vmatprep.subr.bf16.mxu0 0
        %738 = vmatpush1.bf16.msra.mxu0 %v663
        %739 = vmatprep.subr.bf16.mxu0 0
        %740 = vmatpush1.bf16.msra.mxu0 %v664
        %741 = vmatprep.subr.bf16.mxu0 0
        %742 = vmatpush1.bf16.msra.mxu0 %v665
        %743 = vmatprep.subr.bf16.mxu0 0
        %744 = vmatpush1.bf16.msra.mxu0 %v666
        %745 = vmatprep.subr.bf16.mxu0 0
        %746 = vmatpush1.bf16.msra.mxu0 %v667
        %747 = vmatprep.subr.bf16.mxu0 0
        %748 = vmatpush1.bf16.msra.mxu0 %v668
        %749 = vmatprep.subr.bf16.mxu0 0
        %750 = vmatpush1.bf16.msra.mxu0 %v669
        %751 = vmatprep.subr.bf16.mxu0 0
        %752 = vmatpush1.bf16.msra.mxu0 %v670
        %753 = vmatprep.subr.bf16.mxu0 0
        %754 = vmatpush1.bf16.msra.mxu0 %v671
        %755 = vmatprep.subr.bf16.mxu0 0
        %756 = vmatpush1.bf16.msra.mxu0 %v672
        %757 = vmatprep.subr.bf16.mxu0 0
        %758 = vmatpush1.bf16.msra.mxu0 %v673
        %759 = vmatprep.subr.bf16.mxu0 0
        %760 = vmatpush1.bf16.msra.mxu0 0
        %761 = vmatprep.subr.bf16.mxu0 0
        %762 = vmatpush1.bf16.msra.mxu0 0
        %763 = vmatprep.subr.bf16.mxu0 0
        %764 = vmatpush1.bf16.msra.mxu0 0
        %765 = vmatprep.subr.bf16.mxu0 0
        %766 = vmatpush1.bf16.msra.mxu0 0
        %767 = vmatprep.mubr.bf16.mxu0 %v688
        %768 = vmatmul.mubr.bf16.gmra.mrb[0].mxu0 %v566
        %v769 = vpop.f32.mrb[0].mxu0
        %v770 = vadd.f32 0.0, %v769
        %v771 = vpop.f32.mrb[0].mxu0
        %v772 = vpop.f32.mrb[0].mxu0
        %v773 = vadd.f32 0.0, %v772
        %v774 = vpop.f32.mrb[0].mxu0
        %775 = vmatprep.mubr.bf16.mxu0 %v691
        %776 = vmatmul.mubr.bf16.gmra.mrb[0].mxu0 %v568
        %v777 = vpop.f32.mrb[0].mxu0
        %v778 = vadd.f32 0.0, %v777
        %v779 = vpop.f32.mrb[0].mxu0
        %v780 = vpop.f32.mrb[0].mxu0
        %v781 = vadd.f32 0.0, %v780
        %v782 = vpop.f32.mrb[0].mxu0
        %783 = vmatprep.mubr.bf16.mxu0 %v694
        %784 = vmatmul.mubr.bf16.gmra.mrb[0].mxu0 %v570
        %v785 = vpop.f32.mrb[0].mxu0
        %v786 = vadd.f32 0.0, %v785
        %v787 = vpop.f32.mrb[0].mxu0
        %v788 = vpop.f32.mrb[0].mxu0
        %v789 = vadd.f32 0.0, %v788
        %v790 = vpop.f32.mrb[0].mxu0
        %791 = vmatprep.mubr.bf16.mxu0 %v697
        %792 = vmatmul.mubr.bf16.gmra.mrb[0].mxu0 %v572
        %v793 = vpop.f32.mrb[0].mxu0
        %v794 = vadd.f32 0.0, %v793
        %v795 = vpop.f32.mrb[0].mxu0
        %v796 = vpop.f32.mrb[0].mxu0
        %v797 = vadd.f32 0.0, %v796
        %v798 = vpop.f32.mrb[0].mxu0
        %799 = vmatprep.mubr.bf16.mxu0 %v700
        %800 = vmatmul.mubr.bf16.gmra.mrb[0].mxu0 %v574
        %v801 = vpop.f32.mrb[0].mxu0
        %v802 = vadd.f32 0.0, %v801
        %v803 = vpop.f32.mrb[0].mxu0
        %v804 = vpop.f32.mrb[0].mxu0
        %v805 = vadd.f32 0.0, %v804
        %v806 = vpop.f32.mrb[0].mxu0
        %807 = vmatprep.mubr.bf16.mxu0 %v703
        %808 = vmatmul.mubr.bf16.gmra.mrb[0].mxu0 %v576
        %v809 = vpop.f32.mrb[0].mxu0
        %v810 = vadd.f32 0.0, %v809
        %v811 = vpop.f32.mrb[0].mxu0
        %v812 = vpop.f32.mrb[0].mxu0
        %v813 = vadd.f32 0.0, %v812
        %v814 = vpop.f32.mrb[0].mxu0
        %815 = vmatprep.mubr.bf16.mxu0 %v706
        %816 = vmatmul.mubr.bf16.gmra.mrb[0].mxu0 %v578
        %v817 = vpop.f32.mrb[0].mxu0
        %v818 = vadd.f32 0.0, %v817
        %v819 = vpop.f32.mrb[0].mxu0
        %v820 = vpop.f32.mrb[0].mxu0
        %v821 = vadd.f32 0.0, %v820
        %v822 = vpop.f32.mrb[0].mxu0
        %823 = vmatprep.mubr.bf16.mxu0 %v709
        %824 = vmatmul.mubr.bf16.gmra.mrb[0].mxu0 %v580
        %v825 = vpop.f32.mrb[0].mxu0
        %v826 = vadd.f32 0.0, %v825
        %v827 = vpop.f32.mrb[0].mxu0
        %v828 = vpop.f32.mrb[0].mxu0
        %v829 = vadd.f32 0.0, %v828
        %v830 = vpop.f32.mrb[0].mxu0
        %831 = vmatprep.mubr.bf16.mxu0 %v712
        %832 = vmatmul.mubr.bf16.gmra.mrb[0].mxu0 %v582
        %v833 = vpop.f32.mrb[0].mxu0
        %v834 = vadd.f32 0.0, %v833
        %v835 = vpop.f32.mrb[0].mxu0
        %v836 = vpop.f32.mrb[0].mxu0
        %v837 = vadd.f32 0.0, %v836
        %v838 = vpop.f32.mrb[0].mxu0
        %839 = vmatprep.mubr.bf16.mxu0 %v715
        %840 = vmatmul.mubr.bf16.gmra.mrb[0].mxu0 %v584
        %v841 = vpop.f32.mrb[0].mxu0
        %v842 = vadd.f32 0.0, %v841
        %v843 = vpop.f32.mrb[0].mxu0
        %v844 = vpop.f32.mrb[0].mxu0
        %v845 = vadd.f32 0.0, %v844
        %v846 = vpop.f32.mrb[0].mxu0
        %847 = vmatprep.mubr.bf16.mxu0 %v718
        %848 = vmatmul.mubr.bf16.gmra.mrb[0].mxu0 %v586
        %v849 = vpop.f32.mrb[0].mxu0
        %v850 = vadd.f32 0.0, %v849
        %v851 = vpop.f32.mrb[0].mxu0
        %v852 = vpop.f32.mrb[0].mxu0
        %v853 = vadd.f32 0.0, %v852
        %v854 = vpop.f32.mrb[0].mxu0
        %855 = vmatprep.mubr.bf16.mxu0 %v721
        %856 = vmatmul.mubr.bf16.gmra.mrb[0].mxu0 %v588
        %v857 = vpop.f32.mrb[0].mxu0
        %v858 = vadd.f32 0.0, %v857
        %v859 = vpop.f32.mrb[0].mxu0
        %v860 = vpop.f32.mrb[0].mxu0
        %v861 = vadd.f32 0.0, %v860
        %v862 = vpop.f32.mrb[0].mxu0
        %863 = vmatprep.mubr.bf16.mxu0 %v724
        %864 = vmatmul.mubr.bf16.gmra.mrb[0].mxu0 %v590
        %v865 = vpop.f32.mrb[0].mxu0
        %v866 = vadd.f32 0.0, %v865
        %v867 = vpop.f32.mrb[0].mxu0
        %v868 = vpop.f32.mrb[0].mxu0
        %v869 = vadd.f32 0.0, %v868
        %v870 = vpop.f32.mrb[0].mxu0
        %871 = vmatprep.mubr.bf16.mxu0 %v727
        %872 = vmatmul.mubr.bf16.gmra.mrb[0].mxu0 %v592
        %v873 = vpop.f32.mrb[0].mxu0
        %v874 = vadd.f32 0.0, %v873
        %v875 = vpop.f32.mrb[0].mxu0
        %v876 = vpop.f32.mrb[0].mxu0
        %v877 = vadd.f32 0.0, %v876
        %v878 = vpop.f32.mrb[0].mxu0
        %879 = vmatprep.mubr.bf16.mxu0 %v730
        %880 = vmatmul.mubr.bf16.gmra.mrb[0].mxu0 %v594
        %v881 = vpop.f32.mrb[0].mxu0
        %v882 = vadd.f32 0.0, %v881
        %v883 = vpop.f32.mrb[0].mxu0
        %v884 = vpop.f32.mrb[0].mxu0
        %v885 = vadd.f32 0.0, %v884
        %v886 = vpop.f32.mrb[0].mxu0
        %887 = vmatprep.mubr.bf16.mxu0 %v733
        %888 = vmatmul.mubr.bf16.gmra.mrb[0].mxu0 %v596
        %v889 = vpop.f32.mrb[0].mxu0
        %v890 = vadd.f32 0.0, %v889
        %v891 = vpop.f32.mrb[0].mxu0
        %v892 = vpop.f32.mrb[0].mxu0
        %v893 = vadd.f32 0.0, %v892
        %v894 = vpop.f32.mrb[0].mxu0
        %895 = vdwg.mxu0
        %v896 = vld [vmem:[%s2] sm:$0x1]
        %v898 = vlaneseq
        %v899 = vshrl.u32 %v898, 7
        %v900 = vsub.s32 0, %v899
        %v901 = vrot.slane %v896, %v900
        %v903 = vmul.f32 %v770, %v901
        %v904 = vmul.f32 %v773, %v901
        %v905 = vmul.f32 %v778, %v901
        %v906 = vmul.f32 %v781, %v901
        %v907 = vmul.f32 %v786, %v901
        %v908 = vmul.f32 %v789, %v901
        %v909 = vmul.f32 %v794, %v901
        %v910 = vmul.f32 %v797, %v901
        %v911 = vmul.f32 %v802, %v901
        %v912 = vmul.f32 %v805, %v901
        %v913 = vmul.f32 %v810, %v901
        %v914 = vmul.f32 %v813, %v901
        %v915 = vmul.f32 %v818, %v901
        %v916 = vmul.f32 %v821, %v901
        %v917 = vmul.f32 %v826, %v901
        %v918 = vmul.f32 %v829, %v901
        %v919 = vmul.f32 %v834, %v901
        %v920 = vmul.f32 %v837, %v901
        %v921 = vmul.f32 %v842, %v901
        %v922 = vmul.f32 %v845, %v901
        %v923 = vmul.f32 %v850, %v901
        %v924 = vmul.f32 %v853, %v901
        %v925 = vmul.f32 %v858, %v901
        %v926 = vmul.f32 %v861, %v901
        %v927 = vmul.f32 %v866, %v901
        %v928 = vmul.f32 %v869, %v901
        %v929 = vmul.f32 %v874, %v901
        %v930 = vmul.f32 %v877, %v901
        %v931 = vmul.f32 %v882, %v901
        %v932 = vmul.f32 %v885, %v901
        %v933 = vmul.f32 %v890, %v901
        %v934 = vmul.f32 %v893, %v901
        %v935 = vld [vmem:[%s3] sm:$0x1]
        %v937 = vlaneseq
        %v938 = vshrl.u32 %v937, 7
        %v939 = vsub.s32 0, %v938
        %v940 = vrot.slane %v935, %v939
        %v942 = vadd.f32 %v903, %v940
        %v943 = vadd.f32 %v904, %v940
        %v944 = vadd.f32 %v905, %v940
        %v945 = vadd.f32 %v906, %v940
        %v946 = vadd.f32 %v907, %v940
        %v947 = vadd.f32 %v908, %v940
        %v948 = vadd.f32 %v909, %v940
        %v949 = vadd.f32 %v910, %v940
        %v950 = vadd.f32 %v911, %v940
        %v951 = vadd.f32 %v912, %v940
        %v952 = vadd.f32 %v913, %v940
        %v953 = vadd.f32 %v914, %v940
        %v954 = vadd.f32 %v915, %v940
        %v955 = vadd.f32 %v916, %v940
        %v956 = vadd.f32 %v917, %v940
        %v957 = vadd.f32 %v918, %v940
        %v958 = vadd.f32 %v919, %v940
        %v959 = vadd.f32 %v920, %v940
        %v960 = vadd.f32 %v921, %v940
        %v961 = vadd.f32 %v922, %v940
        %v962 = vadd.f32 %v923, %v940
        %v963 = vadd.f32 %v924, %v940
        %v964 = vadd.f32 %v925, %v940
        %v965 = vadd.f32 %v926, %v940
        %v966 = vadd.f32 %v927, %v940
        %v967 = vadd.f32 %v928, %v940
        %v968 = vadd.f32 %v929, %v940
        %v969 = vadd.f32 %v930, %v940
        %v970 = vadd.f32 %v931, %v940
        %v971 = vadd.f32 %v932, %v940
        %v972 = vadd.f32 %v933, %v940
        %v973 = vadd.f32 %v934, %v940
        %v974 = vld [vmem:[%s334] sm:$0xff]
        %v975 = vld [vmem:[%s334 + $0x8] sm:$0xff]
        %v976 = vld [vmem:[%s334 + $0x10] sm:$0xff]
        %v977 = vld [vmem:[%s334 + $0x18] sm:$0xff]
        %v978 = vld [vmem:[%s334 + $0x20] sm:$0xff]
        %v979 = vld [vmem:[%s334 + $0x28] sm:$0xff]
        %v980 = vld [vmem:[%s334 + $0x30] sm:$0xff]
        %v981 = vld [vmem:[%s334 + $0x38] sm:$0xff]
        %v982 = vld [vmem:[%s334 + $0x40] sm:$0xff]
        %v983 = vld [vmem:[%s334 + $0x48] sm:$0xff]
        %v984 = vld [vmem:[%s334 + $0x50] sm:$0xff]
        %v985 = vld [vmem:[%s334 + $0x58] sm:$0xff]
        %v986 = vld [vmem:[%s334 + $0x60] sm:$0xff]
        %v987 = vld [vmem:[%s334 + $0x68] sm:$0xff]
        %v988 = vld [vmem:[%s334 + $0x70] sm:$0xff]
        %v989 = vld [vmem:[%s334 + $0x78] sm:$0xff]
        %v990 = vld [vmem:[%s334 + $0x80] sm:$0xff]
        %v991 = vld [vmem:[%s334 + $0x88] sm:$0xff]
        %v992 = vld [vmem:[%s334 + $0x90] sm:$0xff]
        %v993 = vld [vmem:[%s334 + $0x98] sm:$0xff]
        %v994 = vld [vmem:[%s334 + $0xa0] sm:$0xff]
        %v995 = vld [vmem:[%s334 + $0xa8] sm:$0xff]
        %v996 = vld [vmem:[%s334 + $0xb0] sm:$0xff]
        %v997 = vld [vmem:[%s334 + $0xb8] sm:$0xff]
        %v998 = vld [vmem:[%s334 + $0xc0] sm:$0xff]
        %v999 = vld [vmem:[%s334 + $0xc8] sm:$0xff]
        %v1000 = vld [vmem:[%s334 + $0xd0] sm:$0xff]
        %v1001 = vld [vmem:[%s334 + $0xd8] sm:$0xff]
        %v1002 = vld [vmem:[%s334 + $0xe0] sm:$0xff]
        %v1003 = vld [vmem:[%s334 + $0xe8] sm:$0xff]
        %v1004 = vld [vmem:[%s334 + $0xf0] sm:$0xff]
        %v1005 = vld [vmem:[%s334 + $0xf8] sm:$0xff]
        %v1006 = vadd.f32 %v942, %v974
        %v1007 = vadd.f32 %v943, %v975
        %v1008 = vadd.f32 %v944, %v976
        %v1009 = vadd.f32 %v945, %v977
        %v1010 = vadd.f32 %v946, %v978
        %v1011 = vadd.f32 %v947, %v979
        %v1012 = vadd.f32 %v948, %v980
        %v1013 = vadd.f32 %v949, %v981
        %v1014 = vadd.f32 %v950, %v982
        %v1015 = vadd.f32 %v951, %v983
        %v1016 = vadd.f32 %v952, %v984
        %v1017 = vadd.f32 %v953, %v985
        %v1018 = vadd.f32 %v954, %v986
        %v1019 = vadd.f32 %v955, %v987
        %v1020 = vadd.f32 %v956, %v988
        %v1021 = vadd.f32 %v957, %v989
        %v1022 = vadd.f32 %v958, %v990
        %v1023 = vadd.f32 %v959, %v991
        %v1024 = vadd.f32 %v960, %v992
        %v1025 = vadd.f32 %v961, %v993
        %v1026 = vadd.f32 %v962, %v994
        %v1027 = vadd.f32 %v963, %v995
        %v1028 = vadd.f32 %v964, %v996
        %v1029 = vadd.f32 %v965, %v997
        %v1030 = vadd.f32 %v966, %v998
        %v1031 = vadd.f32 %v967, %v999
        %v1032 = vadd.f32 %v968, %v1000
        %v1033 = vadd.f32 %v969, %v1001
        %v1034 = vadd.f32 %v970, %v1002
        %v1035 = vadd.f32 %v971, %v1003
        %v1036 = vadd.f32 %v972, %v1004
        %v1037 = vadd.f32 %v973, %v1005
        %vm1038 = vcmask 261120
        %1039 = vst.msk [vmem:[%s310] sm:$0xff] %vm1038, %v1006
        %1040 = vst.msk [vmem:[%s310 + $0x8] sm:$0xff] %vm1038, %v1007
        %1041 = vst.msk [vmem:[%s310 + $0x10] sm:$0xff] %vm1038, %v1008
        %1042 = vst.msk [vmem:[%s310 + $0x18] sm:$0xff] %vm1038, %v1009
        %1043 = vst.msk [vmem:[%s310 + $0x20] sm:$0xff] %vm1038, %v1010
        %1044 = vst.msk [vmem:[%s310 + $0x28] sm:$0xff] %vm1038, %v1011
        %1045 = vst.msk [vmem:[%s310 + $0x30] sm:$0xff] %vm1038, %v1012
        %1046 = vst.msk [vmem:[%s310 + $0x38] sm:$0xff] %vm1038, %v1013
        %1047 = vst.msk [vmem:[%s310 + $0x40] sm:$0xff] %vm1038, %v1014
        %1048 = vst.msk [vmem:[%s310 + $0x48] sm:$0xff] %vm1038, %v1015
        %1049 = vst.msk [vmem:[%s310 + $0x50] sm:$0xff] %vm1038, %v1016
        %1050 = vst.msk [vmem:[%s310 + $0x58] sm:$0xff] %vm1038, %v1017
        %1051 = vst.msk [vmem:[%s310 + $0x60] sm:$0xff] %vm1038, %v1018
        %1052 = vst.msk [vmem:[%s310 + $0x68] sm:$0xff] %vm1038, %v1019
        %1053 = vst.msk [vmem:[%s310 + $0x70] sm:$0xff] %vm1038, %v1020
        %1054 = vst.msk [vmem:[%s310 + $0x78] sm:$0xff] %vm1038, %v1021
        %1055 = vst.msk [vmem:[%s310 + $0x80] sm:$0xff] %vm1038, %v1022
        %1056 = vst.msk [vmem:[%s310 + $0x88] sm:$0xff] %vm1038, %v1023
        %1057 = vst.msk [vmem:[%s310 + $0x90] sm:$0xff] %vm1038, %v1024
        %1058 = vst.msk [vmem:[%s310 + $0x98] sm:$0xff] %vm1038, %v1025
        %1059 = vst.msk [vmem:[%s310 + $0xa0] sm:$0xff] %vm1038, %v1026
        %1060 = vst.msk [vmem:[%s310 + $0xa8] sm:$0xff] %vm1038, %v1027
        %1061 = vst.msk [vmem:[%s310 + $0xb0] sm:$0xff] %vm1038, %v1028
        %1062 = vst.msk [vmem:[%s310 + $0xb8] sm:$0xff] %vm1038, %v1029
        %1063 = vst.msk [vmem:[%s310 + $0xc0] sm:$0xff] %vm1038, %v1030
        %1064 = vst.msk [vmem:[%s310 + $0xc8] sm:$0xff] %vm1038, %v1031
        %1065 = vst.msk [vmem:[%s310 + $0xd0] sm:$0xff] %vm1038, %v1032
        %1066 = vst.msk [vmem:[%s310 + $0xd8] sm:$0xff] %vm1038, %v1033
        %1067 = vst.msk [vmem:[%s310 + $0xe0] sm:$0xff] %vm1038, %v1034
        %1068 = vst.msk [vmem:[%s310 + $0xe8] sm:$0xff] %vm1038, %v1035
        %1069 = vst.msk [vmem:[%s310 + $0xf0] sm:$0xff] %vm1038, %v1036
        %1070 = vst.msk [vmem:[%s310 + $0xf8] sm:$0xff] %vm1038, %v1037
        %s1071 = sand.u32 %s187, 1
        %s1072 = scalar_lea.sflag [#allocation3], %s1071
        %s1073 = sand.u32 %s187, 1
        %s1074 = smul.addr %s1073, 256
        %s1075 = scalar_lea.vmem [#allocation2], %s1074
        // Predicated region
        $region45: #{mbconv_forward.7} parent=43 // pred_check
          %p1076 = pneg %p197
        $region46: #{mbconv_forward.7} parent=43 // pred_check_branch
          %1078 = sbr.rel (%p1076) target = $region48
        $region47: #{mbconv_forward.7} parent=43 // pred_region
          %s1079 = smul.u32 32, %s25
          %s1081 = ssub.s32 4096, 4096
          %1082 = vsyncadd %s1072, %s1081
          %s1083 = smul.addr %s24, 32
          %s1084 = sadd.s32 %s1079, %s1083
          %s1085 = smul.addr %s1084, 128
          %s1086 = scalar_lea.hbm %s6, %s1085
          %s1087 = sshll.u32 %s1075, 4
          %s1088 = int_to_ptr.vmem [resolvable:$true] %s1087
          %1093 = dma.vmem_to_hbm [thread:$0]  %s1088, 4096, %s1086, %s1072, 128, 128, 8
        $region48: #{mbconv_forward.7} parent=43 // pred_fallthru
          _
      $region44: #{mbconv_forward.7} parent=5 // pred_fallthru
        _
      %p1094 = scmp.le.s32.totalorder 2, %s15
      // Predicated region
      $region49: #{mbconv_forward.7} parent=5 // pred_check
        %p1095 = pneg %p1094
      $region50: #{mbconv_forward.7} parent=5 // pred_check_branch
        %1097 = sbr.rel (%p1095) target = $region52
      $region51: #{mbconv_forward.7} parent=5 // pred_region
        %s1098 = ssub.s32 %s15, 2
        // Predicated region
        $region53: #{mbconv_forward.7} parent=51 // pred_check
          %p1099 = pneg %p203
        $region54: #{mbconv_forward.7} parent=51 // pred_check_branch
          %1101 = sbr.rel (%p1099) target = $region56
        $region55: #{mbconv_forward.7} parent=51 // pred_region
          %s1102 = sand.u32 %s188, 1
          %s1103 = scalar_lea.sflag [#allocation3], %s1102
          %s1104 = sand.u32 %s188, 1
          %s1105 = smul.addr %s1104, 256
          %s1106 = scalar_lea.vmem [#allocation2], %s1105
          %1107 = dma.done %s1103, 4096
        $region56: #{mbconv_forward.7} parent=51 // pred_fallthru
          _
      $region52: #{mbconv_forward.7} parent=5 // pred_fallthru
        _
    $region6: #{mbconv_forward.7} parent=1 // loop_footer
      %s19 = sadd.s32 1, %s15
    $region7: #{mbconv_forward.7} parent=1 // loop_footer_branch
      %14 = sbr.rel target = $region3
    $region8: #{mbconv_forward.7} parent=1 // loop_exit
      _
    %1108 = vsyncpa [#allocation3], 1
    %s1109 = scalar_lea.sflag [#allocation3], 1
    %1110 = vsyncpa %s1109, 1

// kernel: mbconv_forward.5
$region0: #{mbconv_forward.5}
  #allocation0 [shape = 'u32[]', space=smem, size = 0x4, offset = 0x4, fixed_abs, tag = 'smem constant byte address 0x4 - core index']
  #allocation1 [shape = 'u32[144,128]{1,0:T(1,128)}', space=vmem, size = 0x12000, scoped, tag = 'internal scratch']
  %s0 = inlined_call_operand.vmem [shape: bf16[2,18,18,192], index: 0, kind: input, shape index: {}]
  %s1 = inlined_call_operand.vmem [shape: f32[9,192], index: 1, kind: input, shape index: {}]
  %s2 = inlined_call_operand.vmem [shape: f32[1,192], index: 2, kind: input, shape index: {}]
  %s3 = inlined_call_operand.vmem [shape: f32[1,192], index: 3, kind: input, shape index: {}]
  %s4 = inlined_call_operand.vmem [shape: bf16[2,16,16,192], index: 4, kind: output, shape index: {0}]
  %s5 = inlined_call_operand.vmem [shape: f32[2,1,192], index: 5, kind: output, shape index: {1}]
  %6 = xla_tuple %s4, %s5
  %s7 = sld [smem:[#allocation0]]
  $region57: #{mbconv_forward.5} parent=0
    _
  %s9 = ssub.s32 1, %s7
  %s10 = scalar_select 0, %s9, %s7
  loop: start=0, step=1, limit=4
  $region2: #{mbconv_forward.5} parent=0 // loop_pre_header
    _
  $region3: #{mbconv_forward.5} parent=0 // loop_header
    %s12 = sphi 0, %s16
    %p13 = scmp.ge.s32.totalorder %s12, 4
    %s22 = sphi 0, %s24
    %s25 = sphi 0, %s22
    %s26 = sphi 0, %s25
    %s42 = sphi 0, %s26
    %s46 = sphi 0, %s46
    %s48 = sphi 0, %s46
    %s49 = sphi 0, %s48
    %s63 = sphi 0, %s49
    %s67 = sphi 0, %s67
    %s69 = sphi 0, %s67
    %s70 = sphi 0, %s69
    %s84 = sphi 0, %s70
    %s88 = sphi 0, %s88
    %s90 = sphi 0, %s88
    %s91 = sphi 0, %s90
    %s105 = sphi 0, %s91
    %s111 = sphi 0, %s113
    %s114 = sphi 0, %s111
    %s115 = sphi 0, %s114
    %s131 = sphi 0, %s115
    %s137 = sphi 0, %s139
    %s140 = sphi 0, %s137
    %s141 = sphi 0, %s140
    %s157 = sphi 0, %s141
  $region4: #{mbconv_forward.5} parent=0 // loop_header_branch
    %15 = sbr.rel (%p13) target = $region8
  $region5: #{mbconv_forward.5} parent=0 // loop_body
    %s17 = ssub.s32 %s12, 1
    %s18 = ssub.s32 %s12, 2
    %s19 = sadd.s32 %s12, 1
    %s20 = ssub.s32 %s12, %s19
    %p21 = scmp.eq.s32.totalorder %s20, 0
    %s23 = sadd.s32 %s22, 1
    %s24 = scalar_select %p21, %s22, %s23
    %p27 = pneg %p21
    %p28 = scmp.eq.s32.totalorder %s12, 1
    %p29 = por %p27, %p28
    %p30 = scmp.ne.s32.totalorder %s22, %s25
    %p31 = scmp.eq.s32.totalorder %s12, 0
    %p32 = por %p30, %p31
    %p33 = scmp.ne.s32.totalorder %s22, %s25
    %p34 = scmp.eq.s32.totalorder %s17, 1
    %p35 = por %p33, %p34
    %p36 = scmp.ne.s32.totalorder %s25, %s26
    %p37 = scmp.eq.s32.totalorder %s17, 0
    %p38 = por %p36, %p37
    %p39 = scmp.ne.s32.totalorder %s25, %s26
    %p40 = scmp.eq.s32.totalorder %s18, 1
    %p41 = por %p39, %p40
    %p43 = scmp.ne.s32.totalorder %s26, %s42
    %p44 = scmp.eq.s32.totalorder %s18, 0
    %p45 = por %p43, %p44
    %s47 = sadd.s32 %s46, 1
    %p50 = scmp.eq.s32.totalorder %s12, 1
    %p51 = scmp.ne.s32.totalorder %s46, %s48
    %p52 = scmp.eq.s32.totalorder %s12, 0
    %p53 = por %p51, %p52
    %p54 = scmp.ne.s32.totalorder %s46, %s48
    %p55 = scmp.eq.s32.totalorder %s17, 1
    %p56 = por %p54, %p55
    %p57 = scmp.ne.s32.totalorder %s48, %s49
    %p58 = scmp.eq.s32.totalorder %s17, 0
    %p59 = por %p57, %p58
    %p60 = scmp.ne.s32.totalorder %s48, %s49
    %p61 = scmp.eq.s32.totalorder %s18, 1
    %p62 = por %p60, %p61
    %p64 = scmp.ne.s32.totalorder %s49, %s63
    %p65 = scmp.eq.s32.totalorder %s18, 0
    %p66 = por %p64, %p65
    %s68 = sadd.s32 %s67, 1
    %p71 = scmp.eq.s32.totalorder %s12, 1
    %p72 = scmp.ne.s32.totalorder %s67, %s69
    %p73 = scmp.eq.s32.totalorder %s12, 0
    %p74 = por %p72, %p73
    %p75 = scmp.ne.s32.totalorder %s67, %s69
    %p76 = scmp.eq.s32.totalorder %s17, 1
    %p77 = por %p75, %p76
    %p78 = scmp.ne.s32.totalorder %s69, %s70
    %p79 = scmp.eq.s32.totalorder %s17, 0
    %p80 = por %p78, %p79
    %p81 = scmp.ne.s32.totalorder %s69, %s70
    %p82 = scmp.eq.s32.totalorder %s18, 1
    %p83 = por %p81, %p82
    %p85 = scmp.ne.s32.totalorder %s70, %s84
    %p86 = scmp.eq.s32.totalorder %s18, 0
    %p87 = por %p85, %p86
    %s89 = sadd.s32 %s88, 1
    %p92 = scmp.eq.s32.totalorder %s12, 1
    %p93 = scmp.ne.s32.totalorder %s88, %s90
    %p94 = scmp.eq.s32.totalorder %s12, 0
    %p95 = por %p93, %p94
    %p96 = scmp.ne.s32.totalorder %s88, %s90
    %p97 = scmp.eq.s32.totalorder %s17, 1
    %p98 = por %p96, %p97
    %p99 = scmp.ne.s32.totalorder %s90, %s91
    %p100 = scmp.eq.s32.totalorder %s17, 0
    %p101 = por %p99, %p100
    %p102 = scmp.ne.s32.totalorder %s90, %s91
    %p103 = scmp.eq.s32.totalorder %s18, 1
    %p104 = por %p102, %p103
    %p106 = scmp.ne.s32.totalorder %s91, %s105
    %p107 = scmp.eq.s32.totalorder %s18, 0
    %p108 = por %p106, %p107
    %s109 = ssub.s32 %s12, %s19
    %p110 = scmp.eq.s32.totalorder %s109, 0
    %s112 = sadd.s32 %s111, 1
    %s113 = scalar_select %p110, %s111, %s112
    %p116 = pneg %p110
    %p117 = scmp.eq.s32.totalorder %s12, 1
    %p118 = por %p116, %p117
    %p119 = scmp.ne.s32.totalorder %s111, %s114
    %p120 = scmp.eq.s32.totalorder %s12, 0
    %p121 = por %p119, %p120
    %p122 = scmp.ne.s32.totalorder %s111, %s114
    %p123 = scmp.eq.s32.totalorder %s17, 1
    %p124 = por %p122, %p123
    %p125 = scmp.ne.s32.totalorder %s114, %s115
    %p126 = scmp.eq.s32.totalorder %s17, 0
    %p127 = por %p125, %p126
    %p128 = scmp.ne.s32.totalorder %s114, %s115
    %p129 = scmp.eq.s32.totalorder %s18, 1
    %p130 = por %p128, %p129
    %p132 = scmp.ne.s32.totalorder %s115, %s131
    %p133 = scmp.eq.s32.totalorder %s18, 0
    %p134 = por %p132, %p133
    %s135 = ssub.s32 %s12, %s19
    %p136 = scmp.eq.s32.totalorder %s135, 0
    %s138 = sadd.s32 %s137, 1
    %s139 = scalar_select %p136, %s137, %s138
    %p142 = pneg %p136
    %p143 = scmp.eq.s32.totalorder %s12, 1
    %p144 = por %p142, %p143
    %p145 = scmp.ne.s32.totalorder %s137, %s140
    %p146 = scmp.eq.s32.totalorder %s12, 0
    %p147 = por %p145, %p146
    %p148 = scmp.ne.s32.totalorder %s137, %s140
    %p149 = scmp.eq.s32.totalorder %s17, 1
    %p150 = por %p148, %p149
    %p151 = scmp.ne.s32.totalorder %s140, %s141
    %p152 = scmp.eq.s32.totalorder %s17, 0
    %p153 = por %p151, %p152
    %p154 = scmp.ne.s32.totalorder %s140, %s141
    %p155 = scmp.eq.s32.totalorder %s18, 1
    %p156 = por %p154, %p155
    %p158 = scmp.ne.s32.totalorder %s141, %s157
    %p159 = scmp.eq.s32.totalorder %s18, 0
    %p160 = por %p158, %p159
    %p161 = scmp.le.s32.totalorder 1, %s12
    %p162 = scmp.lt.s32.totalorder %s12, 3
    %p163 = pnand %p161, %p162
    %p164 = pneg %p163
    // Predicated region
    $region9: #{mbconv_forward.5} parent=5 // pred_check
      _
    $region10: #{mbconv_forward.5} parent=5 // pred_check_branch
      %166 = sbr.rel (%p163) target = $region12
    $region11: #{mbconv_forward.5} parent=5 // pred_region
      %s167 = ssub.s32 %s12, 1
      // Predicated region
      $region13: #{mbconv_forward.5} parent=11 // pred_check
        %p168 = pneg %p59
      $region14: #{mbconv_forward.5} parent=11 // pred_check_branch
        %170 = sbr.rel (%p168) target = $region16
      $region15: #{mbconv_forward.5} parent=11 // pred_region
        _
      $region16: #{mbconv_forward.5} parent=11 // pred_fallthru
        _
      // Predicated region
      $region17: #{mbconv_forward.5} parent=11 // pred_check
        %p171 = pneg %p80
      $region18: #{mbconv_forward.5} parent=11 // pred_check_branch
        %173 = sbr.rel (%p171) target = $region20
      $region19: #{mbconv_forward.5} parent=11 // pred_region
        _
      $region20: #{mbconv_forward.5} parent=11 // pred_fallthru
        _
      // Predicated region
      $region21: #{mbconv_forward.5} parent=11 // pred_check
        %p174 = pneg %p101
      $region22: #{mbconv_forward.5} parent=11 // pred_check_branch
        %176 = sbr.rel (%p174) target = $region24
      $region23: #{mbconv_forward.5} parent=11 // pred_region
        _
      $region24: #{mbconv_forward.5} parent=11 // pred_fallthru
        _
    $region12: #{mbconv_forward.5} parent=5 // pred_fallthru
      _
    %p177 = scmp.lt.s32.totalorder %s12, 2
    // Predicated region
    $region25: #{mbconv_forward.5} parent=5 // pred_check
      %p178 = pneg %p177
    $region26: #{mbconv_forward.5} parent=5 // pred_check_branch
      %180 = sbr.rel (%p178) target = $region28
    $region27: #{mbconv_forward.5} parent=5 // pred_region
      // Predicated region
      $region29: #{mbconv_forward.5} parent=27 // pred_check
        %p181 = pneg %p32
      $region30: #{mbconv_forward.5} parent=27 // pred_check_branch
        %183 = sbr.rel (%p181) target = $region32
      $region31: #{mbconv_forward.5} parent=27 // pred_region
        %p184 = scmp.lt.s32.totalorder %s12, 1
        %s185 = scalar_select %p184, %s12, 1
        %s186 = smul.addr %s185, 108
        %s187 = smul.addr %s186, 4
        %s188 = scalar_lea.vmem %s0, %s187
      $region32: #{mbconv_forward.5} parent=27 // pred_fallthru
        _
    $region28: #{mbconv_forward.5} parent=5 // pred_fallthru
      _
    %p189 = scmp.le.s32.totalorder 1, %s12
    %p190 = scmp.lt.s32.totalorder %s12, 3
    %p191 = pnand %p189, %p190
    %p192 = pneg %p191
    // Predicated region
    $region33: #{mbconv_forward.5} parent=5 // pred_check
      _
    $region34: #{mbconv_forward.5} parent=5 // pred_check_branch
      %194 = sbr.rel (%p191) target = $region36
    $region35: #{mbconv_forward.5} parent=5 // pred_region
      %s195 = ssub.s32 %s12, 1
      %p196 = scmp.lt.s32.totalorder %s17, 1
      %s197 = scalar_select %p196, %s17, 1
      %s198 = smul.addr %s197, 108
      %s199 = smul.addr %s198, 4
      %s200 = scalar_lea.vmem %s0, %s199
      %p201 = pneg %p38
      %p202 = pneg %p35
      %p203 = pneg %p59
      %p204 = pneg %p56
      %p205 = pneg %p80
      %p206 = pneg %p77
      %p207 = pneg %p101
      %p208 = pneg %p98
      %p209 = pneg %p127
      %p210 = pneg %p124
      %p211 = scmp.lt.s32.totalorder %s17, 1
      %s212 = scalar_select %p211, %s17, 1
      %s213 = smul.addr %s212, 64
      %s214 = smul.addr %s213, 4
      %s215 = scalar_lea.vmem %s4, %s214
      %p216 = pneg %p153
      %p217 = pneg %p150
      %p218 = scmp.lt.s32.totalorder %s17, 1
      %s219 = scalar_select %p218, %s17, 1
      %s220 = smul.addr %s219, 2
      %s221 = scalar_lea.vmem %s5, %s220
      %p222 = scmp.lt.s32.totalorder %s17, 1
      %s223 = scalar_select %p222, %s17, 1
      %s224 = smul.addr %s223, 108
      %s225 = smul.addr %s224, 4
      %s226 = scalar_lea.vmem %s0, %s225
      %p227 = scmp.lt.s32.totalorder %s17, 1
      %s228 = scalar_select %p227, %s17, 1
      %s229 = smul.addr %s228, 64
      %s230 = smul.addr %s229, 4
      %s231 = scalar_lea.vmem %s4, %s230
      %p232 = scmp.lt.s32.totalorder %s17, 1
      %s233 = scalar_select %p232, %s17, 1
      %s234 = smul.addr %s233, 2
      %s235 = scalar_lea.vmem %s5, %s234
      %v236 = vld [vmem:[%s226] sm:$0xff]
      %v237 = vld [vmem:[%s226 + $0x8] sm:$0xff]
      %v238 = vld [vmem:[%s226 + $0x18] sm:$0xff]
      %v239 = vld [vmem:[%s226 + $0x20] sm:$0xff]
      %v240 = vld [vmem:[%s226 + $0x30] sm:$0xff]
      %v241 = vld [vmem:[%s226 + $0x38] sm:$0xff]
      %v242 = vld [vmem:[%s226 + $0x48] sm:$0xff]
      %v243 = vld [vmem:[%s226 + $0x50] sm:$0xff]
      %v244 = vld [vmem:[%s226 + $0x60] sm:$0xff]
      %v245 = vld [vmem:[%s226 + $0x68] sm:$0xff]
      %v246 = vld [vmem:[%s226 + $0x78] sm:$0xff]
      %v247 = vld [vmem:[%s226 + $0x80] sm:$0xff]
      %v248 = vld [vmem:[%s226 + $0x90] sm:$0xff]
      %v249 = vld [vmem:[%s226 + $0x98] sm:$0xff]
      %v250 = vld [vmem:[%s226 + $0xa8] sm:$0xff]
      %v251 = vld [vmem:[%s226 + $0xb0] sm:$0xff]
      %v252 = vld [vmem:[%s226 + $0xc0] sm:$0xff]
      %v253 = vld [vmem:[%s226 + $0xc8] sm:$0xff]
      %v254 = vld [vmem:[%s226 + $0xd8] sm:$0xff]
      %v255 = vld [vmem:[%s226 + $0xe0] sm:$0xff]
      %v256 = vld [vmem:[%s226 + $0xf0] sm:$0xff]
      %v257 = vld [vmem:[%s226 + $0xf8] sm:$0xff]
      %v258 = vld [vmem:[%s226 + $0x108] sm:$0xff]
      %v259 = vld [vmem:[%s226 + $0x110] sm:$0xff]
      %v260 = vld [vmem:[%s226 + $0x120] sm:$0xff]
      %v261 = vld [vmem:[%s226 + $0x128] sm:$0xff]
      %v262 = vld [vmem:[%s226 + $0x138] sm:$0xff]
      %v263 = vld [vmem:[%s226 + $0x140] sm:$0xff]
      %v264 = vld [vmem:[%s226 + $0x150] sm:$0xff]
      %v265 = vld [vmem:[%s226 + $0x158] sm:$0xff]
      %v266 = vld [vmem:[%s226 + $0x168] sm:$0xff]
      %v267 = vld [vmem:[%s226 + $0x170] sm:$0xff]
      %v268 = vunpack.c.l.bf16 %v236
      %v269 = vunpack.c.h.bf16 %v236
      %v270 = vunpack.c.l.bf16 %v237
      %v271 = vunpack.c.h.bf16 %v237
      %v272 = vunpack.c.l.bf16 %v238
      %v273 = vunpack.c.h.bf16 %v238
      %v274 = vunpack.c.l.bf16 %v239
      %v275 = vunpack.c.h.bf16 %v239
      %v276 = vunpack.c.l.bf16 %v240
      %v277 = vunpack.c.h.bf16 %v240
      %v278 = vunpack.c.l.bf16 %v241
      %v279 = vunpack.c.h.bf16 %v241
      %v280 = vunpack.c.l.bf16 %v242
      %v281 = vunpack.c.h.bf16 %v242
      %v282 = vunpack.c.l.bf16 %v243
      %v283 = vunpack.c.h.bf16 %v243
      %v284 = vunpack.c.l.bf16 %v244
      %v285 = vunpack.c.h.bf16 %v244
      %v286 = vunpack.c.l.bf16 %v245
      %v287 = vunpack.c.h.bf16 %v245
      %v288 = vunpack.c.l.bf16 %v246
      %v289 = vunpack.c.h.bf16 %v246
      %v290 = vunpack.c.l.bf16 %v247
      %v291 = vunpack.c.h.bf16 %v247
      %v292 = vunpack.c.l.bf16 %v248
      %v293 = vunpack.c.h.bf16 %v248
      %v294 = vunpack.c.l.bf16 %v249
      %v295 = vunpack.c.h.bf16 %v249
      %v296 = vunpack.c.l.bf16 %v250
      %v297 = vunpack.c.h.bf16 %v250
      %v298 = vunpack.c.l.bf16 %v251
      %v299 = vunpack.c.h.bf16 %v251
      %v300 = vunpack.c.l.bf16 %v252
      %v301 = vunpack.c.h.bf16 %v252
      %v302 = vunpack.c.l.bf16 %v253
      %v303 = vunpack.c.h.bf16 %v253
      %v304 = vunpack.c.l.bf16 %v254
      %v305 = vunpack.c.h.bf16 %v254
      %v306 = vunpack.c.l.bf16 %v255
      %v307 = vunpack.c.h.bf16 %v255
      %v308 = vunpack.c.l.bf16 %v256
      %v309 = vunpack.c.h.bf16 %v256
      %v310 = vunpack.c.l.bf16 %v257
      %v311 = vunpack.c.h.bf16 %v257
      %v312 = vunpack.c.l.bf16 %v258
      %v313 = vunpack.c.h.bf16 %v258
      %v314 = vunpack.c.l.bf16 %v259
      %v315 = vunpack.c.h.bf16 %v259
      %v316 = vunpack.c.l.bf16 %v260
      %v317 = vunpack.c.h.bf16 %v260
      %v318 = vunpack.c.l.bf16 %v261
      %v319 = vunpack.c.h.bf16 %v261
      %v320 = vunpack.c.l.bf16 %v262
      %v321 = vunpack.c.h.bf16 %v262
      %v322 = vunpack.c.l.bf16 %v263
      %v323 = vunpack.c.h.bf16 %v263
      %v324 = vunpack.c.l.bf16 %v264
      %v325 = vunpack.c.h.bf16 %v264
      %v326 = vunpack.c.l.bf16 %v265
      %v327 = vunpack.c.h.bf16 %v265
      %v328 = vunpack.c.l.bf16 %v266
      %v329 = vunpack.c.h.bf16 %v266
      %v330 = vunpack.c.l.bf16 %v267
      %v331 = vunpack.c.h.bf16 %v267
      %v332 = vld [vmem:[%s1] ss:$8 sm:$0x3]
      %v334 = vlaneseq
      %v335 = vshrl.u32 %v334, 7
      %v336 = vsub.s32 0, %v335
      %v337 = vrot.slane %v332, %v336
      %v338 = vlaneseq
      %v339 = vshrl.u32 %v338, 7
      %v340 = vsub.s32 1, %v339
      %v341 = vrot.slane %v332, %v340
      %v344 = vmul.f32 %v268, %v337
      %v345 = vmul.f32 %v269, %v341
      %v346 = vmul.f32 %v270, %v337
      %v347 = vmul.f32 %v271, %v341
      %v348 = vmul.f32 %v272, %v337
      %v349 = vmul.f32 %v273, %v341
      %v350 = vmul.f32 %v274, %v337
      %v351 = vmul.f32 %v275, %v341
      %v352 = vmul.f32 %v276, %v337
      %v353 = vmul.f32 %v277, %v341
      %v354 = vmul.f32 %v278, %v337
      %v355 = vmul.f32 %v279, %v341
      %v356 = vmul.f32 %v280, %v337
      %v357 = vmul.f32 %v281, %v341
      %v358 = vmul.f32 %v282, %v337
      %v359 = vmul.f32 %v283, %v341
      %v360 = vmul.f32 %v284, %v337
      %v361 = vmul.f32 %v285, %v341
      %v362 = vmul.f32 %v286, %v337
      %v363 = vmul.f32 %v287, %v341
      %v364 = vmul.f32 %v288, %v337
      %v365 = vmul.f32 %v289, %v341
      %v366 = vmul.f32 %v290, %v337
      %v367 = vmul.f32 %v291, %v341
      %v368 = vmul.f32 %v292, %v337
      %v369 = vmul.f32 %v293, %v341
      %v370 = vmul.f32 %v294, %v337
      %v371 = vmul.f32 %v295, %v341
      %v372 = vmul.f32 %v296, %v337
      %v373 = vmul.f32 %v297, %v341
      %v374 = vmul.f32 %v298, %v337
      %v375 = vmul.f32 %v299, %v341
      %v376 = vmul.f32 %v300, %v337
      %v377 = vmul.f32 %v301, %v341
      %v378 = vmul.f32 %v302, %v337
      %v379 = vmul.f32 %v303, %v341
      %v380 = vmul.f32 %v304, %v337
      %v381 = vmul.f32 %v305, %v341
      %v382 = vmul.f32 %v306, %v337
      %v383 = vmul.f32 %v307, %v341
      %v384 = vmul.f32 %v308, %v337
      %v385 = vmul.f32 %v309, %v341
      %v386 = vmul.f32 %v310, %v337
      %v387 = vmul.f32 %v311, %v341
      %v388 = vmul.f32 %v312, %v337
      %v389 = vmul.f32 %v313, %v341
      %v390 = vmul.f32 %v314, %v337
      %v391 = vmul.f32 %v315, %v341
      %v392 = vmul.f32 %v316, %v337
      %v393 = vmul.f32 %v317, %v341
      %v394 = vmul.f32 %v318, %v337
      %v395 = vmul.f32 %v319, %v341
      %v396 = vmul.f32 %v320, %v337
      %v397 = vmul.f32 %v321, %v341
      %v398 = vmul.f32 %v322, %v337
      %v399 = vmul.f32 %v323, %v341
      %v400 = vmul.f32 %v324, %v337
      %v401 = vmul.f32 %v325, %v341
      %v402 = vmul.f32 %v326, %v337
      %v403 = vmul.f32 %v327, %v341
      %v404 = vmul.f32 %v328, %v337
      %v405 = vmul.f32 %v329, %v341
      %v406 = vmul.f32 %v330, %v337
      %v407 = vmul.f32 %v331, %v341
      %v408 = vld [vmem:[%s226 + $0x10] sm:$0x11]
      %v409 = vld [vmem:[%s226 + $0x28] sm:$0x11]
      %v410 = vld [vmem:[%s226 + $0x40] sm:$0x11]
      %v411 = vld [vmem:[%s226 + $0x58] sm:$0x11]
      %v412 = vld [vmem:[%s226 + $0x70] sm:$0x11]
      %v413 = vld [vmem:[%s226 + $0x88] sm:$0x11]
      %v414 = vld [vmem:[%s226 + $0xa0] sm:$0x11]
      %v415 = vld [vmem:[%s226 + $0xb8] sm:$0x11]
      %v416 = vld [vmem:[%s226 + $0xd0] sm:$0x11]
      %v417 = vld [vmem:[%s226 + $0xe8] sm:$0x11]
      %v418 = vld [vmem:[%s226 + $0x100] sm:$0x11]
      %v419 = vld [vmem:[%s226 + $0x118] sm:$0x11]
      %v420 = vld [vmem:[%s226 + $0x130] sm:$0x11]
      %v421 = vld [vmem:[%s226 + $0x148] sm:$0x11]
      %v422 = vld [vmem:[%s226 + $0x160] sm:$0x11]
      %v423 = vld [vmem:[%s226 + $0x178] sm:$0x11]
      %v424 = vunpack.c.l.bf16 %v408
      %v425 = vunpack.c.h.bf16 %v408
      %v426 = vunpack.c.l.bf16 %v409
      %v427 = vunpack.c.h.bf16 %v409
      %v428 = vunpack.c.l.bf16 %v410
      %v429 = vunpack.c.h.bf16 %v410
      %v430 = vunpack.c.l.bf16 %v411
      %v431 = vunpack.c.h.bf16 %v411
      %v432 = vunpack.c.l.bf16 %v412
      %v433 = vunpack.c.h.bf16 %v412
      %v434 = vunpack.c.l.bf16 %v413
      %v435 = vunpack.c.h.bf16 %v413
      %v436 = vunpack.c.l.bf16 %v414
      %v437 = vunpack.c.h.bf16 %v414
      %v438 = vunpack.c.l.bf16 %v415
      %v439 = vunpack.c.h.bf16 %v415
      %v440 = vunpack.c.l.bf16 %v416
      %v441 = vunpack.c.h.bf16 %v416
      %v442 = vunpack.c.l.bf16 %v417
      %v443 = vunpack.c.h.bf16 %v417
      %v444 = vunpack.c.l.bf16 %v418
      %v445 = vunpack.c.h.bf16 %v418
      %v446 = vunpack.c.l.bf16 %v419
      %v447 = vunpack.c.h.bf16 %v419
      %v448 = vunpack.c.l.bf16 %v420
      %v449 = vunpack.c.h.bf16 %v420
      %v450 = vunpack.c.l.bf16 %v421
      %v451 = vunpack.c.h.bf16 %v421
      %v452 = vunpack.c.l.bf16 %v422
      %v453 = vunpack.c.h.bf16 %v422
      %v454 = vunpack.c.l.bf16 %v423
      %v455 = vunpack.c.h.bf16 %v423
      %s456 = scalar_lea.vmem %s1, 1
      %v457 = vld [vmem:[%s456] ss:$8 sm:$0x3]
      %v459 = vlaneseq
      %v460 = vshrl.u32 %v459, 7
      %v461 = vsub.s32 0, %v460
      %v462 = vrot.slane %v457, %v461
      %v463 = vlaneseq
      %v464 = vshrl.u32 %v463, 7
      %v465 = vsub.s32 1, %v464
      %v466 = vrot.slane %v457, %v465
      %v469 = vmul.f32 %v268, %v462
      %v470 = vmul.f32 %v269, %v466
      %v471 = vmul.f32 %v270, %v462
      %v472 = vmul.f32 %v271, %v466
      %v473 = vmul.f32 %v424, %v462
      %v474 = vmul.f32 %v425, %v466
      %v475 = vmul.f32 %v272, %v462
      %v476 = vmul.f32 %v273, %v466
      %v477 = vmul.f32 %v274, %v462
      %v478 = vmul.f32 %v275, %v466
      %v479 = vmul.f32 %v426, %v462
      %v480 = vmul.f32 %v427, %v466
      %v481 = vmul.f32 %v276, %v462
      %v482 = vmul.f32 %v277, %v466
      %v483 = vmul.f32 %v278, %v462
      %v484 = vmul.f32 %v279, %v466
      %v485 = vmul.f32 %v428, %v462
      %v486 = vmul.f32 %v429, %v466
      %v487 = vmul.f32 %v280, %v462
      %v488 = vmul.f32 %v281, %v466
      %v489 = vmul.f32 %v282, %v462
      %v490 = vmul.f32 %v283, %v466
      %v491 = vmul.f32 %v430, %v462
      %v492 = vmul.f32 %v431, %v466
      %v493 = vmul.f32 %v284, %v462
      %v494 = vmul.f32 %v285, %v466
      %v495 = vmul.f32 %v286, %v462
      %v496 = vmul.f32 %v287, %v466
      %v497 = vmul.f32 %v432, %v462
      %v498 = vmul.f32 %v433, %v466
      %v499 = vmul.f32 %v288, %v462
      %v500 = vmul.f32 %v289, %v466
      %v501 = vmul.f32 %v290, %v462
      %v502 = vmul.f32 %v291, %v466
      %v503 = vmul.f32 %v434, %v462
      %v504 = vmul.f32 %v435, %v466
      %v505 = vmul.f32 %v292, %v462
      %v506 = vmul.f32 %v293, %v466
      %v507 = vmul.f32 %v294, %v462
      %v508 = vmul.f32 %v295, %v466
      %v509 = vmul.f32 %v436, %v462
      %v510 = vmul.f32 %v437, %v466
      %v511 = vmul.f32 %v296, %v462
      %v512 = vmul.f32 %v297, %v466
      %v513 = vmul.f32 %v298, %v462
      %v514 = vmul.f32 %v299, %v466
      %v515 = vmul.f32 %v438, %v462
      %v516 = vmul.f32 %v439, %v466
      %v517 = vmul.f32 %v300, %v462
      %v518 = vmul.f32 %v301, %v466
      %v519 = vmul.f32 %v302, %v462
      %v520 = vmul.f32 %v303, %v466
      %v521 = vmul.f32 %v440, %v462
      %v522 = vmul.f32 %v441, %v466
      %v523 = vmul.f32 %v304, %v462
      %v524 = vmul.f32 %v305, %v466
      %v525 = vmul.f32 %v306, %v462
      %v526 = vmul.f32 %v307, %v466
      %v527 = vmul.f32 %v442, %v462
      %v528 = vmul.f32 %v443, %v466
      %v529 = vmul.f32 %v308, %v462
      %v530 = vmul.f32 %v309, %v466
      %v531 = vmul.f32 %v310, %v462
      %v532 = vmul.f32 %v311, %v466
      %v533 = vmul.f32 %v444, %v462
      %v534 = vmul.f32 %v445, %v466
      %v535 = vmul.f32 %v312, %v462
      %v536 = vmul.f32 %v313, %v466
      %v537 = vmul.f32 %v314, %v462
      %v538 = vmul.f32 %v315, %v466
      %v539 = vmul.f32 %v446, %v462
      %v540 = vmul.f32 %v447, %v466
      %v541 = vmul.f32 %v316, %v462
      %v542 = vmul.f32 %v317, %v466
      %v543 = vmul.f32 %v318, %v462
      %v544 = vmul.f32 %v319, %v466
      %v545 = vmul.f32 %v448, %v462
      %v546 = vmul.f32 %v449, %v466
      %v547 = vmul.f32 %v320, %v462
      %v548 = vmul.f32 %v321, %v466
      %v549 = vmul.f32 %v322, %v462
      %v550 = vmul.f32 %v323, %v466
      %v551 = vmul.f32 %v450, %v462
      %v552 = vmul.f32 %v451, %v466
      %v553 = vmul.f32 %v324, %v462
      %v554 = vmul.f32 %v325, %v466
      %v555 = vmul.f32 %v326, %v462
      %v556 = vmul.f32 %v327, %v466
      %v557 = vmul.f32 %v452, %v462
      %v558 = vmul.f32 %v453, %v466
      %v559 = vmul.f32 %v328, %v462
      %v560 = vmul.f32 %v329, %v466
      %v561 = vmul.f32 %v330, %v462
      %v562 = vmul.f32 %v331, %v466
      %v563 = vmul.f32 %v454, %v462
      %v564 = vmul.f32 %v455, %v466
      %vm661 = vcmask 1046528
      %v662 = vrot.slane %v469, 1
      %v663 = vrot.slane %v471, 1
      %v664 = vsel %vm661, %v662, %v663
      %v665 = vrot.slane %v470, 1
      %v666 = vrot.slane %v472, 1
      %v667 = vsel %vm661, %v665, %v666
      %v668 = vrot.slane %v473, 1
      %v669 = vsel %vm661, %v663, %v668
      %v670 = vrot.slane %v474, 1
      %v671 = vsel %vm661, %v666, %v670
      %v672 = vrot.slane %v475, 1
      %v673 = vrot.slane %v477, 1
      %v674 = vsel %vm661, %v672, %v673
      %v675 = vrot.slane %v476, 1
      %v676 = vrot.slane %v478, 1
      %v677 = vsel %vm661, %v675, %v676
      %v678 = vrot.slane %v479, 1
      %v679 = vsel %vm661, %v673, %v678
      %v680 = vrot.slane %v480, 1
      %v681 = vsel %vm661, %v676, %v680
      %v682 = vrot.slane %v481, 1
      %v683 = vrot.slane %v483, 1
      %v684 = vsel %vm661, %v682, %v683
      %v685 = vrot.slane %v482, 1
      %v686 = vrot.slane %v484, 1
      %v687 = vsel %vm661, %v685, %v686
      %v688 = vrot.slane %v485, 1
      %v689 = vsel %vm661, %v683, %v688
      %v690 = vrot.slane %v486, 1
      %v691 = vsel %vm661, %v686, %v690
      %v692 = vrot.slane %v487, 1
      %v693 = vrot.slane %v489, 1
      %v694 = vsel %vm661, %v692, %v693
      %v695 = vrot.slane %v488, 1
      %v696 = vrot.slane %v490, 1
      %v697 = vsel %vm661, %v695, %v696
      %v698 = vrot.slane %v491, 1
      %v699 = vsel %vm661, %v693, %v698
      %v700 = vrot.slane %v492, 1
      %v701 = vsel %vm661, %v696, %v700
      %v702 = vrot.slane %v493, 1
      %v703 = vrot.slane %v495, 1
      %v704 = vsel %vm661, %v702, %v703
      %v705 = vrot.slane %v494, 1
      %v706 = vrot.slane %v496, 1
      %v707 = vsel %vm661, %v705, %v706
      %v708 = vrot.slane %v497, 1
      %v709 = vsel %vm661, %v703, %v708
      %v710 = vrot.slane %v498, 1
      %v711 = vsel %vm661, %v706, %v710
      %v712 = vrot.slane %v499, 1
      %v713 = vrot.slane %v501, 1
      %v714 = vsel %vm661, %v712, %v713
      %v715 = vrot.slane %v500, 1
      %v716 = vrot.slane %v502, 1
      %v717 = vsel %vm661, %v715, %v716
      %v718 = vrot.slane %v503, 1
      %v719 = vsel %vm661, %v713, %v718
      %v720 = vrot.slane %v504, 1
      %v721 = vsel %vm661, %v716, %v720
      %v722 = vrot.slane %v505, 1
      %v723 = vrot.slane %v507, 1
      %v724 = vsel %vm661, %v722, %v723
      %v725 = vrot.slane %v506, 1
      %v726 = vrot.slane %v508, 1
      %v727 = vsel %vm661, %v725, %v726
      %v728 = vrot.slane %v509, 1
      %v729 = vsel %vm661, %v723, %v728
      %v730 = vrot.slane %v510, 1
      %v731 = vsel %vm661, %v726, %v730
      %v732 = vrot.slane %v511, 1
      %v733 = vrot.slane %v513, 1
      %v734 = vsel %vm661, %v732, %v733
      %v735 = vrot.slane %v512, 1
      %v736 = vrot.slane %v514, 1
      %v737 = vsel %vm661, %v735, %v736
      %v738 = vrot.slane %v515, 1
      %v739 = vsel %vm661, %v733, %v738
      %v740 = vrot.slane %v516, 1
      %v741 = vsel %vm661, %v736, %v740
      %v742 = vrot.slane %v517, 1
      %v743 = vrot.slane %v519, 1
      %v744 = vsel %vm661, %v742, %v743
      %v745 = vrot.slane %v518, 1
      %v746 = vrot.slane %v520, 1
      %v747 = vsel %vm661, %v745, %v746
      %v748 = vrot.slane %v521, 1
      %v749 = vsel %vm661, %v743, %v748
      %v750 = vrot.slane %v522, 1
      %v751 = vsel %vm661, %v746, %v750
      %v752 = vrot.slane %v523, 1
      %v753 = vrot.slane %v525, 1
      %v754 = vsel %vm661, %v752, %v753
      %v755 = vrot.slane %v524, 1
      %v756 = vrot.slane %v526, 1
      %v757 = vsel %vm661, %v755, %v756
      %v758 = vrot.slane %v527, 1
      %v759 = vsel %vm661, %v753, %v758
      %v760 = vrot.slane %v528, 1
      %v761 = vsel %vm661, %v756, %v760
      %v762 = vrot.slane %v529, 1
      %v763 = vrot.slane %v531, 1
      %v764 = vsel %vm661, %v762, %v763
      %v765 = vrot.slane %v530, 1
      %v766 = vrot.slane %v532, 1
      %v767 = vsel %vm661, %v765, %v766
      %v768 = vrot.slane %v533, 1
      %v769 = vsel %vm661, %v763, %v768
      %v770 = vrot.slane %v534, 1
      %v771 = vsel %vm661, %v766, %v770
      %v772 = vrot.slane %v535, 1
      %v773 = vrot.slane %v537, 1
      %v774 = vsel %vm661, %v772, %v773
      %v775 = vrot.slane %v536, 1
      %v776 = vrot.slane %v538, 1
      %v777 = vsel %vm661, %v775, %v776
      %v778 = vrot.slane %v539, 1
      %v779 = vsel %vm661, %v773, %v778
      %v780 = vrot.slane %v540, 1
      %v781 = vsel %vm661, %v776, %v780
      %v782 = vrot.slane %v541, 1
      %v783 = vrot.slane %v543, 1
      %v784 = vsel %vm661, %v782, %v783
      %v785 = vrot.slane %v542, 1
      %v786 = vrot.slane %v544, 1
      %v787 = vsel %vm661, %v785, %v786
      %v788 = vrot.slane %v545, 1
      %v789 = vsel %vm661, %v783, %v788
      %v790 = vrot.slane %v546, 1
      %v791 = vsel %vm661, %v786, %v790
      %v792 = vrot.slane %v547, 1
      %v793 = vrot.slane %v549, 1
      %v794 = vsel %vm661, %v792, %v793
      %v795 = vrot.slane %v548, 1
      %v796 = vrot.slane %v550, 1
      %v797 = vsel %vm661, %v795, %v796
      %v798 = vrot.slane %v551, 1
      %v799 = vsel %vm661, %v793, %v798
      %v800 = vrot.slane %v552, 1
      %v801 = vsel %vm661, %v796, %v800
      %v802 = vrot.slane %v553, 1
      %v803 = vrot.slane %v555, 1
      %v804 = vsel %vm661, %v802, %v803
      %v805 = vrot.slane %v554, 1
      %v806 = vrot.slane %v556, 1
      %v807 = vsel %vm661, %v805, %v806
      %v808 = vrot.slane %v557, 1
      %v809 = vsel %vm661, %v803, %v808
      %v810 = vrot.slane %v558, 1
      %v811 = vsel %vm661, %v806, %v810
      %v812 = vrot.slane %v559, 1
      %v813 = vrot.slane %v561, 1
      %v814 = vsel %vm661, %v812, %v813
      %v815 = vrot.slane %v560, 1
      %v816 = vrot.slane %v562, 1
      %v817 = vsel %vm661, %v815, %v816
      %v818 = vrot.slane %v563, 1
      %v819 = vsel %vm661, %v813, %v818
      %v820 = vrot.slane %v564, 1
      %v821 = vsel %vm661, %v816, %v820
      %v886 = vadd.f32 %v344, %v664
      %v887 = vadd.f32 %v345, %v667
      %v888 = vadd.f32 %v346, %v669
      %v889 = vadd.f32 %v347, %v671
      %v890 = vadd.f32 %v348, %v674
      %v891 = vadd.f32 %v349, %v677
      %v892 = vadd.f32 %v350, %v679
      %v893 = vadd.f32 %v351, %v681
      %v894 = vadd.f32 %v352, %v684
      %v895 = vadd.f32 %v353, %v687
      %v896 = vadd.f32 %v354, %v689
      %v897 = vadd.f32 %v355, %v691
      %v898 = vadd.f32 %v356, %v694
      %v899 = vadd.f32 %v357, %v697
      %v900 = vadd.f32 %v358, %v699
      %v901 = vadd.f32 %v359, %v701
      %v902 = vadd.f32 %v360, %v704
      %v903 = vadd.f32 %v361, %v707
      %v904 = vadd.f32 %v362, %v709
      %v905 = vadd.f32 %v363, %v711
      %v906 = vadd.f32 %v364, %v714
      %v907 = vadd.f32 %v365, %v717
      %v908 = vadd.f32 %v366, %v719
      %v909 = vadd.f32 %v367, %v721
      %v910 = vadd.f32 %v368, %v724
      %v911 = vadd.f32 %v369, %v727
      %v912 = vadd.f32 %v370, %v729
      %v913 = vadd.f32 %v371, %v731
      %v914 = vadd.f32 %v372, %v734
      %v915 = vadd.f32 %v373, %v737
      %v916 = vadd.f32 %v374, %v739
      %v917 = vadd.f32 %v375, %v741
      %v918 = vadd.f32 %v376, %v744
      %v919 = vadd.f32 %v377, %v747
      %v920 = vadd.f32 %v378, %v749
      %v921 = vadd.f32 %v379, %v751
      %v922 = vadd.f32 %v380, %v754
      %v923 = vadd.f32 %v381, %v757
      %v924 = vadd.f32 %v382, %v759
      %v925 = vadd.f32 %v383, %v761
      %v926 = vadd.f32 %v384, %v764
      %v927 = vadd.f32 %v385, %v767
      %v928 = vadd.f32 %v386, %v769
      %v929 = vadd.f32 %v387, %v771
      %v930 = vadd.f32 %v388, %v774
      %v931 = vadd.f32 %v389, %v777
      %v932 = vadd.f32 %v390, %v779
      %v933 = vadd.f32 %v391, %v781
      %v934 = vadd.f32 %v392, %v784
      %v935 = vadd.f32 %v393, %v787
      %v936 = vadd.f32 %v394, %v789
      %v937 = vadd.f32 %v395, %v791
      %v938 = vadd.f32 %v396, %v794
      %v939 = vadd.f32 %v397, %v797
      %v940 = vadd.f32 %v398, %v799
      %v941 = vadd.f32 %v399, %v801
      %v942 = vadd.f32 %v400, %v804
      %v943 = vadd.f32 %v401, %v807
      %v944 = vadd.f32 %v402, %v809
      %v945 = vadd.f32 %v403, %v811
      %v946 = vadd.f32 %v404, %v814
      %v947 = vadd.f32 %v405, %v817
      %v948 = vadd.f32 %v406, %v819
      %v949 = vadd.f32 %v407, %v821
      %v950 = vld [vmem:[%s226] sm:$0xee]
      %v951 = vld [vmem:[%s226 + $0x18] sm:$0xee]
      %v952 = vld [vmem:[%s226 + $0x30] sm:$0xee]
      %v953 = vld [vmem:[%s226 + $0x48] sm:$0xee]
      %v954 = vld [vmem:[%s226 + $0x60] sm:$0xee]
      %v955 = vld [vmem:[%s226 + $0x78] sm:$0xee]
      %v956 = vld [vmem:[%s226 + $0x90] sm:$0xee]
      %v957 = vld [vmem:[%s226 + $0xa8] sm:$0xee]
      %v958 = vld [vmem:[%s226 + $0xc0] sm:$0xee]
      %v959 = vld [vmem:[%s226 + $0xd8] sm:$0xee]
      %v960 = vld [vmem:[%s226 + $0xf0] sm:$0xee]
      %v961 = vld [vmem:[%s226 + $0x108] sm:$0xee]
      %v962 = vld [vmem:[%s226 + $0x120] sm:$0xee]
      %v963 = vld [vmem:[%s226 + $0x138] sm:$0xee]
      %v964 = vld [vmem:[%s226 + $0x150] sm:$0xee]
      %v965 = vld [vmem:[%s226 + $0x168] sm:$0xee]
      %v966 = vunpack.c.l.bf16 %v950
      %v967 = vunpack.c.h.bf16 %v950
      %v968 = vunpack.c.l.bf16 %v951
      %v969 = vunpack.c.h.bf16 %v951
      %v970 = vunpack.c.l.bf16 %v952
      %v971 = vunpack.c.h.bf16 %v952
      %v972 = vunpack.c.l.bf16 %v953
      %v973 = vunpack.c.h.bf16 %v953
      %v974 = vunpack.c.l.bf16 %v954
      %v975 = vunpack.c.h.bf16 %v954
      %v976 = vunpack.c.l.bf16 %v955
      %v977 = vunpack.c.h.bf16 %v955
      %v978 = vunpack.c.l.bf16 %v956
      %v979 = vunpack.c.h.bf16 %v956
      %v980 = vunpack.c.l.bf16 %v957
      %v981 = vunpack.c.h.bf16 %v957
      %v982 = vunpack.c.l.bf16 %v958
      %v983 = vunpack.c.h.bf16 %v958
      %v984 = vunpack.c.l.bf16 %v959
      %v985 = vunpack.c.h.bf16 %v959
      %v986 = vunpack.c.l.bf16 %v960
      %v987 = vunpack.c.h.bf16 %v960
      %v988 = vunpack.c.l.bf16 %v961
      %v989 = vunpack.c.h.bf16 %v961
      %v990 = vunpack.c.l.bf16 %v962
      %v991 = vunpack.c.h.bf16 %v962
      %v992 = vunpack.c.l.bf16 %v963
      %v993 = vunpack.c.h.bf16 %v963
      %v994 = vunpack.c.l.bf16 %v964
      %v995 = vunpack.c.h.bf16 %v964
      %v996 = vunpack.c.l.bf16 %v965
      %v997 = vunpack.c.h.bf16 %v965
      %s998 = scalar_lea.vmem %s1, 2
      %v999 = vld [vmem:[%s998] ss:$8 sm:$0x3]
      %v1001 = vlaneseq
      %v1002 = vshrl.u32 %v1001, 7
      %v1003 = vsub.s32 0, %v1002
      %v1004 = vrot.slane %v999, %v1003
      %v1005 = vlaneseq
      %v1006 = vshrl.u32 %v1005, 7
      %v1007 = vsub.s32 1, %v1006
      %v1008 = vrot.slane %v999, %v1007
      %v1011 = vmul.f32 %v966, %v1004
      %v1012 = vmul.f32 %v967, %v1008
      %v1013 = vmul.f32 %v270, %v1004
      %v1014 = vmul.f32 %v271, %v1008
      %v1015 = vmul.f32 %v424, %v1004
      %v1016 = vmul.f32 %v425, %v1008
      %v1017 = vmul.f32 %v968, %v1004
      %v1018 = vmul.f32 %v969, %v1008
      %v1019 = vmul.f32 %v274, %v1004
      %v1020 = vmul.f32 %v275, %v1008
      %v1021 = vmul.f32 %v426, %v1004
      %v1022 = vmul.f32 %v427, %v1008
      %v1023 = vmul.f32 %v970, %v1004
      %v1024 = vmul.f32 %v971, %v1008
      %v1025 = vmul.f32 %v278, %v1004
      %v1026 = vmul.f32 %v279, %v1008
      %v1027 = vmul.f32 %v428, %v1004
      %v1028 = vmul.f32 %v429, %v1008
      %v1029 = vmul.f32 %v972, %v1004
      %v1030 = vmul.f32 %v973, %v1008
      %v1031 = vmul.f32 %v282, %v1004
      %v1032 = vmul.f32 %v283, %v1008
      %v1033 = vmul.f32 %v430, %v1004
      %v1034 = vmul.f32 %v431, %v1008
      %v1035 = vmul.f32 %v974, %v1004
      %v1036 = vmul.f32 %v975, %v1008
      %v1037 = vmul.f32 %v286, %v1004
      %v1038 = vmul.f32 %v287, %v1008
      %v1039 = vmul.f32 %v432, %v1004
      %v1040 = vmul.f32 %v433, %v1008
      %v1041 = vmul.f32 %v976, %v1004
      %v1042 = vmul.f32 %v977, %v1008
      %v1043 = vmul.f32 %v290, %v1004
      %v1044 = vmul.f32 %v291, %v1008
      %v1045 = vmul.f32 %v434, %v1004
      %v1046 = vmul.f32 %v435, %v1008
      %v1047 = vmul.f32 %v978, %v1004
      %v1048 = vmul.f32 %v979, %v1008
      %v1049 = vmul.f32 %v294, %v1004
      %v1050 = vmul.f32 %v295, %v1008
      %v1051 = vmul.f32 %v436, %v1004
      %v1052 = vmul.f32 %v437, %v1008
      %v1053 = vmul.f32 %v980, %v1004
      %v1054 = vmul.f32 %v981, %v1008
      %v1055 = vmul.f32 %v298, %v1004
      %v1056 = vmul.f32 %v299, %v1008
      %v1057 = vmul.f32 %v438, %v1004
      %v1058 = vmul.f32 %v439, %v1008
      %v1059 = vmul.f32 %v982, %v1004
      %v1060 = vmul.f32 %v983, %v1008
      %v1061 = vmul.f32 %v302, %v1004
      %v1062 = vmul.f32 %v303, %v1008
      %v1063 = vmul.f32 %v440, %v1004
      %v1064 = vmul.f32 %v441, %v1008
      %v1065 = vmul.f32 %v984, %v1004
      %v1066 = vmul.f32 %v985, %v1008
      %v1067 = vmul.f32 %v306, %v1004
      %v1068 = vmul.f32 %v307, %v1008
      %v1069 = vmul.f32 %v442, %v1004
      %v1070 = vmul.f32 %v443, %v1008
      %v1071 = vmul.f32 %v986, %v1004
      %v1072 = vmul.f32 %v987, %v1008
      %v1073 = vmul.f32 %v310, %v1004
      %v1074 = vmul.f32 %v311, %v1008
      %v1075 = vmul.f32 %v444, %v1004
      %v1076 = vmul.f32 %v445, %v1008
      %v1077 = vmul.f32 %v988, %v1004
      %v1078 = vmul.f32 %v989, %v1008
      %v1079 = vmul.f32 %v314, %v1004
      %v1080 = vmul.f32 %v315, %v1008
      %v1081 = vmul.f32 %v446, %v1004
      %v1082 = vmul.f32 %v447, %v1008
      %v1083 = vmul.f32 %v990, %v1004
      %v1084 = vmul.f32 %v991, %v1008
      %v1085 = vmul.f32 %v318, %v1004
      %v1086 = vmul.f32 %v319, %v1008
      %v1087 = vmul.f32 %v448, %v1004
      %v1088 = vmul.f32 %v449, %v1008
      %v1089 = vmul.f32 %v992, %v1004
      %v1090 = vmul.f32 %v993, %v1008
      %v1091 = vmul.f32 %v322, %v1004
      %v1092 = vmul.f32 %v323, %v1008
      %v1093 = vmul.f32 %v450, %v1004
      %v1094 = vmul.f32 %v451, %v1008
      %v1095 = vmul.f32 %v994, %v1004
      %v1096 = vmul.f32 %v995, %v1008
      %v1097 = vmul.f32 %v326, %v1004
      %v1098 = vmul.f32 %v327, %v1008
      %v1099 = vmul.f32 %v452, %v1004
      %v1100 = vmul.f32 %v453, %v1008
      %v1101 = vmul.f32 %v996, %v1004
      %v1102 = vmul.f32 %v997, %v1008
      %v1103 = vmul.f32 %v330, %v1004
      %v1104 = vmul.f32 %v331, %v1008
      %v1105 = vmul.f32 %v454, %v1004
      %v1106 = vmul.f32 %v455, %v1008
      %vm1203 = vcmask 1045504
      %v1204 = vrot.slane %v1011, 2
      %v1205 = vrot.slane %v1013, 2
      %v1206 = vsel %vm1203, %v1204, %v1205
      %v1207 = vrot.slane %v1012, 2
      %v1208 = vrot.slane %v1014, 2
      %v1209 = vsel %vm1203, %v1207, %v1208
      %v1210 = vrot.slane %v1015, 2
      %v1211 = vsel %vm1203, %v1205, %v1210
      %v1212 = vrot.slane %v1016, 2
      %v1213 = vsel %vm1203, %v1208, %v1212
      %v1214 = vrot.slane %v1017, 2
      %v1215 = vrot.slane %v1019, 2
      %v1216 = vsel %vm1203, %v1214, %v1215
      %v1217 = vrot.slane %v1018, 2
      %v1218 = vrot.slane %v1020, 2
      %v1219 = vsel %vm1203, %v1217, %v1218
      %v1220 = vrot.slane %v1021, 2
      %v1221 = vsel %vm1203, %v1215, %v1220
      %v1222 = vrot.slane %v1022, 2
      %v1223 = vsel %vm1203, %v1218, %v1222
      %v1224 = vrot.slane %v1023, 2
      %v1225 = vrot.slane %v1025, 2
      %v1226 = vsel %vm1203, %v1224, %v1225
      %v1227 = vrot.slane %v1024, 2
      %v1228 = vrot.slane %v1026, 2
      %v1229 = vsel %vm1203, %v1227, %v1228
      %v1230 = vrot.slane %v1027, 2
      %v1231 = vsel %vm1203, %v1225, %v1230
      %v1232 = vrot.slane %v1028, 2
      %v1233 = vsel %vm1203, %v1228, %v1232
      %v1234 = vrot.slane %v1029, 2
      %v1235 = vrot.slane %v1031, 2
      %v1236 = vsel %vm1203, %v1234, %v1235
      %v1237 = vrot.slane %v1030, 2
      %v1238 = vrot.slane %v1032, 2
      %v1239 = vsel %vm1203, %v1237, %v1238
      %v1240 = vrot.slane %v1033, 2
      %v1241 = vsel %vm1203, %v1235, %v1240
      %v1242 = vrot.slane %v1034, 2
      %v1243 = vsel %vm1203, %v1238, %v1242
      %v1244 = vrot.slane %v1035, 2
      %v1245 = vrot.slane %v1037, 2
      %v1246 = vsel %vm1203, %v1244, %v1245
      %v1247 = vrot.slane %v1036, 2
      %v1248 = vrot.slane %v1038, 2
      %v1249 = vsel %vm1203, %v1247, %v1248
      %v1250 = vrot.slane %v1039, 2
      %v1251 = vsel %vm1203, %v1245, %v1250
      %v1252 = vrot.slane %v1040, 2
      %v1253 = vsel %vm1203, %v1248, %v1252
      %v1254 = vrot.slane %v1041, 2
      %v1255 = vrot.slane %v1043, 2
      %v1256 = vsel %vm1203, %v1254, %v1255
      %v1257 = vrot.slane %v1042, 2
      %v1258 = vrot.slane %v1044, 2
      %v1259 = vsel %vm1203, %v1257, %v1258
      %v1260 = vrot.slane %v1045, 2
      %v1261 = vsel %vm1203, %v1255, %v1260
      %v1262 = vrot.slane %v1046, 2
      %v1263 = vsel %vm1203, %v1258, %v1262
      %v1264 = vrot.slane %v1047, 2
      %v1265 = vrot.slane %v1049, 2
      %v1266 = vsel %vm1203, %v1264, %v1265
      %v1267 = vrot.slane %v1048, 2
      %v1268 = vrot.slane %v1050, 2
      %v1269 = vsel %vm1203, %v1267, %v1268
      %v1270 = vrot.slane %v1051, 2
      %v1271 = vsel %vm1203, %v1265, %v1270
      %v1272 = vrot.slane %v1052, 2
      %v1273 = vsel %vm1203, %v1268, %v1272
      %v1274 = vrot.slane %v1053, 2
      %v1275 = vrot.slane %v1055, 2
      %v1276 = vsel %vm1203, %v1274, %v1275
      %v1277 = vrot.slane %v1054, 2
      %v1278 = vrot.slane %v1056, 2
      %v1279 = vsel %vm1203, %v1277, %v1278
      %v1280 = vrot.slane %v1057, 2
      %v1281 = vsel %vm1203, %v1275, %v1280
      %v1282 = vrot.slane %v1058, 2
      %v1283 = vsel %vm1203, %v1278, %v1282
      %v1284 = vrot.slane %v1059, 2
      %v1285 = vrot.slane %v1061, 2
      %v1286 = vsel %vm1203, %v1284, %v1285
      %v1287 = vrot.slane %v1060, 2
      %v1288 = vrot.slane %v1062, 2
      %v1289 = vsel %vm1203, %v1287, %v1288
      %v1290 = vrot.slane %v1063, 2
      %v1291 = vsel %vm1203, %v1285, %v1290
      %v1292 = vrot.slane %v1064, 2
      %v1293 = vsel %vm1203, %v1288, %v1292
      %v1294 = vrot.slane %v1065, 2
      %v1295 = vrot.slane %v1067, 2
      %v1296 = vsel %vm1203, %v1294, %v1295
      %v1297 = vrot.slane %v1066, 2
      %v1298 = vrot.slane %v1068, 2
      %v1299 = vsel %vm1203, %v1297, %v1298
      %v1300 = vrot.slane %v1069, 2
      %v1301 = vsel %vm1203, %v1295, %v1300
      %v1302 = vrot.slane %v1070, 2
      %v1303 = vsel %vm1203, %v1298, %v1302
      %v1304 = vrot.slane %v1071, 2
      %v1305 = vrot.slane %v1073, 2
      %v1306 = vsel %vm1203, %v1304, %v1305
      %v1307 = vrot.slane %v1072, 2
      %v1308 = vrot.slane %v1074, 2
      %v1309 = vsel %vm1203, %v1307, %v1308
      %v1310 = vrot.slane %v1075, 2
      %v1311 = vsel %vm1203, %v1305, %v1310
      %v1312 = vrot.slane %v1076, 2
      %v1313 = vsel %vm1203, %v1308, %v1312
      %v1314 = vrot.slane %v1077, 2
      %v1315 = vrot.slane %v1079, 2
      %v1316 = vsel %vm1203, %v1314, %v1315
      %v1317 = vrot.slane %v1078, 2
      %v1318 = vrot.slane %v1080, 2
      %v1319 = vsel %vm1203, %v1317, %v1318
      %v1320 = vrot.slane %v1081, 2
      %v1321 = vsel %vm1203, %v1315, %v1320
      %v1322 = vrot.slane %v1082, 2
      %v1323 = vsel %vm1203, %v1318, %v1322
      %v1324 = vrot.slane %v1083, 2
      %v1325 = vrot.slane %v1085, 2
      %v1326 = vsel %vm1203, %v1324, %v1325
      %v1327 = vrot.slane %v1084, 2
      %v1328 = vrot.slane %v1086, 2
      %v1329 = vsel %vm1203, %v1327, %v1328
      %v1330 = vrot.slane %v1087, 2
      %v1331 = vsel %vm1203, %v1325, %v1330
      %v1332 = vrot.slane %v1088, 2
      %v1333 = vsel %vm1203, %v1328, %v1332
      %v1334 = vrot.slane %v1089, 2
      %v1335 = vrot.slane %v1091, 2
      %v1336 = vsel %vm1203, %v1334, %v1335
      %v1337 = vrot.slane %v1090, 2
      %v1338 = vrot.slane %v1092, 2
      %v1339 = vsel %vm1203, %v1337, %v1338
      %v1340 = vrot.slane %v1093, 2
      %v1341 = vsel %vm1203, %v1335, %v1340
      %v1342 = vrot.slane %v1094, 2
      %v1343 = vsel %vm1203, %v1338, %v1342
      %v1344 = vrot.slane %v1095, 2
      %v1345 = vrot.slane %v1097, 2
      %v1346 = vsel %vm1203, %v1344, %v1345
      %v1347 = vrot.slane %v1096, 2
      %v1348 = vrot.slane %v1098, 2
      %v1349 = vsel %vm1203, %v1347, %v1348
      %v1350 = vrot.slane %v1099, 2
      %v1351 = vsel %vm1203, %v1345, %v1350
      %v1352 = vrot.slane %v1100, 2
      %v1353 = vsel %vm1203, %v1348, %v1352
      %v1354 = vrot.slane %v1101, 2
      %v1355 = vrot.slane %v1103, 2
      %v1356 = vsel %vm1203, %v1354, %v1355
      %v1357 = vrot.slane %v1102, 2
      %v1358 = vrot.slane %v1104, 2
      %v1359 = vsel %vm1203, %v1357, %v1358
      %v1360 = vrot.slane %v1105, 2
      %v1361 = vsel %vm1203, %v1355, %v1360
      %v1362 = vrot.slane %v1106, 2
      %v1363 = vsel %vm1203, %v1358, %v1362
      %v1428 = vadd.f32 %v886, %v1206
      %v1429 = vadd.f32 %v887, %v1209
      %v1430 = vadd.f32 %v888, %v1211
      %v1431 = vadd.f32 %v889, %v1213
      %v1432 = vadd.f32 %v890, %v1216
      %v1433 = vadd.f32 %v891, %v1219
      %v1434 = vadd.f32 %v892, %v1221
      %v1435 = vadd.f32 %v893, %v1223
      %v1436 = vadd.f32 %v894, %v1226
      %v1437 = vadd.f32 %v895, %v1229
      %v1438 = vadd.f32 %v896, %v1231
      %v1439 = vadd.f32 %v897, %v1233
      %v1440 = vadd.f32 %v898, %v1236
      %v1441 = vadd.f32 %v899, %v1239
      %v1442 = vadd.f32 %v900, %v1241
      %v1443 = vadd.f32 %v901, %v1243
      %v1444 = vadd.f32 %v902, %v1246
      %v1445 = vadd.f32 %v903, %v1249
      %v1446 = vadd.f32 %v904, %v1251
      %v1447 = vadd.f32 %v905, %v1253
      %v1448 = vadd.f32 %v906, %v1256
      %v1449 = vadd.f32 %v907, %v1259
      %v1450 = vadd.f32 %v908, %v1261
      %v1451 = vadd.f32 %v909, %v1263
      %v1452 = vadd.f32 %v910, %v1266
      %v1453 = vadd.f32 %v911, %v1269
      %v1454 = vadd.f32 %v912, %v1271
      %v1455 = vadd.f32 %v913, %v1273
      %v1456 = vadd.f32 %v914, %v1276
      %v1457 = vadd.f32 %v915, %v1279
      %v1458 = vadd.f32 %v916, %v1281
      %v1459 = vadd.f32 %v917, %v1283
      %v1460 = vadd.f32 %v918, %v1286
      %v1461 = vadd.f32 %v919, %v1289
      %v1462 = vadd.f32 %v920, %v1291
      %v1463 = vadd.f32 %v921, %v1293
      %v1464 = vadd.f32 %v922, %v1296
      %v1465 = vadd.f32 %v923, %v1299
      %v1466 = vadd.f32 %v924, %v1301
      %v1467 = vadd.f32 %v925, %v1303
      %v1468 = vadd.f32 %v926, %v1306
      %v1469 = vadd.f32 %v927, %v1309
      %v1470 = vadd.f32 %v928, %v1311
      %v1471 = vadd.f32 %v929, %v1313
      %v1472 = vadd.f32 %v930, %v1316
      %v1473 = vadd.f32 %v931, %v1319
      %v1474 = vadd.f32 %v932, %v1321
      %v1475 = vadd.f32 %v933, %v1323
      %v1476 = vadd.f32 %v934, %v1326
      %v1477 = vadd.f32 %v935, %v1329
      %v1478 = vadd.f32 %v936, %v1331
      %v1479 = vadd.f32 %v937, %v1333
      %v1480 = vadd.f32 %v938, %v1336
      %v1481 = vadd.f32 %v939, %v1339
      %v1482 = vadd.f32 %v940, %v1341
      %v1483 = vadd.f32 %v941, %v1343
      %v1484 = vadd.f32 %v942, %v1346
      %v1485 = vadd.f32 %v943, %v1349
      %v1486 = vadd.f32 %v944, %v1351
      %v1487 = vadd.f32 %v945, %v1353
      %v1488 = vadd.f32 %v946, %v1356
      %v1489 = vadd.f32 %v947, %v1359
      %v1490 = vadd.f32 %v948, %v1361
      %v1491 = vadd.f32 %v949, %v1363
      %s1492 = scalar_lea.vmem %s226, 24
      %v1493 = vld [vmem:[%s1492] sm:$0xff]
      %v1494 = vld [vmem:[%s1492 + $0x8] sm:$0xff]
      %v1495 = vld [vmem:[%s1492 + $0x18] sm:$0xff]
      %v1496 = vld [vmem:[%s1492 + $0x20] sm:$0xff]
      %v1497 = vld [vmem:[%s1492 + $0x30] sm:$0xff]
      %v1498 = vld [vmem:[%s1492 + $0x38] sm:$0xff]
      %v1499 = vld [vmem:[%s1492 + $0x48] sm:$0xff]
      %v1500 = vld [vmem:[%s1492 + $0x50] sm:$0xff]
      %v1501 = vld [vmem:[%s1492 + $0x60] sm:$0xff]
      %v1502 = vld [vmem:[%s1492 + $0x68] sm:$0xff]
      %v1503 = vld [vmem:[%s1492 + $0x78] sm:$0xff]
      %v1504 = vld [vmem:[%s1492 + $0x80] sm:$0xff]
      %v1505 = vld [vmem:[%s1492 + $0x90] sm:$0xff]
      %v1506 = vld [vmem:[%s1492 + $0x98] sm:$0xff]
      %v1507 = vld [vmem:[%s1492 + $0xa8] sm:$0xff]
      %v1508 = vld [vmem:[%s1492 + $0xb0] sm:$0xff]
      %v1509 = vld [vmem:[%s1492 + $0xc0] sm:$0xff]
      %v1510 = vld [vmem:[%s1492 + $0xc8] sm:$0xff]
      %v1511 = vld [vmem:[%s1492 + $0xd8] sm:$0xff]
      %v1512 = vld [vmem:[%s1492 + $0xe0] sm:$0xff]
      %v1513 = vld [vmem:[%s1492 + $0xf0] sm:$0xff]
      %v1514 = vld [vmem:[%s1492 + $0xf8] sm:$0xff]
      %v1515 = vld [vmem:[%s1492 + $0x108] sm:$0xff]
      %v1516 = vld [vmem:[%s1492 + $0x110] sm:$0xff]
      %v1517 = vld [vmem:[%s1492 + $0x120] sm:$0xff]
      %v1518 = vld [vmem:[%s1492 + $0x128] sm:$0xff]
      %v1519 = vld [vmem:[%s1492 + $0x138] sm:$0xff]
      %v1520 = vld [vmem:[%s1492 + $0x140] sm:$0xff]
      %v1521 = vld [vmem:[%s1492 + $0x150] sm:$0xff]
      %v1522 = vld [vmem:[%s1492 + $0x158] sm:$0xff]
      %v1523 = vld [vmem:[%s1492 + $0x168] sm:$0xff]
      %v1524 = vld [vmem:[%s1492 + $0x170] sm:$0xff]
      %v1525 = vunpack.c.l.bf16 %v1493
      %v1526 = vunpack.c.h.bf16 %v1493
      %v1527 = vunpack.c.l.bf16 %v1494
      %v1528 = vunpack.c.h.bf16 %v1494
      %v1529 = vunpack.c.l.bf16 %v1495
      %v1530 = vunpack.c.h.bf16 %v1495
      %v1531 = vunpack.c.l.bf16 %v1496
      %v1532 = vunpack.c.h.bf16 %v1496
      %v1533 = vunpack.c.l.bf16 %v1497
      %v1534 = vunpack.c.h.bf16 %v1497
      %v1535 = vunpack.c.l.bf16 %v1498
      %v1536 = vunpack.c.h.bf16 %v1498
      %v1537 = vunpack.c.l.bf16 %v1499
      %v1538 = vunpack.c.h.bf16 %v1499
      %v1539 = vunpack.c.l.bf16 %v1500
      %v1540 = vunpack.c.h.bf16 %v1500
      %v1541 = vunpack.c.l.bf16 %v1501
      %v1542 = vunpack.c.h.bf16 %v1501
      %v1543 = vunpack.c.l.bf16 %v1502
      %v1544 = vunpack.c.h.bf16 %v1502
      %v1545 = vunpack.c.l.bf16 %v1503
      %v1546 = vunpack.c.h.bf16 %v1503
      %v1547 = vunpack.c.l.bf16 %v1504
      %v1548 = vunpack.c.h.bf16 %v1504
      %v1549 = vunpack.c.l.bf16 %v1505
      %v1550 = vunpack.c.h.bf16 %v1505
      %v1551 = vunpack.c.l.bf16 %v1506
      %v1552 = vunpack.c.h.bf16 %v1506
      %v1553 = vunpack.c.l.bf16 %v1507
      %v1554 = vunpack.c.h.bf16 %v1507
      %v1555 = vunpack.c.l.bf16 %v1508
      %v1556 = vunpack.c.h.bf16 %v1508
      %v1557 = vunpack.c.l.bf16 %v1509
      %v1558 = vunpack.c.h.bf16 %v1509
      %v1559 = vunpack.c.l.bf16 %v1510
      %v1560 = vunpack.c.h.bf16 %v1510
      %v1561 = vunpack.c.l.bf16 %v1511
      %v1562 = vunpack.c.h.bf16 %v1511
      %v1563 = vunpack.c.l.bf16 %v1512
      %v1564 = vunpack.c.h.bf16 %v1512
      %v1565 = vunpack.c.l.bf16 %v1513
      %v1566 = vunpack.c.h.bf16 %v1513
      %v1567 = vunpack.c.l.bf16 %v1514
      %v1568 = vunpack.c.h.bf16 %v1514
      %v1569 = vunpack.c.l.bf16 %v1515
      %v1570 = vunpack.c.h.bf16 %v1515
      %v1571 = vunpack.c.l.bf16 %v1516
      %v1572 = vunpack.c.h.bf16 %v1516
      %v1573 = vunpack.c.l.bf16 %v1517
      %v1574 = vunpack.c.h.bf16 %v1517
      %v1575 = vunpack.c.l.bf16 %v1518
      %v1576 = vunpack.c.h.bf16 %v1518
      %v1577 = vunpack.c.l.bf16 %v1519
      %v1578 = vunpack.c.h.bf16 %v1519
      %v1579 = vunpack.c.l.bf16 %v1520
      %v1580 = vunpack.c.h.bf16 %v1520
      %v1581 = vunpack.c.l.bf16 %v1521
      %v1582 = vunpack.c.h.bf16 %v1521
      %v1583 = vunpack.c.l.bf16 %v1522
      %v1584 = vunpack.c.h.bf16 %v1522
      %v1585 = vunpack.c.l.bf16 %v1523
      %v1586 = vunpack.c.h.bf16 %v1523
      %v1587 = vunpack.c.l.bf16 %v1524
      %v1588 = vunpack.c.h.bf16 %v1524
      %s1589 = scalar_lea.vmem %s1, 3
      %v1590 = vld [vmem:[%s1589] ss:$8 sm:$0x3]
      %v1592 = vlaneseq
      %v1593 = vshrl.u32 %v1592, 7
      %v1594 = vsub.s32 0, %v1593
      %v1595 = vrot.slane %v1590, %v1594
      %v1596 = vlaneseq
      %v1597 = vshrl.u32 %v1596, 7
      %v1598 = vsub.s32 1, %v1597
      %v1599 = vrot.slane %v1590, %v1598
      %v1602 = vmul.f32 %v1525, %v1595
      %v1603 = vmul.f32 %v1526, %v1599
      %v1604 = vmul.f32 %v1527, %v1595
      %v1605 = vmul.f32 %v1528, %v1599
      %v1606 = vmul.f32 %v1529, %v1595
      %v1607 = vmul.f32 %v1530, %v1599
      %v1608 = vmul.f32 %v1531, %v1595
      %v1609 = vmul.f32 %v1532, %v1599
      %v1610 = vmul.f32 %v1533, %v1595
      %v1611 = vmul.f32 %v1534, %v1599
      %v1612 = vmul.f32 %v1535, %v1595
      %v1613 = vmul.f32 %v1536, %v1599
      %v1614 = vmul.f32 %v1537, %v1595
      %v1615 = vmul.f32 %v1538, %v1599
      %v1616 = vmul.f32 %v1539, %v1595
      %v1617 = vmul.f32 %v1540, %v1599
      %v1618 = vmul.f32 %v1541, %v1595
      %v1619 = vmul.f32 %v1542, %v1599
      %v1620 = vmul.f32 %v1543, %v1595
      %v1621 = vmul.f32 %v1544, %v1599
      %v1622 = vmul.f32 %v1545, %v1595
      %v1623 = vmul.f32 %v1546, %v1599
      %v1624 = vmul.f32 %v1547, %v1595
      %v1625 = vmul.f32 %v1548, %v1599
      %v1626 = vmul.f32 %v1549, %v1595
      %v1627 = vmul.f32 %v1550, %v1599
      %v1628 = vmul.f32 %v1551, %v1595
      %v1629 = vmul.f32 %v1552, %v1599
      %v1630 = vmul.f32 %v1553, %v1595
      %v1631 = vmul.f32 %v1554, %v1599
      %v1632 = vmul.f32 %v1555, %v1595
      %v1633 = vmul.f32 %v1556, %v1599
      %v1634 = vmul.f32 %v1557, %v1595
      %v1635 = vmul.f32 %v1558, %v1599
      %v1636 = vmul.f32 %v1559, %v1595
      %v1637 = vmul.f32 %v1560, %v1599
      %v1638 = vmul.f32 %v1561, %v1595
      %v1639 = vmul.f32 %v1562, %v1599
      %v1640 = vmul.f32 %v1563, %v1595
      %v1641 = vmul.f32 %v1564, %v1599
      %v1642 = vmul.f32 %v1565, %v1595
      %v1643 = vmul.f32 %v1566, %v1599
      %v1644 = vmul.f32 %v1567, %v1595
      %v1645 = vmul.f32 %v1568, %v1599
      %v1646 = vmul.f32 %v1569, %v1595
      %v1647 = vmul.f32 %v1570, %v1599
      %v1648 = vmul.f32 %v1571, %v1595
      %v1649 = vmul.f32 %v1572, %v1599
      %v1650 = vmul.f32 %v1573, %v1595
      %v1651 = vmul.f32 %v1574, %v1599
      %v1652 = vmul.f32 %v1575, %v1595
      %v1653 = vmul.f32 %v1576, %v1599
      %v1654 = vmul.f32 %v1577, %v1595
      %v1655 = vmul.f32 %v1578, %v1599
      %v1656 = vmul.f32 %v1579, %v1595
      %v1657 = vmul.f32 %v1580, %v1599
      %v1658 = vmul.f32 %v1581, %v1595
      %v1659 = vmul.f32 %v1582, %v1599
      %v1660 = vmul.f32 %v1583, %v1595
      %v1661 = vmul.f32 %v1584, %v1599
      %v1662 = vmul.f32 %v1585, %v1595
      %v1663 = vmul.f32 %v1586, %v1599
      %v1664 = vmul.f32 %v1587, %v1595
      %v1665 = vmul.f32 %v1588, %v1599
      %v1666 = vadd.f32 %v1428, %v1602
      %v1667 = vadd.f32 %v1429, %v1603
      %v1668 = vadd.f32 %v1430, %v1604
      %v1669 = vadd.f32 %v1431, %v1605
      %v1670 = vadd.f32 %v1432, %v1606
      %v1671 = vadd.f32 %v1433, %v1607
      %v1672 = vadd.f32 %v1434, %v1608
      %v1673 = vadd.f32 %v1435, %v1609
      %v1674 = vadd.f32 %v1436, %v1610
      %v1675 = vadd.f32 %v1437, %v1611
      %v1676 = vadd.f32 %v1438, %v1612
      %v1677 = vadd.f32 %v1439, %v1613
      %v1678 = vadd.f32 %v1440, %v1614
      %v1679 = vadd.f32 %v1441, %v1615
      %v1680 = vadd.f32 %v1442, %v1616
      %v1681 = vadd.f32 %v1443, %v1617
      %v1682 = vadd.f32 %v1444, %v1618
      %v1683 = vadd.f32 %v1445, %v1619
      %v1684 = vadd.f32 %v1446, %v1620
      %v1685 = vadd.f32 %v1447, %v1621
      %v1686 = vadd.f32 %v1448, %v1622
      %v1687 = vadd.f32 %v1449, %v1623
      %v1688 = vadd.f32 %v1450, %v1624
      %v1689 = vadd.f32 %v1451, %v1625
      %v1690 = vadd.f32 %v1452, %v1626
      %v1691 = vadd.f32 %v1453, %v1627
      %v1692 = vadd.f32 %v1454, %v1628
      %v1693 = vadd.f32 %v1455, %v1629
      %v1694 = vadd.f32 %v1456, %v1630
      %v1695 = vadd.f32 %v1457, %v1631
      %v1696 = vadd.f32 %v1458, %v1632
      %v1697 = vadd.f32 %v1459, %v1633
      %v1698 = vadd.f32 %v1460, %v1634
      %v1699 = vadd.f32 %v1461, %v1635
      %v1700 = vadd.f32 %v1462, %v1636
      %v1701 = vadd.f32 %v1463, %v1637
      %v1702 = vadd.f32 %v1464, %v1638
      %v1703 = vadd.f32 %v1465, %v1639
      %v1704 = vadd.f32 %v1466, %v1640
      %v1705 = vadd.f32 %v1467, %v1641
      %v1706 = vadd.f32 %v1468, %v1642
      %v1707 = vadd.f32 %v1469, %v1643
      %v1708 = vadd.f32 %v1470, %v1644
      %v1709 = vadd.f32 %v1471, %v1645
      %v1710 = vadd.f32 %v1472, %v1646
      %v1711 = vadd.f32 %v1473, %v1647
      %v1712 = vadd.f32 %v1474, %v1648
      %v1713 = vadd.f32 %v1475, %v1649
      %v1714 = vadd.f32 %v1476, %v1650
      %v1715 = vadd.f32 %v1477, %v1651
      %v1716 = vadd.f32 %v1478, %v1652
      %v1717 = vadd.f32 %v1479, %v1653
      %v1718 = vadd.f32 %v1480, %v1654
      %v1719 = vadd.f32 %v1481, %v1655
      %v1720 = vadd.f32 %v1482, %v1656
      %v1721 = vadd.f32 %v1483, %v1657
      %v1722 = vadd.f32 %v1484, %v1658
      %v1723 = vadd.f32 %v1485, %v1659
      %v1724 = vadd.f32 %v1486, %v1660
      %v1725 = vadd.f32 %v1487, %v1661
      %v1726 = vadd.f32 %v1488, %v1662
      %v1727 = vadd.f32 %v1489, %v1663
      %v1728 = vadd.f32 %v1490, %v1664
      %v1729 = vadd.f32 %v1491, %v1665
      %v1730 = vld [vmem:[%s1492 + $0x10] sm:$0x11]
      %v1731 = vld [vmem:[%s1492 + $0x28] sm:$0x11]
      %v1732 = vld [vmem:[%s1492 + $0x40] sm:$0x11]
      %v1733 = vld [vmem:[%s1492 + $0x58] sm:$0x11]
      %v1734 = vld [vmem:[%s1492 + $0x70] sm:$0x11]
      %v1735 = vld [vmem:[%s1492 + $0x88] sm:$0x11]
      %v1736 = vld [vmem:[%s1492 + $0xa0] sm:$0x11]
      %v1737 = vld [vmem:[%s1492 + $0xb8] sm:$0x11]
      %v1738 = vld [vmem:[%s1492 + $0xd0] sm:$0x11]
      %v1739 = vld [vmem:[%s1492 + $0xe8] sm:$0x11]
      %v1740 = vld [vmem:[%s1492 + $0x100] sm:$0x11]
      %v1741 = vld [vmem:[%s1492 + $0x118] sm:$0x11]
      %v1742 = vld [vmem:[%s1492 + $0x130] sm:$0x11]
      %v1743 = vld [vmem:[%s1492 + $0x148] sm:$0x11]
      %v1744 = vld [vmem:[%s1492 + $0x160] sm:$0x11]
      %v1745 = vld [vmem:[%s1492 + $0x178] sm:$0x11]
      %v1746 = vunpack.c.l.bf16 %v1730
      %v1747 = vunpack.c.h.bf16 %v1730
      %v1748 = vunpack.c.l.bf16 %v1731
      %v1749 = vunpack.c.h.bf16 %v1731
      %v1750 = vunpack.c.l.bf16 %v1732
      %v1751 = vunpack.c.h.bf16 %v1732
      %v1752 = vunpack.c.l.bf16 %v1733
      %v1753 = vunpack.c.h.bf16 %v1733
      %v1754 = vunpack.c.l.bf16 %v1734
      %v1755 = vunpack.c.h.bf16 %v1734
      %v1756 = vunpack.c.l.bf16 %v1735
      %v1757 = vunpack.c.h.bf16 %v1735
      %v1758 = vunpack.c.l.bf16 %v1736
      %v1759 = vunpack.c.h.bf16 %v1736
      %v1760 = vunpack.c.l.bf16 %v1737
      %v1761 = vunpack.c.h.bf16 %v1737
      %v1762 = vunpack.c.l.bf16 %v1738
      %v1763 = vunpack.c.h.bf16 %v1738
      %v1764 = vunpack.c.l.bf16 %v1739
      %v1765 = vunpack.c.h.bf16 %v1739
      %v1766 = vunpack.c.l.bf16 %v1740
      %v1767 = vunpack.c.h.bf16 %v1740
      %v1768 = vunpack.c.l.bf16 %v1741
      %v1769 = vunpack.c.h.bf16 %v1741
      %v1770 = vunpack.c.l.bf16 %v1742
      %v1771 = vunpack.c.h.bf16 %v1742
      %v1772 = vunpack.c.l.bf16 %v1743
      %v1773 = vunpack.c.h.bf16 %v1743
      %v1774 = vunpack.c.l.bf16 %v1744
      %v1775 = vunpack.c.h.bf16 %v1744
      %v1776 = vunpack.c.l.bf16 %v1745
      %v1777 = vunpack.c.h.bf16 %v1745
      %s1778 = scalar_lea.vmem %s1, 4
      %v1779 = vld [vmem:[%s1778] ss:$8 sm:$0x3]
      %v1781 = vlaneseq
      %v1782 = vshrl.u32 %v1781, 7
      %v1783 = vsub.s32 0, %v1782
      %v1784 = vrot.slane %v1779, %v1783
      %v1785 = vlaneseq
      %v1786 = vshrl.u32 %v1785, 7
      %v1787 = vsub.s32 1, %v1786
      %v1788 = vrot.slane %v1779, %v1787
      %v1791 = vmul.f32 %v1525, %v1784
      %v1792 = vmul.f32 %v1526, %v1788
      %v1793 = vmul.f32 %v1527, %v1784
      %v1794 = vmul.f32 %v1528, %v1788
      %v1795 = vmul.f32 %v1746, %v1784
      %v1796 = vmul.f32 %v1747, %v1788
      %v1797 = vmul.f32 %v1529, %v1784
      %v1798 = vmul.f32 %v1530, %v1788
      %v1799 = vmul.f32 %v1531, %v1784
      %v1800 = vmul.f32 %v1532, %v1788
      %v1801 = vmul.f32 %v1748, %v1784
      %v1802 = vmul.f32 %v1749, %v1788
      %v1803 = vmul.f32 %v1533, %v1784
      %v1804 = vmul.f32 %v1534, %v1788
      %v1805 = vmul.f32 %v1535, %v1784
      %v1806 = vmul.f32 %v1536, %v1788
      %v1807 = vmul.f32 %v1750, %v1784
      %v1808 = vmul.f32 %v1751, %v1788
      %v1809 = vmul.f32 %v1537, %v1784
      %v1810 = vmul.f32 %v1538, %v1788
      %v1811 = vmul.f32 %v1539, %v1784
      %v1812 = vmul.f32 %v1540, %v1788
      %v1813 = vmul.f32 %v1752, %v1784
      %v1814 = vmul.f32 %v1753, %v1788
      %v1815 = vmul.f32 %v1541, %v1784
      %v1816 = vmul.f32 %v1542, %v1788
      %v1817 = vmul.f32 %v1543, %v1784
      %v1818 = vmul.f32 %v1544, %v1788
      %v1819 = vmul.f32 %v1754, %v1784
      %v1820 = vmul.f32 %v1755, %v1788
      %v1821 = vmul.f32 %v1545, %v1784
      %v1822 = vmul.f32 %v1546, %v1788
      %v1823 = vmul.f32 %v1547, %v1784
      %v1824 = vmul.f32 %v1548, %v1788
      %v1825 = vmul.f32 %v1756, %v1784
      %v1826 = vmul.f32 %v1757, %v1788
      %v1827 = vmul.f32 %v1549, %v1784
      %v1828 = vmul.f32 %v1550, %v1788
      %v1829 = vmul.f32 %v1551, %v1784
      %v1830 = vmul.f32 %v1552, %v1788
      %v1831 = vmul.f32 %v1758, %v1784
      %v1832 = vmul.f32 %v1759, %v1788
      %v1833 = vmul.f32 %v1553, %v1784
      %v1834 = vmul.f32 %v1554, %v1788
      %v1835 = vmul.f32 %v1555, %v1784
      %v1836 = vmul.f32 %v1556, %v1788
      %v1837 = vmul.f32 %v1760, %v1784
      %v1838 = vmul.f32 %v1761, %v1788
      %v1839 = vmul.f32 %v1557, %v1784
      %v1840 = vmul.f32 %v1558, %v1788
      %v1841 = vmul.f32 %v1559, %v1784
      %v1842 = vmul.f32 %v1560, %v1788
      %v1843 = vmul.f32 %v1762, %v1784
      %v1844 = vmul.f32 %v1763, %v1788
      %v1845 = vmul.f32 %v1561, %v1784
      %v1846 = vmul.f32 %v1562, %v1788
      %v1847 = vmul.f32 %v1563, %v1784
      %v1848 = vmul.f32 %v1564, %v1788
      %v1849 = vmul.f32 %v1764, %v1784
      %v1850 = vmul.f32 %v1765, %v1788
      %v1851 = vmul.f32 %v1565, %v1784
      %v1852 = vmul.f32 %v1566, %v1788
      %v1853 = vmul.f32 %v1567, %v1784
      %v1854 = vmul.f32 %v1568, %v1788
      %v1855 = vmul.f32 %v1766, %v1784
      %v1856 = vmul.f32 %v1767, %v1788
      %v1857 = vmul.f32 %v1569, %v1784
      %v1858 = vmul.f32 %v1570, %v1788
      %v1859 = vmul.f32 %v1571, %v1784
      %v1860 = vmul.f32 %v1572, %v1788
      %v1861 = vmul.f32 %v1768, %v1784
      %v1862 = vmul.f32 %v1769, %v1788
      %v1863 = vmul.f32 %v1573, %v1784
      %v1864 = vmul.f32 %v1574, %v1788
      %v1865 = vmul.f32 %v1575, %v1784
      %v1866 = vmul.f32 %v1576, %v1788
      %v1867 = vmul.f32 %v1770, %v1784
      %v1868 = vmul.f32 %v1771, %v1788
      %v1869 = vmul.f32 %v1577, %v1784
      %v1870 = vmul.f32 %v1578, %v1788
      %v1871 = vmul.f32 %v1579, %v1784
      %v1872 = vmul.f32 %v1580, %v1788
      %v1873 = vmul.f32 %v1772, %v1784
      %v1874 = vmul.f32 %v1773, %v1788
      %v1875 = vmul.f32 %v1581, %v1784
      %v1876 = vmul.f32 %v1582, %v1788
      %v1877 = vmul.f32 %v1583, %v1784
      %v1878 = vmul.f32 %v1584, %v1788
      %v1879 = vmul.f32 %v1774, %v1784
      %v1880 = vmul.f32 %v1775, %v1788
      %v1881 = vmul.f32 %v1585, %v1784
      %v1882 = vmul.f32 %v1586, %v1788
      %v1883 = vmul.f32 %v1587, %v1784
      %v1884 = vmul.f32 %v1588, %v1788
      %v1885 = vmul.f32 %v1776, %v1784
      %v1886 = vmul.f32 %v1777, %v1788
      %v1983 = vrot.slane %v1791, 1
      %v1984 = vrot.slane %v1793, 1
      %v1985 = vsel %vm661, %v1983, %v1984
      %v1986 = vrot.slane %v1792, 1
      %v1987 = vrot.slane %v1794, 1
      %v1988 = vsel %vm661, %v1986, %v1987
      %v1989 = vrot.slane %v1795, 1
      %v1990 = vsel %vm661, %v1984, %v1989
      %v1991 = vrot.slane %v1796, 1
      %v1992 = vsel %vm661, %v1987, %v1991
      %v1993 = vrot.slane %v1797, 1
      %v1994 = vrot.slane %v1799, 1
      %v1995 = vsel %vm661, %v1993, %v1994
      %v1996 = vrot.slane %v1798, 1
      %v1997 = vrot.slane %v1800, 1
      %v1998 = vsel %vm661, %v1996, %v1997
      %v1999 = vrot.slane %v1801, 1
      %v2000 = vsel %vm661, %v1994, %v1999
      %v2001 = vrot.slane %v1802, 1
      %v2002 = vsel %vm661, %v1997, %v2001
      %v2003 = vrot.slane %v1803, 1
      %v2004 = vrot.slane %v1805, 1
      %v2005 = vsel %vm661, %v2003, %v2004
      %v2006 = vrot.slane %v1804, 1
      %v2007 = vrot.slane %v1806, 1
      %v2008 = vsel %vm661, %v2006, %v2007
      %v2009 = vrot.slane %v1807, 1
      %v2010 = vsel %vm661, %v2004, %v2009
      %v2011 = vrot.slane %v1808, 1
      %v2012 = vsel %vm661, %v2007, %v2011
      %v2013 = vrot.slane %v1809, 1
      %v2014 = vrot.slane %v1811, 1
      %v2015 = vsel %vm661, %v2013, %v2014
      %v2016 = vrot.slane %v1810, 1
      %v2017 = vrot.slane %v1812, 1
      %v2018 = vsel %vm661, %v2016, %v2017
      %v2019 = vrot.slane %v1813, 1
      %v2020 = vsel %vm661, %v2014, %v2019
      %v2021 = vrot.slane %v1814, 1
      %v2022 = vsel %vm661, %v2017, %v2021
      %v2023 = vrot.slane %v1815, 1
      %v2024 = vrot.slane %v1817, 1
      %v2025 = vsel %vm661, %v2023, %v2024
      %v2026 = vrot.slane %v1816, 1
      %v2027 = vrot.slane %v1818, 1
      %v2028 = vsel %vm661, %v2026, %v2027
      %v2029 = vrot.slane %v1819, 1
      %v2030 = vsel %vm661, %v2024, %v2029
      %v2031 = vrot.slane %v1820, 1
      %v2032 = vsel %vm661, %v2027, %v2031
      %v2033 = vrot.slane %v1821, 1
      %v2034 = vrot.slane %v1823, 1
      %v2035 = vsel %vm661, %v2033, %v2034
      %v2036 = vrot.slane %v1822, 1
      %v2037 = vrot.slane %v1824, 1
      %v2038 = vsel %vm661, %v2036, %v2037
      %v2039 = vrot.slane %v1825, 1
      %v2040 = vsel %vm661, %v2034, %v2039
      %v2041 = vrot.slane %v1826, 1
      %v2042 = vsel %vm661, %v2037, %v2041
      %v2043 = vrot.slane %v1827, 1
      %v2044 = vrot.slane %v1829, 1
      %v2045 = vsel %vm661, %v2043, %v2044
      %v2046 = vrot.slane %v1828, 1
      %v2047 = vrot.slane %v1830, 1
      %v2048 = vsel %vm661, %v2046, %v2047
      %v2049 = vrot.slane %v1831, 1
      %v2050 = vsel %vm661, %v2044, %v2049
      %v2051 = vrot.slane %v1832, 1
      %v2052 = vsel %vm661, %v2047, %v2051
      %v2053 = vrot.slane %v1833, 1
      %v2054 = vrot.slane %v1835, 1
      %v2055 = vsel %vm661, %v2053, %v2054
      %v2056 = vrot.slane %v1834, 1
      %v2057 = vrot.slane %v1836, 1
      %v2058 = vsel %vm661, %v2056, %v2057
      %v2059 = vrot.slane %v1837, 1
      %v2060 = vsel %vm661, %v2054, %v2059
      %v2061 = vrot.slane %v1838, 1
      %v2062 = vsel %vm661, %v2057, %v2061
      %v2063 = vrot.slane %v1839, 1
      %v2064 = vrot.slane %v1841, 1
      %v2065 = vsel %vm661, %v2063, %v2064
      %v2066 = vrot.slane %v1840, 1
      %v2067 = vrot.slane %v1842, 1
      %v2068 = vsel %vm661, %v2066, %v2067
      %v2069 = vrot.slane %v1843, 1
      %v2070 = vsel %vm661, %v2064, %v2069
      %v2071 = vrot.slane %v1844, 1
      %v2072 = vsel %vm661, %v2067, %v2071
      %v2073 = vrot.slane %v1845, 1
      %v2074 = vrot.slane %v1847, 1
      %v2075 = vsel %vm661, %v2073, %v2074
      %v2076 = vrot.slane %v1846, 1
      %v2077 = vrot.slane %v1848, 1
      %v2078 = vsel %vm661, %v2076, %v2077
      %v2079 = vrot.slane %v1849, 1
      %v2080 = vsel %vm661, %v2074, %v2079
      %v2081 = vrot.slane %v1850, 1
      %v2082 = vsel %vm661, %v2077, %v2081
      %v2083 = vrot.slane %v1851, 1
      %v2084 = vrot.slane %v1853, 1
      %v2085 = vsel %vm661, %v2083, %v2084
      %v2086 = vrot.slane %v1852, 1
      %v2087 = vrot.slane %v1854, 1
      %v2088 = vsel %vm661, %v2086, %v2087
      %v2089 = vrot.slane %v1855, 1
      %v2090 = vsel %vm661, %v2084, %v2089
      %v2091 = vrot.slane %v1856, 1
      %v2092 = vsel %vm661, %v2087, %v2091
      %v2093 = vrot.slane %v1857, 1
      %v2094 = vrot.slane %v1859, 1
      %v2095 = vsel %vm661, %v2093, %v2094
      %v2096 = vrot.slane %v1858, 1
      %v2097 = vrot.slane %v1860, 1
      %v2098 = vsel %vm661, %v2096, %v2097
      %v2099 = vrot.slane %v1861, 1
      %v2100 = vsel %vm661, %v2094, %v2099
      %v2101 = vrot.slane %v1862, 1
      %v2102 = vsel %vm661, %v2097, %v2101
      %v2103 = vrot.slane %v1863, 1
      %v2104 = vrot.slane %v1865, 1
      %v2105 = vsel %vm661, %v2103, %v2104
      %v2106 = vrot.slane %v1864, 1
      %v2107 = vrot.slane %v1866, 1
      %v2108 = vsel %vm661, %v2106, %v2107
      %v2109 = vrot.slane %v1867, 1
      %v2110 = vsel %vm661, %v2104, %v2109
      %v2111 = vrot.slane %v1868, 1
      %v2112 = vsel %vm661, %v2107, %v2111
      %v2113 = vrot.slane %v1869, 1
      %v2114 = vrot.slane %v1871, 1
      %v2115 = vsel %vm661, %v2113, %v2114
      %v2116 = vrot.slane %v1870, 1
      %v2117 = vrot.slane %v1872, 1
      %v2118 = vsel %vm661, %v2116, %v2117
      %v2119 = vrot.slane %v1873, 1
      %v2120 = vsel %vm661, %v2114, %v2119
      %v2121 = vrot.slane %v1874, 1
      %v2122 = vsel %vm661, %v2117, %v2121
      %v2123 = vrot.slane %v1875, 1
      %v2124 = vrot.slane %v1877, 1
      %v2125 = vsel %vm661, %v2123, %v2124
      %v2126 = vrot.slane %v1876, 1
      %v2127 = vrot.slane %v1878, 1
      %v2128 = vsel %vm661, %v2126, %v2127
      %v2129 = vrot.slane %v1879, 1
      %v2130 = vsel %vm661, %v2124, %v2129
      %v2131 = vrot.slane %v1880, 1
      %v2132 = vsel %vm661, %v2127, %v2131
      %v2133 = vrot.slane %v1881, 1
      %v2134 = vrot.slane %v1883, 1
      %v2135 = vsel %vm661, %v2133, %v2134
      %v2136 = vrot.slane %v1882, 1
      %v2137 = vrot.slane %v1884, 1
      %v2138 = vsel %vm661, %v2136, %v2137
      %v2139 = vrot.slane %v1885, 1
      %v2140 = vsel %vm661, %v2134, %v2139
      %v2141 = vrot.slane %v1886, 1
      %v2142 = vsel %vm661, %v2137, %v2141
      %v2207 = vadd.f32 %v1666, %v1985
      %v2208 = vadd.f32 %v1667, %v1988
      %v2209 = vadd.f32 %v1668, %v1990
      %v2210 = vadd.f32 %v1669, %v1992
      %v2211 = vadd.f32 %v1670, %v1995
      %v2212 = vadd.f32 %v1671, %v1998
      %v2213 = vadd.f32 %v1672, %v2000
      %v2214 = vadd.f32 %v1673, %v2002
      %v2215 = vadd.f32 %v1674, %v2005
      %v2216 = vadd.f32 %v1675, %v2008
      %v2217 = vadd.f32 %v1676, %v2010
      %v2218 = vadd.f32 %v1677, %v2012
      %v2219 = vadd.f32 %v1678, %v2015
      %v2220 = vadd.f32 %v1679, %v2018
      %v2221 = vadd.f32 %v1680, %v2020
      %v2222 = vadd.f32 %v1681, %v2022
      %v2223 = vadd.f32 %v1682, %v2025
      %v2224 = vadd.f32 %v1683, %v2028
      %v2225 = vadd.f32 %v1684, %v2030
      %v2226 = vadd.f32 %v1685, %v2032
      %v2227 = vadd.f32 %v1686, %v2035
      %v2228 = vadd.f32 %v1687, %v2038
      %v2229 = vadd.f32 %v1688, %v2040
      %v2230 = vadd.f32 %v1689, %v2042
      %v2231 = vadd.f32 %v1690, %v2045
      %v2232 = vadd.f32 %v1691, %v2048
      %v2233 = vadd.f32 %v1692, %v2050
      %v2234 = vadd.f32 %v1693, %v2052
      %v2235 = vadd.f32 %v1694, %v2055
      %v2236 = vadd.f32 %v1695, %v2058
      %v2237 = vadd.f32 %v1696, %v2060
      %v2238 = vadd.f32 %v1697, %v2062
      %v2239 = vadd.f32 %v1698, %v2065
      %v2240 = vadd.f32 %v1699, %v2068
      %v2241 = vadd.f32 %v1700, %v2070
      %v2242 = vadd.f32 %v1701, %v2072
      %v2243 = vadd.f32 %v1702, %v2075
      %v2244 = vadd.f32 %v1703, %v2078
      %v2245 = vadd.f32 %v1704, %v2080
      %v2246 = vadd.f32 %v1705, %v2082
      %v2247 = vadd.f32 %v1706, %v2085
      %v2248 = vadd.f32 %v1707, %v2088
      %v2249 = vadd.f32 %v1708, %v2090
      %v2250 = vadd.f32 %v1709, %v2092
      %v2251 = vadd.f32 %v1710, %v2095
      %v2252 = vadd.f32 %v1711, %v2098
      %v2253 = vadd.f32 %v1712, %v2100
      %v2254 = vadd.f32 %v1713, %v2102
      %v2255 = vadd.f32 %v1714, %v2105
      %v2256 = vadd.f32 %v1715, %v2108
      %v2257 = vadd.f32 %v1716, %v2110
      %v2258 = vadd.f32 %v1717, %v2112
      %v2259 = vadd.f32 %v1718, %v2115
      %v2260 = vadd.f32 %v1719, %v2118
      %v2261 = vadd.f32 %v1720, %v2120
      %v2262 = vadd.f32 %v1721, %v2122
      %v2263 = vadd.f32 %v1722, %v2125
      %v2264 = vadd.f32 %v1723, %v2128
      %v2265 = vadd.f32 %v1724, %v2130
      %v2266 = vadd.f32 %v1725, %v2132
      %v2267 = vadd.f32 %v1726, %v2135
      %v2268 = vadd.f32 %v1727, %v2138
      %v2269 = vadd.f32 %v1728, %v2140
      %v2270 = vadd.f32 %v1729, %v2142
      %v2271 = vld [vmem:[%s1492] sm:$0xee]
      %v2272 = vld [vmem:[%s1492 + $0x18] sm:$0xee]
      %v2273 = vld [vmem:[%s1492 + $0x30] sm:$0xee]
      %v2274 = vld [vmem:[%s1492 + $0x48] sm:$0xee]
      %v2275 = vld [vmem:[%s1492 + $0x60] sm:$0xee]
      %v2276 = vld [vmem:[%s1492 + $0x78] sm:$0xee]
      %v2277 = vld [vmem:[%s1492 + $0x90] sm:$0xee]
      %v2278 = vld [vmem:[%s1492 + $0xa8] sm:$0xee]
      %v2279 = vld [vmem:[%s1492 + $0xc0] sm:$0xee]
      %v2280 = vld [vmem:[%s1492 + $0xd8] sm:$0xee]
      %v2281 = vld [vmem:[%s1492 + $0xf0] sm:$0xee]
      %v2282 = vld [vmem:[%s1492 + $0x108] sm:$0xee]
      %v2283 = vld [vmem:[%s1492 + $0x120] sm:$0xee]
      %v2284 = vld [vmem:[%s1492 + $0x138] sm:$0xee]
      %v2285 = vld [vmem:[%s1492 + $0x150] sm:$0xee]
      %v2286 = vld [vmem:[%s1492 + $0x168] sm:$0xee]
      %v2287 = vunpack.c.l.bf16 %v2271
      %v2288 = vunpack.c.h.bf16 %v2271
      %v2289 = vunpack.c.l.bf16 %v2272
      %v2290 = vunpack.c.h.bf16 %v2272
      %v2291 = vunpack.c.l.bf16 %v2273
      %v2292 = vunpack.c.h.bf16 %v2273
      %v2293 = vunpack.c.l.bf16 %v2274
      %v2294 = vunpack.c.h.bf16 %v2274
      %v2295 = vunpack.c.l.bf16 %v2275
      %v2296 = vunpack.c.h.bf16 %v2275
      %v2297 = vunpack.c.l.bf16 %v2276
      %v2298 = vunpack.c.h.bf16 %v2276
      %v2299 = vunpack.c.l.bf16 %v2277
      %v2300 = vunpack.c.h.bf16 %v2277
      %v2301 = vunpack.c.l.bf16 %v2278
      %v2302 = vunpack.c.h.bf16 %v2278
      %v2303 = vunpack.c.l.bf16 %v2279
      %v2304 = vunpack.c.h.bf16 %v2279
      %v2305 = vunpack.c.l.bf16 %v2280
      %v2306 = vunpack.c.h.bf16 %v2280
      %v2307 = vunpack.c.l.bf16 %v2281
      %v2308 = vunpack.c.h.bf16 %v2281
      %v2309 = vunpack.c.l.bf16 %v2282
      %v2310 = vunpack.c.h.bf16 %v2282
      %v2311 = vunpack.c.l.bf16 %v2283
      %v2312 = vunpack.c.h.bf16 %v2283
      %v2313 = vunpack.c.l.bf16 %v2284
      %v2314 = vunpack.c.h.bf16 %v2284
      %v2315 = vunpack.c.l.bf16 %v2285
      %v2316 = vunpack.c.h.bf16 %v2285
      %v2317 = vunpack.c.l.bf16 %v2286
      %v2318 = vunpack.c.h.bf16 %v2286
      %s2319 = scalar_lea.vmem %s1, 5
      %v2320 = vld [vmem:[%s2319] ss:$8 sm:$0x3]
      %v2322 = vlaneseq
      %v2323 = vshrl.u32 %v2322, 7
      %v2324 = vsub.s32 0, %v2323
      %v2325 = vrot.slane %v2320, %v2324
      %v2326 = vlaneseq
      %v2327 = vshrl.u32 %v2326, 7
      %v2328 = vsub.s32 1, %v2327
      %v2329 = vrot.slane %v2320, %v2328
      %v2332 = vmul.f32 %v2287, %v2325
      %v2333 = vmul.f32 %v2288, %v2329
      %v2334 = vmul.f32 %v1527, %v2325
      %v2335 = vmul.f32 %v1528, %v2329
      %v2336 = vmul.f32 %v1746, %v2325
      %v2337 = vmul.f32 %v1747, %v2329
      %v2338 = vmul.f32 %v2289, %v2325
      %v2339 = vmul.f32 %v2290, %v2329
      %v2340 = vmul.f32 %v1531, %v2325
      %v2341 = vmul.f32 %v1532, %v2329
      %v2342 = vmul.f32 %v1748, %v2325
      %v2343 = vmul.f32 %v1749, %v2329
      %v2344 = vmul.f32 %v2291, %v2325
      %v2345 = vmul.f32 %v2292, %v2329
      %v2346 = vmul.f32 %v1535, %v2325
      %v2347 = vmul.f32 %v1536, %v2329
      %v2348 = vmul.f32 %v1750, %v2325
      %v2349 = vmul.f32 %v1751, %v2329
      %v2350 = vmul.f32 %v2293, %v2325
      %v2351 = vmul.f32 %v2294, %v2329
      %v2352 = vmul.f32 %v1539, %v2325
      %v2353 = vmul.f32 %v1540, %v2329
      %v2354 = vmul.f32 %v1752, %v2325
      %v2355 = vmul.f32 %v1753, %v2329
      %v2356 = vmul.f32 %v2295, %v2325
      %v2357 = vmul.f32 %v2296, %v2329
      %v2358 = vmul.f32 %v1543, %v2325
      %v2359 = vmul.f32 %v1544, %v2329
      %v2360 = vmul.f32 %v1754, %v2325
      %v2361 = vmul.f32 %v1755, %v2329
      %v2362 = vmul.f32 %v2297, %v2325
      %v2363 = vmul.f32 %v2298, %v2329
      %v2364 = vmul.f32 %v1547, %v2325
      %v2365 = vmul.f32 %v1548, %v2329
      %v2366 = vmul.f32 %v1756, %v2325
      %v2367 = vmul.f32 %v1757, %v2329
      %v2368 = vmul.f32 %v2299, %v2325
      %v2369 = vmul.f32 %v2300, %v2329
      %v2370 = vmul.f32 %v1551, %v2325
      %v2371 = vmul.f32 %v1552, %v2329
      %v2372 = vmul.f32 %v1758, %v2325
      %v2373 = vmul.f32 %v1759, %v2329
      %v2374 = vmul.f32 %v2301, %v2325
      %v2375 = vmul.f32 %v2302, %v2329
      %v2376 = vmul.f32 %v1555, %v2325
      %v2377 = vmul.f32 %v1556, %v2329
      %v2378 = vmul.f32 %v1760, %v2325
      %v2379 = vmul.f32 %v1761, %v2329
      %v2380 = vmul.f32 %v2303, %v2325
      %v2381 = vmul.f32 %v2304, %v2329
      %v2382 = vmul.f32 %v1559, %v2325
      %v2383 = vmul.f32 %v1560, %v2329
      %v2384 = vmul.f32 %v1762, %v2325
      %v2385 = vmul.f32 %v1763, %v2329
      %v2386 = vmul.f32 %v2305, %v2325
      %v2387 = vmul.f32 %v2306, %v2329
      %v2388 = vmul.f32 %v1563, %v2325
      %v2389 = vmul.f32 %v1564, %v2329
      %v2390 = vmul.f32 %v1764, %v2325
      %v2391 = vmul.f32 %v1765, %v2329
      %v2392 = vmul.f32 %v2307, %v2325
      %v2393 = vmul.f32 %v2308, %v2329
      %v2394 = vmul.f32 %v1567, %v2325
      %v2395 = vmul.f32 %v1568, %v2329
      %v2396 = vmul.f32 %v1766, %v2325
      %v2397 = vmul.f32 %v1767, %v2329
      %v2398 = vmul.f32 %v2309, %v2325
      %v2399 = vmul.f32 %v2310, %v2329
      %v2400 = vmul.f32 %v1571, %v2325
      %v2401 = vmul.f32 %v1572, %v2329
      %v2402 = vmul.f32 %v1768, %v2325
      %v2403 = vmul.f32 %v1769, %v2329
      %v2404 = vmul.f32 %v2311, %v2325
      %v2405 = vmul.f32 %v2312, %v2329
      %v2406 = vmul.f32 %v1575, %v2325
      %v2407 = vmul.f32 %v1576, %v2329
      %v2408 = vmul.f32 %v1770, %v2325
      %v2409 = vmul.f32 %v1771, %v2329
      %v2410 = vmul.f32 %v2313, %v2325
      %v2411 = vmul.f32 %v2314, %v2329
      %v2412 = vmul.f32 %v1579, %v2325
      %v2413 = vmul.f32 %v1580, %v2329
      %v2414 = vmul.f32 %v1772, %v2325
      %v2415 = vmul.f32 %v1773, %v2329
      %v2416 = vmul.f32 %v2315, %v2325
      %v2417 = vmul.f32 %v2316, %v2329
      %v2418 = vmul.f32 %v1583, %v2325
      %v2419 = vmul.f32 %v1584, %v2329
      %v2420 = vmul.f32 %v1774, %v2325
      %v2421 = vmul.f32 %v1775, %v2329
      %v2422 = vmul.f32 %v2317, %v2325
      %v2423 = vmul.f32 %v2318, %v2329
      %v2424 = vmul.f32 %v1587, %v2325
      %v2425 = vmul.f32 %v1588, %v2329
      %v2426 = vmul.f32 %v1776, %v2325
      %v2427 = vmul.f32 %v1777, %v2329
      %v2524 = vrot.slane %v2332, 2
      %v2525 = vrot.slane %v2334, 2
      %v2526 = vsel %vm1203, %v2524, %v2525
      %v2527 = vrot.slane %v2333, 2
      %v2528 = vrot.slane %v2335, 2
      %v2529 = vsel %vm1203, %v2527, %v2528
      %v2530 = vrot.slane %v2336, 2
      %v2531 = vsel %vm1203, %v2525, %v2530
      %v2532 = vrot.slane %v2337, 2
      %v2533 = vsel %vm1203, %v2528, %v2532
      %v2534 = vrot.slane %v2338, 2
      %v2535 = vrot.slane %v2340, 2
      %v2536 = vsel %vm1203, %v2534, %v2535
      %v2537 = vrot.slane %v2339, 2
      %v2538 = vrot.slane %v2341, 2
      %v2539 = vsel %vm1203, %v2537, %v2538
      %v2540 = vrot.slane %v2342, 2
      %v2541 = vsel %vm1203, %v2535, %v2540
      %v2542 = vrot.slane %v2343, 2
      %v2543 = vsel %vm1203, %v2538, %v2542
      %v2544 = vrot.slane %v2344, 2
      %v2545 = vrot.slane %v2346, 2
      %v2546 = vsel %vm1203, %v2544, %v2545
      %v2547 = vrot.slane %v2345, 2
      %v2548 = vrot.slane %v2347, 2
      %v2549 = vsel %vm1203, %v2547, %v2548
      %v2550 = vrot.slane %v2348, 2
      %v2551 = vsel %vm1203, %v2545, %v2550
      %v2552 = vrot.slane %v2349, 2
      %v2553 = vsel %vm1203, %v2548, %v2552
      %v2554 = vrot.slane %v2350, 2
      %v2555 = vrot.slane %v2352, 2
      %v2556 = vsel %vm1203, %v2554, %v2555
      %v2557 = vrot.slane %v2351, 2
      %v2558 = vrot.slane %v2353, 2
      %v2559 = vsel %vm1203, %v2557, %v2558
      %v2560 = vrot.slane %v2354, 2
      %v2561 = vsel %vm1203, %v2555, %v2560
      %v2562 = vrot.slane %v2355, 2
      %v2563 = vsel %vm1203, %v2558, %v2562
      %v2564 = vrot.slane %v2356, 2
      %v2565 = vrot.slane %v2358, 2
      %v2566 = vsel %vm1203, %v2564, %v2565
      %v2567 = vrot.slane %v2357, 2
      %v2568 = vrot.slane %v2359, 2
      %v2569 = vsel %vm1203, %v2567, %v2568
      %v2570 = vrot.slane %v2360, 2
      %v2571 = vsel %vm1203, %v2565, %v2570
      %v2572 = vrot.slane %v2361, 2
      %v2573 = vsel %vm1203, %v2568, %v2572
      %v2574 = vrot.slane %v2362, 2
      %v2575 = vrot.slane %v2364, 2
      %v2576 = vsel %vm1203, %v2574, %v2575
      %v2577 = vrot.slane %v2363, 2
      %v2578 = vrot.slane %v2365, 2
      %v2579 = vsel %vm1203, %v2577, %v2578
      %v2580 = vrot.slane %v2366, 2
      %v2581 = vsel %vm1203, %v2575, %v2580
      %v2582 = vrot.slane %v2367, 2
      %v2583 = vsel %vm1203, %v2578, %v2582
      %v2584 = vrot.slane %v2368, 2
      %v2585 = vrot.slane %v2370, 2
      %v2586 = vsel %vm1203, %v2584, %v2585
      %v2587 = vrot.slane %v2369, 2
      %v2588 = vrot.slane %v2371, 2
      %v2589 = vsel %vm1203, %v2587, %v2588
      %v2590 = vrot.slane %v2372, 2
      %v2591 = vsel %vm1203, %v2585, %v2590
      %v2592 = vrot.slane %v2373, 2
      %v2593 = vsel %vm1203, %v2588, %v2592
      %v2594 = vrot.slane %v2374, 2
      %v2595 = vrot.slane %v2376, 2
      %v2596 = vsel %vm1203, %v2594, %v2595
      %v2597 = vrot.slane %v2375, 2
      %v2598 = vrot.slane %v2377, 2
      %v2599 = vsel %vm1203, %v2597, %v2598
      %v2600 = vrot.slane %v2378, 2
      %v2601 = vsel %vm1203, %v2595, %v2600
      %v2602 = vrot.slane %v2379, 2
      %v2603 = vsel %vm1203, %v2598, %v2602
      %v2604 = vrot.slane %v2380, 2
      %v2605 = vrot.slane %v2382, 2
      %v2606 = vsel %vm1203, %v2604, %v2605
      %v2607 = vrot.slane %v2381, 2
      %v2608 = vrot.slane %v2383, 2
      %v2609 = vsel %vm1203, %v2607, %v2608
      %v2610 = vrot.slane %v2384, 2
      %v2611 = vsel %vm1203, %v2605, %v2610
      %v2612 = vrot.slane %v2385, 2
      %v2613 = vsel %vm1203, %v2608, %v2612
      %v2614 = vrot.slane %v2386, 2
      %v2615 = vrot.slane %v2388, 2
      %v2616 = vsel %vm1203, %v2614, %v2615
      %v2617 = vrot.slane %v2387, 2
      %v2618 = vrot.slane %v2389, 2
      %v2619 = vsel %vm1203, %v2617, %v2618
      %v2620 = vrot.slane %v2390, 2
      %v2621 = vsel %vm1203, %v2615, %v2620
      %v2622 = vrot.slane %v2391, 2
      %v2623 = vsel %vm1203, %v2618, %v2622
      %v2624 = vrot.slane %v2392, 2
      %v2625 = vrot.slane %v2394, 2
      %v2626 = vsel %vm1203, %v2624, %v2625
      %v2627 = vrot.slane %v2393, 2
      %v2628 = vrot.slane %v2395, 2
      %v2629 = vsel %vm1203, %v2627, %v2628
      %v2630 = vrot.slane %v2396, 2
      %v2631 = vsel %vm1203, %v2625, %v2630
      %v2632 = vrot.slane %v2397, 2
      %v2633 = vsel %vm1203, %v2628, %v2632
      %v2634 = vrot.slane %v2398, 2
      %v2635 = vrot.slane %v2400, 2
      %v2636 = vsel %vm1203, %v2634, %v2635
      %v2637 = vrot.slane %v2399, 2
      %v2638 = vrot.slane %v2401, 2
      %v2639 = vsel %vm1203, %v2637, %v2638
      %v2640 = vrot.slane %v2402, 2
      %v2641 = vsel %vm1203, %v2635, %v2640
      %v2642 = vrot.slane %v2403, 2
      %v2643 = vsel %vm1203, %v2638, %v2642
      %v2644 = vrot.slane %v2404, 2
      %v2645 = vrot.slane %v2406, 2
      %v2646 = vsel %vm1203, %v2644, %v2645
      %v2647 = vrot.slane %v2405, 2
      %v2648 = vrot.slane %v2407, 2
      %v2649 = vsel %vm1203, %v2647, %v2648
      %v2650 = vrot.slane %v2408, 2
      %v2651 = vsel %vm1203, %v2645, %v2650
      %v2652 = vrot.slane %v2409, 2
      %v2653 = vsel %vm1203, %v2648, %v2652
      %v2654 = vrot.slane %v2410, 2
      %v2655 = vrot.slane %v2412, 2
      %v2656 = vsel %vm1203, %v2654, %v2655
      %v2657 = vrot.slane %v2411, 2
      %v2658 = vrot.slane %v2413, 2
      %v2659 = vsel %vm1203, %v2657, %v2658
      %v2660 = vrot.slane %v2414, 2
      %v2661 = vsel %vm1203, %v2655, %v2660
      %v2662 = vrot.slane %v2415, 2
      %v2663 = vsel %vm1203, %v2658, %v2662
      %v2664 = vrot.slane %v2416, 2
      %v2665 = vrot.slane %v2418, 2
      %v2666 = vsel %vm1203, %v2664, %v2665
      %v2667 = vrot.slane %v2417, 2
      %v2668 = vrot.slane %v2419, 2
      %v2669 = vsel %vm1203, %v2667, %v2668
      %v2670 = vrot.slane %v2420, 2
      %v2671 = vsel %vm1203, %v2665, %v2670
      %v2672 = vrot.slane %v2421, 2
      %v2673 = vsel %vm1203, %v2668, %v2672
      %v2674 = vrot.slane %v2422, 2
      %v2675 = vrot.slane %v2424, 2
      %v2676 = vsel %vm1203, %v2674, %v2675
      %v2677 = vrot.slane %v2423, 2
      %v2678 = vrot.slane %v2425, 2
      %v2679 = vsel %vm1203, %v2677, %v2678
      %v2680 = vrot.slane %v2426, 2
      %v2681 = vsel %vm1203, %v2675, %v2680
      %v2682 = vrot.slane %v2427, 2
      %v2683 = vsel %vm1203, %v2678, %v2682
      %v2748 = vadd.f32 %v2207, %v2526
      %v2749 = vadd.f32 %v2208, %v2529
      %v2750 = vadd.f32 %v2209, %v2531
      %v2751 = vadd.f32 %v2210, %v2533
      %v2752 = vadd.f32 %v2211, %v2536
      %v2753 = vadd.f32 %v2212, %v2539
      %v2754 = vadd.f32 %v2213, %v2541
      %v2755 = vadd.f32 %v2214, %v2543
      %v2756 = vadd.f32 %v2215, %v2546
      %v2757 = vadd.f32 %v2216, %v2549
      %v2758 = vadd.f32 %v2217, %v2551
      %v2759 = vadd.f32 %v2218, %v2553
      %v2760 = vadd.f32 %v2219, %v2556
      %v2761 = vadd.f32 %v2220, %v2559
      %v2762 = vadd.f32 %v2221, %v2561
      %v2763 = vadd.f32 %v2222, %v2563
      %v2764 = vadd.f32 %v2223, %v2566
      %v2765 = vadd.f32 %v2224, %v2569
      %v2766 = vadd.f32 %v2225, %v2571
      %v2767 = vadd.f32 %v2226, %v2573
      %v2768 = vadd.f32 %v2227, %v2576
      %v2769 = vadd.f32 %v2228, %v2579
      %v2770 = vadd.f32 %v2229, %v2581
      %v2771 = vadd.f32 %v2230, %v2583
      %v2772 = vadd.f32 %v2231, %v2586
      %v2773 = vadd.f32 %v2232, %v2589
      %v2774 = vadd.f32 %v2233, %v2591
      %v2775 = vadd.f32 %v2234, %v2593
      %v2776 = vadd.f32 %v2235, %v2596
      %v2777 = vadd.f32 %v2236, %v2599
      %v2778 = vadd.f32 %v2237, %v2601
      %v2779 = vadd.f32 %v2238, %v2603
      %v2780 = vadd.f32 %v2239, %v2606
      %v2781 = vadd.f32 %v2240, %v2609
      %v2782 = vadd.f32 %v2241, %v2611
      %v2783 = vadd.f32 %v2242, %v2613
      %v2784 = vadd.f32 %v2243, %v2616
      %v2785 = vadd.f32 %v2244, %v2619
      %v2786 = vadd.f32 %v2245, %v2621
      %v2787 = vadd.f32 %v2246, %v2623
      %v2788 = vadd.f32 %v2247, %v2626
      %v2789 = vadd.f32 %v2248, %v2629
      %v2790 = vadd.f32 %v2249, %v2631
      %v2791 = vadd.f32 %v2250, %v2633
      %v2792 = vadd.f32 %v2251, %v2636
      %v2793 = vadd.f32 %v2252, %v2639
      %v2794 = vadd.f32 %v2253, %v2641
      %v2795 = vadd.f32 %v2254, %v2643
      %v2796 = vadd.f32 %v2255, %v2646
      %v2797 = vadd.f32 %v2256, %v2649
      %v2798 = vadd.f32 %v2257, %v2651
      %v2799 = vadd.f32 %v2258, %v2653
      %v2800 = vadd.f32 %v2259, %v2656
      %v2801 = vadd.f32 %v2260, %v2659
      %v2802 = vadd.f32 %v2261, %v2661
      %v2803 = vadd.f32 %v2262, %v2663
      %v2804 = vadd.f32 %v2263, %v2666
      %v2805 = vadd.f32 %v2264, %v2669
      %v2806 = vadd.f32 %v2265, %v2671
      %v2807 = vadd.f32 %v2266, %v2673
      %v2808 = vadd.f32 %v2267, %v2676
      %v2809 = vadd.f32 %v2268, %v2679
      %v2810 = vadd.f32 %v2269, %v2681
      %v2811 = vadd.f32 %v2270, %v2683
      %s2812 = scalar_lea.vmem %s226, 48
      %v2813 = vld [vmem:[%s2812] sm:$0xff]
      %v2814 = vld [vmem:[%s2812 + $0x8] sm:$0xff]
      %v2815 = vld [vmem:[%s2812 + $0x18] sm:$0xff]
      %v2816 = vld [vmem:[%s2812 + $0x20] sm:$0xff]
      %v2817 = vld [vmem:[%s2812 + $0x30] sm:$0xff]
      %v2818 = vld [vmem:[%s2812 + $0x38] sm:$0xff]
      %v2819 = vld [vmem:[%s2812 + $0x48] sm:$0xff]
      %v2820 = vld [vmem:[%s2812 + $0x50] sm:$0xff]
      %v2821 = vld [vmem:[%s2812 + $0x60] sm:$0xff]
      %v2822 = vld [vmem:[%s2812 + $0x68] sm:$0xff]
      %v2823 = vld [vmem:[%s2812 + $0x78] sm:$0xff]
      %v2824 = vld [vmem:[%s2812 + $0x80] sm:$0xff]
      %v2825 = vld [vmem:[%s2812 + $0x90] sm:$0xff]
      %v2826 = vld [vmem:[%s2812 + $0x98] sm:$0xff]
      %v2827 = vld [vmem:[%s2812 + $0xa8] sm:$0xff]
      %v2828 = vld [vmem:[%s2812 + $0xb0] sm:$0xff]
      %v2829 = vld [vmem:[%s2812 + $0xc0] sm:$0xff]
      %v2830 = vld [vmem:[%s2812 + $0xc8] sm:$0xff]
      %v2831 = vld [vmem:[%s2812 + $0xd8] sm:$0xff]
      %v2832 = vld [vmem:[%s2812 + $0xe0] sm:$0xff]
      %v2833 = vld [vmem:[%s2812 + $0xf0] sm:$0xff]
      %v2834 = vld [vmem:[%s2812 + $0xf8] sm:$0xff]
      %v2835 = vld [vmem:[%s2812 + $0x108] sm:$0xff]
      %v2836 = vld [vmem:[%s2812 + $0x110] sm:$0xff]
      %v2837 = vld [vmem:[%s2812 + $0x120] sm:$0xff]
      %v2838 = vld [vmem:[%s2812 + $0x128] sm:$0xff]
      %v2839 = vld [vmem:[%s2812 + $0x138] sm:$0xff]
      %v2840 = vld [vmem:[%s2812 + $0x140] sm:$0xff]
      %v2841 = vld [vmem:[%s2812 + $0x150] sm:$0xff]
      %v2842 = vld [vmem:[%s2812 + $0x158] sm:$0xff]
      %v2843 = vld [vmem:[%s2812 + $0x168] sm:$0xff]
      %v2844 = vld [vmem:[%s2812 + $0x170] sm:$0xff]
      %v2845 = vunpack.c.l.bf16 %v2813
      %v2846 = vunpack.c.h.bf16 %v2813
      %v2847 = vunpack.c.l.bf16 %v2814
      %v2848 = vunpack.c.h.bf16 %v2814
      %v2849 = vunpack.c.l.bf16 %v2815
      %v2850 = vunpack.c.h.bf16 %v2815
      %v2851 = vunpack.c.l.bf16 %v2816
      %v2852 = vunpack.c.h.bf16 %v2816
      %v2853 = vunpack.c.l.bf16 %v2817
      %v2854 = vunpack.c.h.bf16 %v2817
      %v2855 = vunpack.c.l.bf16 %v2818
      %v2856 = vunpack.c.h.bf16 %v2818
      %v2857 = vunpack.c.l.bf16 %v2819
      %v2858 = vunpack.c.h.bf16 %v2819
      %v2859 = vunpack.c.l.bf16 %v2820
      %v2860 = vunpack.c.h.bf16 %v2820
      %v2861 = vunpack.c.l.bf16 %v2821
      %v2862 = vunpack.c.h.bf16 %v2821
      %v2863 = vunpack.c.l.bf16 %v2822
      %v2864 = vunpack.c.h.bf16 %v2822
      %v2865 = vunpack.c.l.bf16 %v2823
      %v2866 = vunpack.c.h.bf16 %v2823
      %v2867 = vunpack.c.l.bf16 %v2824
      %v2868 = vunpack.c.h.bf16 %v2824
      %v2869 = vunpack.c.l.bf16 %v2825
      %v2870 = vunpack.c.h.bf16 %v2825
      %v2871 = vunpack.c.l.bf16 %v2826
      %v2872 = vunpack.c.h.bf16 %v2826
      %v2873 = vunpack.c.l.bf16 %v2827
      %v2874 = vunpack.c.h.bf16 %v2827
      %v2875 = vunpack.c.l.bf16 %v2828
      %v2876 = vunpack.c.h.bf16 %v2828
      %v2877 = vunpack.c.l.bf16 %v2829
      %v2878 = vunpack.c.h.bf16 %v2829
      %v2879 = vunpack.c.l.bf16 %v2830
      %v2880 = vunpack.c.h.bf16 %v2830
      %v2881 = vunpack.c.l.bf16 %v2831
      %v2882 = vunpack.c.h.bf16 %v2831
      %v2883 = vunpack.c.l.bf16 %v2832
      %v2884 = vunpack.c.h.bf16 %v2832
      %v2885 = vunpack.c.l.bf16 %v2833
      %v2886 = vunpack.c.h.bf16 %v2833
      %v2887 = vunpack.c.l.bf16 %v2834
      %v2888 = vunpack.c.h.bf16 %v2834
      %v2889 = vunpack.c.l.bf16 %v2835
      %v2890 = vunpack.c.h.bf16 %v2835
      %v2891 = vunpack.c.l.bf16 %v2836
      %v2892 = vunpack.c.h.bf16 %v2836
      %v2893 = vunpack.c.l.bf16 %v2837
      %v2894 = vunpack.c.h.bf16 %v2837
      %v2895 = vunpack.c.l.bf16 %v2838
      %v2896 = vunpack.c.h.bf16 %v2838
      %v2897 = vunpack.c.l.bf16 %v2839
      %v2898 = vunpack.c.h.bf16 %v2839
      %v2899 = vunpack.c.l.bf16 %v2840
      %v2900 = vunpack.c.h.bf16 %v2840
      %v2901 = vunpack.c.l.bf16 %v2841
      %v2902 = vunpack.c.h.bf16 %v2841
      %v2903 = vunpack.c.l.bf16 %v2842
      %v2904 = vunpack.c.h.bf16 %v2842
      %v2905 = vunpack.c.l.bf16 %v2843
      %v2906 = vunpack.c.h.bf16 %v2843
      %v2907 = vunpack.c.l.bf16 %v2844
      %v2908 = vunpack.c.h.bf16 %v2844
      %s2909 = scalar_lea.vmem %s1, 6
      %v2910 = vld [vmem:[%s2909] ss:$8 sm:$0x3]
      %v2912 = vlaneseq
      %v2913 = vshrl.u32 %v2912, 7
      %v2914 = vsub.s32 0, %v2913
      %v2915 = vrot.slane %v2910, %v2914
      %v2916 = vlaneseq
      %v2917 = vshrl.u32 %v2916, 7
      %v2918 = vsub.s32 1, %v2917
      %v2919 = vrot.slane %v2910, %v2918
      %v2922 = vmul.f32 %v2845, %v2915
      %v2923 = vmul.f32 %v2846, %v2919
      %v2924 = vmul.f32 %v2847, %v2915
      %v2925 = vmul.f32 %v2848, %v2919
      %v2926 = vmul.f32 %v2849, %v2915
      %v2927 = vmul.f32 %v2850, %v2919
      %v2928 = vmul.f32 %v2851, %v2915
      %v2929 = vmul.f32 %v2852, %v2919
      %v2930 = vmul.f32 %v2853, %v2915
      %v2931 = vmul.f32 %v2854, %v2919
      %v2932 = vmul.f32 %v2855, %v2915
      %v2933 = vmul.f32 %v2856, %v2919
      %v2934 = vmul.f32 %v2857, %v2915
      %v2935 = vmul.f32 %v2858, %v2919
      %v2936 = vmul.f32 %v2859, %v2915
      %v2937 = vmul.f32 %v2860, %v2919
      %v2938 = vmul.f32 %v2861, %v2915
      %v2939 = vmul.f32 %v2862, %v2919
      %v2940 = vmul.f32 %v2863, %v2915
      %v2941 = vmul.f32 %v2864, %v2919
      %v2942 = vmul.f32 %v2865, %v2915
      %v2943 = vmul.f32 %v2866, %v2919
      %v2944 = vmul.f32 %v2867, %v2915
      %v2945 = vmul.f32 %v2868, %v2919
      %v2946 = vmul.f32 %v2869, %v2915
      %v2947 = vmul.f32 %v2870, %v2919
      %v2948 = vmul.f32 %v2871, %v2915
      %v2949 = vmul.f32 %v2872, %v2919
      %v2950 = vmul.f32 %v2873, %v2915
      %v2951 = vmul.f32 %v2874, %v2919
      %v2952 = vmul.f32 %v2875, %v2915
      %v2953 = vmul.f32 %v2876, %v2919
      %v2954 = vmul.f32 %v2877, %v2915
      %v2955 = vmul.f32 %v2878, %v2919
      %v2956 = vmul.f32 %v2879, %v2915
      %v2957 = vmul.f32 %v2880, %v2919
      %v2958 = vmul.f32 %v2881, %v2915
      %v2959 = vmul.f32 %v2882, %v2919
      %v2960 = vmul.f32 %v2883, %v2915
      %v2961 = vmul.f32 %v2884, %v2919
      %v2962 = vmul.f32 %v2885, %v2915
      %v2963 = vmul.f32 %v2886, %v2919
      %v2964 = vmul.f32 %v2887, %v2915
      %v2965 = vmul.f32 %v2888, %v2919
      %v2966 = vmul.f32 %v2889, %v2915
      %v2967 = vmul.f32 %v2890, %v2919
      %v2968 = vmul.f32 %v2891, %v2915
      %v2969 = vmul.f32 %v2892, %v2919
      %v2970 = vmul.f32 %v2893, %v2915
      %v2971 = vmul.f32 %v2894, %v2919
      %v2972 = vmul.f32 %v2895, %v2915
      %v2973 = vmul.f32 %v2896, %v2919
      %v2974 = vmul.f32 %v2897, %v2915
      %v2975 = vmul.f32 %v2898, %v2919
      %v2976 = vmul.f32 %v2899, %v2915
      %v2977 = vmul.f32 %v2900, %v2919
      %v2978 = vmul.f32 %v2901, %v2915
      %v2979 = vmul.f32 %v2902, %v2919
      %v2980 = vmul.f32 %v2903, %v2915
      %v2981 = vmul.f32 %v2904, %v2919
      %v2982 = vmul.f32 %v2905, %v2915
      %v2983 = vmul.f32 %v2906, %v2919
      %v2984 = vmul.f32 %v2907, %v2915
      %v2985 = vmul.f32 %v2908, %v2919
      %v2986 = vadd.f32 %v2748, %v2922
      %v2987 = vadd.f32 %v2749, %v2923
      %v2988 = vadd.f32 %v2750, %v2924
      %v2989 = vadd.f32 %v2751, %v2925
      %v2990 = vadd.f32 %v2752, %v2926
      %v2991 = vadd.f32 %v2753, %v2927
      %v2992 = vadd.f32 %v2754, %v2928
      %v2993 = vadd.f32 %v2755, %v2929
      %v2994 = vadd.f32 %v2756, %v2930
      %v2995 = vadd.f32 %v2757, %v2931
      %v2996 = vadd.f32 %v2758, %v2932
      %v2997 = vadd.f32 %v2759, %v2933
      %v2998 = vadd.f32 %v2760, %v2934
      %v2999 = vadd.f32 %v2761, %v2935
      %v3000 = vadd.f32 %v2762, %v2936
      %v3001 = vadd.f32 %v2763, %v2937
      %v3002 = vadd.f32 %v2764, %v2938
      %v3003 = vadd.f32 %v2765, %v2939
      %v3004 = vadd.f32 %v2766, %v2940
      %v3005 = vadd.f32 %v2767, %v2941
      %v3006 = vadd.f32 %v2768, %v2942
      %v3007 = vadd.f32 %v2769, %v2943
      %v3008 = vadd.f32 %v2770, %v2944
      %v3009 = vadd.f32 %v2771, %v2945
      %v3010 = vadd.f32 %v2772, %v2946
      %v3011 = vadd.f32 %v2773, %v2947
      %v3012 = vadd.f32 %v2774, %v2948
      %v3013 = vadd.f32 %v2775, %v2949
      %v3014 = vadd.f32 %v2776, %v2950
      %v3015 = vadd.f32 %v2777, %v2951
      %v3016 = vadd.f32 %v2778, %v2952
      %v3017 = vadd.f32 %v2779, %v2953
      %v3018 = vadd.f32 %v2780, %v2954
      %v3019 = vadd.f32 %v2781, %v2955
      %v3020 = vadd.f32 %v2782, %v2956
      %v3021 = vadd.f32 %v2783, %v2957
      %v3022 = vadd.f32 %v2784, %v2958
      %v3023 = vadd.f32 %v2785, %v2959
      %v3024 = vadd.f32 %v2786, %v2960
      %v3025 = vadd.f32 %v2787, %v2961
      %v3026 = vadd.f32 %v2788, %v2962
      %v3027 = vadd.f32 %v2789, %v2963
      %v3028 = vadd.f32 %v2790, %v2964
      %v3029 = vadd.f32 %v2791, %v2965
      %v3030 = vadd.f32 %v2792, %v2966
      %v3031 = vadd.f32 %v2793, %v2967
      %v3032 = vadd.f32 %v2794, %v2968
      %v3033 = vadd.f32 %v2795, %v2969
      %v3034 = vadd.f32 %v2796, %v2970
      %v3035 = vadd.f32 %v2797, %v2971
      %v3036 = vadd.f32 %v2798, %v2972
      %v3037 = vadd.f32 %v2799, %v2973
      %v3038 = vadd.f32 %v2800, %v2974
      %v3039 = vadd.f32 %v2801, %v2975
      %v3040 = vadd.f32 %v2802, %v2976
      %v3041 = vadd.f32 %v2803, %v2977
      %v3042 = vadd.f32 %v2804, %v2978
      %v3043 = vadd.f32 %v2805, %v2979
      %v3044 = vadd.f32 %v2806, %v2980
      %v3045 = vadd.f32 %v2807, %v2981
      %v3046 = vadd.f32 %v2808, %v2982
      %v3047 = vadd.f32 %v2809, %v2983
      %v3048 = vadd.f32 %v2810, %v2984
      %v3049 = vadd.f32 %v2811, %v2985
      %v3050 = vld [vmem:[%s2812 + $0x10] sm:$0x11]
      %v3051 = vld [vmem:[%s2812 + $0x28] sm:$0x11]
      %v3052 = vld [vmem:[%s2812 + $0x40] sm:$0x11]
      %v3053 = vld [vmem:[%s2812 + $0x58] sm:$0x11]
      %v3054 = vld [vmem:[%s2812 + $0x70] sm:$0x11]
      %v3055 = vld [vmem:[%s2812 + $0x88] sm:$0x11]
      %v3056 = vld [vmem:[%s2812 + $0xa0] sm:$0x11]
      %v3057 = vld [vmem:[%s2812 + $0xb8] sm:$0x11]
      %v3058 = vld [vmem:[%s2812 + $0xd0] sm:$0x11]
      %v3059 = vld [vmem:[%s2812 + $0xe8] sm:$0x11]
      %v3060 = vld [vmem:[%s2812 + $0x100] sm:$0x11]
      %v3061 = vld [vmem:[%s2812 + $0x118] sm:$0x11]
      %v3062 = vld [vmem:[%s2812 + $0x130] sm:$0x11]
      %v3063 = vld [vmem:[%s2812 + $0x148] sm:$0x11]
      %v3064 = vld [vmem:[%s2812 + $0x160] sm:$0x11]
      %v3065 = vld [vmem:[%s2812 + $0x178] sm:$0x11]
      %v3066 = vunpack.c.l.bf16 %v3050
      %v3067 = vunpack.c.h.bf16 %v3050
      %v3068 = vunpack.c.l.bf16 %v3051
      %v3069 = vunpack.c.h.bf16 %v3051
      %v3070 = vunpack.c.l.bf16 %v3052
      %v3071 = vunpack.c.h.bf16 %v3052
      %v3072 = vunpack.c.l.bf16 %v3053
      %v3073 = vunpack.c.h.bf16 %v3053
      %v3074 = vunpack.c.l.bf16 %v3054
      %v3075 = vunpack.c.h.bf16 %v3054
      %v3076 = vunpack.c.l.bf16 %v3055
      %v3077 = vunpack.c.h.bf16 %v3055
      %v3078 = vunpack.c.l.bf16 %v3056
      %v3079 = vunpack.c.h.bf16 %v3056
      %v3080 = vunpack.c.l.bf16 %v3057
      %v3081 = vunpack.c.h.bf16 %v3057
      %v3082 = vunpack.c.l.bf16 %v3058
      %v3083 = vunpack.c.h.bf16 %v3058
      %v3084 = vunpack.c.l.bf16 %v3059
      %v3085 = vunpack.c.h.bf16 %v3059
      %v3086 = vunpack.c.l.bf16 %v3060
      %v3087 = vunpack.c.h.bf16 %v3060
      %v3088 = vunpack.c.l.bf16 %v3061
      %v3089 = vunpack.c.h.bf16 %v3061
      %v3090 = vunpack.c.l.bf16 %v3062
      %v3091 = vunpack.c.h.bf16 %v3062
      %v3092 = vunpack.c.l.bf16 %v3063
      %v3093 = vunpack.c.h.bf16 %v3063
      %v3094 = vunpack.c.l.bf16 %v3064
      %v3095 = vunpack.c.h.bf16 %v3064
      %v3096 = vunpack.c.l.bf16 %v3065
      %v3097 = vunpack.c.h.bf16 %v3065
      %s3098 = scalar_lea.vmem %s1, 7
      %v3099 = vld [vmem:[%s3098] ss:$8 sm:$0x3]
      %v3101 = vlaneseq
      %v3102 = vshrl.u32 %v3101, 7
      %v3103 = vsub.s32 0, %v3102
      %v3104 = vrot.slane %v3099, %v3103
      %v3105 = vlaneseq
      %v3106 = vshrl.u32 %v3105, 7
      %v3107 = vsub.s32 1, %v3106
      %v3108 = vrot.slane %v3099, %v3107
      %v3111 = vmul.f32 %v2845, %v3104
      %v3112 = vmul.f32 %v2846, %v3108
      %v3113 = vmul.f32 %v2847, %v3104
      %v3114 = vmul.f32 %v2848, %v3108
      %v3115 = vmul.f32 %v3066, %v3104
      %v3116 = vmul.f32 %v3067, %v3108
      %v3117 = vmul.f32 %v2849, %v3104
      %v3118 = vmul.f32 %v2850, %v3108
      %v3119 = vmul.f32 %v2851, %v3104
      %v3120 = vmul.f32 %v2852, %v3108
      %v3121 = vmul.f32 %v3068, %v3104
      %v3122 = vmul.f32 %v3069, %v3108
      %v3123 = vmul.f32 %v2853, %v3104
      %v3124 = vmul.f32 %v2854, %v3108
      %v3125 = vmul.f32 %v2855, %v3104
      %v3126 = vmul.f32 %v2856, %v3108
      %v3127 = vmul.f32 %v3070, %v3104
      %v3128 = vmul.f32 %v3071, %v3108
      %v3129 = vmul.f32 %v2857, %v3104
      %v3130 = vmul.f32 %v2858, %v3108
      %v3131 = vmul.f32 %v2859, %v3104
      %v3132 = vmul.f32 %v2860, %v3108
      %v3133 = vmul.f32 %v3072, %v3104
      %v3134 = vmul.f32 %v3073, %v3108
      %v3135 = vmul.f32 %v2861, %v3104
      %v3136 = vmul.f32 %v2862, %v3108
      %v3137 = vmul.f32 %v2863, %v3104
      %v3138 = vmul.f32 %v2864, %v3108
      %v3139 = vmul.f32 %v3074, %v3104
      %v3140 = vmul.f32 %v3075, %v3108
      %v3141 = vmul.f32 %v2865, %v3104
      %v3142 = vmul.f32 %v2866, %v3108
      %v3143 = vmul.f32 %v2867, %v3104
      %v3144 = vmul.f32 %v2868, %v3108
      %v3145 = vmul.f32 %v3076, %v3104
      %v3146 = vmul.f32 %v3077, %v3108
      %v3147 = vmul.f32 %v2869, %v3104
      %v3148 = vmul.f32 %v2870, %v3108
      %v3149 = vmul.f32 %v2871, %v3104
      %v3150 = vmul.f32 %v2872, %v3108
      %v3151 = vmul.f32 %v3078, %v3104
      %v3152 = vmul.f32 %v3079, %v3108
      %v3153 = vmul.f32 %v2873, %v3104
      %v3154 = vmul.f32 %v2874, %v3108
      %v3155 = vmul.f32 %v2875, %v3104
      %v3156 = vmul.f32 %v2876, %v3108
      %v3157 = vmul.f32 %v3080, %v3104
      %v3158 = vmul.f32 %v3081, %v3108
      %v3159 = vmul.f32 %v2877, %v3104
      %v3160 = vmul.f32 %v2878, %v3108
      %v3161 = vmul.f32 %v2879, %v3104
      %v3162 = vmul.f32 %v2880, %v3108
      %v3163 = vmul.f32 %v3082, %v3104
      %v3164 = vmul.f32 %v3083, %v3108
      %v3165 = vmul.f32 %v2881, %v3104
      %v3166 = vmul.f32 %v2882, %v3108
      %v3167 = vmul.f32 %v2883, %v3104
      %v3168 = vmul.f32 %v2884, %v3108
      %v3169 = vmul.f32 %v3084, %v3104
      %v3170 = vmul.f32 %v3085, %v3108
      %v3171 = vmul.f32 %v2885, %v3104
      %v3172 = vmul.f32 %v2886, %v3108
      %v3173 = vmul.f32 %v2887, %v3104
      %v3174 = vmul.f32 %v2888, %v3108
      %v3175 = vmul.f32 %v3086, %v3104
      %v3176 = vmul.f32 %v3087, %v3108
      %v3177 = vmul.f32 %v2889, %v3104
      %v3178 = vmul.f32 %v2890, %v3108
      %v3179 = vmul.f32 %v2891, %v3104
      %v3180 = vmul.f32 %v2892, %v3108
      %v3181 = vmul.f32 %v3088, %v3104
      %v3182 = vmul.f32 %v3089, %v3108
      %v3183 = vmul.f32 %v2893, %v3104
      %v3184 = vmul.f32 %v2894, %v3108
      %v3185 = vmul.f32 %v2895, %v3104
      %v3186 = vmul.f32 %v2896, %v3108
      %v3187 = vmul.f32 %v3090, %v3104
      %v3188 = vmul.f32 %v3091, %v3108
      %v3189 = vmul.f32 %v2897, %v3104
      %v3190 = vmul.f32 %v2898, %v3108
      %v3191 = vmul.f32 %v2899, %v3104
      %v3192 = vmul.f32 %v2900, %v3108
      %v3193 = vmul.f32 %v3092, %v3104
      %v3194 = vmul.f32 %v3093, %v3108
      %v3195 = vmul.f32 %v2901, %v3104
      %v3196 = vmul.f32 %v2902, %v3108
      %v3197 = vmul.f32 %v2903, %v3104
      %v3198 = vmul.f32 %v2904, %v3108
      %v3199 = vmul.f32 %v3094, %v3104
      %v3200 = vmul.f32 %v3095, %v3108
      %v3201 = vmul.f32 %v2905, %v3104
      %v3202 = vmul.f32 %v2906, %v3108
      %v3203 = vmul.f32 %v2907, %v3104
      %v3204 = vmul.f32 %v2908, %v3108
      %v3205 = vmul.f32 %v3096, %v3104
      %v3206 = vmul.f32 %v3097, %v3108
      %v3303 = vrot.slane %v3111, 1
      %v3304 = vrot.slane %v3113, 1
      %v3305 = vsel %vm661, %v3303, %v3304
      %v3306 = vrot.slane %v3112, 1
      %v3307 = vrot.slane %v3114, 1
      %v3308 = vsel %vm661, %v3306, %v3307
      %v3309 = vrot.slane %v3115, 1
      %v3310 = vsel %vm661, %v3304, %v3309
      %v3311 = vrot.slane %v3116, 1
      %v3312 = vsel %vm661, %v3307, %v3311
      %v3313 = vrot.slane %v3117, 1
      %v3314 = vrot.slane %v3119, 1
      %v3315 = vsel %vm661, %v3313, %v3314
      %v3316 = vrot.slane %v3118, 1
      %v3317 = vrot.slane %v3120, 1
      %v3318 = vsel %vm661, %v3316, %v3317
      %v3319 = vrot.slane %v3121, 1
      %v3320 = vsel %vm661, %v3314, %v3319
      %v3321 = vrot.slane %v3122, 1
      %v3322 = vsel %vm661, %v3317, %v3321
      %v3323 = vrot.slane %v3123, 1
      %v3324 = vrot.slane %v3125, 1
      %v3325 = vsel %vm661, %v3323, %v3324
      %v3326 = vrot.slane %v3124, 1
      %v3327 = vrot.slane %v3126, 1
      %v3328 = vsel %vm661, %v3326, %v3327
      %v3329 = vrot.slane %v3127, 1
      %v3330 = vsel %vm661, %v3324, %v3329
      %v3331 = vrot.slane %v3128, 1
      %v3332 = vsel %vm661, %v3327, %v3331
      %v3333 = vrot.slane %v3129, 1
      %v3334 = vrot.slane %v3131, 1
      %v3335 = vsel %vm661, %v3333, %v3334
      %v3336 = vrot.slane %v3130, 1
      %v3337 = vrot.slane %v3132, 1
      %v3338 = vsel %vm661, %v3336, %v3337
      %v3339 = vrot.slane %v3133, 1
      %v3340 = vsel %vm661, %v3334, %v3339
      %v3341 = vrot.slane %v3134, 1
      %v3342 = vsel %vm661, %v3337, %v3341
      %v3343 = vrot.slane %v3135, 1
      %v3344 = vrot.slane %v3137, 1
      %v3345 = vsel %vm661, %v3343, %v3344
      %v3346 = vrot.slane %v3136, 1
      %v3347 = vrot.slane %v3138, 1
      %v3348 = vsel %vm661, %v3346, %v3347
      %v3349 = vrot.slane %v3139, 1
      %v3350 = vsel %vm661, %v3344, %v3349
      %v3351 = vrot.slane %v3140, 1
      %v3352 = vsel %vm661, %v3347, %v3351
      %v3353 = vrot.slane %v3141, 1
      %v3354 = vrot.slane %v3143, 1
      %v3355 = vsel %vm661, %v3353, %v3354
      %v3356 = vrot.slane %v3142, 1
      %v3357 = vrot.slane %v3144, 1
      %v3358 = vsel %vm661, %v3356, %v3357
      %v3359 = vrot.slane %v3145, 1
      %v3360 = vsel %vm661, %v3354, %v3359
      %v3361 = vrot.slane %v3146, 1
      %v3362 = vsel %vm661, %v3357, %v3361
      %v3363 = vrot.slane %v3147, 1
      %v3364 = vrot.slane %v3149, 1
      %v3365 = vsel %vm661, %v3363, %v3364
      %v3366 = vrot.slane %v3148, 1
      %v3367 = vrot.slane %v3150, 1
      %v3368 = vsel %vm661, %v3366, %v3367
      %v3369 = vrot.slane %v3151, 1
      %v3370 = vsel %vm661, %v3364, %v3369
      %v3371 = vrot.slane %v3152, 1
      %v3372 = vsel %vm661, %v3367, %v3371
      %v3373 = vrot.slane %v3153, 1
      %v3374 = vrot.slane %v3155, 1
      %v3375 = vsel %vm661, %v3373, %v3374
      %v3376 = vrot.slane %v3154, 1
      %v3377 = vrot.slane %v3156, 1
      %v3378 = vsel %vm661, %v3376, %v3377
      %v3379 = vrot.slane %v3157, 1
      %v3380 = vsel %vm661, %v3374, %v3379
      %v3381 = vrot.slane %v3158, 1
      %v3382 = vsel %vm661, %v3377, %v3381
      %v3383 = vrot.slane %v3159, 1
      %v3384 = vrot.slane %v3161, 1
      %v3385 = vsel %vm661, %v3383, %v3384
      %v3386 = vrot.slane %v3160, 1
      %v3387 = vrot.slane %v3162, 1
      %v3388 = vsel %vm661, %v3386, %v3387
      %v3389 = vrot.slane %v3163, 1
      %v3390 = vsel %vm661, %v3384, %v3389
      %v3391 = vrot.slane %v3164, 1
      %v3392 = vsel %vm661, %v3387, %v3391
      %v3393 = vrot.slane %v3165, 1
      %v3394 = vrot.slane %v3167, 1
      %v3395 = vsel %vm661, %v3393, %v3394
      %v3396 = vrot.slane %v3166, 1
      %v3397 = vrot.slane %v3168, 1
      %v3398 = vsel %vm661, %v3396, %v3397
      %v3399 = vrot.slane %v3169, 1
      %v3400 = vsel %vm661, %v3394, %v3399
      %v3401 = vrot.slane %v3170, 1
      %v3402 = vsel %vm661, %v3397, %v3401
      %v3403 = vrot.slane %v3171, 1
      %v3404 = vrot.slane %v3173, 1
      %v3405 = vsel %vm661, %v3403, %v3404
      %v3406 = vrot.slane %v3172, 1
      %v3407 = vrot.slane %v3174, 1
      %v3408 = vsel %vm661, %v3406, %v3407
      %v3409 = vrot.slane %v3175, 1
      %v3410 = vsel %vm661, %v3404, %v3409
      %v3411 = vrot.slane %v3176, 1
      %v3412 = vsel %vm661, %v3407, %v3411
      %v3413 = vrot.slane %v3177, 1
      %v3414 = vrot.slane %v3179, 1
      %v3415 = vsel %vm661, %v3413, %v3414
      %v3416 = vrot.slane %v3178, 1
      %v3417 = vrot.slane %v3180, 1
      %v3418 = vsel %vm661, %v3416, %v3417
      %v3419 = vrot.slane %v3181, 1
      %v3420 = vsel %vm661, %v3414, %v3419
      %v3421 = vrot.slane %v3182, 1
      %v3422 = vsel %vm661, %v3417, %v3421
      %v3423 = vrot.slane %v3183, 1
      %v3424 = vrot.slane %v3185, 1
      %v3425 = vsel %vm661, %v3423, %v3424
      %v3426 = vrot.slane %v3184, 1
      %v3427 = vrot.slane %v3186, 1
      %v3428 = vsel %vm661, %v3426, %v3427
      %v3429 = vrot.slane %v3187, 1
      %v3430 = vsel %vm661, %v3424, %v3429
      %v3431 = vrot.slane %v3188, 1
      %v3432 = vsel %vm661, %v3427, %v3431
      %v3433 = vrot.slane %v3189, 1
      %v3434 = vrot.slane %v3191, 1
      %v3435 = vsel %vm661, %v3433, %v3434
      %v3436 = vrot.slane %v3190, 1
      %v3437 = vrot.slane %v3192, 1
      %v3438 = vsel %vm661, %v3436, %v3437
      %v3439 = vrot.slane %v3193, 1
      %v3440 = vsel %vm661, %v3434, %v3439
      %v3441 = vrot.slane %v3194, 1
      %v3442 = vsel %vm661, %v3437, %v3441
      %v3443 = vrot.slane %v3195, 1
      %v3444 = vrot.slane %v3197, 1
      %v3445 = vsel %vm661, %v3443, %v3444
      %v3446 = vrot.slane %v3196, 1
      %v3447 = vrot.slane %v3198, 1
      %v3448 = vsel %vm661, %v3446, %v3447
      %v3449 = vrot.slane %v3199, 1
      %v3450 = vsel %vm661, %v3444, %v3449
      %v3451 = vrot.slane %v3200, 1
      %v3452 = vsel %vm661, %v3447, %v3451
      %v3453 = vrot.slane %v3201, 1
      %v3454 = vrot.slane %v3203, 1
      %v3455 = vsel %vm661, %v3453, %v3454
      %v3456 = vrot.slane %v3202, 1
      %v3457 = vrot.slane %v3204, 1
      %v3458 = vsel %vm661, %v3456, %v3457
      %v3459 = vrot.slane %v3205, 1
      %v3460 = vsel %vm661, %v3454, %v3459
      %v3461 = vrot.slane %v3206, 1
      %v3462 = vsel %vm661, %v3457, %v3461
      %v3527 = vadd.f32 %v2986, %v3305
      %v3528 = vadd.f32 %v2987, %v3308
      %v3529 = vadd.f32 %v2988, %v3310
      %v3530 = vadd.f32 %v2989, %v3312
      %v3531 = vadd.f32 %v2990, %v3315
      %v3532 = vadd.f32 %v2991, %v3318
      %v3533 = vadd.f32 %v2992, %v3320
      %v3534 = vadd.f32 %v2993, %v3322
      %v3535 = vadd.f32 %v2994, %v3325
      %v3536 = vadd.f32 %v2995, %v3328
      %v3537 = vadd.f32 %v2996, %v3330
      %v3538 = vadd.f32 %v2997, %v3332
      %v3539 = vadd.f32 %v2998, %v3335
      %v3540 = vadd.f32 %v2999, %v3338
      %v3541 = vadd.f32 %v3000, %v3340
      %v3542 = vadd.f32 %v3001, %v3342
      %v3543 = vadd.f32 %v3002, %v3345
      %v3544 = vadd.f32 %v3003, %v3348
      %v3545 = vadd.f32 %v3004, %v3350
      %v3546 = vadd.f32 %v3005, %v3352
      %v3547 = vadd.f32 %v3006, %v3355
      %v3548 = vadd.f32 %v3007, %v3358
      %v3549 = vadd.f32 %v3008, %v3360
      %v3550 = vadd.f32 %v3009, %v3362
      %v3551 = vadd.f32 %v3010, %v3365
      %v3552 = vadd.f32 %v3011, %v3368
      %v3553 = vadd.f32 %v3012, %v3370
      %v3554 = vadd.f32 %v3013, %v3372
      %v3555 = vadd.f32 %v3014, %v3375
      %v3556 = vadd.f32 %v3015, %v3378
      %v3557 = vadd.f32 %v3016, %v3380
      %v3558 = vadd.f32 %v3017, %v3382
      %v3559 = vadd.f32 %v3018, %v3385
      %v3560 = vadd.f32 %v3019, %v3388
      %v3561 = vadd.f32 %v3020, %v3390
      %v3562 = vadd.f32 %v3021, %v3392
      %v3563 = vadd.f32 %v3022, %v3395
      %v3564 = vadd.f32 %v3023, %v3398
      %v3565 = vadd.f32 %v3024, %v3400
      %v3566 = vadd.f32 %v3025, %v3402
      %v3567 = vadd.f32 %v3026, %v3405
      %v3568 = vadd.f32 %v3027, %v3408
      %v3569 = vadd.f32 %v3028, %v3410
      %v3570 = vadd.f32 %v3029, %v3412
      %v3571 = vadd.f32 %v3030, %v3415
      %v3572 = vadd.f32 %v3031, %v3418
      %v3573 = vadd.f32 %v3032, %v3420
      %v3574 = vadd.f32 %v3033, %v3422
      %v3575 = vadd.f32 %v3034, %v3425
      %v3576 = vadd.f32 %v3035, %v3428
      %v3577 = vadd.f32 %v3036, %v3430
      %v3578 = vadd.f32 %v3037, %v3432
      %v3579 = vadd.f32 %v3038, %v3435
      %v3580 = vadd.f32 %v3039, %v3438
      %v3581 = vadd.f32 %v3040, %v3440
      %v3582 = vadd.f32 %v3041, %v3442
      %v3583 = vadd.f32 %v3042, %v3445
      %v3584 = vadd.f32 %v3043, %v3448
      %v3585 = vadd.f32 %v3044, %v3450
      %v3586 = vadd.f32 %v3045, %v3452
      %v3587 = vadd.f32 %v3046, %v3455
      %v3588 = vadd.f32 %v3047, %v3458
      %v3589 = vadd.f32 %v3048, %v3460
      %v3590 = vadd.f32 %v3049, %v3462
      %v3591 = vld [vmem:[%s2812] sm:$0xee]
      %v3592 = vld [vmem:[%s2812 + $0x18] sm:$0xee]
      %v3593 = vld [vmem:[%s2812 + $0x30] sm:$0xee]
      %v3594 = vld [vmem:[%s2812 + $0x48] sm:$0xee]
      %v3595 = vld [vmem:[%s2812 + $0x60] sm:$0xee]
      %v3596 = vld [vmem:[%s2812 + $0x78] sm:$0xee]
      %v3597 = vld [vmem:[%s2812 + $0x90] sm:$0xee]
      %v3598 = vld [vmem:[%s2812 + $0xa8] sm:$0xee]
      %v3599 = vld [vmem:[%s2812 + $0xc0] sm:$0xee]
      %v3600 = vld [vmem:[%s2812 + $0xd8] sm:$0xee]
      %v3601 = vld [vmem:[%s2812 + $0xf0] sm:$0xee]
      %v3602 = vld [vmem:[%s2812 + $0x108] sm:$0xee]
      %v3603 = vld [vmem:[%s2812 + $0x120] sm:$0xee]
      %v3604 = vld [vmem:[%s2812 + $0x138] sm:$0xee]
      %v3605 = vld [vmem:[%s2812 + $0x150] sm:$0xee]
      %v3606 = vld [vmem:[%s2812 + $0x168] sm:$0xee]
      %v3607 = vunpack.c.l.bf16 %v3591
      %v3608 = vunpack.c.h.bf16 %v3591
      %v3609 = vunpack.c.l.bf16 %v3592
      %v3610 = vunpack.c.h.bf16 %v3592
      %v3611 = vunpack.c.l.bf16 %v3593
      %v3612 = vunpack.c.h.bf16 %v3593
      %v3613 = vunpack.c.l.bf16 %v3594
      %v3614 = vunpack.c.h.bf16 %v3594
      %v3615 = vunpack.c.l.bf16 %v3595
      %v3616 = vunpack.c.h.bf16 %v3595
      %v3617 = vunpack.c.l.bf16 %v3596
      %v3618 = vunpack.c.h.bf16 %v3596
      %v3619 = vunpack.c.l.bf16 %v3597
      %v3620 = vunpack.c.h.bf16 %v3597
      %v3621 = vunpack.c.l.bf16 %v3598
      %v3622 = vunpack.c.h.bf16 %v3598
      %v3623 = vunpack.c.l.bf16 %v3599
      %v3624 = vunpack.c.h.bf16 %v3599
      %v3625 = vunpack.c.l.bf16 %v3600
      %v3626 = vunpack.c.h.bf16 %v3600
      %v3627 = vunpack.c.l.bf16 %v3601
      %v3628 = vunpack.c.h.bf16 %v3601
      %v3629 = vunpack.c.l.bf16 %v3602
      %v3630 = vunpack.c.h.bf16 %v3602
      %v3631 = vunpack.c.l.bf16 %v3603
      %v3632 = vunpack.c.h.bf16 %v3603
      %v3633 = vunpack.c.l.bf16 %v3604
      %v3634 = vunpack.c.h.bf16 %v3604
      %v3635 = vunpack.c.l.bf16 %v3605
      %v3636 = vunpack.c.h.bf16 %v3605
      %v3637 = vunpack.c.l.bf16 %v3606
      %v3638 = vunpack.c.h.bf16 %v3606
      %s3639 = scalar_lea.vmem %s1, 16
      %v3640 = vld [vmem:[%s3639] ss:$8 sm:$0x3]
      %v3642 = vlaneseq
      %v3643 = vshrl.u32 %v3642, 7
      %v3644 = vsub.s32 0, %v3643
      %v3645 = vrot.slane %v3640, %v3644
      %v3646 = vlaneseq
      %v3647 = vshrl.u32 %v3646, 7
      %v3648 = vsub.s32 1, %v3647
      %v3649 = vrot.slane %v3640, %v3648
      %v3652 = vmul.f32 %v3607, %v3645
      %v3653 = vmul.f32 %v3608, %v3649
      %v3654 = vmul.f32 %v2847, %v3645
      %v3655 = vmul.f32 %v2848, %v3649
      %v3656 = vmul.f32 %v3066, %v3645
      %v3657 = vmul.f32 %v3067, %v3649
      %v3658 = vmul.f32 %v3609, %v3645
      %v3659 = vmul.f32 %v3610, %v3649
      %v3660 = vmul.f32 %v2851, %v3645
      %v3661 = vmul.f32 %v2852, %v3649
      %v3662 = vmul.f32 %v3068, %v3645
      %v3663 = vmul.f32 %v3069, %v3649
      %v3664 = vmul.f32 %v3611, %v3645
      %v3665 = vmul.f32 %v3612, %v3649
      %v3666 = vmul.f32 %v2855, %v3645
      %v3667 = vmul.f32 %v2856, %v3649
      %v3668 = vmul.f32 %v3070, %v3645
      %v3669 = vmul.f32 %v3071, %v3649
      %v3670 = vmul.f32 %v3613, %v3645
      %v3671 = vmul.f32 %v3614, %v3649
      %v3672 = vmul.f32 %v2859, %v3645
      %v3673 = vmul.f32 %v2860, %v3649
      %v3674 = vmul.f32 %v3072, %v3645
      %v3675 = vmul.f32 %v3073, %v3649
      %v3676 = vmul.f32 %v3615, %v3645
      %v3677 = vmul.f32 %v3616, %v3649
      %v3678 = vmul.f32 %v2863, %v3645
      %v3679 = vmul.f32 %v2864, %v3649
      %v3680 = vmul.f32 %v3074, %v3645
      %v3681 = vmul.f32 %v3075, %v3649
      %v3682 = vmul.f32 %v3617, %v3645
      %v3683 = vmul.f32 %v3618, %v3649
      %v3684 = vmul.f32 %v2867, %v3645
      %v3685 = vmul.f32 %v2868, %v3649
      %v3686 = vmul.f32 %v3076, %v3645
      %v3687 = vmul.f32 %v3077, %v3649
      %v3688 = vmul.f32 %v3619, %v3645
      %v3689 = vmul.f32 %v3620, %v3649
      %v3690 = vmul.f32 %v2871, %v3645
      %v3691 = vmul.f32 %v2872, %v3649
      %v3692 = vmul.f32 %v3078, %v3645
      %v3693 = vmul.f32 %v3079, %v3649
      %v3694 = vmul.f32 %v3621, %v3645
      %v3695 = vmul.f32 %v3622, %v3649
      %v3696 = vmul.f32 %v2875, %v3645
      %v3697 = vmul.f32 %v2876, %v3649
      %v3698 = vmul.f32 %v3080, %v3645
      %v3699 = vmul.f32 %v3081, %v3649
      %v3700 = vmul.f32 %v3623, %v3645
      %v3701 = vmul.f32 %v3624, %v3649
      %v3702 = vmul.f32 %v2879, %v3645
      %v3703 = vmul.f32 %v2880, %v3649
      %v3704 = vmul.f32 %v3082, %v3645
      %v3705 = vmul.f32 %v3083, %v3649
      %v3706 = vmul.f32 %v3625, %v3645
      %v3707 = vmul.f32 %v3626, %v3649
      %v3708 = vmul.f32 %v2883, %v3645
      %v3709 = vmul.f32 %v2884, %v3649
      %v3710 = vmul.f32 %v3084, %v3645
      %v3711 = vmul.f32 %v3085, %v3649
      %v3712 = vmul.f32 %v3627, %v3645
      %v3713 = vmul.f32 %v3628, %v3649
      %v3714 = vmul.f32 %v2887, %v3645
      %v3715 = vmul.f32 %v2888, %v3649
      %v3716 = vmul.f32 %v3086, %v3645
      %v3717 = vmul.f32 %v3087, %v3649
      %v3718 = vmul.f32 %v3629, %v3645
      %v3719 = vmul.f32 %v3630, %v3649
      %v3720 = vmul.f32 %v2891, %v3645
      %v3721 = vmul.f32 %v2892, %v3649
      %v3722 = vmul.f32 %v3088, %v3645
      %v3723 = vmul.f32 %v3089, %v3649
      %v3724 = vmul.f32 %v3631, %v3645
      %v3725 = vmul.f32 %v3632, %v3649
      %v3726 = vmul.f32 %v2895, %v3645
      %v3727 = vmul.f32 %v2896, %v3649
      %v3728 = vmul.f32 %v3090, %v3645
      %v3729 = vmul.f32 %v3091, %v3649
      %v3730 = vmul.f32 %v3633, %v3645
      %v3731 = vmul.f32 %v3634, %v3649
      %v3732 = vmul.f32 %v2899, %v3645
      %v3733 = vmul.f32 %v2900, %v3649
      %v3734 = vmul.f32 %v3092, %v3645
      %v3735 = vmul.f32 %v3093, %v3649
      %v3736 = vmul.f32 %v3635, %v3645
      %v3737 = vmul.f32 %v3636, %v3649
      %v3738 = vmul.f32 %v2903, %v3645
      %v3739 = vmul.f32 %v2904, %v3649
      %v3740 = vmul.f32 %v3094, %v3645
      %v3741 = vmul.f32 %v3095, %v3649
      %v3742 = vmul.f32 %v3637, %v3645
      %v3743 = vmul.f32 %v3638, %v3649
      %v3744 = vmul.f32 %v2907, %v3645
      %v3745 = vmul.f32 %v2908, %v3649
      %v3746 = vmul.f32 %v3096, %v3645
      %v3747 = vmul.f32 %v3097, %v3649
      %v3844 = vrot.slane %v3652, 2
      %v3845 = vrot.slane %v3654, 2
      %v3846 = vsel %vm1203, %v3844, %v3845
      %v3847 = vrot.slane %v3653, 2
      %v3848 = vrot.slane %v3655, 2
      %v3849 = vsel %vm1203, %v3847, %v3848
      %v3850 = vrot.slane %v3656, 2
      %v3851 = vsel %vm1203, %v3845, %v3850
      %v3852 = vrot.slane %v3657, 2
      %v3853 = vsel %vm1203, %v3848, %v3852
      %v3854 = vrot.slane %v3658, 2
      %v3855 = vrot.slane %v3660, 2
      %v3856 = vsel %vm1203, %v3854, %v3855
      %v3857 = vrot.slane %v3659, 2
      %v3858 = vrot.slane %v3661, 2
      %v3859 = vsel %vm1203, %v3857, %v3858
      %v3860 = vrot.slane %v3662, 2
      %v3861 = vsel %vm1203, %v3855, %v3860
      %v3862 = vrot.slane %v3663, 2
      %v3863 = vsel %vm1203, %v3858, %v3862
      %v3864 = vrot.slane %v3664, 2
      %v3865 = vrot.slane %v3666, 2
      %v3866 = vsel %vm1203, %v3864, %v3865
      %v3867 = vrot.slane %v3665, 2
      %v3868 = vrot.slane %v3667, 2
      %v3869 = vsel %vm1203, %v3867, %v3868
      %v3870 = vrot.slane %v3668, 2
      %v3871 = vsel %vm1203, %v3865, %v3870
      %v3872 = vrot.slane %v3669, 2
      %v3873 = vsel %vm1203, %v3868, %v3872
      %v3874 = vrot.slane %v3670, 2
      %v3875 = vrot.slane %v3672, 2
      %v3876 = vsel %vm1203, %v3874, %v3875
      %v3877 = vrot.slane %v3671, 2
      %v3878 = vrot.slane %v3673, 2
      %v3879 = vsel %vm1203, %v3877, %v3878
      %v3880 = vrot.slane %v3674, 2
      %v3881 = vsel %vm1203, %v3875, %v3880
      %v3882 = vrot.slane %v3675, 2
      %v3883 = vsel %vm1203, %v3878, %v3882
      %v3884 = vrot.slane %v3676, 2
      %v3885 = vrot.slane %v3678, 2
      %v3886 = vsel %vm1203, %v3884, %v3885
      %v3887 = vrot.slane %v3677, 2
      %v3888 = vrot.slane %v3679, 2
      %v3889 = vsel %vm1203, %v3887, %v3888
      %v3890 = vrot.slane %v3680, 2
      %v3891 = vsel %vm1203, %v3885, %v3890
      %v3892 = vrot.slane %v3681, 2
      %v3893 = vsel %vm1203, %v3888, %v3892
      %v3894 = vrot.slane %v3682, 2
      %v3895 = vrot.slane %v3684, 2
      %v3896 = vsel %vm1203, %v3894, %v3895
      %v3897 = vrot.slane %v3683, 2
      %v3898 = vrot.slane %v3685, 2
      %v3899 = vsel %vm1203, %v3897, %v3898
      %v3900 = vrot.slane %v3686, 2
      %v3901 = vsel %vm1203, %v3895, %v3900
      %v3902 = vrot.slane %v3687, 2
      %v3903 = vsel %vm1203, %v3898, %v3902
      %v3904 = vrot.slane %v3688, 2
      %v3905 = vrot.slane %v3690, 2
      %v3906 = vsel %vm1203, %v3904, %v3905
      %v3907 = vrot.slane %v3689, 2
      %v3908 = vrot.slane %v3691, 2
      %v3909 = vsel %vm1203, %v3907, %v3908
      %v3910 = vrot.slane %v3692, 2
      %v3911 = vsel %vm1203, %v3905, %v3910
      %v3912 = vrot.slane %v3693, 2
      %v3913 = vsel %vm1203, %v3908, %v3912
      %v3914 = vrot.slane %v3694, 2
      %v3915 = vrot.slane %v3696, 2
      %v3916 = vsel %vm1203, %v3914, %v3915
      %v3917 = vrot.slane %v3695, 2
      %v3918 = vrot.slane %v3697, 2
      %v3919 = vsel %vm1203, %v3917, %v3918
      %v3920 = vrot.slane %v3698, 2
      %v3921 = vsel %vm1203, %v3915, %v3920
      %v3922 = vrot.slane %v3699, 2
      %v3923 = vsel %vm1203, %v3918, %v3922
      %v3924 = vrot.slane %v3700, 2
      %v3925 = vrot.slane %v3702, 2
      %v3926 = vsel %vm1203, %v3924, %v3925
      %v3927 = vrot.slane %v3701, 2
      %v3928 = vrot.slane %v3703, 2
      %v3929 = vsel %vm1203, %v3927, %v3928
      %v3930 = vrot.slane %v3704, 2
      %v3931 = vsel %vm1203, %v3925, %v3930
      %v3932 = vrot.slane %v3705, 2
      %v3933 = vsel %vm1203, %v3928, %v3932
      %v3934 = vrot.slane %v3706, 2
      %v3935 = vrot.slane %v3708, 2
      %v3936 = vsel %vm1203, %v3934, %v3935
      %v3937 = vrot.slane %v3707, 2
      %v3938 = vrot.slane %v3709, 2
      %v3939 = vsel %vm1203, %v3937, %v3938
      %v3940 = vrot.slane %v3710, 2
      %v3941 = vsel %vm1203, %v3935, %v3940
      %v3942 = vrot.slane %v3711, 2
      %v3943 = vsel %vm1203, %v3938, %v3942
      %v3944 = vrot.slane %v3712, 2
      %v3945 = vrot.slane %v3714, 2
      %v3946 = vsel %vm1203, %v3944, %v3945
      %v3947 = vrot.slane %v3713, 2
      %v3948 = vrot.slane %v3715, 2
      %v3949 = vsel %vm1203, %v3947, %v3948
      %v3950 = vrot.slane %v3716, 2
      %v3951 = vsel %vm1203, %v3945, %v3950
      %v3952 = vrot.slane %v3717, 2
      %v3953 = vsel %vm1203, %v3948, %v3952
      %v3954 = vrot.slane %v3718, 2
      %v3955 = vrot.slane %v3720, 2
      %v3956 = vsel %vm1203, %v3954, %v3955
      %v3957 = vrot.slane %v3719, 2
      %v3958 = vrot.slane %v3721, 2
      %v3959 = vsel %vm1203, %v3957, %v3958
      %v3960 = vrot.slane %v3722, 2
      %v3961 = vsel %vm1203, %v3955, %v3960
      %v3962 = vrot.slane %v3723, 2
      %v3963 = vsel %vm1203, %v3958, %v3962
      %v3964 = vrot.slane %v3724, 2
      %v3965 = vrot.slane %v3726, 2
      %v3966 = vsel %vm1203, %v3964, %v3965
      %v3967 = vrot.slane %v3725, 2
      %v3968 = vrot.slane %v3727, 2
      %v3969 = vsel %vm1203, %v3967, %v3968
      %v3970 = vrot.slane %v3728, 2
      %v3971 = vsel %vm1203, %v3965, %v3970
      %v3972 = vrot.slane %v3729, 2
      %v3973 = vsel %vm1203, %v3968, %v3972
      %v3974 = vrot.slane %v3730, 2
      %v3975 = vrot.slane %v3732, 2
      %v3976 = vsel %vm1203, %v3974, %v3975
      %v3977 = vrot.slane %v3731, 2
      %v3978 = vrot.slane %v3733, 2
      %v3979 = vsel %vm1203, %v3977, %v3978
      %v3980 = vrot.slane %v3734, 2
      %v3981 = vsel %vm1203, %v3975, %v3980
      %v3982 = vrot.slane %v3735, 2
      %v3983 = vsel %vm1203, %v3978, %v3982
      %v3984 = vrot.slane %v3736, 2
      %v3985 = vrot.slane %v3738, 2
      %v3986 = vsel %vm1203, %v3984, %v3985
      %v3987 = vrot.slane %v3737, 2
      %v3988 = vrot.slane %v3739, 2
      %v3989 = vsel %vm1203, %v3987, %v3988
      %v3990 = vrot.slane %v3740, 2
      %v3991 = vsel %vm1203, %v3985, %v3990
      %v3992 = vrot.slane %v3741, 2
      %v3993 = vsel %vm1203, %v3988, %v3992
      %v3994 = vrot.slane %v3742, 2
      %v3995 = vrot.slane %v3744, 2
      %v3996 = vsel %vm1203, %v3994, %v3995
      %v3997 = vrot.slane %v3743, 2
      %v3998 = vrot.slane %v3745, 2
      %v3999 = vsel %vm1203, %v3997, %v3998
      %v4000 = vrot.slane %v3746, 2
      %v4001 = vsel %vm1203, %v3995, %v4000
      %v4002 = vrot.slane %v3747, 2
      %v4003 = vsel %vm1203, %v3998, %v4002
      %v4068 = vadd.f32 %v3527, %v3846
      %v4069 = vadd.f32 %v3528, %v3849
      %v4070 = vadd.f32 %v3529, %v3851
      %v4071 = vadd.f32 %v3530, %v3853
      %v4072 = vadd.f32 %v3531, %v3856
      %v4073 = vadd.f32 %v3532, %v3859
      %v4074 = vadd.f32 %v3533, %v3861
      %v4075 = vadd.f32 %v3534, %v3863
      %v4076 = vadd.f32 %v3535, %v3866
      %v4077 = vadd.f32 %v3536, %v3869
      %v4078 = vadd.f32 %v3537, %v3871
      %v4079 = vadd.f32 %v3538, %v3873
      %v4080 = vadd.f32 %v3539, %v3876
      %v4081 = vadd.f32 %v3540, %v3879
      %v4082 = vadd.f32 %v3541, %v3881
      %v4083 = vadd.f32 %v3542, %v3883
      %v4084 = vadd.f32 %v3543, %v3886
      %v4085 = vadd.f32 %v3544, %v3889
      %v4086 = vadd.f32 %v3545, %v3891
      %v4087 = vadd.f32 %v3546, %v3893
      %v4088 = vadd.f32 %v3547, %v3896
      %v4089 = vadd.f32 %v3548, %v3899
      %v4090 = vadd.f32 %v3549, %v3901
      %v4091 = vadd.f32 %v3550, %v3903
      %v4092 = vadd.f32 %v3551, %v3906
      %v4093 = vadd.f32 %v3552, %v3909
      %v4094 = vadd.f32 %v3553, %v3911
      %v4095 = vadd.f32 %v3554, %v3913
      %v4096 = vadd.f32 %v3555, %v3916
      %v4097 = vadd.f32 %v3556, %v3919
      %v4098 = vadd.f32 %v3557, %v3921
      %v4099 = vadd.f32 %v3558, %v3923
      %v4100 = vadd.f32 %v3559, %v3926
      %v4101 = vadd.f32 %v3560, %v3929
      %v4102 = vadd.f32 %v3561, %v3931
      %v4103 = vadd.f32 %v3562, %v3933
      %v4104 = vadd.f32 %v3563, %v3936
      %v4105 = vadd.f32 %v3564, %v3939
      %v4106 = vadd.f32 %v3565, %v3941
      %v4107 = vadd.f32 %v3566, %v3943
      %v4108 = vadd.f32 %v3567, %v3946
      %v4109 = vadd.f32 %v3568, %v3949
      %v4110 = vadd.f32 %v3569, %v3951
      %v4111 = vadd.f32 %v3570, %v3953
      %v4112 = vadd.f32 %v3571, %v3956
      %v4113 = vadd.f32 %v3572, %v3959
      %v4114 = vadd.f32 %v3573, %v3961
      %v4115 = vadd.f32 %v3574, %v3963
      %v4116 = vadd.f32 %v3575, %v3966
      %v4117 = vadd.f32 %v3576, %v3969
      %v4118 = vadd.f32 %v3577, %v3971
      %v4119 = vadd.f32 %v3578, %v3973
      %v4120 = vadd.f32 %v3579, %v3976
      %v4121 = vadd.f32 %v3580, %v3979
      %v4122 = vadd.f32 %v3581, %v3981
      %v4123 = vadd.f32 %v3582, %v3983
      %v4124 = vadd.f32 %v3583, %v3986
      %v4125 = vadd.f32 %v3584, %v3989
      %v4126 = vadd.f32 %v3585, %v3991
      %v4127 = vadd.f32 %v3586, %v3993
      %v4128 = vadd.f32 %v3587, %v3996
      %v4129 = vadd.f32 %v3588, %v3999
      %v4130 = vadd.f32 %v3589, %v4001
      %v4131 = vadd.f32 %v3590, %v4003
      %v4132 = vld [vmem:[%s2] sm:$0x3]
      %v4134 = vlaneseq
      %v4135 = vshrl.u32 %v4134, 7
      %v4136 = vsub.s32 0, %v4135
      %v4137 = vrot.slane %v4132, %v4136
      %v4138 = vlaneseq
      %v4139 = vshrl.u32 %v4138, 7
      %v4140 = vsub.s32 1, %v4139
      %v4141 = vrot.slane %v4132, %v4140
      %v4144 = vmul.f32 %v4068, %v4137
      %v4145 = vmul.f32 %v4069, %v4141
      %v4146 = vmul.f32 %v4070, %v4137
      %v4147 = vmul.f32 %v4071, %v4141
      %v4148 = vmul.f32 %v4072, %v4137
      %v4149 = vmul.f32 %v4073, %v4141
      %v4150 = vmul.f32 %v4074, %v4137
      %v4151 = vmul.f32 %v4075, %v4141
      %v4152 = vmul.f32 %v4076, %v4137
      %v4153 = vmul.f32 %v4077, %v4141
      %v4154 = vmul.f32 %v4078, %v4137
      %v4155 = vmul.f32 %v4079, %v4141
      %v4156 = vmul.f32 %v4080, %v4137
      %v4157 = vmul.f32 %v4081, %v4141
      %v4158 = vmul.f32 %v4082, %v4137
      %v4159 = vmul.f32 %v4083, %v4141
      %v4160 = vmul.f32 %v4084, %v4137
      %v4161 = vmul.f32 %v4085, %v4141
      %v4162 = vmul.f32 %v4086, %v4137
      %v4163 = vmul.f32 %v4087, %v4141
      %v4164 = vmul.f32 %v4088, %v4137
      %v4165 = vmul.f32 %v4089, %v4141
      %v4166 = vmul.f32 %v4090, %v4137
      %v4167 = vmul.f32 %v4091, %v4141
      %v4168 = vmul.f32 %v4092, %v4137
      %v4169 = vmul.f32 %v4093, %v4141
      %v4170 = vmul.f32 %v4094, %v4137
      %v4171 = vmul.f32 %v4095, %v4141
      %v4172 = vmul.f32 %v4096, %v4137
      %v4173 = vmul.f32 %v4097, %v4141
      %v4174 = vmul.f32 %v4098, %v4137
      %v4175 = vmul.f32 %v4099, %v4141
      %v4176 = vmul.f32 %v4100, %v4137
      %v4177 = vmul.f32 %v4101, %v4141
      %v4178 = vmul.f32 %v4102, %v4137
      %v4179 = vmul.f32 %v4103, %v4141
      %v4180 = vmul.f32 %v4104, %v4137
      %v4181 = vmul.f32 %v4105, %v4141
      %v4182 = vmul.f32 %v4106, %v4137
      %v4183 = vmul.f32 %v4107, %v4141
      %v4184 = vmul.f32 %v4108, %v4137
      %v4185 = vmul.f32 %v4109, %v4141
      %v4186 = vmul.f32 %v4110, %v4137
      %v4187 = vmul.f32 %v4111, %v4141
      %v4188 = vmul.f32 %v4112, %v4137
      %v4189 = vmul.f32 %v4113, %v4141
      %v4190 = vmul.f32 %v4114, %v4137
      %v4191 = vmul.f32 %v4115, %v4141
      %v4192 = vmul.f32 %v4116, %v4137
      %v4193 = vmul.f32 %v4117, %v4141
      %v4194 = vmul.f32 %v4118, %v4137
      %v4195 = vmul.f32 %v4119, %v4141
      %v4196 = vmul.f32 %v4120, %v4137
      %v4197 = vmul.f32 %v4121, %v4141
      %v4198 = vmul.f32 %v4122, %v4137
      %v4199 = vmul.f32 %v4123, %v4141
      %v4200 = vmul.f32 %v4124, %v4137
      %v4201 = vmul.f32 %v4125, %v4141
      %v4202 = vmul.f32 %v4126, %v4137
      %v4203 = vmul.f32 %v4127, %v4141
      %v4204 = vmul.f32 %v4128, %v4137
      %v4205 = vmul.f32 %v4129, %v4141
      %v4206 = vmul.f32 %v4130, %v4137
      %v4207 = vmul.f32 %v4131, %v4141
      %v4208 = vld [vmem:[%s3] sm:$0x3]
      %v4210 = vlaneseq
      %v4211 = vshrl.u32 %v4210, 7
      %v4212 = vsub.s32 0, %v4211
      %v4213 = vrot.slane %v4208, %v4212
      %v4214 = vlaneseq
      %v4215 = vshrl.u32 %v4214, 7
      %v4216 = vsub.s32 1, %v4215
      %v4217 = vrot.slane %v4208, %v4216
      %v4220 = vadd.f32 %v4144, %v4213
      %v4221 = vadd.f32 %v4145, %v4217
      %v4222 = vadd.f32 %v4146, %v4213
      %v4223 = vadd.f32 %v4147, %v4217
      %v4224 = vadd.f32 %v4148, %v4213
      %v4225 = vadd.f32 %v4149, %v4217
      %v4226 = vadd.f32 %v4150, %v4213
      %v4227 = vadd.f32 %v4151, %v4217
      %v4228 = vadd.f32 %v4152, %v4213
      %v4229 = vadd.f32 %v4153, %v4217
      %v4230 = vadd.f32 %v4154, %v4213
      %v4231 = vadd.f32 %v4155, %v4217
      %v4232 = vadd.f32 %v4156, %v4213
      %v4233 = vadd.f32 %v4157, %v4217
      %v4234 = vadd.f32 %v4158, %v4213
      %v4235 = vadd.f32 %v4159, %v4217
      %v4236 = vadd.f32 %v4160, %v4213
      %v4237 = vadd.f32 %v4161, %v4217
      %v4238 = vadd.f32 %v4162, %v4213
      %v4239 = vadd.f32 %v4163, %v4217
      %v4240 = vadd.f32 %v4164, %v4213
      %v4241 = vadd.f32 %v4165, %v4217
      %v4242 = vadd.f32 %v4166, %v4213
      %v4243 = vadd.f32 %v4167, %v4217
      %v4244 = vadd.f32 %v4168, %v4213
      %v4245 = vadd.f32 %v4169, %v4217
      %v4246 = vadd.f32 %v4170, %v4213
      %v4247 = vadd.f32 %v4171, %v4217
      %v4248 = vadd.f32 %v4172, %v4213
      %v4249 = vadd.f32 %v4173, %v4217
      %v4250 = vadd.f32 %v4174, %v4213
      %v4251 = vadd.f32 %v4175, %v4217
      %v4252 = vadd.f32 %v4176, %v4213
      %v4253 = vadd.f32 %v4177, %v4217
      %v4254 = vadd.f32 %v4178, %v4213
      %v4255 = vadd.f32 %v4179, %v4217
      %v4256 = vadd.f32 %v4180, %v4213
      %v4257 = vadd.f32 %v4181, %v4217
      %v4258 = vadd.f32 %v4182, %v4213
      %v4259 = vadd.f32 %v4183, %v4217
      %v4260 = vadd.f32 %v4184, %v4213
      %v4261 = vadd.f32 %v4185, %v4217
      %v4262 = vadd.f32 %v4186, %v4213
      %v4263 = vadd.f32 %v4187, %v4217
      %v4264 = vadd.f32 %v4188, %v4213
      %v4265 = vadd.f32 %v4189, %v4217
      %v4266 = vadd.f32 %v4190, %v4213
      %v4267 = vadd.f32 %v4191, %v4217
      %v4268 = vadd.f32 %v4192, %v4213
      %v4269 = vadd.f32 %v4193, %v4217
      %v4270 = vadd.f32 %v4194, %v4213
      %v4271 = vadd.f32 %v4195, %v4217
      %v4272 = vadd.f32 %v4196, %v4213
      %v4273 = vadd.f32 %v4197, %v4217
      %v4274 = vadd.f32 %v4198, %v4213
      %v4275 = vadd.f32 %v4199, %v4217
      %v4276 = vadd.f32 %v4200, %v4213
      %v4277 = vadd.f32 %v4201, %v4217
      %v4278 = vadd.f32 %v4202, %v4213
      %v4279 = vadd.f32 %v4203, %v4217
      %v4280 = vadd.f32 %v4204, %v4213
      %v4281 = vadd.f32 %v4205, %v4217
      %v4282 = vadd.f32 %v4206, %v4213
      %v4283 = vadd.f32 %v4207, %v4217
      %v4284 = vxor.u32 %v4220, 2147483648
      %v4285 = vxor.u32 %v4221, 2147483648
      %v4286 = vxor.u32 %v4222, 2147483648
      %v4287 = vxor.u32 %v4223, 2147483648
      %v4288 = vxor.u32 %v4224, 2147483648
      %v4289 = vxor.u32 %v4225, 2147483648
      %v4290 = vxor.u32 %v4226, 2147483648
      %v4291 = vxor.u32 %v4227, 2147483648
      %v4292 = vxor.u32 %v4228, 2147483648
      %v4293 = vxor.u32 %v4229, 2147483648
      %v4294 = vxor.u32 %v4230, 2147483648
      %v4295 = vxor.u32 %v4231, 2147483648
      %v4296 = vxor.u32 %v4232, 2147483648
      %v4297 = vxor.u32 %v4233, 2147483648
      %v4298 = vxor.u32 %v4234, 2147483648
      %v4299 = vxor.u32 %v4235, 2147483648
      %v4300 = vxor.u32 %v4236, 2147483648
      %v4301 = vxor.u32 %v4237, 2147483648
      %v4302 = vxor.u32 %v4238, 2147483648
      %v4303 = vxor.u32 %v4239, 2147483648
      %v4304 = vxor.u32 %v4240, 2147483648
      %v4305 = vxor.u32 %v4241, 2147483648
      %v4306 = vxor.u32 %v4242, 2147483648
      %v4307 = vxor.u32 %v4243, 2147483648
      %v4308 = vxor.u32 %v4244, 2147483648
      %v4309 = vxor.u32 %v4245, 2147483648
      %v4310 = vxor.u32 %v4246, 2147483648
      %v4311 = vxor.u32 %v4247, 2147483648
      %v4312 = vxor.u32 %v4248, 2147483648
      %v4313 = vxor.u32 %v4249, 2147483648
      %v4314 = vxor.u32 %v4250, 2147483648
      %v4315 = vxor.u32 %v4251, 2147483648
      %v4316 = vxor.u32 %v4252, 2147483648
      %v4317 = vxor.u32 %v4253, 2147483648
      %v4318 = vxor.u32 %v4254, 2147483648
      %v4319 = vxor.u32 %v4255, 2147483648
      %v4320 = vxor.u32 %v4256, 2147483648
      %v4321 = vxor.u32 %v4257, 2147483648
      %v4322 = vxor.u32 %v4258, 2147483648
      %v4323 = vxor.u32 %v4259, 2147483648
      %v4324 = vxor.u32 %v4260, 2147483648
      %v4325 = vxor.u32 %v4261, 2147483648
      %v4326 = vxor.u32 %v4262, 2147483648
      %v4327 = vxor.u32 %v4263, 2147483648
      %v4328 = vxor.u32 %v4264, 2147483648
      %v4329 = vxor.u32 %v4265, 2147483648
      %v4330 = vxor.u32 %v4266, 2147483648
      %v4331 = vxor.u32 %v4267, 2147483648
      %v4332 = vxor.u32 %v4268, 2147483648
      %v4333 = vxor.u32 %v4269, 2147483648
      %v4334 = vxor.u32 %v4270, 2147483648
      %v4335 = vxor.u32 %v4271, 2147483648
      %v4336 = vxor.u32 %v4272, 2147483648
      %v4337 = vxor.u32 %v4273, 2147483648
      %v4338 = vxor.u32 %v4274, 2147483648
      %v4339 = vxor.u32 %v4275, 2147483648
      %v4340 = vxor.u32 %v4276, 2147483648
      %v4341 = vxor.u32 %v4277, 2147483648
      %v4342 = vxor.u32 %v4278, 2147483648
      %v4343 = vxor.u32 %v4279, 2147483648
      %v4344 = vxor.u32 %v4280, 2147483648
      %v4345 = vxor.u32 %v4281, 2147483648
      %v4346 = vxor.u32 %v4282, 2147483648
      %v4347 = vxor.u32 %v4283, 2147483648
      %v4348 = vmul.f32 %v4284, 1.442695
      %v4349 = vpow.pop %v4348
      %v4350 = vmul.f32 %v4285, 1.442695
      %v4351 = vpow.pop %v4350
      %v4352 = vmul.f32 %v4286, 1.442695
      %v4353 = vpow.pop %v4352
      %v4354 = vmul.f32 %v4287, 1.442695
      %v4355 = vpow.pop %v4354
      %v4356 = vmul.f32 %v4288, 1.442695
      %v4357 = vpow.pop %v4356
      %v4358 = vmul.f32 %v4289, 1.442695
      %v4359 = vpow.pop %v4358
      %v4360 = vmul.f32 %v4290, 1.442695
      %v4361 = vpow.pop %v4360
      %v4362 = vmul.f32 %v4291, 1.442695
      %v4363 = vpow.pop %v4362
      %v4364 = vmul.f32 %v4292, 1.442695
      %v4365 = vpow.pop %v4364
      %v4366 = vmul.f32 %v4293, 1.442695
      %v4367 = vpow.pop %v4366
      %v4368 = vmul.f32 %v4294, 1.442695
      %v4369 = vpow.pop %v4368
      %v4370 = vmul.f32 %v4295, 1.442695
      %v4371 = vpow.pop %v4370
      %v4372 = vmul.f32 %v4296, 1.442695
      %v4373 = vpow.pop %v4372
      %v4374 = vmul.f32 %v4297, 1.442695
      %v4375 = vpow.pop %v4374
      %v4376 = vmul.f32 %v4298, 1.442695
      %v4377 = vpow.pop %v4376
      %v4378 = vmul.f32 %v4299, 1.442695
      %v4379 = vpow.pop %v4378
      %v4380 = vmul.f32 %v4300, 1.442695
      %v4381 = vpow.pop %v4380
      %v4382 = vmul.f32 %v4301, 1.442695
      %v4383 = vpow.pop %v4382
      %v4384 = vmul.f32 %v4302, 1.442695
      %v4385 = vpow.pop %v4384
      %v4386 = vmul.f32 %v4303, 1.442695
      %v4387 = vpow.pop %v4386
      %v4388 = vmul.f32 %v4304, 1.442695
      %v4389 = vpow.pop %v4388
      %v4390 = vmul.f32 %v4305, 1.442695
      %v4391 = vpow.pop %v4390
      %v4392 = vmul.f32 %v4306, 1.442695
      %v4393 = vpow.pop %v4392
      %v4394 = vmul.f32 %v4307, 1.442695
      %v4395 = vpow.pop %v4394
      %v4396 = vmul.f32 %v4308, 1.442695
      %v4397 = vpow.pop %v4396
      %v4398 = vmul.f32 %v4309, 1.442695
      %v4399 = vpow.pop %v4398
      %v4400 = vmul.f32 %v4310, 1.442695
      %v4401 = vpow.pop %v4400
      %v4402 = vmul.f32 %v4311, 1.442695
      %v4403 = vpow.pop %v4402
      %v4404 = vmul.f32 %v4312, 1.442695
      %v4405 = vpow.pop %v4404
      %v4406 = vmul.f32 %v4313, 1.442695
      %v4407 = vpow.pop %v4406
      %v4408 = vmul.f32 %v4314, 1.442695
      %v4409 = vpow.pop %v4408
      %v4410 = vmul.f32 %v4315, 1.442695
      %v4411 = vpow.pop %v4410
      %v4412 = vmul.f32 %v4316, 1.442695
      %v4413 = vpow.pop %v4412
      %v4414 = vmul.f32 %v4317, 1.442695
      %v4415 = vpow.pop %v4414
      %v4416 = vmul.f32 %v4318, 1.442695
      %v4417 = vpow.pop %v4416
      %v4418 = vmul.f32 %v4319, 1.442695
      %v4419 = vpow.pop %v4418
      %v4420 = vmul.f32 %v4320, 1.442695
      %v4421 = vpow.pop %v4420
      %v4422 = vmul.f32 %v4321, 1.442695
      %v4423 = vpow.pop %v4422
      %v4424 = vmul.f32 %v4322, 1.442695
      %v4425 = vpow.pop %v4424
      %v4426 = vmul.f32 %v4323, 1.442695
      %v4427 = vpow.pop %v4426
      %v4428 = vmul.f32 %v4324, 1.442695
      %v4429 = vpow.pop %v4428
      %v4430 = vmul.f32 %v4325, 1.442695
      %v4431 = vpow.pop %v4430
      %v4432 = vmul.f32 %v4326, 1.442695
      %v4433 = vpow.pop %v4432
      %v4434 = vmul.f32 %v4327, 1.442695
      %v4435 = vpow.pop %v4434
      %v4436 = vmul.f32 %v4328, 1.442695
      %v4437 = vpow.pop %v4436
      %v4438 = vmul.f32 %v4329, 1.442695
      %v4439 = vpow.pop %v4438
      %v4440 = vmul.f32 %v4330, 1.442695
      %v4441 = vpow.pop %v4440
      %v4442 = vmul.f32 %v4331, 1.442695
      %v4443 = vpow.pop %v4442
      %v4444 = vmul.f32 %v4332, 1.442695
      %v4445 = vpow.pop %v4444
      %v4446 = vmul.f32 %v4333, 1.442695
      %v4447 = vpow.pop %v4446
      %v4448 = vmul.f32 %v4334, 1.442695
      %v4449 = vpow.pop %v4448
      %v4450 = vmul.f32 %v4335, 1.442695
      %v4451 = vpow.pop %v4450
      %v4452 = vmul.f32 %v4336, 1.442695
      %v4453 = vpow.pop %v4452
      %v4454 = vmul.f32 %v4337, 1.442695
      %v4455 = vpow.pop %v4454
      %v4456 = vmul.f32 %v4338, 1.442695
      %v4457 = vpow.pop %v4456
      %v4458 = vmul.f32 %v4339, 1.442695
      %v4459 = vpow.pop %v4458
      %v4460 = vmul.f32 %v4340, 1.442695
      %v4461 = vpow.pop %v4460
      %v4462 = vmul.f32 %v4341, 1.442695
      %v4463 = vpow.pop %v4462
      %v4464 = vmul.f32 %v4342, 1.442695
      %v4465 = vpow.pop %v4464
      %v4466 = vmul.f32 %v4343, 1.442695
      %v4467 = vpow.pop %v4466
      %v4468 = vmul.f32 %v4344, 1.442695
      %v4469 = vpow.pop %v4468
      %v4470 = vmul.f32 %v4345, 1.442695
      %v4471 = vpow.pop %v4470
      %v4472 = vmul.f32 %v4346, 1.442695
      %v4473 = vpow.pop %v4472
      %v4474 = vmul.f32 %v4347, 1.442695
      %v4475 = vpow.pop %v4474
      %v4476 = vadd.f32 %v4349, 1.0
      %v4477 = vadd.f32 %v4351, 1.0
      %v4478 = vadd.f32 %v4353, 1.0
      %v4479 = vadd.f32 %v4355, 1.0
      %v4480 = vadd.f32 %v4357, 1.0
      %v4481 = vadd.f32 %v4359, 1.0
      %v4482 = vadd.f32 %v4361, 1.0
      %v4483 = vadd.f32 %v4363, 1.0
      %v4484 = vadd.f32 %v4365, 1.0
      %v4485 = vadd.f32 %v4367, 1.0
      %v4486 = vadd.f32 %v4369, 1.0
      %v4487 = vadd.f32 %v4371, 1.0
      %v4488 = vadd.f32 %v4373, 1.0
      %v4489 = vadd.f32 %v4375, 1.0
      %v4490 = vadd.f32 %v4377, 1.0
      %v4491 = vadd.f32 %v4379, 1.0
      %v4492 = vadd.f32 %v4381, 1.0
      %v4493 = vadd.f32 %v4383, 1.0
      %v4494 = vadd.f32 %v4385, 1.0
      %v4495 = vadd.f32 %v4387, 1.0
      %v4496 = vadd.f32 %v4389, 1.0
      %v4497 = vadd.f32 %v4391, 1.0
      %v4498 = vadd.f32 %v4393, 1.0
      %v4499 = vadd.f32 %v4395, 1.0
      %v4500 = vadd.f32 %v4397, 1.0
      %v4501 = vadd.f32 %v4399, 1.0
      %v4502 = vadd.f32 %v4401, 1.0
      %v4503 = vadd.f32 %v4403, 1.0
      %v4504 = vadd.f32 %v4405, 1.0
      %v4505 = vadd.f32 %v4407, 1.0
      %v4506 = vadd.f32 %v4409, 1.0
      %v4507 = vadd.f32 %v4411, 1.0
      %v4508 = vadd.f32 %v4413, 1.0
      %v4509 = vadd.f32 %v4415, 1.0
      %v4510 = vadd.f32 %v4417, 1.0
      %v4511 = vadd.f32 %v4419, 1.0
      %v4512 = vadd.f32 %v4421, 1.0
      %v4513 = vadd.f32 %v4423, 1.0
      %v4514 = vadd.f32 %v4425, 1.0
      %v4515 = vadd.f32 %v4427, 1.0
      %v4516 = vadd.f32 %v4429, 1.0
      %v4517 = vadd.f32 %v4431, 1.0
      %v4518 = vadd.f32 %v4433, 1.0
      %v4519 = vadd.f32 %v4435, 1.0
      %v4520 = vadd.f32 %v4437, 1.0
      %v4521 = vadd.f32 %v4439, 1.0
      %v4522 = vadd.f32 %v4441, 1.0
      %v4523 = vadd.f32 %v4443, 1.0
      %v4524 = vadd.f32 %v4445, 1.0
      %v4525 = vadd.f32 %v4447, 1.0
      %v4526 = vadd.f32 %v4449, 1.0
      %v4527 = vadd.f32 %v4451, 1.0
      %v4528 = vadd.f32 %v4453, 1.0
      %v4529 = vadd.f32 %v4455, 1.0
      %v4530 = vadd.f32 %v4457, 1.0
      %v4531 = vadd.f32 %v4459, 1.0
      %v4532 = vadd.f32 %v4461, 1.0
      %v4533 = vadd.f32 %v4463, 1.0
      %v4534 = vadd.f32 %v4465, 1.0
      %v4535 = vadd.f32 %v4467, 1.0
      %v4536 = vadd.f32 %v4469, 1.0
      %v4537 = vadd.f32 %v4471, 1.0
      %v4538 = vadd.f32 %v4473, 1.0
      %v4539 = vadd.f32 %v4475, 1.0
      %v4540 = vrcp.pop %v4476
      %v4541 = vmul.f32 1.0, %v4540
      %v4542 = vrcp.pop %v4477
      %v4543 = vmul.f32 1.0, %v4542
      %v4544 = vrcp.pop %v4478
      %v4545 = vmul.f32 1.0, %v4544
      %v4546 = vrcp.pop %v4479
      %v4547 = vmul.f32 1.0, %v4546
      %v4548 = vrcp.pop %v4480
      %v4549 = vmul.f32 1.0, %v4548
      %v4550 = vrcp.pop %v4481
      %v4551 = vmul.f32 1.0, %v4550
      %v4552 = vrcp.pop %v4482
      %v4553 = vmul.f32 1.0, %v4552
      %v4554 = vrcp.pop %v4483
      %v4555 = vmul.f32 1.0, %v4554
      %v4556 = vrcp.pop %v4484
      %v4557 = vmul.f32 1.0, %v4556
      %v4558 = vrcp.pop %v4485
      %v4559 = vmul.f32 1.0, %v4558
      %v4560 = vrcp.pop %v4486
      %v4561 = vmul.f32 1.0, %v4560
      %v4562 = vrcp.pop %v4487
      %v4563 = vmul.f32 1.0, %v4562
      %v4564 = vrcp.pop %v4488
      %v4565 = vmul.f32 1.0, %v4564
      %v4566 = vrcp.pop %v4489
      %v4567 = vmul.f32 1.0, %v4566
      %v4568 = vrcp.pop %v4490
      %v4569 = vmul.f32 1.0, %v4568
      %v4570 = vrcp.pop %v4491
      %v4571 = vmul.f32 1.0, %v4570
      %v4572 = vrcp.pop %v4492
      %v4573 = vmul.f32 1.0, %v4572
      %v4574 = vrcp.pop %v4493
      %v4575 = vmul.f32 1.0, %v4574
      %v4576 = vrcp.pop %v4494
      %v4577 = vmul.f32 1.0, %v4576
      %v4578 = vrcp.pop %v4495
      %v4579 = vmul.f32 1.0, %v4578
      %v4580 = vrcp.pop %v4496
      %v4581 = vmul.f32 1.0, %v4580
      %v4582 = vrcp.pop %v4497
      %v4583 = vmul.f32 1.0, %v4582
      %v4584 = vrcp.pop %v4498
      %v4585 = vmul.f32 1.0, %v4584
      %v4586 = vrcp.pop %v4499
      %v4587 = vmul.f32 1.0, %v4586
      %v4588 = vrcp.pop %v4500
      %v4589 = vmul.f32 1.0, %v4588
      %v4590 = vrcp.pop %v4501
      %v4591 = vmul.f32 1.0, %v4590
      %v4592 = vrcp.pop %v4502
      %v4593 = vmul.f32 1.0, %v4592
      %v4594 = vrcp.pop %v4503
      %v4595 = vmul.f32 1.0, %v4594
      %v4596 = vrcp.pop %v4504
      %v4597 = vmul.f32 1.0, %v4596
      %v4598 = vrcp.pop %v4505
      %v4599 = vmul.f32 1.0, %v4598
      %v4600 = vrcp.pop %v4506
      %v4601 = vmul.f32 1.0, %v4600
      %v4602 = vrcp.pop %v4507
      %v4603 = vmul.f32 1.0, %v4602
      %v4604 = vrcp.pop %v4508
      %v4605 = vmul.f32 1.0, %v4604
      %v4606 = vrcp.pop %v4509
      %v4607 = vmul.f32 1.0, %v4606
      %v4608 = vrcp.pop %v4510
      %v4609 = vmul.f32 1.0, %v4608
      %v4610 = vrcp.pop %v4511
      %v4611 = vmul.f32 1.0, %v4610
      %v4612 = vrcp.pop %v4512
      %v4613 = vmul.f32 1.0, %v4612
      %v4614 = vrcp.pop %v4513
      %v4615 = vmul.f32 1.0, %v4614
      %v4616 = vrcp.pop %v4514
      %v4617 = vmul.f32 1.0, %v4616
      %v4618 = vrcp.pop %v4515
      %v4619 = vmul.f32 1.0, %v4618
      %v4620 = vrcp.pop %v4516
      %v4621 = vmul.f32 1.0, %v4620
      %v4622 = vrcp.pop %v4517
      %v4623 = vmul.f32 1.0, %v4622
      %v4624 = vrcp.pop %v4518
      %v4625 = vmul.f32 1.0, %v4624
      %v4626 = vrcp.pop %v4519
      %v4627 = vmul.f32 1.0, %v4626
      %v4628 = vrcp.pop %v4520
      %v4629 = vmul.f32 1.0, %v4628
      %v4630 = vrcp.pop %v4521
      %v4631 = vmul.f32 1.0, %v4630
      %v4632 = vrcp.pop %v4522
      %v4633 = vmul.f32 1.0, %v4632
      %v4634 = vrcp.pop %v4523
      %v4635 = vmul.f32 1.0, %v4634
      %v4636 = vrcp.pop %v4524
      %v4637 = vmul.f32 1.0, %v4636
      %v4638 = vrcp.pop %v4525
      %v4639 = vmul.f32 1.0, %v4638
      %v4640 = vrcp.pop %v4526
      %v4641 = vmul.f32 1.0, %v4640
      %v4642 = vrcp.pop %v4527
      %v4643 = vmul.f32 1.0, %v4642
      %v4644 = vrcp.pop %v4528
      %v4645 = vmul.f32 1.0, %v4644
      %v4646 = vrcp.pop %v4529
      %v4647 = vmul.f32 1.0, %v4646
      %v4648 = vrcp.pop %v4530
      %v4649 = vmul.f32 1.0, %v4648
      %v4650 = vrcp.pop %v4531
      %v4651 = vmul.f32 1.0, %v4650
      %v4652 = vrcp.pop %v4532
      %v4653 = vmul.f32 1.0, %v4652
      %v4654 = vrcp.pop %v4533
      %v4655 = vmul.f32 1.0, %v4654
      %v4656 = vrcp.pop %v4534
      %v4657 = vmul.f32 1.0, %v4656
      %v4658 = vrcp.pop %v4535
      %v4659 = vmul.f32 1.0, %v4658
      %v4660 = vrcp.pop %v4536
      %v4661 = vmul.f32 1.0, %v4660
      %v4662 = vrcp.pop %v4537
      %v4663 = vmul.f32 1.0, %v4662
      %v4664 = vrcp.pop %v4538
      %v4665 = vmul.f32 1.0, %v4664
      %v4666 = vrcp.pop %v4539
      %v4667 = vmul.f32 1.0, %v4666
      %v4668 = vmul.f32 %v4220, %v4541
      %v4669 = vmul.f32 %v4221, %v4543
      %v4670 = vmul.f32 %v4222, %v4545
      %v4671 = vmul.f32 %v4223, %v4547
      %v4672 = vmul.f32 %v4224, %v4549
      %v4673 = vmul.f32 %v4225, %v4551
      %v4674 = vmul.f32 %v4226, %v4553
      %v4675 = vmul.f32 %v4227, %v4555
      %v4676 = vmul.f32 %v4228, %v4557
      %v4677 = vmul.f32 %v4229, %v4559
      %v4678 = vmul.f32 %v4230, %v4561
      %v4679 = vmul.f32 %v4231, %v4563
      %v4680 = vmul.f32 %v4232, %v4565
      %v4681 = vmul.f32 %v4233, %v4567
      %v4682 = vmul.f32 %v4234, %v4569
      %v4683 = vmul.f32 %v4235, %v4571
      %v4684 = vmul.f32 %v4236, %v4573
      %v4685 = vmul.f32 %v4237, %v4575
      %v4686 = vmul.f32 %v4238, %v4577
      %v4687 = vmul.f32 %v4239, %v4579
      %v4688 = vmul.f32 %v4240, %v4581
      %v4689 = vmul.f32 %v4241, %v4583
      %v4690 = vmul.f32 %v4242, %v4585
      %v4691 = vmul.f32 %v4243, %v4587
      %v4692 = vmul.f32 %v4244, %v4589
      %v4693 = vmul.f32 %v4245, %v4591
      %v4694 = vmul.f32 %v4246, %v4593
      %v4695 = vmul.f32 %v4247, %v4595
      %v4696 = vmul.f32 %v4248, %v4597
      %v4697 = vmul.f32 %v4249, %v4599
      %v4698 = vmul.f32 %v4250, %v4601
      %v4699 = vmul.f32 %v4251, %v4603
      %v4700 = vmul.f32 %v4252, %v4605
      %v4701 = vmul.f32 %v4253, %v4607
      %v4702 = vmul.f32 %v4254, %v4609
      %v4703 = vmul.f32 %v4255, %v4611
      %v4704 = vmul.f32 %v4256, %v4613
      %v4705 = vmul.f32 %v4257, %v4615
      %v4706 = vmul.f32 %v4258, %v4617
      %v4707 = vmul.f32 %v4259, %v4619
      %v4708 = vmul.f32 %v4260, %v4621
      %v4709 = vmul.f32 %v4261, %v4623
      %v4710 = vmul.f32 %v4262, %v4625
      %v4711 = vmul.f32 %v4263, %v4627
      %v4712 = vmul.f32 %v4264, %v4629
      %v4713 = vmul.f32 %v4265, %v4631
      %v4714 = vmul.f32 %v4266, %v4633
      %v4715 = vmul.f32 %v4267, %v4635
      %v4716 = vmul.f32 %v4268, %v4637
      %v4717 = vmul.f32 %v4269, %v4639
      %v4718 = vmul.f32 %v4270, %v4641
      %v4719 = vmul.f32 %v4271, %v4643
      %v4720 = vmul.f32 %v4272, %v4645
      %v4721 = vmul.f32 %v4273, %v4647
      %v4722 = vmul.f32 %v4274, %v4649
      %v4723 = vmul.f32 %v4275, %v4651
      %v4724 = vmul.f32 %v4276, %v4653
      %v4725 = vmul.f32 %v4277, %v4655
      %v4726 = vmul.f32 %v4278, %v4657
      %v4727 = vmul.f32 %v4279, %v4659
      %v4728 = vmul.f32 %v4280, %v4661
      %v4729 = vmul.f32 %v4281, %v4663
      %v4730 = vmul.f32 %v4282, %v4665
      %v4731 = vmul.f32 %v4283, %v4667
      %v4732 = vpack.c.bf16 %v4670, %v4668
      %v4733 = vpack.c.bf16 %v4671, %v4669
      %v4734 = vpack.c.bf16 %v4674, %v4672
      %v4735 = vpack.c.bf16 %v4675, %v4673
      %v4736 = vpack.c.bf16 %v4678, %v4676
      %v4737 = vpack.c.bf16 %v4679, %v4677
      %v4738 = vpack.c.bf16 %v4682, %v4680
      %v4739 = vpack.c.bf16 %v4683, %v4681
      %v4740 = vpack.c.bf16 %v4686, %v4684
      %v4741 = vpack.c.bf16 %v4687, %v4685
      %v4742 = vpack.c.bf16 %v4690, %v4688
      %v4743 = vpack.c.bf16 %v4691, %v4689
      %v4744 = vpack.c.bf16 %v4694, %v4692
      %v4745 = vpack.c.bf16 %v4695, %v4693
      %v4746 = vpack.c.bf16 %v4698, %v4696
      %v4747 = vpack.c.bf16 %v4699, %v4697
      %v4748 = vpack.c.bf16 %v4702, %v4700
      %v4749 = vpack.c.bf16 %v4703, %v4701
      %v4750 = vpack.c.bf16 %v4706, %v4704
      %v4751 = vpack.c.bf16 %v4707, %v4705
      %v4752 = vpack.c.bf16 %v4710, %v4708
      %v4753 = vpack.c.bf16 %v4711, %v4709
      %v4754 = vpack.c.bf16 %v4714, %v4712
      %v4755 = vpack.c.bf16 %v4715, %v4713
      %v4756 = vpack.c.bf16 %v4718, %v4716
      %v4757 = vpack.c.bf16 %v4719, %v4717
      %v4758 = vpack.c.bf16 %v4722, %v4720
      %v4759 = vpack.c.bf16 %v4723, %v4721
      %v4760 = vpack.c.bf16 %v4726, %v4724
      %v4761 = vpack.c.bf16 %v4727, %v4725
      %v4762 = vpack.c.bf16 %v4730, %v4728
      %v4763 = vpack.c.bf16 %v4731, %v4729
      %v4796 = vunpack.c.l.b16 %v4732
      %v4797 = vunpack.c.l.b16 %v4733
      %v4798 = vunpack.c.h.b16 %v4732
      %v4799 = vunpack.c.h.b16 %v4733
      %v4800 = vunpack.c.l.b16 %v4734
      %v4801 = vunpack.c.l.b16 %v4735
      %v4802 = vunpack.c.h.b16 %v4734
      %v4803 = vunpack.c.h.b16 %v4735
      %v4804 = vunpack.c.l.b16 %v4736
      %v4805 = vunpack.c.l.b16 %v4737
      %v4806 = vunpack.c.h.b16 %v4736
      %v4807 = vunpack.c.h.b16 %v4737
      %v4808 = vunpack.c.l.b16 %v4738
      %v4809 = vunpack.c.l.b16 %v4739
      %v4810 = vunpack.c.h.b16 %v4738
      %v4811 = vunpack.c.h.b16 %v4739
      %v4812 = vunpack.c.l.b16 %v4740
      %v4813 = vunpack.c.l.b16 %v4741
      %v4814 = vunpack.c.h.b16 %v4740
      %v4815 = vunpack.c.h.b16 %v4741
      %v4816 = vunpack.c.l.b16 %v4742
      %v4817 = vunpack.c.l.b16 %v4743
      %v4818 = vunpack.c.h.b16 %v4742
      %v4819 = vunpack.c.h.b16 %v4743
      %v4820 = vunpack.c.l.b16 %v4744
      %v4821 = vunpack.c.l.b16 %v4745
      %v4822 = vunpack.c.h.b16 %v4744
      %v4823 = vunpack.c.h.b16 %v4745
      %v4824 = vunpack.c.l.b16 %v4746
      %v4825 = vunpack.c.l.b16 %v4747
      %v4826 = vunpack.c.h.b16 %v4746
      %v4827 = vunpack.c.h.b16 %v4747
      %v4828 = vunpack.c.l.b16 %v4748
      %v4829 = vunpack.c.l.b16 %v4749
      %v4830 = vunpack.c.h.b16 %v4748
      %v4831 = vunpack.c.h.b16 %v4749
      %v4832 = vunpack.c.l.b16 %v4750
      %v4833 = vunpack.c.l.b16 %v4751
      %v4834 = vunpack.c.h.b16 %v4750
      %v4835 = vunpack.c.h.b16 %v4751
      %v4836 = vunpack.c.l.b16 %v4752
      %v4837 = vunpack.c.l.b16 %v4753
      %v4838 = vunpack.c.h.b16 %v4752
      %v4839 = vunpack.c.h.b16 %v4753
      %v4840 = vunpack.c.l.b16 %v4754
      %v4841 = vunpack.c.l.b16 %v4755
      %v4842 = vunpack.c.h.b16 %v4754
      %v4843 = vunpack.c.h.b16 %v4755
      %v4844 = vunpack.c.l.b16 %v4756
      %v4845 = vunpack.c.l.b16 %v4757
      %v4846 = vunpack.c.h.b16 %v4756
      %v4847 = vunpack.c.h.b16 %v4757
      %v4848 = vunpack.c.l.b16 %v4758
      %v4849 = vunpack.c.l.b16 %v4759
      %v4850 = vunpack.c.h.b16 %v4758
      %v4851 = vunpack.c.h.b16 %v4759
      %v4852 = vunpack.c.l.b16 %v4760
      %v4853 = vunpack.c.l.b16 %v4761
      %v4854 = vunpack.c.h.b16 %v4760
      %v4855 = vunpack.c.h.b16 %v4761
      %v4856 = vunpack.c.l.b16 %v4762
      %v4857 = vunpack.c.l.b16 %v4763
      %v4858 = vunpack.c.h.b16 %v4762
      %v4859 = vunpack.c.h.b16 %v4763
      %v4860 = vpack.c.b16 %v4797, %v4796
      %v4861 = vpack.c.b16 %v4799, %v4798
      %v4862 = vpack.c.b16 %v4801, %v4800
      %v4863 = vpack.c.b16 %v4803, %v4802
      %v4864 = vpack.c.b16 %v4805, %v4804
      %v4865 = vpack.c.b16 %v4807, %v4806
      %v4866 = vpack.c.b16 %v4809, %v4808
      %v4867 = vpack.c.b16 %v4811, %v4810
      %v4868 = vpack.c.b16 %v4813, %v4812
      %v4869 = vpack.c.b16 %v4815, %v4814
      %v4870 = vpack.c.b16 %v4817, %v4816
      %v4871 = vpack.c.b16 %v4819, %v4818
      %v4872 = vpack.c.b16 %v4821, %v4820
      %v4873 = vpack.c.b16 %v4823, %v4822
      %v4874 = vpack.c.b16 %v4825, %v4824
      %v4875 = vpack.c.b16 %v4827, %v4826
      %v4876 = vpack.c.b16 %v4829, %v4828
      %v4877 = vpack.c.b16 %v4831, %v4830
      %v4878 = vpack.c.b16 %v4833, %v4832
      %v4879 = vpack.c.b16 %v4835, %v4834
      %v4880 = vpack.c.b16 %v4837, %v4836
      %v4881 = vpack.c.b16 %v4839, %v4838
      %v4882 = vpack.c.b16 %v4841, %v4840
      %v4883 = vpack.c.b16 %v4843, %v4842
      %v4884 = vpack.c.b16 %v4845, %v4844
      %v4885 = vpack.c.b16 %v4847, %v4846
      %v4886 = vpack.c.b16 %v4849, %v4848
      %v4887 = vpack.c.b16 %v4851, %v4850
      %v4888 = vpack.c.b16 %v4853, %v4852
      %v4889 = vpack.c.b16 %v4855, %v4854
      %v4890 = vpack.c.b16 %v4857, %v4856
      %v4891 = vpack.c.b16 %v4859, %v4858
      %vm4924 = vcmask 1043456
      %vm4925 = vcmask 523268
      %vm4926 = vmor %vm4925, %vm4924
      %4927 = vst.msk [vmem:[%s231] sm:$0xff] %vm4926, %v4860
      %4928 = vst.msk [vmem:[%s231 + $0x8] sm:$0xff] %vm4926, %v4861
      %4929 = vst.msk [vmem:[%s231 + $0x10] sm:$0xff] %vm4926, %v4862
      %4930 = vst.msk [vmem:[%s231 + $0x18] sm:$0xff] %vm4926, %v4863
      %4931 = vst.msk [vmem:[%s231 + $0x20] sm:$0xff] %vm4926, %v4864
      %4932 = vst.msk [vmem:[%s231 + $0x28] sm:$0xff] %vm4926, %v4865
      %4933 = vst.msk [vmem:[%s231 + $0x30] sm:$0xff] %vm4926, %v4866
      %4934 = vst.msk [vmem:[%s231 + $0x38] sm:$0xff] %vm4926, %v4867
      %4935 = vst.msk [vmem:[%s231 + $0x40] sm:$0xff] %vm4926, %v4868
      %4936 = vst.msk [vmem:[%s231 + $0x48] sm:$0xff] %vm4926, %v4869
      %4937 = vst.msk [vmem:[%s231 + $0x50] sm:$0xff] %vm4926, %v4870
      %4938 = vst.msk [vmem:[%s231 + $0x58] sm:$0xff] %vm4926, %v4871
      %4939 = vst.msk [vmem:[%s231 + $0x60] sm:$0xff] %vm4926, %v4872
      %4940 = vst.msk [vmem:[%s231 + $0x68] sm:$0xff] %vm4926, %v4873
      %4941 = vst.msk [vmem:[%s231 + $0x70] sm:$0xff] %vm4926, %v4874
      %4942 = vst.msk [vmem:[%s231 + $0x78] sm:$0xff] %vm4926, %v4875
      %4943 = vst.msk [vmem:[%s231 + $0x80] sm:$0xff] %vm4926, %v4876
      %4944 = vst.msk [vmem:[%s231 + $0x88] sm:$0xff] %vm4926, %v4877
      %4945 = vst.msk [vmem:[%s231 + $0x90] sm:$0xff] %vm4926, %v4878
      %4946 = vst.msk [vmem:[%s231 + $0x98] sm:$0xff] %vm4926, %v4879
      %4947 = vst.msk [vmem:[%s231 + $0xa0] sm:$0xff] %vm4926, %v4880
      %4948 = vst.msk [vmem:[%s231 + $0xa8] sm:$0xff] %vm4926, %v4881
      %4949 = vst.msk [vmem:[%s231 + $0xb0] sm:$0xff] %vm4926, %v4882
      %4950 = vst.msk [vmem:[%s231 + $0xb8] sm:$0xff] %vm4926, %v4883
      %4951 = vst.msk [vmem:[%s231 + $0xc0] sm:$0xff] %vm4926, %v4884
      %4952 = vst.msk [vmem:[%s231 + $0xc8] sm:$0xff] %vm4926, %v4885
      %4953 = vst.msk [vmem:[%s231 + $0xd0] sm:$0xff] %vm4926, %v4886
      %4954 = vst.msk [vmem:[%s231 + $0xd8] sm:$0xff] %vm4926, %v4887
      %4955 = vst.msk [vmem:[%s231 + $0xe0] sm:$0xff] %vm4926, %v4888
      %4956 = vst.msk [vmem:[%s231 + $0xe8] sm:$0xff] %vm4926, %v4889
      %4957 = vst.msk [vmem:[%s231 + $0xf0] sm:$0xff] %vm4926, %v4890
      %4958 = vst.msk [vmem:[%s231 + $0xf8] sm:$0xff] %vm4926, %v4891
      %v4959 = vadd.f32 %v4668, %v4670
      %v4960 = vadd.f32 %v4959, %v4672
      %v4961 = vadd.f32 %v4960, %v4674
      %v4962 = vadd.f32 %v4961, %v4676
      %v4963 = vadd.f32 %v4962, %v4678
      %v4964 = vadd.f32 %v4963, %v4680
      %v4965 = vadd.f32 %v4964, %v4682
      %v4966 = vadd.f32 %v4965, %v4684
      %v4967 = vadd.f32 %v4966, %v4686
      %v4968 = vadd.f32 %v4967, %v4688
      %v4969 = vadd.f32 %v4968, %v4690
      %v4970 = vadd.f32 %v4969, %v4692
      %v4971 = vadd.f32 %v4970, %v4694
      %v4972 = vadd.f32 %v4971, %v4696
      %v4973 = vadd.f32 %v4972, %v4698
      %v4974 = vadd.f32 %v4973, %v4700
      %v4975 = vadd.f32 %v4974, %v4702
      %v4976 = vadd.f32 %v4975, %v4704
      %v4977 = vadd.f32 %v4976, %v4706
      %v4978 = vadd.f32 %v4977, %v4708
      %v4979 = vadd.f32 %v4978, %v4710
      %v4980 = vadd.f32 %v4979, %v4712
      %v4981 = vadd.f32 %v4980, %v4714
      %v4982 = vadd.f32 %v4981, %v4716
      %v4983 = vadd.f32 %v4982, %v4718
      %v4984 = vadd.f32 %v4983, %v4720
      %v4985 = vadd.f32 %v4984, %v4722
      %v4986 = vadd.f32 %v4985, %v4724
      %v4987 = vadd.f32 %v4986, %v4726
      %v4988 = vadd.f32 %v4987, %v4728
      %v4989 = vadd.f32 %v4988, %v4730
      %v4990 = vrot.slane %v4989, 4
      %v4991 = vadd.f32 %v4989, %v4990
      %v4992 = vrot.slane %v4991, 2
      %v4993 = vadd.f32 %v4991, %v4992
      %v4994 = vrot.slane %v4993, 1
      %v4995 = vadd.f32 %v4993, %v4994
      %vm4996 = vcmask 523264
      %v4997 = vsel %vm4996, %v4669, 0.0
      %v4998 = vsel %vm4996, %v4671, 0.0
      %v4999 = vadd.f32 %v4997, %v4998
      %v5000 = vsel %vm4996, %v4673, 0.0
      %v5001 = vadd.f32 %v4999, %v5000
      %v5002 = vsel %vm4996, %v4675, 0.0
      %v5003 = vadd.f32 %v5001, %v5002
      %v5004 = vsel %vm4996, %v4677, 0.0
      %v5005 = vadd.f32 %v5003, %v5004
      %v5006 = vsel %vm4996, %v4679, 0.0
      %v5007 = vadd.f32 %v5005, %v5006
      %v5008 = vsel %vm4996, %v4681, 0.0
      %v5009 = vadd.f32 %v5007, %v5008
      %v5010 = vsel %vm4996, %v4683, 0.0
      %v5011 = vadd.f32 %v5009, %v5010
      %v5012 = vsel %vm4996, %v4685, 0.0
      %v5013 = vadd.f32 %v5011, %v5012
      %v5014 = vsel %vm4996, %v4687, 0.0
      %v5015 = vadd.f32 %v5013, %v5014
      %v5016 = vsel %vm4996, %v4689, 0.0
      %v5017 = vadd.f32 %v5015, %v5016
      %v5018 = vsel %vm4996, %v4691, 0.0
      %v5019 = vadd.f32 %v5017, %v5018
      %v5020 = vsel %vm4996, %v4693, 0.0
      %v5021 = vadd.f32 %v5019, %v5020
      %v5022 = vsel %vm4996, %v4695, 0.0
      %v5023 = vadd.f32 %v5021, %v5022
      %v5024 = vsel %vm4996, %v4697, 0.0
      %v5025 = vadd.f32 %v5023, %v5024
      %v5026 = vsel %vm4996, %v4699, 0.0
      %v5027 = vadd.f32 %v5025, %v5026
      %v5028 = vsel %vm4996, %v4701, 0.0
      %v5029 = vadd.f32 %v5027, %v5028
      %v5030 = vsel %vm4996, %v4703, 0.0
      %v5031 = vadd.f32 %v5029, %v5030
      %v5032 = vsel %vm4996, %v4705, 0.0
      %v5033 = vadd.f32 %v5031, %v5032
      %v5034 = vsel %vm4996, %v4707, 0.0
      %v5035 = vadd.f32 %v5033, %v5034
      %v5036 = vsel %vm4996, %v4709, 0.0
      %v5037 = vadd.f32 %v5035, %v5036
      %v5038 = vsel %vm4996, %v4711, 0.0
      %v5039 = vadd.f32 %v5037, %v5038
      %v5040 = vsel %vm4996, %v4713, 0.0
      %v5041 = vadd.f32 %v5039, %v5040
      %v5042 = vsel %vm4996, %v4715, 0.0
      %v5043 = vadd.f32 %v5041, %v5042
      %v5044 = vsel %vm4996, %v4717, 0.0
      %v5045 = vadd.f32 %v5043, %v5044
      %v5046 = vsel %vm4996, %v4719, 0.0
      %v5047 = vadd.f32 %v5045, %v5046
      %v5048 = vsel %vm4996, %v4721, 0.0
      %v5049 = vadd.f32 %v5047, %v5048
      %v5050 = vsel %vm4996, %v4723, 0.0
      %v5051 = vadd.f32 %v5049, %v5050
      %v5052 = vsel %vm4996, %v4725, 0.0
      %v5053 = vadd.f32 %v5051, %v5052
      %v5054 = vsel %vm4996, %v4727, 0.0
      %v5055 = vadd.f32 %v5053, %v5054
      %v5056 = vsel %vm4996, %v4729, 0.0
      %v5057 = vadd.f32 %v5055, %v5056
      %v5058 = vsel %vm4996, %v4731, 0.0
      %v5059 = vadd.f32 %v5057, %v5058
      %v5060 = vrot.slane %v5059, 4
      %v5061 = vadd.f32 %v5059, %v5060
      %v5062 = vrot.slane %v5061, 2
      %v5063 = vadd.f32 %v5061, %v5062
      %v5064 = vrot.slane %v5063, 1
      %v5065 = vadd.f32 %v5063, %v5064
      %v5066 = vmul.f32 %v4995, 0.00390625
      %v5067 = vmul.f32 %v5065, 0.00390625
      %v5070 = vcombine.low %v5066, %v5067
      %v5072 = vunpack.c.l.s4 1966171168
      %v5073 = vunpack.c.0.s8 %v5072
      %v5074 = vlaneseq
      %v5075 = vshrl.u32 %v5074, 7
      %v5076 = vsub.s32 %v5073, %v5075
      %v5077 = vrot.slane %v5070, %v5076
      %v5079 = vunpack.c.l.s4 1966171168
      %v5080 = vunpack.c.0.s8 %v5079
      %v5081 = vlaneseq
      %v5082 = vshrl.u32 %v5081, 7
      %v5083 = vsub.s32 %v5080, %v5082
      %v5084 = vrot.slane %v5077, %v5083
      %v5086 = vlaneseq
      %vm5087 = vcmp.ge.s32.totalorder %v5086, 0
      %vm5088 = vcmp.lt.s32.totalorder %v5086, 192
      %vm5089 = vmand %vm5087, %vm5088
      %5090 = vst.msk [vmem:[%s235] sm:$0x3] %vm5089, %v5084
      %p5091 = scmp.lt.s32.totalorder %s17, 1
      %s5092 = scalar_select %p5091, %s17, 1
      %s5093 = smul.addr %s5092, 64
      %s5094 = smul.addr %s5093, 4
      %s5095 = scalar_lea.vmem %s4, %s5094
      %p5096 = scmp.lt.s32.totalorder %s17, 1
      %s5097 = scalar_select %p5096, %s17, 1
      %s5098 = smul.addr %s5097, 2
      %s5099 = scalar_lea.vmem %s5, %s5098
      // Predicated region
      $region37: #{mbconv_forward.5} parent=35 // pred_check
        %p5100 = pneg %p124
      $region38: #{mbconv_forward.5} parent=35 // pred_check_branch
        %5102 = sbr.rel (%p5100) target = $region40
      $region39: #{mbconv_forward.5} parent=35 // pred_region
        _
      $region40: #{mbconv_forward.5} parent=35 // pred_fallthru
        _
      // Predicated region
      $region41: #{mbconv_forward.5} parent=35 // pred_check
        %p5103 = pneg %p150
      $region42: #{mbconv_forward.5} parent=35 // pred_check_branch
        %5105 = sbr.rel (%p5103) target = $region44
      $region43: #{mbconv_forward.5} parent=35 // pred_region
        _
      $region44: #{mbconv_forward.5} parent=35 // pred_fallthru
        _
    $region36: #{mbconv_forward.5} parent=5 // pred_fallthru
      _
    %p5106 = scmp.le.s32.totalorder 2, %s12
    // Predicated region
    $region45: #{mbconv_forward.5} parent=5 // pred_check
      %p5107 = pneg %p5106
    $region46: #{mbconv_forward.5} parent=5 // pred_check_branch
      %5109 = sbr.rel (%p5107) target = $region48
    $region47: #{mbconv_forward.5} parent=5 // pred_region
      %s5110 = ssub.s32 %s12, 2
      // Predicated region
      $region49: #{mbconv_forward.5} parent=47 // pred_check
        %p5111 = pneg %p130
      $region50: #{mbconv_forward.5} parent=47 // pred_check_branch
        %5113 = sbr.rel (%p5111) target = $region52
      $region51: #{mbconv_forward.5} parent=47 // pred_region
        %p5114 = scmp.lt.s32.totalorder %s18, 1
        %s5115 = scalar_select %p5114, %s18, 1
        %s5116 = smul.addr %s5115, 64
        %s5117 = smul.addr %s5116, 4
        %s5118 = scalar_lea.vmem %s4, %s5117
      $region52: #{mbconv_forward.5} parent=47 // pred_fallthru
        _
      // Predicated region
      $region53: #{mbconv_forward.5} parent=47 // pred_check
        %p5119 = pneg %p156
      $region54: #{mbconv_forward.5} parent=47 // pred_check_branch
        %5121 = sbr.rel (%p5119) target = $region56
      $region55: #{mbconv_forward.5} parent=47 // pred_region
        %p5122 = scmp.lt.s32.totalorder %s18, 1
        %s5123 = scalar_select %p5122, %s18, 1
        %s5124 = smul.addr %s5123, 2
        %s5125 = scalar_lea.vmem %s5, %s5124
      $region56: #{mbconv_forward.5} parent=47 // pred_fallthru
        _
    $region48: #{mbconv_forward.5} parent=5 // pred_fallthru
      _
  $region6: #{mbconv_forward.5} parent=0 // loop_footer
    %s16 = sadd.s32 1, %s12
  $region7: #{mbconv_forward.5} parent=0 // loop_footer_branch
    %11 = sbr.rel target = $region3
  $region8: #{mbconv_forward.5} parent=0 // loop_exit
    _

</llo_original>
